<compile_context>
chip_gen: v7x
topology: tpu7x:2x2x1
jax: 0.10.0
libtpu: 0.0.40
codegen_flags: <defaults>
</compile_context>

<pallas_src>
import jax
import jax.numpy as jnp
from jax import lax
from jax.experimental import pallas as pl
from jax.experimental.pallas import tpu as pltpu

N, C, H, W = 2, 64, 16, 16      # channels fixed at 64 by the module
M = N * H * W                   # 512 output pixels
K_TAPS = 9 * C                  # 576 = im2col contraction depth
K_PAD = 640                     # 5 * 128 lanes (zero weight rows in the tail)
N_PAIRS = K_PAD // 128          # 5 tap pairs
EPS = 1e-5


def _bn_train(y, gamma, beta):
    """Training-mode BatchNorm over the pixel axis of an (M, C) f32 slab.
    Two-pass (mean, then centered sum of squares) for numerical robustness."""
    mean = jnp.sum(y, axis=0, keepdims=True) * (1.0 / M)
    d = y - mean
    var = jnp.sum(d * d, axis=0, keepdims=True) * (1.0 / M)   # biased batch var
    return d * (lax.rsqrt(var + EPS) * gamma) + beta


def srgan_resblock_kernel(
    a_ref,                               # SMEM (1,1) f32 : PReLU slope
    x4_ref,                              # VMEM (N,H,W,C) f32 : input NHWC (pad fill)
    x2_ref,                              # VMEM (M,C)     f32 : same input, matmul layout
    w1_ref, b1_ref, g1_ref, be1_ref,     # (K_PAD,C) bf16, (1,C) f32 x3
    w2_ref, b2_ref, g2_ref, be2_ref,     # (K_PAD,C) bf16, (1,C) f32 x3
    out_ref,                             # VMEM (M,C) f32
    pad_ref,                             # VMEM (N,H+2,W+2,C) f32 : shared padded buf
    col_ref,                             # VMEM (M,K_PAD) bf16    : im2col matrix
):
    # One-time zeroing of the 1-pixel halo of the padded buffer.  Its interior
    # is always fully overwritten before use, and the same halo serves both convs.
    pad_ref[:, 0:1, :, :] = jnp.zeros((N, 1, W + 2, C), jnp.float32)
    pad_ref[:, H + 1:H + 2, :, :] = jnp.zeros((N, 1, W + 2, C), jnp.float32)
    pad_ref[:, :, 0:1, :] = jnp.zeros((N, H + 2, 1, C), jnp.float32)
    pad_ref[:, :, W + 1:W + 2, :] = jnp.zeros((N, H + 2, 1, C), jnp.float32)

    zero_tap = jnp.zeros((M, C), jnp.float32)

    def tap(t):
        dy, dx = t // 3, t % 3
        return pad_ref[:, dy:dy + H, dx:dx + W, :].reshape(M, C)

    def im2col_from_pad():
        # Pack the 9 shifted (M,64) taps as 5 adjacent-tap pairs so every store
        # into col_ref is a full, unmasked 128-lane write.  Pair 4 carries the
        # zero K-padding columns (they multiply zero weight rows).  Adjacent-tap
        # pairing keeps the (dy, dx, cin) column ordering, so the weight slab
        # layout is unchanged.  bf16 store halves im2col write bytes.
        for p in range(N_PAIRS):
            lo = tap(2 * p)
            hi = tap(2 * p + 1) if 2 * p + 1 < 9 else zero_tap
            slab = jnp.concatenate([lo, hi], axis=1).astype(jnp.bfloat16)
            col_ref[:, p * 128:(p + 1) * 128] = slab

    # ---------------- conv1: one (M,K_PAD) @ (K_PAD,C) bf16 MXU matmul -------
    pad_ref[:, 1:H + 1, 1:W + 1, :] = x4_ref[...]
    im2col_from_pad()
    y = jnp.dot(col_ref[...], w1_ref[...], preferred_element_type=jnp.float32)
    y = y + b1_ref[...]

    # ---------------- BatchNorm1 + PReLU (f32) --------------------------------
    y = _bn_train(y, g1_ref[...], be1_ref[...])
    a = a_ref[0, 0]
    y = jnp.where(y > 0, y, a * y)

    # ---------------- conv2 (reuse padded buffer + im2col scratch) ------------
    pad_ref[:, 1:H + 1, 1:W + 1, :] = y.reshape(N, H, W, C)
    im2col_from_pad()
    z = jnp.dot(col_ref[...], w2_ref[...], preferred_element_type=jnp.float32)
    z = z + b2_ref[...]

    # ---------------- BatchNorm2 + residual (matmul-domain layout) ------------
    z = _bn_train(z, g2_ref[...], be2_ref[...])
    out_ref[...] = x2_ref[...] + z


def _prep_conv_weight(w_oihw):
    """PyTorch (Cout,Cin,3,3) OIHW -> (K_PAD, Cout) bf16 matmul slab, rows
    ordered (dy, dx, cin), zero-padded from 576 to 640 rows."""
    w_hwio = jnp.transpose(w_oihw, (2, 3, 1, 0))            # (kh, kw, Cin, Cout)
    w_col = w_hwio.reshape(K_TAPS, C).astype(jnp.float32)
    pad = jnp.zeros((K_PAD - K_TAPS, C), jnp.float32)
    return jnp.concatenate([w_col, pad], axis=0).astype(jnp.bfloat16)


def srgan_resblock(x_nchw, params):
    """x_nchw: (N, C, H, W) f32. Returns (N, C, H, W) f32."""
    (w1, b1, g1, be1, a, w2, b2, g2, be2) = params

    x_nhwc = jnp.transpose(x_nchw, (0, 2, 3, 1)).astype(jnp.float32)
    x_2d = x_nhwc.reshape(M, C)            # free in HBM: same (n,h,w) linearization
    w1c = _prep_conv_weight(w1)
    w2c = _prep_conv_weight(w2)

    vmem = pl.BlockSpec(memory_space=pltpu.MemorySpace.VMEM)
    smem = pl.BlockSpec(memory_space=pltpu.MemorySpace.SMEM)

    flops = 2 * (2 * M * K_TAPS * C)                          # two convs
    bytes_accessed = (3 * M * C) * 4 + 2 * (K_PAD * C) * 2 + 8 * C * 4 + 4

    out_2d = pl.pallas_call(
        srgan_resblock_kernel,
        out_shape=jax.ShapeDtypeStruct((M, C), jnp.float32),
        in_specs=[smem] + [vmem] * 10,
        out_specs=vmem,
        scratch_shapes=[
            pltpu.VMEM((N, H + 2, W + 2, C), jnp.float32),    # shared padded buffer
            pltpu.VMEM((M, K_PAD), jnp.bfloat16),             # im2col matrix (bf16)
        ],
        cost_estimate=pl.CostEstimate(flops=flops, transcendentals=0,
                                      bytes_accessed=bytes_accessed),
    )(a, x_nhwc, x_2d, w1c, b1, g1, be1, w2c, b2, g2, be2)

    out_nhwc = out_2d.reshape(N, H, W, C)
    return jnp.transpose(out_nhwc, (0, 3, 1, 2))


def init_params(key):
    k1, k2, k3, k4 = jax.random.split(key, 4)
    # Conv weights in PyTorch OIHW layout (Cout, Cin, kh, kw).
    w1 = jax.random.normal(k1, (C, C, 3, 3), jnp.float32) * 0.05
    w2 = jax.random.normal(k2, (C, C, 3, 3), jnp.float32) * 0.05
    b1 = (jax.random.uniform(k3, (1, C), jnp.float32) - 0.5) * 0.1
    b2 = (jax.random.uniform(k4, (1, C), jnp.float32) - 0.5) * 0.1
    g1 = jnp.ones((1, C), jnp.float32)     # BN gamma (torch default)
    be1 = jnp.zeros((1, C), jnp.float32)   # BN beta
    g2 = jnp.ones((1, C), jnp.float32)
    be2 = jnp.zeros((1, C), jnp.float32)
    a = jnp.full((1, 1), 0.25, jnp.float32)  # PReLU default slope
    return (w1, b1, g1, be1, a, w2, b2, g2, be2)


def reference(x_nchw, params):
    """Pure-JAX f32 reference with identical semantics (NCHW, lax.conv, OIHW)."""
    (w1, b1, g1, be1, a, w2, b2, g2, be2) = params

    def conv(x, w_oihw, b):
        y = lax.conv_general_dilated(x, w_oihw, (1, 1), ((1, 1), (1, 1)),
                                     dimension_numbers=("NCHW", "OIHW", "NCHW"))
        return y + b.reshape(1, C, 1, 1)

    def bn(y, gamma, beta):
        mean = jnp.mean(y, axis=(0, 2, 3), keepdims=True)
        var = jnp.mean((y - mean) ** 2, axis=(0, 2, 3), keepdims=True)
        return (y - mean) * lax.rsqrt(var + EPS) * gamma.reshape(1, C, 1, 1) \
               + beta.reshape(1, C, 1, 1)

    h = bn(conv(x_nchw, w1, b1), g1, be1)
    h = jnp.where(h > 0, h, a[0, 0] * h)
    h = bn(conv(h, w2, b2), g2, be2)
    return x_nchw + h


if __name__ == "__main__":
    key = jax.random.PRNGKey(0)
    kx, kp = jax.random.split(key)
    x = jax.random.normal(kx, (N, C, H, W), jnp.float32)
    params = init_params(kp)

    out = jax.jit(srgan_resblock)(x, params)
    out = jax.block_until_ready(out)

    ref = jax.block_until_ready(reference(x, params))
    assert out.shape == (N, C, H, W)
    # bf16 MXU operands (f32 accumulation, f32 BN stats) bound the error well
    # inside this tolerance for unit-scale inputs.
    assert jnp.allclose(out, ref, atol=3e-2, rtol=1e-2), \
        f"max abs err {float(jnp.max(jnp.abs(out - ref)))}"

    print("KERNEL_OK")
</pallas_src>

<mosaic_0001>
module attributes {stable_mosaic.version = 11 : i64} {
  func.func @srgan_resblock_kernel(%arg0: memref<1x1xf32, #tpu.memory_space<smem>>, %arg1: memref<2x16x16x64xf32, #tpu.memory_space<vmem>>, %arg2: memref<512x64xf32, #tpu.memory_space<vmem>>, %arg3: memref<640x64xbf16, #tpu.memory_space<vmem>>, %arg4: memref<1x64xf32, #tpu.memory_space<vmem>>, %arg5: memref<1x64xf32, #tpu.memory_space<vmem>>, %arg6: memref<1x64xf32, #tpu.memory_space<vmem>>, %arg7: memref<640x64xbf16, #tpu.memory_space<vmem>>, %arg8: memref<1x64xf32, #tpu.memory_space<vmem>>, %arg9: memref<1x64xf32, #tpu.memory_space<vmem>>, %arg10: memref<1x64xf32, #tpu.memory_space<vmem>>, %arg11: memref<512x64xf32, #tpu.memory_space<vmem>>, %arg12: memref<2x18x18x64xf32, #tpu.memory_space<vmem>>, %arg13: memref<512x640xbf16, #tpu.memory_space<vmem>>) attributes {dimension_semantics = [], scalar_prefetch = 0 : i64, scratch_operands = 2 : i64, tpu.core_type = #tpu.core_type<tc>} {
    %cst = arith.constant 0.000000e+00 : f32
    %0 = vector.broadcast %cst : f32 to vector<2x1x18x64xf32>
    %c0 = arith.constant 0 : index
    %c0_0 = arith.constant 0 : index
    %c0_1 = arith.constant 0 : index
    %c0_2 = arith.constant 0 : index
    %1 = vector.load %arg12[%c0, %c0_0, %c0_1, %c0_2] : memref<2x18x18x64xf32, #tpu.memory_space<vmem>>, vector<2x1x18x64xf32>
    tpu.vector_store %arg12[%c0, %c0_0, %c0_1, %c0_2], %0 {strides = array<i32>} : memref<2x18x18x64xf32, #tpu.memory_space<vmem>>, vector<2x1x18x64xf32>,
    %cst_3 = arith.constant 0.000000e+00 : f32
    %2 = vector.broadcast %cst_3 : f32 to vector<2x1x18x64xf32>
    %c0_4 = arith.constant 0 : index
    %c17 = arith.constant 17 : index
    %c0_5 = arith.constant 0 : index
    %c0_6 = arith.constant 0 : index
    %3 = vector.load %arg12[%c0_4, %c17, %c0_5, %c0_6] : memref<2x18x18x64xf32, #tpu.memory_space<vmem>>, vector<2x1x18x64xf32>
    tpu.vector_store %arg12[%c0_4, %c17, %c0_5, %c0_6], %2 {strides = array<i32>} : memref<2x18x18x64xf32, #tpu.memory_space<vmem>>, vector<2x1x18x64xf32>,
    %cst_7 = arith.constant 0.000000e+00 : f32
    %4 = vector.broadcast %cst_7 : f32 to vector<2x18x1x64xf32>
    %c0_8 = arith.constant 0 : index
    %c0_9 = arith.constant 0 : index
    %c0_10 = arith.constant 0 : index
    %c0_11 = arith.constant 0 : index
    %5 = vector.load %arg12[%c0_8, %c0_9, %c0_10, %c0_11] : memref<2x18x18x64xf32, #tpu.memory_space<vmem>>, vector<2x18x1x64xf32>
    tpu.vector_store %arg12[%c0_8, %c0_9, %c0_10, %c0_11], %4 {strides = array<i32>} : memref<2x18x18x64xf32, #tpu.memory_space<vmem>>, vector<2x18x1x64xf32>,
    %cst_12 = arith.constant 0.000000e+00 : f32
    %6 = vector.broadcast %cst_12 : f32 to vector<2x18x1x64xf32>
    %c0_13 = arith.constant 0 : index
    %c0_14 = arith.constant 0 : index
    %c17_15 = arith.constant 17 : index
    %c0_16 = arith.constant 0 : index
    %7 = vector.load %arg12[%c0_13, %c0_14, %c17_15, %c0_16] : memref<2x18x18x64xf32, #tpu.memory_space<vmem>>, vector<2x18x1x64xf32>
    tpu.vector_store %arg12[%c0_13, %c0_14, %c17_15, %c0_16], %6 {strides = array<i32>} : memref<2x18x18x64xf32, #tpu.memory_space<vmem>>, vector<2x18x1x64xf32>,
    %cst_17 = arith.constant 0.000000e+00 : f32
    %8 = vector.broadcast %cst_17 : f32 to vector<512x64xf32>
    %c0_18 = arith.constant 0 : index
    %c0_19 = arith.constant 0 : index
    %c0_20 = arith.constant 0 : index
    %c0_21 = arith.constant 0 : index
    %9 = vector.load %arg1[%c0_18, %c0_19, %c0_20, %c0_21] : memref<2x16x16x64xf32, #tpu.memory_space<vmem>>, vector<2x16x16x64xf32>
    %c0_22 = arith.constant 0 : index
    %c1 = arith.constant 1 : index
    %c1_23 = arith.constant 1 : index
    %c0_24 = arith.constant 0 : index
    %10 = vector.load %arg12[%c0_22, %c1, %c1_23, %c0_24] : memref<2x18x18x64xf32, #tpu.memory_space<vmem>>, vector<2x16x16x64xf32>
    tpu.vector_store %arg12[%c0_22, %c1, %c1_23, %c0_24], %9 {strides = array<i32>} : memref<2x18x18x64xf32, #tpu.memory_space<vmem>>, vector<2x16x16x64xf32>,
    %c0_25 = arith.constant 0 : index
    %c0_26 = arith.constant 0 : index
    %c0_27 = arith.constant 0 : index
    %c0_28 = arith.constant 0 : index
    %11 = vector.load %arg12[%c0_25, %c0_26, %c0_27, %c0_28] : memref<2x18x18x64xf32, #tpu.memory_space<vmem>>, vector<2x16x16x64xf32>
    %12 = vector.shape_cast %11 : vector<2x16x16x64xf32> to vector<512x64xf32>
    %c0_29 = arith.constant 0 : index
    %c0_30 = arith.constant 0 : index
    %c1_31 = arith.constant 1 : index
    %c0_32 = arith.constant 0 : index
    %13 = vector.load %arg12[%c0_29, %c0_30, %c1_31, %c0_32] : memref<2x18x18x64xf32, #tpu.memory_space<vmem>>, vector<2x16x16x64xf32>
    %14 = vector.shape_cast %13 : vector<2x16x16x64xf32> to vector<512x64xf32>
    %15 = tpu.concatenate %12, %14 in 1 : vector<512x64xf32>, vector<512x64xf32> -> vector<512x128xf32>
    %16 = arith.truncf %15 : vector<512x128xf32> to vector<512x128xbf16>
    %c0_33 = arith.constant 0 : index
    %c0_34 = arith.constant 0 : index
    %17 = vector.load %arg13[%c0_33, %c0_34] : memref<512x640xbf16, #tpu.memory_space<vmem>>, vector<512x128xbf16>
    tpu.vector_store %arg13[%c0_33, %c0_34], %16 {strides = array<i32>} : memref<512x640xbf16, #tpu.memory_space<vmem>>, vector<512x128xbf16>,
    %c0_35 = arith.constant 0 : index
    %c0_36 = arith.constant 0 : index
    %c2 = arith.constant 2 : index
    %c0_37 = arith.constant 0 : index
    %18 = vector.load %arg12[%c0_35, %c0_36, %c2, %c0_37] : memref<2x18x18x64xf32, #tpu.memory_space<vmem>>, vector<2x16x16x64xf32>
    %19 = vector.shape_cast %18 : vector<2x16x16x64xf32> to vector<512x64xf32>
    %c0_38 = arith.constant 0 : index
    %c1_39 = arith.constant 1 : index
    %c0_40 = arith.constant 0 : index
    %c0_41 = arith.constant 0 : index
    %20 = vector.load %arg12[%c0_38, %c1_39, %c0_40, %c0_41] : memref<2x18x18x64xf32, #tpu.memory_space<vmem>>, vector<2x16x16x64xf32>
    %21 = vector.shape_cast %20 : vector<2x16x16x64xf32> to vector<512x64xf32>
    %22 = tpu.concatenate %19, %21 in 1 : vector<512x64xf32>, vector<512x64xf32> -> vector<512x128xf32>
    %23 = arith.truncf %22 : vector<512x128xf32> to vector<512x128xbf16>
    %c0_42 = arith.constant 0 : index
    %c128 = arith.constant 128 : index
    %24 = vector.load %arg13[%c0_42, %c128] : memref<512x640xbf16, #tpu.memory_space<vmem>>, vector<512x128xbf16>
    tpu.vector_store %arg13[%c0_42, %c128], %23 {strides = array<i32>} : memref<512x640xbf16, #tpu.memory_space<vmem>>, vector<512x128xbf16>,
    %c0_43 = arith.constant 0 : index
    %c1_44 = arith.constant 1 : index
    %c1_45 = arith.constant 1 : index
    %c0_46 = arith.constant 0 : index
    %25 = vector.load %arg12[%c0_43, %c1_44, %c1_45, %c0_46] : memref<2x18x18x64xf32, #tpu.memory_space<vmem>>, vector<2x16x16x64xf32>
    %26 = vector.shape_cast %25 : vector<2x16x16x64xf32> to vector<512x64xf32>
    %c0_47 = arith.constant 0 : index
    %c1_48 = arith.constant 1 : index
    %c2_49 = arith.constant 2 : index
    %c0_50 = arith.constant 0 : index
    %27 = vector.load %arg12[%c0_47, %c1_48, %c2_49, %c0_50] : memref<2x18x18x64xf32, #tpu.memory_space<vmem>>, vector<2x16x16x64xf32>
    %28 = vector.shape_cast %27 : vector<2x16x16x64xf32> to vector<512x64xf32>
    %29 = tpu.concatenate %26, %28 in 1 : vector<512x64xf32>, vector<512x64xf32> -> vector<512x128xf32>
    %30 = arith.truncf %29 : vector<512x128xf32> to vector<512x128xbf16>
    %c0_51 = arith.constant 0 : index
    %c256 = arith.constant 256 : index
    %31 = vector.load %arg13[%c0_51, %c256] : memref<512x640xbf16, #tpu.memory_space<vmem>>, vector<512x128xbf16>
    tpu.vector_store %arg13[%c0_51, %c256], %30 {strides = array<i32>} : memref<512x640xbf16, #tpu.memory_space<vmem>>, vector<512x128xbf16>,
    %c0_52 = arith.constant 0 : index
    %c2_53 = arith.constant 2 : index
    %c0_54 = arith.constant 0 : index
    %c0_55 = arith.constant 0 : index
    %32 = vector.load %arg12[%c0_52, %c2_53, %c0_54, %c0_55] : memref<2x18x18x64xf32, #tpu.memory_space<vmem>>, vector<2x16x16x64xf32>
    %33 = vector.shape_cast %32 : vector<2x16x16x64xf32> to vector<512x64xf32>
    %c0_56 = arith.constant 0 : index
    %c2_57 = arith.constant 2 : index
    %c1_58 = arith.constant 1 : index
    %c0_59 = arith.constant 0 : index
    %34 = vector.load %arg12[%c0_56, %c2_57, %c1_58, %c0_59] : memref<2x18x18x64xf32, #tpu.memory_space<vmem>>, vector<2x16x16x64xf32>
    %35 = vector.shape_cast %34 : vector<2x16x16x64xf32> to vector<512x64xf32>
    %36 = tpu.concatenate %33, %35 in 1 : vector<512x64xf32>, vector<512x64xf32> -> vector<512x128xf32>
    %37 = arith.truncf %36 : vector<512x128xf32> to vector<512x128xbf16>
    %c0_60 = arith.constant 0 : index
    %c384 = arith.constant 384 : index
    %38 = vector.load %arg13[%c0_60, %c384] : memref<512x640xbf16, #tpu.memory_space<vmem>>, vector<512x128xbf16>
    tpu.vector_store %arg13[%c0_60, %c384], %37 {strides = array<i32>} : memref<512x640xbf16, #tpu.memory_space<vmem>>, vector<512x128xbf16>,
    %c0_61 = arith.constant 0 : index
    %c2_62 = arith.constant 2 : index
    %c2_63 = arith.constant 2 : index
    %c0_64 = arith.constant 0 : index
    %39 = vector.load %arg12[%c0_61, %c2_62, %c2_63, %c0_64] : memref<2x18x18x64xf32, #tpu.memory_space<vmem>>, vector<2x16x16x64xf32>
    %40 = vector.shape_cast %39 : vector<2x16x16x64xf32> to vector<512x64xf32>
    %41 = tpu.concatenate %40, %8 in 1 : vector<512x64xf32>, vector<512x64xf32> -> vector<512x128xf32>
    %42 = arith.truncf %41 : vector<512x128xf32> to vector<512x128xbf16>
    %c0_65 = arith.constant 0 : index
    %c512 = arith.constant 512 : index
    %43 = vector.load %arg13[%c0_65, %c512] : memref<512x640xbf16, #tpu.memory_space<vmem>>, vector<512x128xbf16>
    tpu.vector_store %arg13[%c0_65, %c512], %42 {strides = array<i32>} : memref<512x640xbf16, #tpu.memory_space<vmem>>, vector<512x128xbf16>,
    %c0_66 = arith.constant 0 : index
    %c0_67 = arith.constant 0 : index
    %44 = vector.load %arg13[%c0_66, %c0_67] : memref<512x640xbf16, #tpu.memory_space<vmem>>, vector<512x640xbf16>
    %c0_68 = arith.constant 0 : index
    %c0_69 = arith.constant 0 : index
    %45 = vector.load %arg3[%c0_68, %c0_69] : memref<640x64xbf16, #tpu.memory_space<vmem>>, vector<640x64xbf16>
    %cst_70 = arith.constant dense<0.000000e+00> : vector<512x64xf32>
    %46 = tpu.matmul %44, %45, %cst_70 {dimension_numbers = #tpu.dot_dimension_numbers<[1], [0], [0], [1], [0, 0, 1, 1], [], []>} : vector<512x640xbf16>, vector<640x64xbf16>, vector<512x64xf32> -> vector<512x64xf32>
    %c0_71 = arith.constant 0 : index
    %c0_72 = arith.constant 0 : index
    %47 = vector.load %arg4[%c0_71, %c0_72] : memref<1x64xf32, #tpu.memory_space<vmem>>, vector<1x64xf32>
    %48 = vector.broadcast %47 : vector<1x64xf32> to vector<512x64xf32>
    %49 = arith.addf %46, %48 : vector<512x64xf32>
    %c0_73 = arith.constant 0 : index
    %c0_74 = arith.constant 0 : index
    %50 = vector.load %arg5[%c0_73, %c0_74] : memref<1x64xf32, #tpu.memory_space<vmem>>, vector<1x64xf32>
    %c0_75 = arith.constant 0 : index
    %c0_76 = arith.constant 0 : index
    %51 = vector.load %arg6[%c0_75, %c0_76] : memref<1x64xf32, #tpu.memory_space<vmem>>, vector<1x64xf32>
    %cst_77 = arith.constant dense<0.000000e+00> : vector<64xf32>
    %52 = vector.multi_reduction <add>, %49, %cst_77 [0] : vector<512x64xf32> to vector<64xf32>
    %53 = vector.shape_cast %52 : vector<64xf32> to vector<1x64xf32>
    %cst_78 = arith.constant 0.001953125 : f32
    %54 = vector.broadcast %cst_78 : f32 to vector<1x64xf32>
    %55 = arith.mulf %53, %54 : vector<1x64xf32>
    %56 = vector.broadcast %55 : vector<1x64xf32> to vector<512x64xf32>
    %57 = arith.subf %49, %56 : vector<512x64xf32>
    %58 = arith.mulf %57, %57 : vector<512x64xf32>
    %cst_79 = arith.constant dense<0.000000e+00> : vector<64xf32>
    %59 = vector.multi_reduction <add>, %58, %cst_79 [0] : vector<512x64xf32> to vector<64xf32>
    %60 = vector.shape_cast %59 : vector<64xf32> to vector<1x64xf32>
    %cst_80 = arith.constant 0.001953125 : f32
    %61 = vector.broadcast %cst_80 : f32 to vector<1x64xf32>
    %62 = arith.mulf %60, %61 : vector<1x64xf32>
    %cst_81 = arith.constant 9.99999974E-6 : f32
    %63 = vector.broadcast %cst_81 : f32 to vector<1x64xf32>
    %64 = arith.addf %62, %63 : vector<1x64xf32>
    %65 = math.rsqrt %64 : vector<1x64xf32>
    %66 = arith.mulf %65, %50 : vector<1x64xf32>
    %67 = vector.broadcast %66 : vector<1x64xf32> to vector<512x64xf32>
    %68 = arith.mulf %57, %67 : vector<512x64xf32>
    %69 = vector.broadcast %51 : vector<1x64xf32> to vector<512x64xf32>
    %70 = arith.addf %68, %69 : vector<512x64xf32>
    %c0_82 = arith.constant 0 : index
    %c0_83 = arith.constant 0 : index
    %71 = memref.load %arg0[%c0_82, %c0_83] : memref<1x1xf32, #tpu.memory_space<smem>>
    %cst_84 = arith.constant 0.000000e+00 : f32
    %72 = vector.broadcast %cst_84 : f32 to vector<512x64xf32>
    %73 = arith.cmpf ogt, %70, %72 : vector<512x64xf32>
    %74 = vector.broadcast %71 : f32 to vector<512x64xf32>
    %75 = arith.mulf %74, %70 : vector<512x64xf32>
    %76 = arith.select %73, %70, %75 : vector<512x64xi1>, vector<512x64xf32>
    %77 = vector.shape_cast %76 : vector<512x64xf32> to vector<2x16x16x64xf32>
    %c0_85 = arith.constant 0 : index
    %c1_86 = arith.constant 1 : index
    %c1_87 = arith.constant 1 : index
    %c0_88 = arith.constant 0 : index
    %78 = vector.load %arg12[%c0_85, %c1_86, %c1_87, %c0_88] : memref<2x18x18x64xf32, #tpu.memory_space<vmem>>, vector<2x16x16x64xf32>
    tpu.vector_store %arg12[%c0_85, %c1_86, %c1_87, %c0_88], %77 {strides = array<i32>} : memref<2x18x18x64xf32, #tpu.memory_space<vmem>>, vector<2x16x16x64xf32>,
    %c0_89 = arith.constant 0 : index
    %c0_90 = arith.constant 0 : index
    %c0_91 = arith.constant 0 : index
    %c0_92 = arith.constant 0 : index
    %79 = vector.load %arg12[%c0_89, %c0_90, %c0_91, %c0_92] : memref<2x18x18x64xf32, #tpu.memory_space<vmem>>, vector<2x16x16x64xf32>
    %80 = vector.shape_cast %79 : vector<2x16x16x64xf32> to vector<512x64xf32>
    %c0_93 = arith.constant 0 : index
    %c0_94 = arith.constant 0 : index
    %c1_95 = arith.constant 1 : index
    %c0_96 = arith.constant 0 : index
    %81 = vector.load %arg12[%c0_93, %c0_94, %c1_95, %c0_96] : memref<2x18x18x64xf32, #tpu.memory_space<vmem>>, vector<2x16x16x64xf32>
    %82 = vector.shape_cast %81 : vector<2x16x16x64xf32> to vector<512x64xf32>
    %83 = tpu.concatenate %80, %82 in 1 : vector<512x64xf32>, vector<512x64xf32> -> vector<512x128xf32>
    %84 = arith.truncf %83 : vector<512x128xf32> to vector<512x128xbf16>
    %c0_97 = arith.constant 0 : index
    %c0_98 = arith.constant 0 : index
    %85 = vector.load %arg13[%c0_97, %c0_98] : memref<512x640xbf16, #tpu.memory_space<vmem>>, vector<512x128xbf16>
    tpu.vector_store %arg13[%c0_97, %c0_98], %84 {strides = array<i32>} : memref<512x640xbf16, #tpu.memory_space<vmem>>, vector<512x128xbf16>,
    %c0_99 = arith.constant 0 : index
    %c0_100 = arith.constant 0 : index
    %c2_101 = arith.constant 2 : index
    %c0_102 = arith.constant 0 : index
    %86 = vector.load %arg12[%c0_99, %c0_100, %c2_101, %c0_102] : memref<2x18x18x64xf32, #tpu.memory_space<vmem>>, vector<2x16x16x64xf32>
    %87 = vector.shape_cast %86 : vector<2x16x16x64xf32> to vector<512x64xf32>
    %c0_103 = arith.constant 0 : index
    %c1_104 = arith.constant 1 : index
    %c0_105 = arith.constant 0 : index
    %c0_106 = arith.constant 0 : index
    %88 = vector.load %arg12[%c0_103, %c1_104, %c0_105, %c0_106] : memref<2x18x18x64xf32, #tpu.memory_space<vmem>>, vector<2x16x16x64xf32>
    %89 = vector.shape_cast %88 : vector<2x16x16x64xf32> to vector<512x64xf32>
    %90 = tpu.concatenate %87, %89 in 1 : vector<512x64xf32>, vector<512x64xf32> -> vector<512x128xf32>
    %91 = arith.truncf %90 : vector<512x128xf32> to vector<512x128xbf16>
    %c0_107 = arith.constant 0 : index
    %c128_108 = arith.constant 128 : index
    %92 = vector.load %arg13[%c0_107, %c128_108] : memref<512x640xbf16, #tpu.memory_space<vmem>>, vector<512x128xbf16>
    tpu.vector_store %arg13[%c0_107, %c128_108], %91 {strides = array<i32>} : memref<512x640xbf16, #tpu.memory_space<vmem>>, vector<512x128xbf16>,
    %c0_109 = arith.constant 0 : index
    %c1_110 = arith.constant 1 : index
    %c1_111 = arith.constant 1 : index
    %c0_112 = arith.constant 0 : index
    %93 = vector.load %arg12[%c0_109, %c1_110, %c1_111, %c0_112] : memref<2x18x18x64xf32, #tpu.memory_space<vmem>>, vector<2x16x16x64xf32>
    %94 = vector.shape_cast %93 : vector<2x16x16x64xf32> to vector<512x64xf32>
    %c0_113 = arith.constant 0 : index
    %c1_114 = arith.constant 1 : index
    %c2_115 = arith.constant 2 : index
    %c0_116 = arith.constant 0 : index
    %95 = vector.load %arg12[%c0_113, %c1_114, %c2_115, %c0_116] : memref<2x18x18x64xf32, #tpu.memory_space<vmem>>, vector<2x16x16x64xf32>
    %96 = vector.shape_cast %95 : vector<2x16x16x64xf32> to vector<512x64xf32>
    %97 = tpu.concatenate %94, %96 in 1 : vector<512x64xf32>, vector<512x64xf32> -> vector<512x128xf32>
    %98 = arith.truncf %97 : vector<512x128xf32> to vector<512x128xbf16>
    %c0_117 = arith.constant 0 : index
    %c256_118 = arith.constant 256 : index
    %99 = vector.load %arg13[%c0_117, %c256_118] : memref<512x640xbf16, #tpu.memory_space<vmem>>, vector<512x128xbf16>
    tpu.vector_store %arg13[%c0_117, %c256_118], %98 {strides = array<i32>} : memref<512x640xbf16, #tpu.memory_space<vmem>>, vector<512x128xbf16>,
    %c0_119 = arith.constant 0 : index
    %c2_120 = arith.constant 2 : index
    %c0_121 = arith.constant 0 : index
    %c0_122 = arith.constant 0 : index
    %100 = vector.load %arg12[%c0_119, %c2_120, %c0_121, %c0_122] : memref<2x18x18x64xf32, #tpu.memory_space<vmem>>, vector<2x16x16x64xf32>
    %101 = vector.shape_cast %100 : vector<2x16x16x64xf32> to vector<512x64xf32>
    %c0_123 = arith.constant 0 : index
    %c2_124 = arith.constant 2 : index
    %c1_125 = arith.constant 1 : index
    %c0_126 = arith.constant 0 : index
    %102 = vector.load %arg12[%c0_123, %c2_124, %c1_125, %c0_126] : memref<2x18x18x64xf32, #tpu.memory_space<vmem>>, vector<2x16x16x64xf32>
    %103 = vector.shape_cast %102 : vector<2x16x16x64xf32> to vector<512x64xf32>
    %104 = tpu.concatenate %101, %103 in 1 : vector<512x64xf32>, vector<512x64xf32> -> vector<512x128xf32>
    %105 = arith.truncf %104 : vector<512x128xf32> to vector<512x128xbf16>
    %c0_127 = arith.constant 0 : index
    %c384_128 = arith.constant 384 : index
    %106 = vector.load %arg13[%c0_127, %c384_128] : memref<512x640xbf16, #tpu.memory_space<vmem>>, vector<512x128xbf16>
    tpu.vector_store %arg13[%c0_127, %c384_128], %105 {strides = array<i32>} : memref<512x640xbf16, #tpu.memory_space<vmem>>, vector<512x128xbf16>,
    %c0_129 = arith.constant 0 : index
    %c2_130 = arith.constant 2 : index
    %c2_131 = arith.constant 2 : index
    %c0_132 = arith.constant 0 : index
    %107 = vector.load %arg12[%c0_129, %c2_130, %c2_131, %c0_132] : memref<2x18x18x64xf32, #tpu.memory_space<vmem>>, vector<2x16x16x64xf32>
    %108 = vector.shape_cast %107 : vector<2x16x16x64xf32> to vector<512x64xf32>
    %109 = tpu.concatenate %108, %8 in 1 : vector<512x64xf32>, vector<512x64xf32> -> vector<512x128xf32>
    %110 = arith.truncf %109 : vector<512x128xf32> to vector<512x128xbf16>
    %c0_133 = arith.constant 0 : index
    %c512_134 = arith.constant 512 : index
    %111 = vector.load %arg13[%c0_133, %c512_134] : memref<512x640xbf16, #tpu.memory_space<vmem>>, vector<512x128xbf16>
    tpu.vector_store %arg13[%c0_133, %c512_134], %110 {strides = array<i32>} : memref<512x640xbf16, #tpu.memory_space<vmem>>, vector<512x128xbf16>,
    %c0_135 = arith.constant 0 : index
    %c0_136 = arith.constant 0 : index
    %112 = vector.load %arg13[%c0_135, %c0_136] : memref<512x640xbf16, #tpu.memory_space<vmem>>, vector<512x640xbf16>
    %c0_137 = arith.constant 0 : index
    %c0_138 = arith.constant 0 : index
    %113 = vector.load %arg7[%c0_137, %c0_138] : memref<640x64xbf16, #tpu.memory_space<vmem>>, vector<640x64xbf16>
    %cst_139 = arith.constant dense<0.000000e+00> : vector<512x64xf32>
    %114 = tpu.matmul %112, %113, %cst_139 {dimension_numbers = #tpu.dot_dimension_numbers<[1], [0], [0], [1], [0, 0, 1, 1], [], []>} : vector<512x640xbf16>, vector<640x64xbf16>, vector<512x64xf32> -> vector<512x64xf32>
    %c0_140 = arith.constant 0 : index
    %c0_141 = arith.constant 0 : index
    %115 = vector.load %arg8[%c0_140, %c0_141] : memref<1x64xf32, #tpu.memory_space<vmem>>, vector<1x64xf32>
    %116 = vector.broadcast %115 : vector<1x64xf32> to vector<512x64xf32>
    %117 = arith.addf %114, %116 : vector<512x64xf32>
    %c0_142 = arith.constant 0 : index
    %c0_143 = arith.constant 0 : index
    %118 = vector.load %arg9[%c0_142, %c0_143] : memref<1x64xf32, #tpu.memory_space<vmem>>, vector<1x64xf32>
    %c0_144 = arith.constant 0 : index
    %c0_145 = arith.constant 0 : index
    %119 = vector.load %arg10[%c0_144, %c0_145] : memref<1x64xf32, #tpu.memory_space<vmem>>, vector<1x64xf32>
    %cst_146 = arith.constant dense<0.000000e+00> : vector<64xf32>
    %120 = vector.multi_reduction <add>, %117, %cst_146 [0] : vector<512x64xf32> to vector<64xf32>
    %121 = vector.shape_cast %120 : vector<64xf32> to vector<1x64xf32>
    %cst_147 = arith.constant 0.001953125 : f32
    %122 = vector.broadcast %cst_147 : f32 to vector<1x64xf32>
    %123 = arith.mulf %121, %122 : vector<1x64xf32>
    %124 = vector.broadcast %123 : vector<1x64xf32> to vector<512x64xf32>
    %125 = arith.subf %117, %124 : vector<512x64xf32>
    %126 = arith.mulf %125, %125 : vector<512x64xf32>
    %cst_148 = arith.constant dense<0.000000e+00> : vector<64xf32>
    %127 = vector.multi_reduction <add>, %126, %cst_148 [0] : vector<512x64xf32> to vector<64xf32>
    %128 = vector.shape_cast %127 : vector<64xf32> to vector<1x64xf32>
    %cst_149 = arith.constant 0.001953125 : f32
    %129 = vector.broadcast %cst_149 : f32 to vector<1x64xf32>
    %130 = arith.mulf %128, %129 : vector<1x64xf32>
    %cst_150 = arith.constant 9.99999974E-6 : f32
    %131 = vector.broadcast %cst_150 : f32 to vector<1x64xf32>
    %132 = arith.addf %130, %131 : vector<1x64xf32>
    %133 = math.rsqrt %132 : vector<1x64xf32>
    %134 = arith.mulf %133, %118 : vector<1x64xf32>
    %135 = vector.broadcast %134 : vector<1x64xf32> to vector<512x64xf32>
    %136 = arith.mulf %125, %135 : vector<512x64xf32>
    %137 = vector.broadcast %119 : vector<1x64xf32> to vector<512x64xf32>
    %138 = arith.addf %136, %137 : vector<512x64xf32>
    %c0_151 = arith.constant 0 : index
    %c0_152 = arith.constant 0 : index
    %139 = vector.load %arg2[%c0_151, %c0_152] : memref<512x64xf32, #tpu.memory_space<vmem>>, vector<512x64xf32>
    %140 = arith.addf %139, %138 : vector<512x64xf32>
    %c0_153 = arith.constant 0 : index
    %c0_154 = arith.constant 0 : index
    %141 = vector.load %arg11[%c0_153, %c0_154] : memref<512x64xf32, #tpu.memory_space<vmem>>, vector<512x64xf32>
    tpu.vector_store %arg11[%c0_153, %c0_154], %140 {strides = array<i32>} : memref<512x64xf32, #tpu.memory_space<vmem>>, vector<512x64xf32>,
    return
  }
}

</mosaic_0001>

<llo_original>
// kernel: srgan_resblock.1
$region0: #{srgan_resblock.1}
  #allocation0 [shape = 'u32[]', space=smem, size = 0x4, offset = 0x4, fixed_abs, tag = 'smem constant byte address 0x4 - core index']
  #allocation1 [shape = 'u32[144,128]{1,0:T(1,128)}', space=vmem, size = 0x12000, scoped, tag = 'internal scratch']
  #allocation2 [shape = 'f32[2,18,18,64]{3,2,1,0:T(8,128)}', space=vmem, size = 0x6c000, scoped, tag = 'scratch operand']
  #allocation3 [shape = 'bf16[512,640]{1,0:T(16,128)(2,1)}', space=vmem, size = 0xa0000, scoped, tag = 'scratch operand']
  #allocation4 [shape = 'f32[1,1]{1,0:T(1,128)S(6)}', space=smem, size = 0x200, scoped, tag = 'scoped memory for srgan_resblock.1']
  %s0 = inlined_call_operand.<no memory space> [shape: f32[1,1], index: 0, kind: input, shape index: {}]
  %s1 = inlined_call_operand.vmem [shape: f32[2,16,16,64], index: 1, kind: input, shape index: {}, may-alias: {1,2}]
  %s2 = inlined_call_operand.vmem [shape: f32[512,64], index: 2, kind: input, shape index: {}, may-alias: {1,2}]
  %s3 = inlined_call_operand.vmem [shape: bf16[640,64], index: 3, kind: input, shape index: {}]
  %s4 = inlined_call_operand.vmem [shape: f32[1,64], index: 4, kind: input, shape index: {}]
  %s5 = inlined_call_operand.vmem [shape: f32[1,64], index: 5, kind: input, shape index: {}]
  %s6 = inlined_call_operand.vmem [shape: f32[1,64], index: 6, kind: input, shape index: {}]
  %s7 = inlined_call_operand.vmem [shape: bf16[640,64], index: 7, kind: input, shape index: {}]
  %s8 = inlined_call_operand.vmem [shape: f32[1,64], index: 8, kind: input, shape index: {}]
  %s9 = inlined_call_operand.vmem [shape: f32[1,64], index: 9, kind: input, shape index: {}]
  %s10 = inlined_call_operand.vmem [shape: f32[1,64], index: 10, kind: input, shape index: {}]
  %s11 = inlined_call_operand.hbm [shape: f32[512,64], index: 11, kind: output, shape index: {}]
  %s12 = sld [smem:[#allocation0]]
  $region54: #{srgan_resblock.1} parent=0
    _
  %s14 = ssub.s32 1, %s12
  %s15 = scalar_select 0, %s14, %s12
  %16 = sst [smem:[#allocation4]] %s0
  $region1: #{srgan_resblock.1} parent=0
    #allocation5 [shape = 'u8[262144]{0}', space=vmem, size = 0x40000, scoped, tag = 'output window, operand 0, single buffered']
    #allocation6 [shape = 's32[1]{0}', space=sflag, size = 0x4, scoped, tag = 'scoped memory for srgan_resblock.1']
    %17 = vsyncpa [#allocation6], 0
    // Predicated region
    $region2: #{srgan_resblock.1} parent=1 // pred_check
      _
    $region3: #{srgan_resblock.1} parent=1 // pred_check_branch
      %19 = sbr.rel (0) target = $region5
    $region4: #{srgan_resblock.1} parent=1 // pred_region
      _
    $region5: #{srgan_resblock.1} parent=1 // pred_fallthru
      _
    // Predicated region
    $region6: #{srgan_resblock.1} parent=1 // pred_check
      _
    $region7: #{srgan_resblock.1} parent=1 // pred_check_branch
      %21 = sbr.rel (0) target = $region9
    $region8: #{srgan_resblock.1} parent=1 // pred_region
      _
    $region9: #{srgan_resblock.1} parent=1 // pred_fallthru
      _
    // Predicated region
    $region10: #{srgan_resblock.1} parent=1 // pred_check
      _
    $region11: #{srgan_resblock.1} parent=1 // pred_check_branch
      %23 = sbr.rel (0) target = $region13
    $region12: #{srgan_resblock.1} parent=1 // pred_region
      _
    $region13: #{srgan_resblock.1} parent=1 // pred_fallthru
      _
    // Predicated region
    $region14: #{srgan_resblock.1} parent=1 // pred_check
      _
    $region15: #{srgan_resblock.1} parent=1 // pred_check_branch
      %25 = sbr.rel (0) target = $region17
    $region16: #{srgan_resblock.1} parent=1 // pred_region
      _
    $region17: #{srgan_resblock.1} parent=1 // pred_fallthru
      _
    // Predicated region
    $region18: #{srgan_resblock.1} parent=1 // pred_check
      _
    $region19: #{srgan_resblock.1} parent=1 // pred_check_branch
      %27 = sbr.rel (0) target = $region21
    $region20: #{srgan_resblock.1} parent=1 // pred_region
      _
    $region21: #{srgan_resblock.1} parent=1 // pred_fallthru
      _
    // Predicated region
    $region22: #{srgan_resblock.1} parent=1 // pred_check
      _
    $region23: #{srgan_resblock.1} parent=1 // pred_check_branch
      %29 = sbr.rel (0) target = $region25
    $region24: #{srgan_resblock.1} parent=1 // pred_region
      _
    $region25: #{srgan_resblock.1} parent=1 // pred_fallthru
      _
    // Predicated region
    $region26: #{srgan_resblock.1} parent=1 // pred_check
      _
    $region27: #{srgan_resblock.1} parent=1 // pred_check_branch
      %31 = sbr.rel (0) target = $region29
    $region28: #{srgan_resblock.1} parent=1 // pred_region
      _
    $region29: #{srgan_resblock.1} parent=1 // pred_fallthru
      _
    // Predicated region
    $region30: #{srgan_resblock.1} parent=1 // pred_check
      _
    $region31: #{srgan_resblock.1} parent=1 // pred_check_branch
      %33 = sbr.rel (0) target = $region33
    $region32: #{srgan_resblock.1} parent=1 // pred_region
      _
    $region33: #{srgan_resblock.1} parent=1 // pred_fallthru
      _
    // Predicated region
    $region34: #{srgan_resblock.1} parent=1 // pred_check
      _
    $region35: #{srgan_resblock.1} parent=1 // pred_check_branch
      %35 = sbr.rel (0) target = $region37
    $region36: #{srgan_resblock.1} parent=1 // pred_region
      _
    $region37: #{srgan_resblock.1} parent=1 // pred_fallthru
      _
    // Predicated region
    $region38: #{srgan_resblock.1} parent=1 // pred_check
      _
    $region39: #{srgan_resblock.1} parent=1 // pred_check_branch
      %37 = sbr.rel (0) target = $region41
    $region40: #{srgan_resblock.1} parent=1 // pred_region
      _
    $region41: #{srgan_resblock.1} parent=1 // pred_fallthru
      _
    // Predicated region
    $region42: #{srgan_resblock.1} parent=1 // pred_check
      _
    $region43: #{srgan_resblock.1} parent=1 // pred_check_branch
      %39 = sbr.rel (0) target = $region45
    $region44: #{srgan_resblock.1} parent=1 // pred_region
      _
    $region45: #{srgan_resblock.1} parent=1 // pred_fallthru
      _
    %vm41 = vcmask 523264
    %42 = vst.msk [vmem:[#allocation2] sm:$0xff] %vm41, 0.0
    %43 = vst.msk [vmem:[#allocation2 + $0x8] sm:$0xff] %vm41, 0.0
    %vm44 = vcmask 517120
    %45 = vst.msk [vmem:[#allocation2 + $0x10] sm:$0x3] %vm44, 0.0
    %46 = vst.msk [vmem:[#allocation2 + $0x1b0] sm:$0xff] %vm41, 0.0
    %47 = vst.msk [vmem:[#allocation2 + $0x1b8] sm:$0xff] %vm41, 0.0
    %48 = vst.msk [vmem:[#allocation2 + $0x1c0] sm:$0x3] %vm44, 0.0
    %s49 = scalar_lea.vmem [#allocation2], 408
    %50 = vst.msk [vmem:[%s49] sm:$0xff] %vm41, 0.0
    %51 = vst.msk [vmem:[%s49 + $0x8] sm:$0xff] %vm41, 0.0
    %52 = vst.msk [vmem:[%s49 + $0x10] sm:$0x3] %vm44, 0.0
    %53 = vst.msk [vmem:[%s49 + $0x1b0] sm:$0xff] %vm41, 0.0
    %54 = vst.msk [vmem:[%s49 + $0x1b8] sm:$0xff] %vm41, 0.0
    %55 = vst.msk [vmem:[%s49 + $0x1c0] sm:$0x3] %vm44, 0.0
    %vm56 = vcmask 516096
    %57 = vst.msk [vmem:[#allocation2] sm:$0x1] %vm56, 0.0
    %58 = vst.msk [vmem:[#allocation2 + $0x18] sm:$0x1] %vm56, 0.0
    %59 = vst.msk [vmem:[#allocation2 + $0x30] sm:$0x1] %vm56, 0.0
    %60 = vst.msk [vmem:[#allocation2 + $0x48] sm:$0x1] %vm56, 0.0
    %61 = vst.msk [vmem:[#allocation2 + $0x60] sm:$0x1] %vm56, 0.0
    %62 = vst.msk [vmem:[#allocation2 + $0x78] sm:$0x1] %vm56, 0.0
    %63 = vst.msk [vmem:[#allocation2 + $0x90] sm:$0x1] %vm56, 0.0
    %64 = vst.msk [vmem:[#allocation2 + $0xa8] sm:$0x1] %vm56, 0.0
    %65 = vst.msk [vmem:[#allocation2 + $0xc0] sm:$0x1] %vm56, 0.0
    %66 = vst.msk [vmem:[#allocation2 + $0xd8] sm:$0x1] %vm56, 0.0
    %67 = vst.msk [vmem:[#allocation2 + $0xf0] sm:$0x1] %vm56, 0.0
    %68 = vst.msk [vmem:[#allocation2 + $0x108] sm:$0x1] %vm56, 0.0
    %69 = vst.msk [vmem:[#allocation2 + $0x120] sm:$0x1] %vm56, 0.0
    %70 = vst.msk [vmem:[#allocation2 + $0x138] sm:$0x1] %vm56, 0.0
    %71 = vst.msk [vmem:[#allocation2 + $0x150] sm:$0x1] %vm56, 0.0
    %72 = vst.msk [vmem:[#allocation2 + $0x168] sm:$0x1] %vm56, 0.0
    %73 = vst.msk [vmem:[#allocation2 + $0x180] sm:$0x1] %vm56, 0.0
    %74 = vst.msk [vmem:[#allocation2 + $0x198] sm:$0x1] %vm56, 0.0
    %75 = vst.msk [vmem:[#allocation2 + $0x1b0] sm:$0x1] %vm56, 0.0
    %76 = vst.msk [vmem:[#allocation2 + $0x1c8] sm:$0x1] %vm56, 0.0
    %77 = vst.msk [vmem:[#allocation2 + $0x1e0] sm:$0x1] %vm56, 0.0
    %78 = vst.msk [vmem:[#allocation2 + $0x1f8] sm:$0x1] %vm56, 0.0
    %79 = vst.msk [vmem:[#allocation2 + $0x210] sm:$0x1] %vm56, 0.0
    %80 = vst.msk [vmem:[#allocation2 + $0x228] sm:$0x1] %vm56, 0.0
    %81 = vst.msk [vmem:[#allocation2 + $0x240] sm:$0x1] %vm56, 0.0
    %82 = vst.msk [vmem:[#allocation2 + $0x258] sm:$0x1] %vm56, 0.0
    %83 = vst.msk [vmem:[#allocation2 + $0x270] sm:$0x1] %vm56, 0.0
    %84 = vst.msk [vmem:[#allocation2 + $0x288] sm:$0x1] %vm56, 0.0
    %85 = vst.msk [vmem:[#allocation2 + $0x2a0] sm:$0x1] %vm56, 0.0
    %86 = vst.msk [vmem:[#allocation2 + $0x2b8] sm:$0x1] %vm56, 0.0
    %87 = vst.msk [vmem:[#allocation2 + $0x2d0] sm:$0x1] %vm56, 0.0
    %88 = vst.msk [vmem:[#allocation2 + $0x2e8] sm:$0x1] %vm56, 0.0
    %89 = vst.msk [vmem:[#allocation2 + $0x300] sm:$0x1] %vm56, 0.0
    %90 = vst.msk [vmem:[#allocation2 + $0x318] sm:$0x1] %vm56, 0.0
    %91 = vst.msk [vmem:[#allocation2 + $0x330] sm:$0x1] %vm56, 0.0
    %92 = vst.msk [vmem:[#allocation2 + $0x348] sm:$0x1] %vm56, 0.0
    %93 = vst.msk [vmem:[#allocation2 + $0x11] sm:$0x1] %vm56, 0.0
    %94 = vst.msk [vmem:[#allocation2 + $0x29] sm:$0x1] %vm56, 0.0
    %95 = vst.msk [vmem:[#allocation2 + $0x41] sm:$0x1] %vm56, 0.0
    %96 = vst.msk [vmem:[#allocation2 + $0x59] sm:$0x1] %vm56, 0.0
    %97 = vst.msk [vmem:[#allocation2 + $0x71] sm:$0x1] %vm56, 0.0
    %98 = vst.msk [vmem:[#allocation2 + $0x89] sm:$0x1] %vm56, 0.0
    %99 = vst.msk [vmem:[#allocation2 + $0xa1] sm:$0x1] %vm56, 0.0
    %100 = vst.msk [vmem:[#allocation2 + $0xb9] sm:$0x1] %vm56, 0.0
    %101 = vst.msk [vmem:[#allocation2 + $0xd1] sm:$0x1] %vm56, 0.0
    %102 = vst.msk [vmem:[#allocation2 + $0xe9] sm:$0x1] %vm56, 0.0
    %103 = vst.msk [vmem:[#allocation2 + $0x101] sm:$0x1] %vm56, 0.0
    %104 = vst.msk [vmem:[#allocation2 + $0x119] sm:$0x1] %vm56, 0.0
    %105 = vst.msk [vmem:[#allocation2 + $0x131] sm:$0x1] %vm56, 0.0
    %106 = vst.msk [vmem:[#allocation2 + $0x149] sm:$0x1] %vm56, 0.0
    %107 = vst.msk [vmem:[#allocation2 + $0x161] sm:$0x1] %vm56, 0.0
    %108 = vst.msk [vmem:[#allocation2 + $0x179] sm:$0x1] %vm56, 0.0
    %109 = vst.msk [vmem:[#allocation2 + $0x191] sm:$0x1] %vm56, 0.0
    %110 = vst.msk [vmem:[#allocation2 + $0x1a9] sm:$0x1] %vm56, 0.0
    %111 = vst.msk [vmem:[#allocation2 + $0x1c1] sm:$0x1] %vm56, 0.0
    %112 = vst.msk [vmem:[#allocation2 + $0x1d9] sm:$0x1] %vm56, 0.0
    %113 = vst.msk [vmem:[#allocation2 + $0x1f1] sm:$0x1] %vm56, 0.0
    %114 = vst.msk [vmem:[#allocation2 + $0x209] sm:$0x1] %vm56, 0.0
    %115 = vst.msk [vmem:[#allocation2 + $0x221] sm:$0x1] %vm56, 0.0
    %116 = vst.msk [vmem:[#allocation2 + $0x239] sm:$0x1] %vm56, 0.0
    %117 = vst.msk [vmem:[#allocation2 + $0x251] sm:$0x1] %vm56, 0.0
    %118 = vst.msk [vmem:[#allocation2 + $0x269] sm:$0x1] %vm56, 0.0
    %119 = vst.msk [vmem:[#allocation2 + $0x281] sm:$0x1] %vm56, 0.0
    %120 = vst.msk [vmem:[#allocation2 + $0x299] sm:$0x1] %vm56, 0.0
    %121 = vst.msk [vmem:[#allocation2 + $0x2b1] sm:$0x1] %vm56, 0.0
    %122 = vst.msk [vmem:[#allocation2 + $0x2c9] sm:$0x1] %vm56, 0.0
    %123 = vst.msk [vmem:[#allocation2 + $0x2e1] sm:$0x1] %vm56, 0.0
    %124 = vst.msk [vmem:[#allocation2 + $0x2f9] sm:$0x1] %vm56, 0.0
    %125 = vst.msk [vmem:[#allocation2 + $0x311] sm:$0x1] %vm56, 0.0
    %126 = vst.msk [vmem:[#allocation2 + $0x329] sm:$0x1] %vm56, 0.0
    %127 = vst.msk [vmem:[#allocation2 + $0x341] sm:$0x1] %vm56, 0.0
    %128 = vst.msk [vmem:[#allocation2 + $0x359] sm:$0x1] %vm56, 0.0
    %v129 = vld [vmem:[%s1] sm:$0xff]
    %v130 = vld [vmem:[%s1 + $0x8] sm:$0xff]
    %v131 = vld [vmem:[%s1 + $0x10] sm:$0xff]
    %v132 = vld [vmem:[%s1 + $0x18] sm:$0xff]
    %v133 = vld [vmem:[%s1 + $0x20] sm:$0xff]
    %v134 = vld [vmem:[%s1 + $0x28] sm:$0xff]
    %v135 = vld [vmem:[%s1 + $0x30] sm:$0xff]
    %v136 = vld [vmem:[%s1 + $0x38] sm:$0xff]
    %v137 = vld [vmem:[%s1 + $0x40] sm:$0xff]
    %v138 = vld [vmem:[%s1 + $0x48] sm:$0xff]
    %v139 = vld [vmem:[%s1 + $0x50] sm:$0xff]
    %v140 = vld [vmem:[%s1 + $0x58] sm:$0xff]
    %v141 = vld [vmem:[%s1 + $0x60] sm:$0xff]
    %v142 = vld [vmem:[%s1 + $0x68] sm:$0xff]
    %v143 = vld [vmem:[%s1 + $0x70] sm:$0xff]
    %v144 = vld [vmem:[%s1 + $0x78] sm:$0xff]
    %v145 = vld [vmem:[%s1 + $0x80] sm:$0xff]
    %v146 = vld [vmem:[%s1 + $0x88] sm:$0xff]
    %v147 = vld [vmem:[%s1 + $0x90] sm:$0xff]
    %v148 = vld [vmem:[%s1 + $0x98] sm:$0xff]
    %v149 = vld [vmem:[%s1 + $0xa0] sm:$0xff]
    %v150 = vld [vmem:[%s1 + $0xa8] sm:$0xff]
    %v151 = vld [vmem:[%s1 + $0xb0] sm:$0xff]
    %v152 = vld [vmem:[%s1 + $0xb8] sm:$0xff]
    %v153 = vld [vmem:[%s1 + $0xc0] sm:$0xff]
    %v154 = vld [vmem:[%s1 + $0xc8] sm:$0xff]
    %v155 = vld [vmem:[%s1 + $0xd0] sm:$0xff]
    %v156 = vld [vmem:[%s1 + $0xd8] sm:$0xff]
    %v157 = vld [vmem:[%s1 + $0xe0] sm:$0xff]
    %v158 = vld [vmem:[%s1 + $0xe8] sm:$0xff]
    %v159 = vld [vmem:[%s1 + $0xf0] sm:$0xff]
    %v160 = vld [vmem:[%s1 + $0xf8] sm:$0xff]
    %v161 = vld [vmem:[%s1 + $0x100] sm:$0xff]
    %v162 = vld [vmem:[%s1 + $0x108] sm:$0xff]
    %v163 = vld [vmem:[%s1 + $0x110] sm:$0xff]
    %v164 = vld [vmem:[%s1 + $0x118] sm:$0xff]
    %v165 = vld [vmem:[%s1 + $0x120] sm:$0xff]
    %v166 = vld [vmem:[%s1 + $0x128] sm:$0xff]
    %v167 = vld [vmem:[%s1 + $0x130] sm:$0xff]
    %v168 = vld [vmem:[%s1 + $0x138] sm:$0xff]
    %v169 = vld [vmem:[%s1 + $0x140] sm:$0xff]
    %v170 = vld [vmem:[%s1 + $0x148] sm:$0xff]
    %v171 = vld [vmem:[%s1 + $0x150] sm:$0xff]
    %v172 = vld [vmem:[%s1 + $0x158] sm:$0xff]
    %v173 = vld [vmem:[%s1 + $0x160] sm:$0xff]
    %v174 = vld [vmem:[%s1 + $0x168] sm:$0xff]
    %v175 = vld [vmem:[%s1 + $0x170] sm:$0xff]
    %v176 = vld [vmem:[%s1 + $0x178] sm:$0xff]
    %v177 = vld [vmem:[%s1 + $0x180] sm:$0xff]
    %v178 = vld [vmem:[%s1 + $0x188] sm:$0xff]
    %v179 = vld [vmem:[%s1 + $0x190] sm:$0xff]
    %v180 = vld [vmem:[%s1 + $0x198] sm:$0xff]
    %v181 = vld [vmem:[%s1 + $0x1a0] sm:$0xff]
    %v182 = vld [vmem:[%s1 + $0x1a8] sm:$0xff]
    %v183 = vld [vmem:[%s1 + $0x1b0] sm:$0xff]
    %v184 = vld [vmem:[%s1 + $0x1b8] sm:$0xff]
    %v185 = vld [vmem:[%s1 + $0x1c0] sm:$0xff]
    %v186 = vld [vmem:[%s1 + $0x1c8] sm:$0xff]
    %v187 = vld [vmem:[%s1 + $0x1d0] sm:$0xff]
    %v188 = vld [vmem:[%s1 + $0x1d8] sm:$0xff]
    %v189 = vld [vmem:[%s1 + $0x1e0] sm:$0xff]
    %v190 = vld [vmem:[%s1 + $0x1e8] sm:$0xff]
    %v191 = vld [vmem:[%s1 + $0x1f0] sm:$0xff]
    %v192 = vld [vmem:[%s1 + $0x1f8] sm:$0xff]
    %s193 = scalar_lea.vmem [#allocation2], 24
    %194 = vst.msk [vmem:[%s193 + $0x1] sm:$0xff] %vm41, %v129
    %195 = vst.msk [vmem:[%s193 + $0x9] sm:$0xff] %vm41, %v130
    %196 = vst.msk [vmem:[%s193 + $0x19] sm:$0xff] %vm41, %v131
    %197 = vst.msk [vmem:[%s193 + $0x21] sm:$0xff] %vm41, %v132
    %198 = vst.msk [vmem:[%s193 + $0x31] sm:$0xff] %vm41, %v133
    %199 = vst.msk [vmem:[%s193 + $0x39] sm:$0xff] %vm41, %v134
    %200 = vst.msk [vmem:[%s193 + $0x49] sm:$0xff] %vm41, %v135
    %201 = vst.msk [vmem:[%s193 + $0x51] sm:$0xff] %vm41, %v136
    %202 = vst.msk [vmem:[%s193 + $0x61] sm:$0xff] %vm41, %v137
    %203 = vst.msk [vmem:[%s193 + $0x69] sm:$0xff] %vm41, %v138
    %204 = vst.msk [vmem:[%s193 + $0x79] sm:$0xff] %vm41, %v139
    %205 = vst.msk [vmem:[%s193 + $0x81] sm:$0xff] %vm41, %v140
    %206 = vst.msk [vmem:[%s193 + $0x91] sm:$0xff] %vm41, %v141
    %207 = vst.msk [vmem:[%s193 + $0x99] sm:$0xff] %vm41, %v142
    %208 = vst.msk [vmem:[%s193 + $0xa9] sm:$0xff] %vm41, %v143
    %209 = vst.msk [vmem:[%s193 + $0xb1] sm:$0xff] %vm41, %v144
    %210 = vst.msk [vmem:[%s193 + $0xc1] sm:$0xff] %vm41, %v145
    %211 = vst.msk [vmem:[%s193 + $0xc9] sm:$0xff] %vm41, %v146
    %212 = vst.msk [vmem:[%s193 + $0xd9] sm:$0xff] %vm41, %v147
    %213 = vst.msk [vmem:[%s193 + $0xe1] sm:$0xff] %vm41, %v148
    %214 = vst.msk [vmem:[%s193 + $0xf1] sm:$0xff] %vm41, %v149
    %215 = vst.msk [vmem:[%s193 + $0xf9] sm:$0xff] %vm41, %v150
    %216 = vst.msk [vmem:[%s193 + $0x109] sm:$0xff] %vm41, %v151
    %217 = vst.msk [vmem:[%s193 + $0x111] sm:$0xff] %vm41, %v152
    %218 = vst.msk [vmem:[%s193 + $0x121] sm:$0xff] %vm41, %v153
    %219 = vst.msk [vmem:[%s193 + $0x129] sm:$0xff] %vm41, %v154
    %220 = vst.msk [vmem:[%s193 + $0x139] sm:$0xff] %vm41, %v155
    %221 = vst.msk [vmem:[%s193 + $0x141] sm:$0xff] %vm41, %v156
    %222 = vst.msk [vmem:[%s193 + $0x151] sm:$0xff] %vm41, %v157
    %223 = vst.msk [vmem:[%s193 + $0x159] sm:$0xff] %vm41, %v158
    %224 = vst.msk [vmem:[%s193 + $0x169] sm:$0xff] %vm41, %v159
    %225 = vst.msk [vmem:[%s193 + $0x171] sm:$0xff] %vm41, %v160
    %226 = vst.msk [vmem:[%s193 + $0x1b1] sm:$0xff] %vm41, %v161
    %227 = vst.msk [vmem:[%s193 + $0x1b9] sm:$0xff] %vm41, %v162
    %228 = vst.msk [vmem:[%s193 + $0x1c9] sm:$0xff] %vm41, %v163
    %229 = vst.msk [vmem:[%s193 + $0x1d1] sm:$0xff] %vm41, %v164
    %230 = vst.msk [vmem:[%s193 + $0x1e1] sm:$0xff] %vm41, %v165
    %231 = vst.msk [vmem:[%s193 + $0x1e9] sm:$0xff] %vm41, %v166
    %232 = vst.msk [vmem:[%s193 + $0x1f9] sm:$0xff] %vm41, %v167
    %233 = vst.msk [vmem:[%s193 + $0x201] sm:$0xff] %vm41, %v168
    %234 = vst.msk [vmem:[%s193 + $0x211] sm:$0xff] %vm41, %v169
    %235 = vst.msk [vmem:[%s193 + $0x219] sm:$0xff] %vm41, %v170
    %236 = vst.msk [vmem:[%s193 + $0x229] sm:$0xff] %vm41, %v171
    %237 = vst.msk [vmem:[%s193 + $0x231] sm:$0xff] %vm41, %v172
    %238 = vst.msk [vmem:[%s193 + $0x241] sm:$0xff] %vm41, %v173
    %239 = vst.msk [vmem:[%s193 + $0x249] sm:$0xff] %vm41, %v174
    %240 = vst.msk [vmem:[%s193 + $0x259] sm:$0xff] %vm41, %v175
    %241 = vst.msk [vmem:[%s193 + $0x261] sm:$0xff] %vm41, %v176
    %242 = vst.msk [vmem:[%s193 + $0x271] sm:$0xff] %vm41, %v177
    %243 = vst.msk [vmem:[%s193 + $0x279] sm:$0xff] %vm41, %v178
    %244 = vst.msk [vmem:[%s193 + $0x289] sm:$0xff] %vm41, %v179
    %245 = vst.msk [vmem:[%s193 + $0x291] sm:$0xff] %vm41, %v180
    %246 = vst.msk [vmem:[%s193 + $0x2a1] sm:$0xff] %vm41, %v181
    %247 = vst.msk [vmem:[%s193 + $0x2a9] sm:$0xff] %vm41, %v182
    %248 = vst.msk [vmem:[%s193 + $0x2b9] sm:$0xff] %vm41, %v183
    %249 = vst.msk [vmem:[%s193 + $0x2c1] sm:$0xff] %vm41, %v184
    %250 = vst.msk [vmem:[%s193 + $0x2d1] sm:$0xff] %vm41, %v185
    %251 = vst.msk [vmem:[%s193 + $0x2d9] sm:$0xff] %vm41, %v186
    %252 = vst.msk [vmem:[%s193 + $0x2e9] sm:$0xff] %vm41, %v187
    %253 = vst.msk [vmem:[%s193 + $0x2f1] sm:$0xff] %vm41, %v188
    %254 = vst.msk [vmem:[%s193 + $0x301] sm:$0xff] %vm41, %v189
    %255 = vst.msk [vmem:[%s193 + $0x309] sm:$0xff] %vm41, %v190
    %256 = vst.msk [vmem:[%s193 + $0x319] sm:$0xff] %vm41, %v191
    %257 = vst.msk [vmem:[%s193 + $0x321] sm:$0xff] %vm41, %v192
    %v258 = vld [vmem:[#allocation2] sm:$0xff]
    %v259 = vld [vmem:[#allocation2 + $0x8] sm:$0xff]
    %v260 = vld [vmem:[#allocation2 + $0x18] sm:$0xff]
    %v261 = vld [vmem:[#allocation2 + $0x20] sm:$0xff]
    %v262 = vld [vmem:[#allocation2 + $0x30] sm:$0xff]
    %v263 = vld [vmem:[#allocation2 + $0x38] sm:$0xff]
    %v264 = vld [vmem:[#allocation2 + $0x48] sm:$0xff]
    %v265 = vld [vmem:[#allocation2 + $0x50] sm:$0xff]
    %v266 = vld [vmem:[#allocation2 + $0x60] sm:$0xff]
    %v267 = vld [vmem:[#allocation2 + $0x68] sm:$0xff]
    %v268 = vld [vmem:[#allocation2 + $0x78] sm:$0xff]
    %v269 = vld [vmem:[#allocation2 + $0x80] sm:$0xff]
    %v270 = vld [vmem:[#allocation2 + $0x90] sm:$0xff]
    %v271 = vld [vmem:[#allocation2 + $0x98] sm:$0xff]
    %v272 = vld [vmem:[#allocation2 + $0xa8] sm:$0xff]
    %v273 = vld [vmem:[#allocation2 + $0xb0] sm:$0xff]
    %v274 = vld [vmem:[#allocation2 + $0xc0] sm:$0xff]
    %v275 = vld [vmem:[#allocation2 + $0xc8] sm:$0xff]
    %v276 = vld [vmem:[#allocation2 + $0xd8] sm:$0xff]
    %v277 = vld [vmem:[#allocation2 + $0xe0] sm:$0xff]
    %v278 = vld [vmem:[#allocation2 + $0xf0] sm:$0xff]
    %v279 = vld [vmem:[#allocation2 + $0xf8] sm:$0xff]
    %v280 = vld [vmem:[#allocation2 + $0x108] sm:$0xff]
    %v281 = vld [vmem:[#allocation2 + $0x110] sm:$0xff]
    %v282 = vld [vmem:[#allocation2 + $0x120] sm:$0xff]
    %v283 = vld [vmem:[#allocation2 + $0x128] sm:$0xff]
    %v284 = vld [vmem:[#allocation2 + $0x138] sm:$0xff]
    %v285 = vld [vmem:[#allocation2 + $0x140] sm:$0xff]
    %v286 = vld [vmem:[#allocation2 + $0x150] sm:$0xff]
    %v287 = vld [vmem:[#allocation2 + $0x158] sm:$0xff]
    %v288 = vld [vmem:[#allocation2 + $0x168] sm:$0xff]
    %v289 = vld [vmem:[#allocation2 + $0x170] sm:$0xff]
    %v290 = vld [vmem:[#allocation2 + $0x1b0] sm:$0xff]
    %v291 = vld [vmem:[#allocation2 + $0x1b8] sm:$0xff]
    %v292 = vld [vmem:[#allocation2 + $0x1c8] sm:$0xff]
    %v293 = vld [vmem:[#allocation2 + $0x1d0] sm:$0xff]
    %v294 = vld [vmem:[#allocation2 + $0x1e0] sm:$0xff]
    %v295 = vld [vmem:[#allocation2 + $0x1e8] sm:$0xff]
    %v296 = vld [vmem:[#allocation2 + $0x1f8] sm:$0xff]
    %v297 = vld [vmem:[#allocation2 + $0x200] sm:$0xff]
    %v298 = vld [vmem:[#allocation2 + $0x210] sm:$0xff]
    %v299 = vld [vmem:[#allocation2 + $0x218] sm:$0xff]
    %v300 = vld [vmem:[#allocation2 + $0x228] sm:$0xff]
    %v301 = vld [vmem:[#allocation2 + $0x230] sm:$0xff]
    %v302 = vld [vmem:[#allocation2 + $0x240] sm:$0xff]
    %v303 = vld [vmem:[#allocation2 + $0x248] sm:$0xff]
    %v304 = vld [vmem:[#allocation2 + $0x258] sm:$0xff]
    %v305 = vld [vmem:[#allocation2 + $0x260] sm:$0xff]
    %v306 = vld [vmem:[#allocation2 + $0x270] sm:$0xff]
    %v307 = vld [vmem:[#allocation2 + $0x278] sm:$0xff]
    %v308 = vld [vmem:[#allocation2 + $0x288] sm:$0xff]
    %v309 = vld [vmem:[#allocation2 + $0x290] sm:$0xff]
    %v310 = vld [vmem:[#allocation2 + $0x2a0] sm:$0xff]
    %v311 = vld [vmem:[#allocation2 + $0x2a8] sm:$0xff]
    %v312 = vld [vmem:[#allocation2 + $0x2b8] sm:$0xff]
    %v313 = vld [vmem:[#allocation2 + $0x2c0] sm:$0xff]
    %v314 = vld [vmem:[#allocation2 + $0x2d0] sm:$0xff]
    %v315 = vld [vmem:[#allocation2 + $0x2d8] sm:$0xff]
    %v316 = vld [vmem:[#allocation2 + $0x2e8] sm:$0xff]
    %v317 = vld [vmem:[#allocation2 + $0x2f0] sm:$0xff]
    %v318 = vld [vmem:[#allocation2 + $0x300] sm:$0xff]
    %v319 = vld [vmem:[#allocation2 + $0x308] sm:$0xff]
    %v320 = vld [vmem:[#allocation2 + $0x318] sm:$0xff]
    %v321 = vld [vmem:[#allocation2 + $0x320] sm:$0xff]
    %v322 = vld [vmem:[#allocation2 + $0x1] sm:$0xff]
    %v323 = vld [vmem:[#allocation2 + $0x9] sm:$0xff]
    %v324 = vld [vmem:[#allocation2 + $0x19] sm:$0xff]
    %v325 = vld [vmem:[#allocation2 + $0x21] sm:$0xff]
    %v326 = vld [vmem:[#allocation2 + $0x31] sm:$0xff]
    %v327 = vld [vmem:[#allocation2 + $0x39] sm:$0xff]
    %v328 = vld [vmem:[#allocation2 + $0x49] sm:$0xff]
    %v329 = vld [vmem:[#allocation2 + $0x51] sm:$0xff]
    %v330 = vld [vmem:[#allocation2 + $0x61] sm:$0xff]
    %v331 = vld [vmem:[#allocation2 + $0x69] sm:$0xff]
    %v332 = vld [vmem:[#allocation2 + $0x79] sm:$0xff]
    %v333 = vld [vmem:[#allocation2 + $0x81] sm:$0xff]
    %v334 = vld [vmem:[#allocation2 + $0x91] sm:$0xff]
    %v335 = vld [vmem:[#allocation2 + $0x99] sm:$0xff]
    %v336 = vld [vmem:[#allocation2 + $0xa9] sm:$0xff]
    %v337 = vld [vmem:[#allocation2 + $0xb1] sm:$0xff]
    %v338 = vld [vmem:[#allocation2 + $0xc1] sm:$0xff]
    %v339 = vld [vmem:[#allocation2 + $0xc9] sm:$0xff]
    %v340 = vld [vmem:[#allocation2 + $0xd9] sm:$0xff]
    %v341 = vld [vmem:[#allocation2 + $0xe1] sm:$0xff]
    %v342 = vld [vmem:[#allocation2 + $0xf1] sm:$0xff]
    %v343 = vld [vmem:[#allocation2 + $0xf9] sm:$0xff]
    %v344 = vld [vmem:[#allocation2 + $0x109] sm:$0xff]
    %v345 = vld [vmem:[#allocation2 + $0x111] sm:$0xff]
    %v346 = vld [vmem:[#allocation2 + $0x121] sm:$0xff]
    %v347 = vld [vmem:[#allocation2 + $0x129] sm:$0xff]
    %v348 = vld [vmem:[#allocation2 + $0x139] sm:$0xff]
    %v349 = vld [vmem:[#allocation2 + $0x141] sm:$0xff]
    %v350 = vld [vmem:[#allocation2 + $0x151] sm:$0xff]
    %v351 = vld [vmem:[#allocation2 + $0x159] sm:$0xff]
    %v352 = vld [vmem:[#allocation2 + $0x169] sm:$0xff]
    %v353 = vld [vmem:[#allocation2 + $0x171] sm:$0xff]
    %v354 = vld [vmem:[#allocation2 + $0x1b1] sm:$0xff]
    %v355 = vld [vmem:[#allocation2 + $0x1b9] sm:$0xff]
    %v356 = vld [vmem:[#allocation2 + $0x1c9] sm:$0xff]
    %v357 = vld [vmem:[#allocation2 + $0x1d1] sm:$0xff]
    %v358 = vld [vmem:[#allocation2 + $0x1e1] sm:$0xff]
    %v359 = vld [vmem:[#allocation2 + $0x1e9] sm:$0xff]
    %v360 = vld [vmem:[#allocation2 + $0x1f9] sm:$0xff]
    %v361 = vld [vmem:[#allocation2 + $0x201] sm:$0xff]
    %v362 = vld [vmem:[#allocation2 + $0x211] sm:$0xff]
    %v363 = vld [vmem:[#allocation2 + $0x219] sm:$0xff]
    %v364 = vld [vmem:[#allocation2 + $0x229] sm:$0xff]
    %v365 = vld [vmem:[#allocation2 + $0x231] sm:$0xff]
    %v366 = vld [vmem:[#allocation2 + $0x241] sm:$0xff]
    %v367 = vld [vmem:[#allocation2 + $0x249] sm:$0xff]
    %v368 = vld [vmem:[#allocation2 + $0x259] sm:$0xff]
    %v369 = vld [vmem:[#allocation2 + $0x261] sm:$0xff]
    %v370 = vld [vmem:[#allocation2 + $0x271] sm:$0xff]
    %v371 = vld [vmem:[#allocation2 + $0x279] sm:$0xff]
    %v372 = vld [vmem:[#allocation2 + $0x289] sm:$0xff]
    %v373 = vld [vmem:[#allocation2 + $0x291] sm:$0xff]
    %v374 = vld [vmem:[#allocation2 + $0x2a1] sm:$0xff]
    %v375 = vld [vmem:[#allocation2 + $0x2a9] sm:$0xff]
    %v376 = vld [vmem:[#allocation2 + $0x2b9] sm:$0xff]
    %v377 = vld [vmem:[#allocation2 + $0x2c1] sm:$0xff]
    %v378 = vld [vmem:[#allocation2 + $0x2d1] sm:$0xff]
    %v379 = vld [vmem:[#allocation2 + $0x2d9] sm:$0xff]
    %v380 = vld [vmem:[#allocation2 + $0x2e9] sm:$0xff]
    %v381 = vld [vmem:[#allocation2 + $0x2f1] sm:$0xff]
    %v382 = vld [vmem:[#allocation2 + $0x301] sm:$0xff]
    %v383 = vld [vmem:[#allocation2 + $0x309] sm:$0xff]
    %v384 = vld [vmem:[#allocation2 + $0x319] sm:$0xff]
    %v385 = vld [vmem:[#allocation2 + $0x321] sm:$0xff]
    %450 = vrot.lane.b32.xlu0 %v322, 64
    %v451 = vpop.permute.xlu0 %450
    %452 = vrot.lane.b32.xlu0 %v323, 64
    %v453 = vpop.permute.xlu0 %452
    %454 = vrot.lane.b32.xlu0 %v324, 64
    %v455 = vpop.permute.xlu0 %454
    %456 = vrot.lane.b32.xlu0 %v325, 64
    %v457 = vpop.permute.xlu0 %456
    %458 = vrot.lane.b32.xlu0 %v326, 64
    %v459 = vpop.permute.xlu0 %458
    %460 = vrot.lane.b32.xlu0 %v327, 64
    %v461 = vpop.permute.xlu0 %460
    %462 = vrot.lane.b32.xlu0 %v328, 64
    %v463 = vpop.permute.xlu0 %462
    %464 = vrot.lane.b32.xlu0 %v329, 64
    %v465 = vpop.permute.xlu0 %464
    %466 = vrot.lane.b32.xlu0 %v330, 64
    %v467 = vpop.permute.xlu0 %466
    %468 = vrot.lane.b32.xlu0 %v331, 64
    %v469 = vpop.permute.xlu0 %468
    %470 = vrot.lane.b32.xlu0 %v332, 64
    %v471 = vpop.permute.xlu0 %470
    %472 = vrot.lane.b32.xlu0 %v333, 64
    %v473 = vpop.permute.xlu0 %472
    %474 = vrot.lane.b32.xlu0 %v334, 64
    %v475 = vpop.permute.xlu0 %474
    %476 = vrot.lane.b32.xlu0 %v335, 64
    %v477 = vpop.permute.xlu0 %476
    %478 = vrot.lane.b32.xlu0 %v336, 64
    %v479 = vpop.permute.xlu0 %478
    %480 = vrot.lane.b32.xlu0 %v337, 64
    %v481 = vpop.permute.xlu0 %480
    %482 = vrot.lane.b32.xlu0 %v338, 64
    %v483 = vpop.permute.xlu0 %482
    %484 = vrot.lane.b32.xlu0 %v339, 64
    %v485 = vpop.permute.xlu0 %484
    %486 = vrot.lane.b32.xlu0 %v340, 64
    %v487 = vpop.permute.xlu0 %486
    %488 = vrot.lane.b32.xlu0 %v341, 64
    %v489 = vpop.permute.xlu0 %488
    %490 = vrot.lane.b32.xlu0 %v342, 64
    %v491 = vpop.permute.xlu0 %490
    %492 = vrot.lane.b32.xlu0 %v343, 64
    %v493 = vpop.permute.xlu0 %492
    %494 = vrot.lane.b32.xlu0 %v344, 64
    %v495 = vpop.permute.xlu0 %494
    %496 = vrot.lane.b32.xlu0 %v345, 64
    %v497 = vpop.permute.xlu0 %496
    %498 = vrot.lane.b32.xlu0 %v346, 64
    %v499 = vpop.permute.xlu0 %498
    %500 = vrot.lane.b32.xlu0 %v347, 64
    %v501 = vpop.permute.xlu0 %500
    %502 = vrot.lane.b32.xlu0 %v348, 64
    %v503 = vpop.permute.xlu0 %502
    %504 = vrot.lane.b32.xlu0 %v349, 64
    %v505 = vpop.permute.xlu0 %504
    %506 = vrot.lane.b32.xlu0 %v350, 64
    %v507 = vpop.permute.xlu0 %506
    %508 = vrot.lane.b32.xlu0 %v351, 64
    %v509 = vpop.permute.xlu0 %508
    %510 = vrot.lane.b32.xlu0 %v352, 64
    %v511 = vpop.permute.xlu0 %510
    %512 = vrot.lane.b32.xlu0 %v353, 64
    %v513 = vpop.permute.xlu0 %512
    %514 = vrot.lane.b32.xlu0 %v354, 64
    %v515 = vpop.permute.xlu0 %514
    %516 = vrot.lane.b32.xlu0 %v355, 64
    %v517 = vpop.permute.xlu0 %516
    %518 = vrot.lane.b32.xlu0 %v356, 64
    %v519 = vpop.permute.xlu0 %518
    %520 = vrot.lane.b32.xlu0 %v357, 64
    %v521 = vpop.permute.xlu0 %520
    %522 = vrot.lane.b32.xlu0 %v358, 64
    %v523 = vpop.permute.xlu0 %522
    %524 = vrot.lane.b32.xlu0 %v359, 64
    %v525 = vpop.permute.xlu0 %524
    %526 = vrot.lane.b32.xlu0 %v360, 64
    %v527 = vpop.permute.xlu0 %526
    %528 = vrot.lane.b32.xlu0 %v361, 64
    %v529 = vpop.permute.xlu0 %528
    %530 = vrot.lane.b32.xlu0 %v362, 64
    %v531 = vpop.permute.xlu0 %530
    %532 = vrot.lane.b32.xlu0 %v363, 64
    %v533 = vpop.permute.xlu0 %532
    %534 = vrot.lane.b32.xlu0 %v364, 64
    %v535 = vpop.permute.xlu0 %534
    %536 = vrot.lane.b32.xlu0 %v365, 64
    %v537 = vpop.permute.xlu0 %536
    %538 = vrot.lane.b32.xlu0 %v366, 64
    %v539 = vpop.permute.xlu0 %538
    %540 = vrot.lane.b32.xlu0 %v367, 64
    %v541 = vpop.permute.xlu0 %540
    %542 = vrot.lane.b32.xlu0 %v368, 64
    %v543 = vpop.permute.xlu0 %542
    %544 = vrot.lane.b32.xlu0 %v369, 64
    %v545 = vpop.permute.xlu0 %544
    %546 = vrot.lane.b32.xlu0 %v370, 64
    %v547 = vpop.permute.xlu0 %546
    %548 = vrot.lane.b32.xlu0 %v371, 64
    %v549 = vpop.permute.xlu0 %548
    %550 = vrot.lane.b32.xlu0 %v372, 64
    %v551 = vpop.permute.xlu0 %550
    %552 = vrot.lane.b32.xlu0 %v373, 64
    %v553 = vpop.permute.xlu0 %552
    %554 = vrot.lane.b32.xlu0 %v374, 64
    %v555 = vpop.permute.xlu0 %554
    %556 = vrot.lane.b32.xlu0 %v375, 64
    %v557 = vpop.permute.xlu0 %556
    %558 = vrot.lane.b32.xlu0 %v376, 64
    %v559 = vpop.permute.xlu0 %558
    %560 = vrot.lane.b32.xlu0 %v377, 64
    %v561 = vpop.permute.xlu0 %560
    %562 = vrot.lane.b32.xlu0 %v378, 64
    %v563 = vpop.permute.xlu0 %562
    %564 = vrot.lane.b32.xlu0 %v379, 64
    %v565 = vpop.permute.xlu0 %564
    %566 = vrot.lane.b32.xlu0 %v380, 64
    %v567 = vpop.permute.xlu0 %566
    %568 = vrot.lane.b32.xlu0 %v381, 64
    %v569 = vpop.permute.xlu0 %568
    %570 = vrot.lane.b32.xlu0 %v382, 64
    %v571 = vpop.permute.xlu0 %570
    %572 = vrot.lane.b32.xlu0 %v383, 64
    %v573 = vpop.permute.xlu0 %572
    %574 = vrot.lane.b32.xlu0 %v384, 64
    %v575 = vpop.permute.xlu0 %574
    %576 = vrot.lane.b32.xlu0 %v385, 64
    %v577 = vpop.permute.xlu0 %576
    %v642 = vsel %vm41, %v258, %v451
    %v643 = vsel %vm41, %v259, %v453
    %v644 = vsel %vm41, %v260, %v455
    %v645 = vsel %vm41, %v261, %v457
    %v646 = vsel %vm41, %v262, %v459
    %v647 = vsel %vm41, %v263, %v461
    %v648 = vsel %vm41, %v264, %v463
    %v649 = vsel %vm41, %v265, %v465
    %v650 = vsel %vm41, %v266, %v467
    %v651 = vsel %vm41, %v267, %v469
    %v652 = vsel %vm41, %v268, %v471
    %v653 = vsel %vm41, %v269, %v473
    %v654 = vsel %vm41, %v270, %v475
    %v655 = vsel %vm41, %v271, %v477
    %v656 = vsel %vm41, %v272, %v479
    %v657 = vsel %vm41, %v273, %v481
    %v658 = vsel %vm41, %v274, %v483
    %v659 = vsel %vm41, %v275, %v485
    %v660 = vsel %vm41, %v276, %v487
    %v661 = vsel %vm41, %v277, %v489
    %v662 = vsel %vm41, %v278, %v491
    %v663 = vsel %vm41, %v279, %v493
    %v664 = vsel %vm41, %v280, %v495
    %v665 = vsel %vm41, %v281, %v497
    %v666 = vsel %vm41, %v282, %v499
    %v667 = vsel %vm41, %v283, %v501
    %v668 = vsel %vm41, %v284, %v503
    %v669 = vsel %vm41, %v285, %v505
    %v670 = vsel %vm41, %v286, %v507
    %v671 = vsel %vm41, %v287, %v509
    %v672 = vsel %vm41, %v288, %v511
    %v673 = vsel %vm41, %v289, %v513
    %v674 = vsel %vm41, %v290, %v515
    %v675 = vsel %vm41, %v291, %v517
    %v676 = vsel %vm41, %v292, %v519
    %v677 = vsel %vm41, %v293, %v521
    %v678 = vsel %vm41, %v294, %v523
    %v679 = vsel %vm41, %v295, %v525
    %v680 = vsel %vm41, %v296, %v527
    %v681 = vsel %vm41, %v297, %v529
    %v682 = vsel %vm41, %v298, %v531
    %v683 = vsel %vm41, %v299, %v533
    %v684 = vsel %vm41, %v300, %v535
    %v685 = vsel %vm41, %v301, %v537
    %v686 = vsel %vm41, %v302, %v539
    %v687 = vsel %vm41, %v303, %v541
    %v688 = vsel %vm41, %v304, %v543
    %v689 = vsel %vm41, %v305, %v545
    %v690 = vsel %vm41, %v306, %v547
    %v691 = vsel %vm41, %v307, %v549
    %v692 = vsel %vm41, %v308, %v551
    %v693 = vsel %vm41, %v309, %v553
    %v694 = vsel %vm41, %v310, %v555
    %v695 = vsel %vm41, %v311, %v557
    %v696 = vsel %vm41, %v312, %v559
    %v697 = vsel %vm41, %v313, %v561
    %v698 = vsel %vm41, %v314, %v563
    %v699 = vsel %vm41, %v315, %v565
    %v700 = vsel %vm41, %v316, %v567
    %v701 = vsel %vm41, %v317, %v569
    %v702 = vsel %vm41, %v318, %v571
    %v703 = vsel %vm41, %v319, %v573
    %v704 = vsel %vm41, %v320, %v575
    %v705 = vsel %vm41, %v321, %v577
    %v706 = vpack.c.bf16 %v643, %v642
    %v707 = vpack.c.bf16 %v645, %v644
    %v708 = vpack.c.bf16 %v647, %v646
    %v709 = vpack.c.bf16 %v649, %v648
    %v710 = vpack.c.bf16 %v651, %v650
    %v711 = vpack.c.bf16 %v653, %v652
    %v712 = vpack.c.bf16 %v655, %v654
    %v713 = vpack.c.bf16 %v657, %v656
    %v714 = vpack.c.bf16 %v659, %v658
    %v715 = vpack.c.bf16 %v661, %v660
    %v716 = vpack.c.bf16 %v663, %v662
    %v717 = vpack.c.bf16 %v665, %v664
    %v718 = vpack.c.bf16 %v667, %v666
    %v719 = vpack.c.bf16 %v669, %v668
    %v720 = vpack.c.bf16 %v671, %v670
    %v721 = vpack.c.bf16 %v673, %v672
    %v722 = vpack.c.bf16 %v675, %v674
    %v723 = vpack.c.bf16 %v677, %v676
    %v724 = vpack.c.bf16 %v679, %v678
    %v725 = vpack.c.bf16 %v681, %v680
    %v726 = vpack.c.bf16 %v683, %v682
    %v727 = vpack.c.bf16 %v685, %v684
    %v728 = vpack.c.bf16 %v687, %v686
    %v729 = vpack.c.bf16 %v689, %v688
    %v730 = vpack.c.bf16 %v691, %v690
    %v731 = vpack.c.bf16 %v693, %v692
    %v732 = vpack.c.bf16 %v695, %v694
    %v733 = vpack.c.bf16 %v697, %v696
    %v734 = vpack.c.bf16 %v699, %v698
    %v735 = vpack.c.bf16 %v701, %v700
    %v736 = vpack.c.bf16 %v703, %v702
    %v737 = vpack.c.bf16 %v705, %v704
    %738 = vst [vmem:[#allocation3] sm:$0xff] %v706
    %739 = vst [vmem:[#allocation3 + $0x28] sm:$0xff] %v707
    %740 = vst [vmem:[#allocation3 + $0x50] sm:$0xff] %v708
    %741 = vst [vmem:[#allocation3 + $0x78] sm:$0xff] %v709
    %742 = vst [vmem:[#allocation3 + $0xa0] sm:$0xff] %v710
    %743 = vst [vmem:[#allocation3 + $0xc8] sm:$0xff] %v711
    %744 = vst [vmem:[#allocation3 + $0xf0] sm:$0xff] %v712
    %745 = vst [vmem:[#allocation3 + $0x118] sm:$0xff] %v713
    %746 = vst [vmem:[#allocation3 + $0x140] sm:$0xff] %v714
    %747 = vst [vmem:[#allocation3 + $0x168] sm:$0xff] %v715
    %748 = vst [vmem:[#allocation3 + $0x190] sm:$0xff] %v716
    %749 = vst [vmem:[#allocation3 + $0x1b8] sm:$0xff] %v717
    %750 = vst [vmem:[#allocation3 + $0x1e0] sm:$0xff] %v718
    %751 = vst [vmem:[#allocation3 + $0x208] sm:$0xff] %v719
    %752 = vst [vmem:[#allocation3 + $0x230] sm:$0xff] %v720
    %753 = vst [vmem:[#allocation3 + $0x258] sm:$0xff] %v721
    %754 = vst [vmem:[#allocation3 + $0x280] sm:$0xff] %v722
    %755 = vst [vmem:[#allocation3 + $0x2a8] sm:$0xff] %v723
    %756 = vst [vmem:[#allocation3 + $0x2d0] sm:$0xff] %v724
    %757 = vst [vmem:[#allocation3 + $0x2f8] sm:$0xff] %v725
    %758 = vst [vmem:[#allocation3 + $0x320] sm:$0xff] %v726
    %759 = vst [vmem:[#allocation3 + $0x348] sm:$0xff] %v727
    %760 = vst [vmem:[#allocation3 + $0x370] sm:$0xff] %v728
    %761 = vst [vmem:[#allocation3 + $0x398] sm:$0xff] %v729
    %762 = vst [vmem:[#allocation3 + $0x3c0] sm:$0xff] %v730
    %763 = vst [vmem:[#allocation3 + $0x3e8] sm:$0xff] %v731
    %764 = vst [vmem:[#allocation3 + $0x410] sm:$0xff] %v732
    %765 = vst [vmem:[#allocation3 + $0x438] sm:$0xff] %v733
    %766 = vst [vmem:[#allocation3 + $0x460] sm:$0xff] %v734
    %767 = vst [vmem:[#allocation3 + $0x488] sm:$0xff] %v735
    %768 = vst [vmem:[#allocation3 + $0x4b0] sm:$0xff] %v736
    %769 = vst [vmem:[#allocation3 + $0x4d8] sm:$0xff] %v737
    %v770 = vld [vmem:[#allocation2 + $0x2] sm:$0xff]
    %v771 = vld [vmem:[#allocation2 + $0xa] sm:$0xff]
    %v772 = vld [vmem:[#allocation2 + $0x1a] sm:$0xff]
    %v773 = vld [vmem:[#allocation2 + $0x22] sm:$0xff]
    %v774 = vld [vmem:[#allocation2 + $0x32] sm:$0xff]
    %v775 = vld [vmem:[#allocation2 + $0x3a] sm:$0xff]
    %v776 = vld [vmem:[#allocation2 + $0x4a] sm:$0xff]
    %v777 = vld [vmem:[#allocation2 + $0x52] sm:$0xff]
    %v778 = vld [vmem:[#allocation2 + $0x62] sm:$0xff]
    %v779 = vld [vmem:[#allocation2 + $0x6a] sm:$0xff]
    %v780 = vld [vmem:[#allocation2 + $0x7a] sm:$0xff]
    %v781 = vld [vmem:[#allocation2 + $0x82] sm:$0xff]
    %v782 = vld [vmem:[#allocation2 + $0x92] sm:$0xff]
    %v783 = vld [vmem:[#allocation2 + $0x9a] sm:$0xff]
    %v784 = vld [vmem:[#allocation2 + $0xaa] sm:$0xff]
    %v785 = vld [vmem:[#allocation2 + $0xb2] sm:$0xff]
    %v786 = vld [vmem:[#allocation2 + $0xc2] sm:$0xff]
    %v787 = vld [vmem:[#allocation2 + $0xca] sm:$0xff]
    %v788 = vld [vmem:[#allocation2 + $0xda] sm:$0xff]
    %v789 = vld [vmem:[#allocation2 + $0xe2] sm:$0xff]
    %v790 = vld [vmem:[#allocation2 + $0xf2] sm:$0xff]
    %v791 = vld [vmem:[#allocation2 + $0xfa] sm:$0xff]
    %v792 = vld [vmem:[#allocation2 + $0x10a] sm:$0xff]
    %v793 = vld [vmem:[#allocation2 + $0x112] sm:$0xff]
    %v794 = vld [vmem:[#allocation2 + $0x122] sm:$0xff]
    %v795 = vld [vmem:[#allocation2 + $0x12a] sm:$0xff]
    %v796 = vld [vmem:[#allocation2 + $0x13a] sm:$0xff]
    %v797 = vld [vmem:[#allocation2 + $0x142] sm:$0xff]
    %v798 = vld [vmem:[#allocation2 + $0x152] sm:$0xff]
    %v799 = vld [vmem:[#allocation2 + $0x15a] sm:$0xff]
    %v800 = vld [vmem:[#allocation2 + $0x16a] sm:$0xff]
    %v801 = vld [vmem:[#allocation2 + $0x172] sm:$0xff]
    %v802 = vld [vmem:[#allocation2 + $0x1b2] sm:$0xff]
    %v803 = vld [vmem:[#allocation2 + $0x1ba] sm:$0xff]
    %v804 = vld [vmem:[#allocation2 + $0x1ca] sm:$0xff]
    %v805 = vld [vmem:[#allocation2 + $0x1d2] sm:$0xff]
    %v806 = vld [vmem:[#allocation2 + $0x1e2] sm:$0xff]
    %v807 = vld [vmem:[#allocation2 + $0x1ea] sm:$0xff]
    %v808 = vld [vmem:[#allocation2 + $0x1fa] sm:$0xff]
    %v809 = vld [vmem:[#allocation2 + $0x202] sm:$0xff]
    %v810 = vld [vmem:[#allocation2 + $0x212] sm:$0xff]
    %v811 = vld [vmem:[#allocation2 + $0x21a] sm:$0xff]
    %v812 = vld [vmem:[#allocation2 + $0x22a] sm:$0xff]
    %v813 = vld [vmem:[#allocation2 + $0x232] sm:$0xff]
    %v814 = vld [vmem:[#allocation2 + $0x242] sm:$0xff]
    %v815 = vld [vmem:[#allocation2 + $0x24a] sm:$0xff]
    %v816 = vld [vmem:[#allocation2 + $0x25a] sm:$0xff]
    %v817 = vld [vmem:[#allocation2 + $0x262] sm:$0xff]
    %v818 = vld [vmem:[#allocation2 + $0x272] sm:$0xff]
    %v819 = vld [vmem:[#allocation2 + $0x27a] sm:$0xff]
    %v820 = vld [vmem:[#allocation2 + $0x28a] sm:$0xff]
    %v821 = vld [vmem:[#allocation2 + $0x292] sm:$0xff]
    %v822 = vld [vmem:[#allocation2 + $0x2a2] sm:$0xff]
    %v823 = vld [vmem:[#allocation2 + $0x2aa] sm:$0xff]
    %v824 = vld [vmem:[#allocation2 + $0x2ba] sm:$0xff]
    %v825 = vld [vmem:[#allocation2 + $0x2c2] sm:$0xff]
    %v826 = vld [vmem:[#allocation2 + $0x2d2] sm:$0xff]
    %v827 = vld [vmem:[#allocation2 + $0x2da] sm:$0xff]
    %v828 = vld [vmem:[#allocation2 + $0x2ea] sm:$0xff]
    %v829 = vld [vmem:[#allocation2 + $0x2f2] sm:$0xff]
    %v830 = vld [vmem:[#allocation2 + $0x302] sm:$0xff]
    %v831 = vld [vmem:[#allocation2 + $0x30a] sm:$0xff]
    %v832 = vld [vmem:[#allocation2 + $0x31a] sm:$0xff]
    %v833 = vld [vmem:[#allocation2 + $0x322] sm:$0xff]
    %v834 = vld [vmem:[%s193] sm:$0xff]
    %v835 = vld [vmem:[%s193 + $0x8] sm:$0xff]
    %v836 = vld [vmem:[%s193 + $0x18] sm:$0xff]
    %v837 = vld [vmem:[%s193 + $0x20] sm:$0xff]
    %v838 = vld [vmem:[%s193 + $0x30] sm:$0xff]
    %v839 = vld [vmem:[%s193 + $0x38] sm:$0xff]
    %v840 = vld [vmem:[%s193 + $0x48] sm:$0xff]
    %v841 = vld [vmem:[%s193 + $0x50] sm:$0xff]
    %v842 = vld [vmem:[%s193 + $0x60] sm:$0xff]
    %v843 = vld [vmem:[%s193 + $0x68] sm:$0xff]
    %v844 = vld [vmem:[%s193 + $0x78] sm:$0xff]
    %v845 = vld [vmem:[%s193 + $0x80] sm:$0xff]
    %v846 = vld [vmem:[%s193 + $0x90] sm:$0xff]
    %v847 = vld [vmem:[%s193 + $0x98] sm:$0xff]
    %v848 = vld [vmem:[%s193 + $0xa8] sm:$0xff]
    %v849 = vld [vmem:[%s193 + $0xb0] sm:$0xff]
    %v850 = vld [vmem:[%s193 + $0xc0] sm:$0xff]
    %v851 = vld [vmem:[%s193 + $0xc8] sm:$0xff]
    %v852 = vld [vmem:[%s193 + $0xd8] sm:$0xff]
    %v853 = vld [vmem:[%s193 + $0xe0] sm:$0xff]
    %v854 = vld [vmem:[%s193 + $0xf0] sm:$0xff]
    %v855 = vld [vmem:[%s193 + $0xf8] sm:$0xff]
    %v856 = vld [vmem:[%s193 + $0x108] sm:$0xff]
    %v857 = vld [vmem:[%s193 + $0x110] sm:$0xff]
    %v858 = vld [vmem:[%s193 + $0x120] sm:$0xff]
    %v859 = vld [vmem:[%s193 + $0x128] sm:$0xff]
    %v860 = vld [vmem:[%s193 + $0x138] sm:$0xff]
    %v861 = vld [vmem:[%s193 + $0x140] sm:$0xff]
    %v862 = vld [vmem:[%s193 + $0x150] sm:$0xff]
    %v863 = vld [vmem:[%s193 + $0x158] sm:$0xff]
    %v864 = vld [vmem:[%s193 + $0x168] sm:$0xff]
    %v865 = vld [vmem:[%s193 + $0x170] sm:$0xff]
    %v866 = vld [vmem:[%s193 + $0x1b0] sm:$0xff]
    %v867 = vld [vmem:[%s193 + $0x1b8] sm:$0xff]
    %v868 = vld [vmem:[%s193 + $0x1c8] sm:$0xff]
    %v869 = vld [vmem:[%s193 + $0x1d0] sm:$0xff]
    %v870 = vld [vmem:[%s193 + $0x1e0] sm:$0xff]
    %v871 = vld [vmem:[%s193 + $0x1e8] sm:$0xff]
    %v872 = vld [vmem:[%s193 + $0x1f8] sm:$0xff]
    %v873 = vld [vmem:[%s193 + $0x200] sm:$0xff]
    %v874 = vld [vmem:[%s193 + $0x210] sm:$0xff]
    %v875 = vld [vmem:[%s193 + $0x218] sm:$0xff]
    %v876 = vld [vmem:[%s193 + $0x228] sm:$0xff]
    %v877 = vld [vmem:[%s193 + $0x230] sm:$0xff]
    %v878 = vld [vmem:[%s193 + $0x240] sm:$0xff]
    %v879 = vld [vmem:[%s193 + $0x248] sm:$0xff]
    %v880 = vld [vmem:[%s193 + $0x258] sm:$0xff]
    %v881 = vld [vmem:[%s193 + $0x260] sm:$0xff]
    %v882 = vld [vmem:[%s193 + $0x270] sm:$0xff]
    %v883 = vld [vmem:[%s193 + $0x278] sm:$0xff]
    %v884 = vld [vmem:[%s193 + $0x288] sm:$0xff]
    %v885 = vld [vmem:[%s193 + $0x290] sm:$0xff]
    %v886 = vld [vmem:[%s193 + $0x2a0] sm:$0xff]
    %v887 = vld [vmem:[%s193 + $0x2a8] sm:$0xff]
    %v888 = vld [vmem:[%s193 + $0x2b8] sm:$0xff]
    %v889 = vld [vmem:[%s193 + $0x2c0] sm:$0xff]
    %v890 = vld [vmem:[%s193 + $0x2d0] sm:$0xff]
    %v891 = vld [vmem:[%s193 + $0x2d8] sm:$0xff]
    %v892 = vld [vmem:[%s193 + $0x2e8] sm:$0xff]
    %v893 = vld [vmem:[%s193 + $0x2f0] sm:$0xff]
    %v894 = vld [vmem:[%s193 + $0x300] sm:$0xff]
    %v895 = vld [vmem:[%s193 + $0x308] sm:$0xff]
    %v896 = vld [vmem:[%s193 + $0x318] sm:$0xff]
    %v897 = vld [vmem:[%s193 + $0x320] sm:$0xff]
    %962 = vrot.lane.b32.xlu0 %v834, 64
    %v963 = vpop.permute.xlu0 %962
    %964 = vrot.lane.b32.xlu0 %v835, 64
    %v965 = vpop.permute.xlu0 %964
    %966 = vrot.lane.b32.xlu0 %v836, 64
    %v967 = vpop.permute.xlu0 %966
    %968 = vrot.lane.b32.xlu0 %v837, 64
    %v969 = vpop.permute.xlu0 %968
    %970 = vrot.lane.b32.xlu0 %v838, 64
    %v971 = vpop.permute.xlu0 %970
    %972 = vrot.lane.b32.xlu0 %v839, 64
    %v973 = vpop.permute.xlu0 %972
    %974 = vrot.lane.b32.xlu0 %v840, 64
    %v975 = vpop.permute.xlu0 %974
    %976 = vrot.lane.b32.xlu0 %v841, 64
    %v977 = vpop.permute.xlu0 %976
    %978 = vrot.lane.b32.xlu0 %v842, 64
    %v979 = vpop.permute.xlu0 %978
    %980 = vrot.lane.b32.xlu0 %v843, 64
    %v981 = vpop.permute.xlu0 %980
    %982 = vrot.lane.b32.xlu0 %v844, 64
    %v983 = vpop.permute.xlu0 %982
    %984 = vrot.lane.b32.xlu0 %v845, 64
    %v985 = vpop.permute.xlu0 %984
    %986 = vrot.lane.b32.xlu0 %v846, 64
    %v987 = vpop.permute.xlu0 %986
    %988 = vrot.lane.b32.xlu0 %v847, 64
    %v989 = vpop.permute.xlu0 %988
    %990 = vrot.lane.b32.xlu0 %v848, 64
    %v991 = vpop.permute.xlu0 %990
    %992 = vrot.lane.b32.xlu0 %v849, 64
    %v993 = vpop.permute.xlu0 %992
    %994 = vrot.lane.b32.xlu0 %v850, 64
    %v995 = vpop.permute.xlu0 %994
    %996 = vrot.lane.b32.xlu0 %v851, 64
    %v997 = vpop.permute.xlu0 %996
    %998 = vrot.lane.b32.xlu0 %v852, 64
    %v999 = vpop.permute.xlu0 %998
    %1000 = vrot.lane.b32.xlu0 %v853, 64
    %v1001 = vpop.permute.xlu0 %1000
    %1002 = vrot.lane.b32.xlu0 %v854, 64
    %v1003 = vpop.permute.xlu0 %1002
    %1004 = vrot.lane.b32.xlu0 %v855, 64
    %v1005 = vpop.permute.xlu0 %1004
    %1006 = vrot.lane.b32.xlu0 %v856, 64
    %v1007 = vpop.permute.xlu0 %1006
    %1008 = vrot.lane.b32.xlu0 %v857, 64
    %v1009 = vpop.permute.xlu0 %1008
    %1010 = vrot.lane.b32.xlu0 %v858, 64
    %v1011 = vpop.permute.xlu0 %1010
    %1012 = vrot.lane.b32.xlu0 %v859, 64
    %v1013 = vpop.permute.xlu0 %1012
    %1014 = vrot.lane.b32.xlu0 %v860, 64
    %v1015 = vpop.permute.xlu0 %1014
    %1016 = vrot.lane.b32.xlu0 %v861, 64
    %v1017 = vpop.permute.xlu0 %1016
    %1018 = vrot.lane.b32.xlu0 %v862, 64
    %v1019 = vpop.permute.xlu0 %1018
    %1020 = vrot.lane.b32.xlu0 %v863, 64
    %v1021 = vpop.permute.xlu0 %1020
    %1022 = vrot.lane.b32.xlu0 %v864, 64
    %v1023 = vpop.permute.xlu0 %1022
    %1024 = vrot.lane.b32.xlu0 %v865, 64
    %v1025 = vpop.permute.xlu0 %1024
    %1026 = vrot.lane.b32.xlu0 %v866, 64
    %v1027 = vpop.permute.xlu0 %1026
    %1028 = vrot.lane.b32.xlu0 %v867, 64
    %v1029 = vpop.permute.xlu0 %1028
    %1030 = vrot.lane.b32.xlu0 %v868, 64
    %v1031 = vpop.permute.xlu0 %1030
    %1032 = vrot.lane.b32.xlu0 %v869, 64
    %v1033 = vpop.permute.xlu0 %1032
    %1034 = vrot.lane.b32.xlu0 %v870, 64
    %v1035 = vpop.permute.xlu0 %1034
    %1036 = vrot.lane.b32.xlu0 %v871, 64
    %v1037 = vpop.permute.xlu0 %1036
    %1038 = vrot.lane.b32.xlu0 %v872, 64
    %v1039 = vpop.permute.xlu0 %1038
    %1040 = vrot.lane.b32.xlu0 %v873, 64
    %v1041 = vpop.permute.xlu0 %1040
    %1042 = vrot.lane.b32.xlu0 %v874, 64
    %v1043 = vpop.permute.xlu0 %1042
    %1044 = vrot.lane.b32.xlu0 %v875, 64
    %v1045 = vpop.permute.xlu0 %1044
    %1046 = vrot.lane.b32.xlu0 %v876, 64
    %v1047 = vpop.permute.xlu0 %1046
    %1048 = vrot.lane.b32.xlu0 %v877, 64
    %v1049 = vpop.permute.xlu0 %1048
    %1050 = vrot.lane.b32.xlu0 %v878, 64
    %v1051 = vpop.permute.xlu0 %1050
    %1052 = vrot.lane.b32.xlu0 %v879, 64
    %v1053 = vpop.permute.xlu0 %1052
    %1054 = vrot.lane.b32.xlu0 %v880, 64
    %v1055 = vpop.permute.xlu0 %1054
    %1056 = vrot.lane.b32.xlu0 %v881, 64
    %v1057 = vpop.permute.xlu0 %1056
    %1058 = vrot.lane.b32.xlu0 %v882, 64
    %v1059 = vpop.permute.xlu0 %1058
    %1060 = vrot.lane.b32.xlu0 %v883, 64
    %v1061 = vpop.permute.xlu0 %1060
    %1062 = vrot.lane.b32.xlu0 %v884, 64
    %v1063 = vpop.permute.xlu0 %1062
    %1064 = vrot.lane.b32.xlu0 %v885, 64
    %v1065 = vpop.permute.xlu0 %1064
    %1066 = vrot.lane.b32.xlu0 %v886, 64
    %v1067 = vpop.permute.xlu0 %1066
    %1068 = vrot.lane.b32.xlu0 %v887, 64
    %v1069 = vpop.permute.xlu0 %1068
    %1070 = vrot.lane.b32.xlu0 %v888, 64
    %v1071 = vpop.permute.xlu0 %1070
    %1072 = vrot.lane.b32.xlu0 %v889, 64
    %v1073 = vpop.permute.xlu0 %1072
    %1074 = vrot.lane.b32.xlu0 %v890, 64
    %v1075 = vpop.permute.xlu0 %1074
    %1076 = vrot.lane.b32.xlu0 %v891, 64
    %v1077 = vpop.permute.xlu0 %1076
    %1078 = vrot.lane.b32.xlu0 %v892, 64
    %v1079 = vpop.permute.xlu0 %1078
    %1080 = vrot.lane.b32.xlu0 %v893, 64
    %v1081 = vpop.permute.xlu0 %1080
    %1082 = vrot.lane.b32.xlu0 %v894, 64
    %v1083 = vpop.permute.xlu0 %1082
    %1084 = vrot.lane.b32.xlu0 %v895, 64
    %v1085 = vpop.permute.xlu0 %1084
    %1086 = vrot.lane.b32.xlu0 %v896, 64
    %v1087 = vpop.permute.xlu0 %1086
    %1088 = vrot.lane.b32.xlu0 %v897, 64
    %v1089 = vpop.permute.xlu0 %1088
    %v1154 = vsel %vm41, %v770, %v963
    %v1155 = vsel %vm41, %v771, %v965
    %v1156 = vsel %vm41, %v772, %v967
    %v1157 = vsel %vm41, %v773, %v969
    %v1158 = vsel %vm41, %v774, %v971
    %v1159 = vsel %vm41, %v775, %v973
    %v1160 = vsel %vm41, %v776, %v975
    %v1161 = vsel %vm41, %v777, %v977
    %v1162 = vsel %vm41, %v778, %v979
    %v1163 = vsel %vm41, %v779, %v981
    %v1164 = vsel %vm41, %v780, %v983
    %v1165 = vsel %vm41, %v781, %v985
    %v1166 = vsel %vm41, %v782, %v987
    %v1167 = vsel %vm41, %v783, %v989
    %v1168 = vsel %vm41, %v784, %v991
    %v1169 = vsel %vm41, %v785, %v993
    %v1170 = vsel %vm41, %v786, %v995
    %v1171 = vsel %vm41, %v787, %v997
    %v1172 = vsel %vm41, %v788, %v999
    %v1173 = vsel %vm41, %v789, %v1001
    %v1174 = vsel %vm41, %v790, %v1003
    %v1175 = vsel %vm41, %v791, %v1005
    %v1176 = vsel %vm41, %v792, %v1007
    %v1177 = vsel %vm41, %v793, %v1009
    %v1178 = vsel %vm41, %v794, %v1011
    %v1179 = vsel %vm41, %v795, %v1013
    %v1180 = vsel %vm41, %v796, %v1015
    %v1181 = vsel %vm41, %v797, %v1017
    %v1182 = vsel %vm41, %v798, %v1019
    %v1183 = vsel %vm41, %v799, %v1021
    %v1184 = vsel %vm41, %v800, %v1023
    %v1185 = vsel %vm41, %v801, %v1025
    %v1186 = vsel %vm41, %v802, %v1027
    %v1187 = vsel %vm41, %v803, %v1029
    %v1188 = vsel %vm41, %v804, %v1031
    %v1189 = vsel %vm41, %v805, %v1033
    %v1190 = vsel %vm41, %v806, %v1035
    %v1191 = vsel %vm41, %v807, %v1037
    %v1192 = vsel %vm41, %v808, %v1039
    %v1193 = vsel %vm41, %v809, %v1041
    %v1194 = vsel %vm41, %v810, %v1043
    %v1195 = vsel %vm41, %v811, %v1045
    %v1196 = vsel %vm41, %v812, %v1047
    %v1197 = vsel %vm41, %v813, %v1049
    %v1198 = vsel %vm41, %v814, %v1051
    %v1199 = vsel %vm41, %v815, %v1053
    %v1200 = vsel %vm41, %v816, %v1055
    %v1201 = vsel %vm41, %v817, %v1057
    %v1202 = vsel %vm41, %v818, %v1059
    %v1203 = vsel %vm41, %v819, %v1061
    %v1204 = vsel %vm41, %v820, %v1063
    %v1205 = vsel %vm41, %v821, %v1065
    %v1206 = vsel %vm41, %v822, %v1067
    %v1207 = vsel %vm41, %v823, %v1069
    %v1208 = vsel %vm41, %v824, %v1071
    %v1209 = vsel %vm41, %v825, %v1073
    %v1210 = vsel %vm41, %v826, %v1075
    %v1211 = vsel %vm41, %v827, %v1077
    %v1212 = vsel %vm41, %v828, %v1079
    %v1213 = vsel %vm41, %v829, %v1081
    %v1214 = vsel %vm41, %v830, %v1083
    %v1215 = vsel %vm41, %v831, %v1085
    %v1216 = vsel %vm41, %v832, %v1087
    %v1217 = vsel %vm41, %v833, %v1089
    %v1218 = vpack.c.bf16 %v1155, %v1154
    %v1219 = vpack.c.bf16 %v1157, %v1156
    %v1220 = vpack.c.bf16 %v1159, %v1158
    %v1221 = vpack.c.bf16 %v1161, %v1160
    %v1222 = vpack.c.bf16 %v1163, %v1162
    %v1223 = vpack.c.bf16 %v1165, %v1164
    %v1224 = vpack.c.bf16 %v1167, %v1166
    %v1225 = vpack.c.bf16 %v1169, %v1168
    %v1226 = vpack.c.bf16 %v1171, %v1170
    %v1227 = vpack.c.bf16 %v1173, %v1172
    %v1228 = vpack.c.bf16 %v1175, %v1174
    %v1229 = vpack.c.bf16 %v1177, %v1176
    %v1230 = vpack.c.bf16 %v1179, %v1178
    %v1231 = vpack.c.bf16 %v1181, %v1180
    %v1232 = vpack.c.bf16 %v1183, %v1182
    %v1233 = vpack.c.bf16 %v1185, %v1184
    %v1234 = vpack.c.bf16 %v1187, %v1186
    %v1235 = vpack.c.bf16 %v1189, %v1188
    %v1236 = vpack.c.bf16 %v1191, %v1190
    %v1237 = vpack.c.bf16 %v1193, %v1192
    %v1238 = vpack.c.bf16 %v1195, %v1194
    %v1239 = vpack.c.bf16 %v1197, %v1196
    %v1240 = vpack.c.bf16 %v1199, %v1198
    %v1241 = vpack.c.bf16 %v1201, %v1200
    %v1242 = vpack.c.bf16 %v1203, %v1202
    %v1243 = vpack.c.bf16 %v1205, %v1204
    %v1244 = vpack.c.bf16 %v1207, %v1206
    %v1245 = vpack.c.bf16 %v1209, %v1208
    %v1246 = vpack.c.bf16 %v1211, %v1210
    %v1247 = vpack.c.bf16 %v1213, %v1212
    %v1248 = vpack.c.bf16 %v1215, %v1214
    %v1249 = vpack.c.bf16 %v1217, %v1216
    %1250 = vst [vmem:[#allocation3 + $0x8] sm:$0xff] %v1218
    %1251 = vst [vmem:[#allocation3 + $0x30] sm:$0xff] %v1219
    %1252 = vst [vmem:[#allocation3 + $0x58] sm:$0xff] %v1220
    %1253 = vst [vmem:[#allocation3 + $0x80] sm:$0xff] %v1221
    %1254 = vst [vmem:[#allocation3 + $0xa8] sm:$0xff] %v1222
    %1255 = vst [vmem:[#allocation3 + $0xd0] sm:$0xff] %v1223
    %1256 = vst [vmem:[#allocation3 + $0xf8] sm:$0xff] %v1224
    %1257 = vst [vmem:[#allocation3 + $0x120] sm:$0xff] %v1225
    %1258 = vst [vmem:[#allocation3 + $0x148] sm:$0xff] %v1226
    %1259 = vst [vmem:[#allocation3 + $0x170] sm:$0xff] %v1227
    %1260 = vst [vmem:[#allocation3 + $0x198] sm:$0xff] %v1228
    %1261 = vst [vmem:[#allocation3 + $0x1c0] sm:$0xff] %v1229
    %1262 = vst [vmem:[#allocation3 + $0x1e8] sm:$0xff] %v1230
    %1263 = vst [vmem:[#allocation3 + $0x210] sm:$0xff] %v1231
    %1264 = vst [vmem:[#allocation3 + $0x238] sm:$0xff] %v1232
    %1265 = vst [vmem:[#allocation3 + $0x260] sm:$0xff] %v1233
    %1266 = vst [vmem:[#allocation3 + $0x288] sm:$0xff] %v1234
    %1267 = vst [vmem:[#allocation3 + $0x2b0] sm:$0xff] %v1235
    %1268 = vst [vmem:[#allocation3 + $0x2d8] sm:$0xff] %v1236
    %1269 = vst [vmem:[#allocation3 + $0x300] sm:$0xff] %v1237
    %1270 = vst [vmem:[#allocation3 + $0x328] sm:$0xff] %v1238
    %1271 = vst [vmem:[#allocation3 + $0x350] sm:$0xff] %v1239
    %1272 = vst [vmem:[#allocation3 + $0x378] sm:$0xff] %v1240
    %1273 = vst [vmem:[#allocation3 + $0x3a0] sm:$0xff] %v1241
    %1274 = vst [vmem:[#allocation3 + $0x3c8] sm:$0xff] %v1242
    %1275 = vst [vmem:[#allocation3 + $0x3f0] sm:$0xff] %v1243
    %1276 = vst [vmem:[#allocation3 + $0x418] sm:$0xff] %v1244
    %1277 = vst [vmem:[#allocation3 + $0x440] sm:$0xff] %v1245
    %1278 = vst [vmem:[#allocation3 + $0x468] sm:$0xff] %v1246
    %1279 = vst [vmem:[#allocation3 + $0x490] sm:$0xff] %v1247
    %1280 = vst [vmem:[#allocation3 + $0x4b8] sm:$0xff] %v1248
    %1281 = vst [vmem:[#allocation3 + $0x4e0] sm:$0xff] %v1249
    %v1282 = vld [vmem:[%s193 + $0x1] sm:$0xff]
    %v1283 = vld [vmem:[%s193 + $0x9] sm:$0xff]
    %v1284 = vld [vmem:[%s193 + $0x19] sm:$0xff]
    %v1285 = vld [vmem:[%s193 + $0x21] sm:$0xff]
    %v1286 = vld [vmem:[%s193 + $0x31] sm:$0xff]
    %v1287 = vld [vmem:[%s193 + $0x39] sm:$0xff]
    %v1288 = vld [vmem:[%s193 + $0x49] sm:$0xff]
    %v1289 = vld [vmem:[%s193 + $0x51] sm:$0xff]
    %v1290 = vld [vmem:[%s193 + $0x61] sm:$0xff]
    %v1291 = vld [vmem:[%s193 + $0x69] sm:$0xff]
    %v1292 = vld [vmem:[%s193 + $0x79] sm:$0xff]
    %v1293 = vld [vmem:[%s193 + $0x81] sm:$0xff]
    %v1294 = vld [vmem:[%s193 + $0x91] sm:$0xff]
    %v1295 = vld [vmem:[%s193 + $0x99] sm:$0xff]
    %v1296 = vld [vmem:[%s193 + $0xa9] sm:$0xff]
    %v1297 = vld [vmem:[%s193 + $0xb1] sm:$0xff]
    %v1298 = vld [vmem:[%s193 + $0xc1] sm:$0xff]
    %v1299 = vld [vmem:[%s193 + $0xc9] sm:$0xff]
    %v1300 = vld [vmem:[%s193 + $0xd9] sm:$0xff]
    %v1301 = vld [vmem:[%s193 + $0xe1] sm:$0xff]
    %v1302 = vld [vmem:[%s193 + $0xf1] sm:$0xff]
    %v1303 = vld [vmem:[%s193 + $0xf9] sm:$0xff]
    %v1304 = vld [vmem:[%s193 + $0x109] sm:$0xff]
    %v1305 = vld [vmem:[%s193 + $0x111] sm:$0xff]
    %v1306 = vld [vmem:[%s193 + $0x121] sm:$0xff]
    %v1307 = vld [vmem:[%s193 + $0x129] sm:$0xff]
    %v1308 = vld [vmem:[%s193 + $0x139] sm:$0xff]
    %v1309 = vld [vmem:[%s193 + $0x141] sm:$0xff]
    %v1310 = vld [vmem:[%s193 + $0x151] sm:$0xff]
    %v1311 = vld [vmem:[%s193 + $0x159] sm:$0xff]
    %v1312 = vld [vmem:[%s193 + $0x169] sm:$0xff]
    %v1313 = vld [vmem:[%s193 + $0x171] sm:$0xff]
    %v1314 = vld [vmem:[%s193 + $0x1b1] sm:$0xff]
    %v1315 = vld [vmem:[%s193 + $0x1b9] sm:$0xff]
    %v1316 = vld [vmem:[%s193 + $0x1c9] sm:$0xff]
    %v1317 = vld [vmem:[%s193 + $0x1d1] sm:$0xff]
    %v1318 = vld [vmem:[%s193 + $0x1e1] sm:$0xff]
    %v1319 = vld [vmem:[%s193 + $0x1e9] sm:$0xff]
    %v1320 = vld [vmem:[%s193 + $0x1f9] sm:$0xff]
    %v1321 = vld [vmem:[%s193 + $0x201] sm:$0xff]
    %v1322 = vld [vmem:[%s193 + $0x211] sm:$0xff]
    %v1323 = vld [vmem:[%s193 + $0x219] sm:$0xff]
    %v1324 = vld [vmem:[%s193 + $0x229] sm:$0xff]
    %v1325 = vld [vmem:[%s193 + $0x231] sm:$0xff]
    %v1326 = vld [vmem:[%s193 + $0x241] sm:$0xff]
    %v1327 = vld [vmem:[%s193 + $0x249] sm:$0xff]
    %v1328 = vld [vmem:[%s193 + $0x259] sm:$0xff]
    %v1329 = vld [vmem:[%s193 + $0x261] sm:$0xff]
    %v1330 = vld [vmem:[%s193 + $0x271] sm:$0xff]
    %v1331 = vld [vmem:[%s193 + $0x279] sm:$0xff]
    %v1332 = vld [vmem:[%s193 + $0x289] sm:$0xff]
    %v1333 = vld [vmem:[%s193 + $0x291] sm:$0xff]
    %v1334 = vld [vmem:[%s193 + $0x2a1] sm:$0xff]
    %v1335 = vld [vmem:[%s193 + $0x2a9] sm:$0xff]
    %v1336 = vld [vmem:[%s193 + $0x2b9] sm:$0xff]
    %v1337 = vld [vmem:[%s193 + $0x2c1] sm:$0xff]
    %v1338 = vld [vmem:[%s193 + $0x2d1] sm:$0xff]
    %v1339 = vld [vmem:[%s193 + $0x2d9] sm:$0xff]
    %v1340 = vld [vmem:[%s193 + $0x2e9] sm:$0xff]
    %v1341 = vld [vmem:[%s193 + $0x2f1] sm:$0xff]
    %v1342 = vld [vmem:[%s193 + $0x301] sm:$0xff]
    %v1343 = vld [vmem:[%s193 + $0x309] sm:$0xff]
    %v1344 = vld [vmem:[%s193 + $0x319] sm:$0xff]
    %v1345 = vld [vmem:[%s193 + $0x321] sm:$0xff]
    %v1346 = vld [vmem:[%s193 + $0x2] sm:$0xff]
    %v1347 = vld [vmem:[%s193 + $0xa] sm:$0xff]
    %v1348 = vld [vmem:[%s193 + $0x1a] sm:$0xff]
    %v1349 = vld [vmem:[%s193 + $0x22] sm:$0xff]
    %v1350 = vld [vmem:[%s193 + $0x32] sm:$0xff]
    %v1351 = vld [vmem:[%s193 + $0x3a] sm:$0xff]
    %v1352 = vld [vmem:[%s193 + $0x4a] sm:$0xff]
    %v1353 = vld [vmem:[%s193 + $0x52] sm:$0xff]
    %v1354 = vld [vmem:[%s193 + $0x62] sm:$0xff]
    %v1355 = vld [vmem:[%s193 + $0x6a] sm:$0xff]
    %v1356 = vld [vmem:[%s193 + $0x7a] sm:$0xff]
    %v1357 = vld [vmem:[%s193 + $0x82] sm:$0xff]
    %v1358 = vld [vmem:[%s193 + $0x92] sm:$0xff]
    %v1359 = vld [vmem:[%s193 + $0x9a] sm:$0xff]
    %v1360 = vld [vmem:[%s193 + $0xaa] sm:$0xff]
    %v1361 = vld [vmem:[%s193 + $0xb2] sm:$0xff]
    %v1362 = vld [vmem:[%s193 + $0xc2] sm:$0xff]
    %v1363 = vld [vmem:[%s193 + $0xca] sm:$0xff]
    %v1364 = vld [vmem:[%s193 + $0xda] sm:$0xff]
    %v1365 = vld [vmem:[%s193 + $0xe2] sm:$0xff]
    %v1366 = vld [vmem:[%s193 + $0xf2] sm:$0xff]
    %v1367 = vld [vmem:[%s193 + $0xfa] sm:$0xff]
    %v1368 = vld [vmem:[%s193 + $0x10a] sm:$0xff]
    %v1369 = vld [vmem:[%s193 + $0x112] sm:$0xff]
    %v1370 = vld [vmem:[%s193 + $0x122] sm:$0xff]
    %v1371 = vld [vmem:[%s193 + $0x12a] sm:$0xff]
    %v1372 = vld [vmem:[%s193 + $0x13a] sm:$0xff]
    %v1373 = vld [vmem:[%s193 + $0x142] sm:$0xff]
    %v1374 = vld [vmem:[%s193 + $0x152] sm:$0xff]
    %v1375 = vld [vmem:[%s193 + $0x15a] sm:$0xff]
    %v1376 = vld [vmem:[%s193 + $0x16a] sm:$0xff]
    %v1377 = vld [vmem:[%s193 + $0x172] sm:$0xff]
    %v1378 = vld [vmem:[%s193 + $0x1b2] sm:$0xff]
    %v1379 = vld [vmem:[%s193 + $0x1ba] sm:$0xff]
    %v1380 = vld [vmem:[%s193 + $0x1ca] sm:$0xff]
    %v1381 = vld [vmem:[%s193 + $0x1d2] sm:$0xff]
    %v1382 = vld [vmem:[%s193 + $0x1e2] sm:$0xff]
    %v1383 = vld [vmem:[%s193 + $0x1ea] sm:$0xff]
    %v1384 = vld [vmem:[%s193 + $0x1fa] sm:$0xff]
    %v1385 = vld [vmem:[%s193 + $0x202] sm:$0xff]
    %v1386 = vld [vmem:[%s193 + $0x212] sm:$0xff]
    %v1387 = vld [vmem:[%s193 + $0x21a] sm:$0xff]
    %v1388 = vld [vmem:[%s193 + $0x22a] sm:$0xff]
    %v1389 = vld [vmem:[%s193 + $0x232] sm:$0xff]
    %v1390 = vld [vmem:[%s193 + $0x242] sm:$0xff]
    %v1391 = vld [vmem:[%s193 + $0x24a] sm:$0xff]
    %v1392 = vld [vmem:[%s193 + $0x25a] sm:$0xff]
    %v1393 = vld [vmem:[%s193 + $0x262] sm:$0xff]
    %v1394 = vld [vmem:[%s193 + $0x272] sm:$0xff]
    %v1395 = vld [vmem:[%s193 + $0x27a] sm:$0xff]
    %v1396 = vld [vmem:[%s193 + $0x28a] sm:$0xff]
    %v1397 = vld [vmem:[%s193 + $0x292] sm:$0xff]
    %v1398 = vld [vmem:[%s193 + $0x2a2] sm:$0xff]
    %v1399 = vld [vmem:[%s193 + $0x2aa] sm:$0xff]
    %v1400 = vld [vmem:[%s193 + $0x2ba] sm:$0xff]
    %v1401 = vld [vmem:[%s193 + $0x2c2] sm:$0xff]
    %v1402 = vld [vmem:[%s193 + $0x2d2] sm:$0xff]
    %v1403 = vld [vmem:[%s193 + $0x2da] sm:$0xff]
    %v1404 = vld [vmem:[%s193 + $0x2ea] sm:$0xff]
    %v1405 = vld [vmem:[%s193 + $0x2f2] sm:$0xff]
    %v1406 = vld [vmem:[%s193 + $0x302] sm:$0xff]
    %v1407 = vld [vmem:[%s193 + $0x30a] sm:$0xff]
    %v1408 = vld [vmem:[%s193 + $0x31a] sm:$0xff]
    %v1409 = vld [vmem:[%s193 + $0x322] sm:$0xff]
    %1474 = vrot.lane.b32.xlu0 %v1346, 64
    %v1475 = vpop.permute.xlu0 %1474
    %1476 = vrot.lane.b32.xlu0 %v1347, 64
    %v1477 = vpop.permute.xlu0 %1476
    %1478 = vrot.lane.b32.xlu0 %v1348, 64
    %v1479 = vpop.permute.xlu0 %1478
    %1480 = vrot.lane.b32.xlu0 %v1349, 64
    %v1481 = vpop.permute.xlu0 %1480
    %1482 = vrot.lane.b32.xlu0 %v1350, 64
    %v1483 = vpop.permute.xlu0 %1482
    %1484 = vrot.lane.b32.xlu0 %v1351, 64
    %v1485 = vpop.permute.xlu0 %1484
    %1486 = vrot.lane.b32.xlu0 %v1352, 64
    %v1487 = vpop.permute.xlu0 %1486
    %1488 = vrot.lane.b32.xlu0 %v1353, 64
    %v1489 = vpop.permute.xlu0 %1488
    %1490 = vrot.lane.b32.xlu0 %v1354, 64
    %v1491 = vpop.permute.xlu0 %1490
    %1492 = vrot.lane.b32.xlu0 %v1355, 64
    %v1493 = vpop.permute.xlu0 %1492
    %1494 = vrot.lane.b32.xlu0 %v1356, 64
    %v1495 = vpop.permute.xlu0 %1494
    %1496 = vrot.lane.b32.xlu0 %v1357, 64
    %v1497 = vpop.permute.xlu0 %1496
    %1498 = vrot.lane.b32.xlu0 %v1358, 64
    %v1499 = vpop.permute.xlu0 %1498
    %1500 = vrot.lane.b32.xlu0 %v1359, 64
    %v1501 = vpop.permute.xlu0 %1500
    %1502 = vrot.lane.b32.xlu0 %v1360, 64
    %v1503 = vpop.permute.xlu0 %1502
    %1504 = vrot.lane.b32.xlu0 %v1361, 64
    %v1505 = vpop.permute.xlu0 %1504
    %1506 = vrot.lane.b32.xlu0 %v1362, 64
    %v1507 = vpop.permute.xlu0 %1506
    %1508 = vrot.lane.b32.xlu0 %v1363, 64
    %v1509 = vpop.permute.xlu0 %1508
    %1510 = vrot.lane.b32.xlu0 %v1364, 64
    %v1511 = vpop.permute.xlu0 %1510
    %1512 = vrot.lane.b32.xlu0 %v1365, 64
    %v1513 = vpop.permute.xlu0 %1512
    %1514 = vrot.lane.b32.xlu0 %v1366, 64
    %v1515 = vpop.permute.xlu0 %1514
    %1516 = vrot.lane.b32.xlu0 %v1367, 64
    %v1517 = vpop.permute.xlu0 %1516
    %1518 = vrot.lane.b32.xlu0 %v1368, 64
    %v1519 = vpop.permute.xlu0 %1518
    %1520 = vrot.lane.b32.xlu0 %v1369, 64
    %v1521 = vpop.permute.xlu0 %1520
    %1522 = vrot.lane.b32.xlu0 %v1370, 64
    %v1523 = vpop.permute.xlu0 %1522
    %1524 = vrot.lane.b32.xlu0 %v1371, 64
    %v1525 = vpop.permute.xlu0 %1524
    %1526 = vrot.lane.b32.xlu0 %v1372, 64
    %v1527 = vpop.permute.xlu0 %1526
    %1528 = vrot.lane.b32.xlu0 %v1373, 64
    %v1529 = vpop.permute.xlu0 %1528
    %1530 = vrot.lane.b32.xlu0 %v1374, 64
    %v1531 = vpop.permute.xlu0 %1530
    %1532 = vrot.lane.b32.xlu0 %v1375, 64
    %v1533 = vpop.permute.xlu0 %1532
    %1534 = vrot.lane.b32.xlu0 %v1376, 64
    %v1535 = vpop.permute.xlu0 %1534
    %1536 = vrot.lane.b32.xlu0 %v1377, 64
    %v1537 = vpop.permute.xlu0 %1536
    %1538 = vrot.lane.b32.xlu0 %v1378, 64
    %v1539 = vpop.permute.xlu0 %1538
    %1540 = vrot.lane.b32.xlu0 %v1379, 64
    %v1541 = vpop.permute.xlu0 %1540
    %1542 = vrot.lane.b32.xlu0 %v1380, 64
    %v1543 = vpop.permute.xlu0 %1542
    %1544 = vrot.lane.b32.xlu0 %v1381, 64
    %v1545 = vpop.permute.xlu0 %1544
    %1546 = vrot.lane.b32.xlu0 %v1382, 64
    %v1547 = vpop.permute.xlu0 %1546
    %1548 = vrot.lane.b32.xlu0 %v1383, 64
    %v1549 = vpop.permute.xlu0 %1548
    %1550 = vrot.lane.b32.xlu0 %v1384, 64
    %v1551 = vpop.permute.xlu0 %1550
    %1552 = vrot.lane.b32.xlu0 %v1385, 64
    %v1553 = vpop.permute.xlu0 %1552
    %1554 = vrot.lane.b32.xlu0 %v1386, 64
    %v1555 = vpop.permute.xlu0 %1554
    %1556 = vrot.lane.b32.xlu0 %v1387, 64
    %v1557 = vpop.permute.xlu0 %1556
    %1558 = vrot.lane.b32.xlu0 %v1388, 64
    %v1559 = vpop.permute.xlu0 %1558
    %1560 = vrot.lane.b32.xlu0 %v1389, 64
    %v1561 = vpop.permute.xlu0 %1560
    %1562 = vrot.lane.b32.xlu0 %v1390, 64
    %v1563 = vpop.permute.xlu0 %1562
    %1564 = vrot.lane.b32.xlu0 %v1391, 64
    %v1565 = vpop.permute.xlu0 %1564
    %1566 = vrot.lane.b32.xlu0 %v1392, 64
    %v1567 = vpop.permute.xlu0 %1566
    %1568 = vrot.lane.b32.xlu0 %v1393, 64
    %v1569 = vpop.permute.xlu0 %1568
    %1570 = vrot.lane.b32.xlu0 %v1394, 64
    %v1571 = vpop.permute.xlu0 %1570
    %1572 = vrot.lane.b32.xlu0 %v1395, 64
    %v1573 = vpop.permute.xlu0 %1572
    %1574 = vrot.lane.b32.xlu0 %v1396, 64
    %v1575 = vpop.permute.xlu0 %1574
    %1576 = vrot.lane.b32.xlu0 %v1397, 64
    %v1577 = vpop.permute.xlu0 %1576
    %1578 = vrot.lane.b32.xlu0 %v1398, 64
    %v1579 = vpop.permute.xlu0 %1578
    %1580 = vrot.lane.b32.xlu0 %v1399, 64
    %v1581 = vpop.permute.xlu0 %1580
    %1582 = vrot.lane.b32.xlu0 %v1400, 64
    %v1583 = vpop.permute.xlu0 %1582
    %1584 = vrot.lane.b32.xlu0 %v1401, 64
    %v1585 = vpop.permute.xlu0 %1584
    %1586 = vrot.lane.b32.xlu0 %v1402, 64
    %v1587 = vpop.permute.xlu0 %1586
    %1588 = vrot.lane.b32.xlu0 %v1403, 64
    %v1589 = vpop.permute.xlu0 %1588
    %1590 = vrot.lane.b32.xlu0 %v1404, 64
    %v1591 = vpop.permute.xlu0 %1590
    %1592 = vrot.lane.b32.xlu0 %v1405, 64
    %v1593 = vpop.permute.xlu0 %1592
    %1594 = vrot.lane.b32.xlu0 %v1406, 64
    %v1595 = vpop.permute.xlu0 %1594
    %1596 = vrot.lane.b32.xlu0 %v1407, 64
    %v1597 = vpop.permute.xlu0 %1596
    %1598 = vrot.lane.b32.xlu0 %v1408, 64
    %v1599 = vpop.permute.xlu0 %1598
    %1600 = vrot.lane.b32.xlu0 %v1409, 64
    %v1601 = vpop.permute.xlu0 %1600
    %v1666 = vsel %vm41, %v1282, %v1475
    %v1667 = vsel %vm41, %v1283, %v1477
    %v1668 = vsel %vm41, %v1284, %v1479
    %v1669 = vsel %vm41, %v1285, %v1481
    %v1670 = vsel %vm41, %v1286, %v1483
    %v1671 = vsel %vm41, %v1287, %v1485
    %v1672 = vsel %vm41, %v1288, %v1487
    %v1673 = vsel %vm41, %v1289, %v1489
    %v1674 = vsel %vm41, %v1290, %v1491
    %v1675 = vsel %vm41, %v1291, %v1493
    %v1676 = vsel %vm41, %v1292, %v1495
    %v1677 = vsel %vm41, %v1293, %v1497
    %v1678 = vsel %vm41, %v1294, %v1499
    %v1679 = vsel %vm41, %v1295, %v1501
    %v1680 = vsel %vm41, %v1296, %v1503
    %v1681 = vsel %vm41, %v1297, %v1505
    %v1682 = vsel %vm41, %v1298, %v1507
    %v1683 = vsel %vm41, %v1299, %v1509
    %v1684 = vsel %vm41, %v1300, %v1511
    %v1685 = vsel %vm41, %v1301, %v1513
    %v1686 = vsel %vm41, %v1302, %v1515
    %v1687 = vsel %vm41, %v1303, %v1517
    %v1688 = vsel %vm41, %v1304, %v1519
    %v1689 = vsel %vm41, %v1305, %v1521
    %v1690 = vsel %vm41, %v1306, %v1523
    %v1691 = vsel %vm41, %v1307, %v1525
    %v1692 = vsel %vm41, %v1308, %v1527
    %v1693 = vsel %vm41, %v1309, %v1529
    %v1694 = vsel %vm41, %v1310, %v1531
    %v1695 = vsel %vm41, %v1311, %v1533
    %v1696 = vsel %vm41, %v1312, %v1535
    %v1697 = vsel %vm41, %v1313, %v1537
    %v1698 = vsel %vm41, %v1314, %v1539
    %v1699 = vsel %vm41, %v1315, %v1541
    %v1700 = vsel %vm41, %v1316, %v1543
    %v1701 = vsel %vm41, %v1317, %v1545
    %v1702 = vsel %vm41, %v1318, %v1547
    %v1703 = vsel %vm41, %v1319, %v1549
    %v1704 = vsel %vm41, %v1320, %v1551
    %v1705 = vsel %vm41, %v1321, %v1553
    %v1706 = vsel %vm41, %v1322, %v1555
    %v1707 = vsel %vm41, %v1323, %v1557
    %v1708 = vsel %vm41, %v1324, %v1559
    %v1709 = vsel %vm41, %v1325, %v1561
    %v1710 = vsel %vm41, %v1326, %v1563
    %v1711 = vsel %vm41, %v1327, %v1565
    %v1712 = vsel %vm41, %v1328, %v1567
    %v1713 = vsel %vm41, %v1329, %v1569
    %v1714 = vsel %vm41, %v1330, %v1571
    %v1715 = vsel %vm41, %v1331, %v1573
    %v1716 = vsel %vm41, %v1332, %v1575
    %v1717 = vsel %vm41, %v1333, %v1577
    %v1718 = vsel %vm41, %v1334, %v1579
    %v1719 = vsel %vm41, %v1335, %v1581
    %v1720 = vsel %vm41, %v1336, %v1583
    %v1721 = vsel %vm41, %v1337, %v1585
    %v1722 = vsel %vm41, %v1338, %v1587
    %v1723 = vsel %vm41, %v1339, %v1589
    %v1724 = vsel %vm41, %v1340, %v1591
    %v1725 = vsel %vm41, %v1341, %v1593
    %v1726 = vsel %vm41, %v1342, %v1595
    %v1727 = vsel %vm41, %v1343, %v1597
    %v1728 = vsel %vm41, %v1344, %v1599
    %v1729 = vsel %vm41, %v1345, %v1601
    %v1730 = vpack.c.bf16 %v1667, %v1666
    %v1731 = vpack.c.bf16 %v1669, %v1668
    %v1732 = vpack.c.bf16 %v1671, %v1670
    %v1733 = vpack.c.bf16 %v1673, %v1672
    %v1734 = vpack.c.bf16 %v1675, %v1674
    %v1735 = vpack.c.bf16 %v1677, %v1676
    %v1736 = vpack.c.bf16 %v1679, %v1678
    %v1737 = vpack.c.bf16 %v1681, %v1680
    %v1738 = vpack.c.bf16 %v1683, %v1682
    %v1739 = vpack.c.bf16 %v1685, %v1684
    %v1740 = vpack.c.bf16 %v1687, %v1686
    %v1741 = vpack.c.bf16 %v1689, %v1688
    %v1742 = vpack.c.bf16 %v1691, %v1690
    %v1743 = vpack.c.bf16 %v1693, %v1692
    %v1744 = vpack.c.bf16 %v1695, %v1694
    %v1745 = vpack.c.bf16 %v1697, %v1696
    %v1746 = vpack.c.bf16 %v1699, %v1698
    %v1747 = vpack.c.bf16 %v1701, %v1700
    %v1748 = vpack.c.bf16 %v1703, %v1702
    %v1749 = vpack.c.bf16 %v1705, %v1704
    %v1750 = vpack.c.bf16 %v1707, %v1706
    %v1751 = vpack.c.bf16 %v1709, %v1708
    %v1752 = vpack.c.bf16 %v1711, %v1710
    %v1753 = vpack.c.bf16 %v1713, %v1712
    %v1754 = vpack.c.bf16 %v1715, %v1714
    %v1755 = vpack.c.bf16 %v1717, %v1716
    %v1756 = vpack.c.bf16 %v1719, %v1718
    %v1757 = vpack.c.bf16 %v1721, %v1720
    %v1758 = vpack.c.bf16 %v1723, %v1722
    %v1759 = vpack.c.bf16 %v1725, %v1724
    %v1760 = vpack.c.bf16 %v1727, %v1726
    %v1761 = vpack.c.bf16 %v1729, %v1728
    %1762 = vst [vmem:[#allocation3 + $0x10] sm:$0xff] %v1730
    %1763 = vst [vmem:[#allocation3 + $0x38] sm:$0xff] %v1731
    %1764 = vst [vmem:[#allocation3 + $0x60] sm:$0xff] %v1732
    %1765 = vst [vmem:[#allocation3 + $0x88] sm:$0xff] %v1733
    %1766 = vst [vmem:[#allocation3 + $0xb0] sm:$0xff] %v1734
    %1767 = vst [vmem:[#allocation3 + $0xd8] sm:$0xff] %v1735
    %1768 = vst [vmem:[#allocation3 + $0x100] sm:$0xff] %v1736
    %1769 = vst [vmem:[#allocation3 + $0x128] sm:$0xff] %v1737
    %1770 = vst [vmem:[#allocation3 + $0x150] sm:$0xff] %v1738
    %1771 = vst [vmem:[#allocation3 + $0x178] sm:$0xff] %v1739
    %1772 = vst [vmem:[#allocation3 + $0x1a0] sm:$0xff] %v1740
    %1773 = vst [vmem:[#allocation3 + $0x1c8] sm:$0xff] %v1741
    %1774 = vst [vmem:[#allocation3 + $0x1f0] sm:$0xff] %v1742
    %1775 = vst [vmem:[#allocation3 + $0x218] sm:$0xff] %v1743
    %1776 = vst [vmem:[#allocation3 + $0x240] sm:$0xff] %v1744
    %1777 = vst [vmem:[#allocation3 + $0x268] sm:$0xff] %v1745
    %1778 = vst [vmem:[#allocation3 + $0x290] sm:$0xff] %v1746
    %1779 = vst [vmem:[#allocation3 + $0x2b8] sm:$0xff] %v1747
    %1780 = vst [vmem:[#allocation3 + $0x2e0] sm:$0xff] %v1748
    %1781 = vst [vmem:[#allocation3 + $0x308] sm:$0xff] %v1749
    %1782 = vst [vmem:[#allocation3 + $0x330] sm:$0xff] %v1750
    %1783 = vst [vmem:[#allocation3 + $0x358] sm:$0xff] %v1751
    %1784 = vst [vmem:[#allocation3 + $0x380] sm:$0xff] %v1752
    %1785 = vst [vmem:[#allocation3 + $0x3a8] sm:$0xff] %v1753
    %1786 = vst [vmem:[#allocation3 + $0x3d0] sm:$0xff] %v1754
    %1787 = vst [vmem:[#allocation3 + $0x3f8] sm:$0xff] %v1755
    %1788 = vst [vmem:[#allocation3 + $0x420] sm:$0xff] %v1756
    %1789 = vst [vmem:[#allocation3 + $0x448] sm:$0xff] %v1757
    %1790 = vst [vmem:[#allocation3 + $0x470] sm:$0xff] %v1758
    %1791 = vst [vmem:[#allocation3 + $0x498] sm:$0xff] %v1759
    %1792 = vst [vmem:[#allocation3 + $0x4c0] sm:$0xff] %v1760
    %1793 = vst [vmem:[#allocation3 + $0x4e8] sm:$0xff] %v1761
    %s1794 = scalar_lea.vmem [#allocation2], 48
    %v1795 = vld [vmem:[%s1794] sm:$0xff]
    %v1796 = vld [vmem:[%s1794 + $0x8] sm:$0xff]
    %v1797 = vld [vmem:[%s1794 + $0x18] sm:$0xff]
    %v1798 = vld [vmem:[%s1794 + $0x20] sm:$0xff]
    %v1799 = vld [vmem:[%s1794 + $0x30] sm:$0xff]
    %v1800 = vld [vmem:[%s1794 + $0x38] sm:$0xff]
    %v1801 = vld [vmem:[%s1794 + $0x48] sm:$0xff]
    %v1802 = vld [vmem:[%s1794 + $0x50] sm:$0xff]
    %v1803 = vld [vmem:[%s1794 + $0x60] sm:$0xff]
    %v1804 = vld [vmem:[%s1794 + $0x68] sm:$0xff]
    %v1805 = vld [vmem:[%s1794 + $0x78] sm:$0xff]
    %v1806 = vld [vmem:[%s1794 + $0x80] sm:$0xff]
    %v1807 = vld [vmem:[%s1794 + $0x90] sm:$0xff]
    %v1808 = vld [vmem:[%s1794 + $0x98] sm:$0xff]
    %v1809 = vld [vmem:[%s1794 + $0xa8] sm:$0xff]
    %v1810 = vld [vmem:[%s1794 + $0xb0] sm:$0xff]
    %v1811 = vld [vmem:[%s1794 + $0xc0] sm:$0xff]
    %v1812 = vld [vmem:[%s1794 + $0xc8] sm:$0xff]
    %v1813 = vld [vmem:[%s1794 + $0xd8] sm:$0xff]
    %v1814 = vld [vmem:[%s1794 + $0xe0] sm:$0xff]
    %v1815 = vld [vmem:[%s1794 + $0xf0] sm:$0xff]
    %v1816 = vld [vmem:[%s1794 + $0xf8] sm:$0xff]
    %v1817 = vld [vmem:[%s1794 + $0x108] sm:$0xff]
    %v1818 = vld [vmem:[%s1794 + $0x110] sm:$0xff]
    %v1819 = vld [vmem:[%s1794 + $0x120] sm:$0xff]
    %v1820 = vld [vmem:[%s1794 + $0x128] sm:$0xff]
    %v1821 = vld [vmem:[%s1794 + $0x138] sm:$0xff]
    %v1822 = vld [vmem:[%s1794 + $0x140] sm:$0xff]
    %v1823 = vld [vmem:[%s1794 + $0x150] sm:$0xff]
    %v1824 = vld [vmem:[%s1794 + $0x158] sm:$0xff]
    %v1825 = vld [vmem:[%s1794 + $0x168] sm:$0xff]
    %v1826 = vld [vmem:[%s1794 + $0x170] sm:$0xff]
    %v1827 = vld [vmem:[%s1794 + $0x1b0] sm:$0xff]
    %v1828 = vld [vmem:[%s1794 + $0x1b8] sm:$0xff]
    %v1829 = vld [vmem:[%s1794 + $0x1c8] sm:$0xff]
    %v1830 = vld [vmem:[%s1794 + $0x1d0] sm:$0xff]
    %v1831 = vld [vmem:[%s1794 + $0x1e0] sm:$0xff]
    %v1832 = vld [vmem:[%s1794 + $0x1e8] sm:$0xff]
    %v1833 = vld [vmem:[%s1794 + $0x1f8] sm:$0xff]
    %v1834 = vld [vmem:[%s1794 + $0x200] sm:$0xff]
    %v1835 = vld [vmem:[%s1794 + $0x210] sm:$0xff]
    %v1836 = vld [vmem:[%s1794 + $0x218] sm:$0xff]
    %v1837 = vld [vmem:[%s1794 + $0x228] sm:$0xff]
    %v1838 = vld [vmem:[%s1794 + $0x230] sm:$0xff]
    %v1839 = vld [vmem:[%s1794 + $0x240] sm:$0xff]
    %v1840 = vld [vmem:[%s1794 + $0x248] sm:$0xff]
    %v1841 = vld [vmem:[%s1794 + $0x258] sm:$0xff]
    %v1842 = vld [vmem:[%s1794 + $0x260] sm:$0xff]
    %v1843 = vld [vmem:[%s1794 + $0x270] sm:$0xff]
    %v1844 = vld [vmem:[%s1794 + $0x278] sm:$0xff]
    %v1845 = vld [vmem:[%s1794 + $0x288] sm:$0xff]
    %v1846 = vld [vmem:[%s1794 + $0x290] sm:$0xff]
    %v1847 = vld [vmem:[%s1794 + $0x2a0] sm:$0xff]
    %v1848 = vld [vmem:[%s1794 + $0x2a8] sm:$0xff]
    %v1849 = vld [vmem:[%s1794 + $0x2b8] sm:$0xff]
    %v1850 = vld [vmem:[%s1794 + $0x2c0] sm:$0xff]
    %v1851 = vld [vmem:[%s1794 + $0x2d0] sm:$0xff]
    %v1852 = vld [vmem:[%s1794 + $0x2d8] sm:$0xff]
    %v1853 = vld [vmem:[%s1794 + $0x2e8] sm:$0xff]
    %v1854 = vld [vmem:[%s1794 + $0x2f0] sm:$0xff]
    %v1855 = vld [vmem:[%s1794 + $0x300] sm:$0xff]
    %v1856 = vld [vmem:[%s1794 + $0x308] sm:$0xff]
    %v1857 = vld [vmem:[%s1794 + $0x318] sm:$0xff]
    %v1858 = vld [vmem:[%s1794 + $0x320] sm:$0xff]
    %v1859 = vld [vmem:[%s1794 + $0x1] sm:$0xff]
    %v1860 = vld [vmem:[%s1794 + $0x9] sm:$0xff]
    %v1861 = vld [vmem:[%s1794 + $0x19] sm:$0xff]
    %v1862 = vld [vmem:[%s1794 + $0x21] sm:$0xff]
    %v1863 = vld [vmem:[%s1794 + $0x31] sm:$0xff]
    %v1864 = vld [vmem:[%s1794 + $0x39] sm:$0xff]
    %v1865 = vld [vmem:[%s1794 + $0x49] sm:$0xff]
    %v1866 = vld [vmem:[%s1794 + $0x51] sm:$0xff]
    %v1867 = vld [vmem:[%s1794 + $0x61] sm:$0xff]
    %v1868 = vld [vmem:[%s1794 + $0x69] sm:$0xff]
    %v1869 = vld [vmem:[%s1794 + $0x79] sm:$0xff]
    %v1870 = vld [vmem:[%s1794 + $0x81] sm:$0xff]
    %v1871 = vld [vmem:[%s1794 + $0x91] sm:$0xff]
    %v1872 = vld [vmem:[%s1794 + $0x99] sm:$0xff]
    %v1873 = vld [vmem:[%s1794 + $0xa9] sm:$0xff]
    %v1874 = vld [vmem:[%s1794 + $0xb1] sm:$0xff]
    %v1875 = vld [vmem:[%s1794 + $0xc1] sm:$0xff]
    %v1876 = vld [vmem:[%s1794 + $0xc9] sm:$0xff]
    %v1877 = vld [vmem:[%s1794 + $0xd9] sm:$0xff]
    %v1878 = vld [vmem:[%s1794 + $0xe1] sm:$0xff]
    %v1879 = vld [vmem:[%s1794 + $0xf1] sm:$0xff]
    %v1880 = vld [vmem:[%s1794 + $0xf9] sm:$0xff]
    %v1881 = vld [vmem:[%s1794 + $0x109] sm:$0xff]
    %v1882 = vld [vmem:[%s1794 + $0x111] sm:$0xff]
    %v1883 = vld [vmem:[%s1794 + $0x121] sm:$0xff]
    %v1884 = vld [vmem:[%s1794 + $0x129] sm:$0xff]
    %v1885 = vld [vmem:[%s1794 + $0x139] sm:$0xff]
    %v1886 = vld [vmem:[%s1794 + $0x141] sm:$0xff]
    %v1887 = vld [vmem:[%s1794 + $0x151] sm:$0xff]
    %v1888 = vld [vmem:[%s1794 + $0x159] sm:$0xff]
    %v1889 = vld [vmem:[%s1794 + $0x169] sm:$0xff]
    %v1890 = vld [vmem:[%s1794 + $0x171] sm:$0xff]
    %v1891 = vld [vmem:[%s1794 + $0x1b1] sm:$0xff]
    %v1892 = vld [vmem:[%s1794 + $0x1b9] sm:$0xff]
    %v1893 = vld [vmem:[%s1794 + $0x1c9] sm:$0xff]
    %v1894 = vld [vmem:[%s1794 + $0x1d1] sm:$0xff]
    %v1895 = vld [vmem:[%s1794 + $0x1e1] sm:$0xff]
    %v1896 = vld [vmem:[%s1794 + $0x1e9] sm:$0xff]
    %v1897 = vld [vmem:[%s1794 + $0x1f9] sm:$0xff]
    %v1898 = vld [vmem:[%s1794 + $0x201] sm:$0xff]
    %v1899 = vld [vmem:[%s1794 + $0x211] sm:$0xff]
    %v1900 = vld [vmem:[%s1794 + $0x219] sm:$0xff]
    %v1901 = vld [vmem:[%s1794 + $0x229] sm:$0xff]
    %v1902 = vld [vmem:[%s1794 + $0x231] sm:$0xff]
    %v1903 = vld [vmem:[%s1794 + $0x241] sm:$0xff]
    %v1904 = vld [vmem:[%s1794 + $0x249] sm:$0xff]
    %v1905 = vld [vmem:[%s1794 + $0x259] sm:$0xff]
    %v1906 = vld [vmem:[%s1794 + $0x261] sm:$0xff]
    %v1907 = vld [vmem:[%s1794 + $0x271] sm:$0xff]
    %v1908 = vld [vmem:[%s1794 + $0x279] sm:$0xff]
    %v1909 = vld [vmem:[%s1794 + $0x289] sm:$0xff]
    %v1910 = vld [vmem:[%s1794 + $0x291] sm:$0xff]
    %v1911 = vld [vmem:[%s1794 + $0x2a1] sm:$0xff]
    %v1912 = vld [vmem:[%s1794 + $0x2a9] sm:$0xff]
    %v1913 = vld [vmem:[%s1794 + $0x2b9] sm:$0xff]
    %v1914 = vld [vmem:[%s1794 + $0x2c1] sm:$0xff]
    %v1915 = vld [vmem:[%s1794 + $0x2d1] sm:$0xff]
    %v1916 = vld [vmem:[%s1794 + $0x2d9] sm:$0xff]
    %v1917 = vld [vmem:[%s1794 + $0x2e9] sm:$0xff]
    %v1918 = vld [vmem:[%s1794 + $0x2f1] sm:$0xff]
    %v1919 = vld [vmem:[%s1794 + $0x301] sm:$0xff]
    %v1920 = vld [vmem:[%s1794 + $0x309] sm:$0xff]
    %v1921 = vld [vmem:[%s1794 + $0x319] sm:$0xff]
    %v1922 = vld [vmem:[%s1794 + $0x321] sm:$0xff]
    %1987 = vrot.lane.b32.xlu0 %v1859, 64
    %v1988 = vpop.permute.xlu0 %1987
    %1989 = vrot.lane.b32.xlu0 %v1860, 64
    %v1990 = vpop.permute.xlu0 %1989
    %1991 = vrot.lane.b32.xlu0 %v1861, 64
    %v1992 = vpop.permute.xlu0 %1991
    %1993 = vrot.lane.b32.xlu0 %v1862, 64
    %v1994 = vpop.permute.xlu0 %1993
    %1995 = vrot.lane.b32.xlu0 %v1863, 64
    %v1996 = vpop.permute.xlu0 %1995
    %1997 = vrot.lane.b32.xlu0 %v1864, 64
    %v1998 = vpop.permute.xlu0 %1997
    %1999 = vrot.lane.b32.xlu0 %v1865, 64
    %v2000 = vpop.permute.xlu0 %1999
    %2001 = vrot.lane.b32.xlu0 %v1866, 64
    %v2002 = vpop.permute.xlu0 %2001
    %2003 = vrot.lane.b32.xlu0 %v1867, 64
    %v2004 = vpop.permute.xlu0 %2003
    %2005 = vrot.lane.b32.xlu0 %v1868, 64
    %v2006 = vpop.permute.xlu0 %2005
    %2007 = vrot.lane.b32.xlu0 %v1869, 64
    %v2008 = vpop.permute.xlu0 %2007
    %2009 = vrot.lane.b32.xlu0 %v1870, 64
    %v2010 = vpop.permute.xlu0 %2009
    %2011 = vrot.lane.b32.xlu0 %v1871, 64
    %v2012 = vpop.permute.xlu0 %2011
    %2013 = vrot.lane.b32.xlu0 %v1872, 64
    %v2014 = vpop.permute.xlu0 %2013
    %2015 = vrot.lane.b32.xlu0 %v1873, 64
    %v2016 = vpop.permute.xlu0 %2015
    %2017 = vrot.lane.b32.xlu0 %v1874, 64
    %v2018 = vpop.permute.xlu0 %2017
    %2019 = vrot.lane.b32.xlu0 %v1875, 64
    %v2020 = vpop.permute.xlu0 %2019
    %2021 = vrot.lane.b32.xlu0 %v1876, 64
    %v2022 = vpop.permute.xlu0 %2021
    %2023 = vrot.lane.b32.xlu0 %v1877, 64
    %v2024 = vpop.permute.xlu0 %2023
    %2025 = vrot.lane.b32.xlu0 %v1878, 64
    %v2026 = vpop.permute.xlu0 %2025
    %2027 = vrot.lane.b32.xlu0 %v1879, 64
    %v2028 = vpop.permute.xlu0 %2027
    %2029 = vrot.lane.b32.xlu0 %v1880, 64
    %v2030 = vpop.permute.xlu0 %2029
    %2031 = vrot.lane.b32.xlu0 %v1881, 64
    %v2032 = vpop.permute.xlu0 %2031
    %2033 = vrot.lane.b32.xlu0 %v1882, 64
    %v2034 = vpop.permute.xlu0 %2033
    %2035 = vrot.lane.b32.xlu0 %v1883, 64
    %v2036 = vpop.permute.xlu0 %2035
    %2037 = vrot.lane.b32.xlu0 %v1884, 64
    %v2038 = vpop.permute.xlu0 %2037
    %2039 = vrot.lane.b32.xlu0 %v1885, 64
    %v2040 = vpop.permute.xlu0 %2039
    %2041 = vrot.lane.b32.xlu0 %v1886, 64
    %v2042 = vpop.permute.xlu0 %2041
    %2043 = vrot.lane.b32.xlu0 %v1887, 64
    %v2044 = vpop.permute.xlu0 %2043
    %2045 = vrot.lane.b32.xlu0 %v1888, 64
    %v2046 = vpop.permute.xlu0 %2045
    %2047 = vrot.lane.b32.xlu0 %v1889, 64
    %v2048 = vpop.permute.xlu0 %2047
    %2049 = vrot.lane.b32.xlu0 %v1890, 64
    %v2050 = vpop.permute.xlu0 %2049
    %2051 = vrot.lane.b32.xlu0 %v1891, 64
    %v2052 = vpop.permute.xlu0 %2051
    %2053 = vrot.lane.b32.xlu0 %v1892, 64
    %v2054 = vpop.permute.xlu0 %2053
    %2055 = vrot.lane.b32.xlu0 %v1893, 64
    %v2056 = vpop.permute.xlu0 %2055
    %2057 = vrot.lane.b32.xlu0 %v1894, 64
    %v2058 = vpop.permute.xlu0 %2057
    %2059 = vrot.lane.b32.xlu0 %v1895, 64
    %v2060 = vpop.permute.xlu0 %2059
    %2061 = vrot.lane.b32.xlu0 %v1896, 64
    %v2062 = vpop.permute.xlu0 %2061
    %2063 = vrot.lane.b32.xlu0 %v1897, 64
    %v2064 = vpop.permute.xlu0 %2063
    %2065 = vrot.lane.b32.xlu0 %v1898, 64
    %v2066 = vpop.permute.xlu0 %2065
    %2067 = vrot.lane.b32.xlu0 %v1899, 64
    %v2068 = vpop.permute.xlu0 %2067
    %2069 = vrot.lane.b32.xlu0 %v1900, 64
    %v2070 = vpop.permute.xlu0 %2069
    %2071 = vrot.lane.b32.xlu0 %v1901, 64
    %v2072 = vpop.permute.xlu0 %2071
    %2073 = vrot.lane.b32.xlu0 %v1902, 64
    %v2074 = vpop.permute.xlu0 %2073
    %2075 = vrot.lane.b32.xlu0 %v1903, 64
    %v2076 = vpop.permute.xlu0 %2075
    %2077 = vrot.lane.b32.xlu0 %v1904, 64
    %v2078 = vpop.permute.xlu0 %2077
    %2079 = vrot.lane.b32.xlu0 %v1905, 64
    %v2080 = vpop.permute.xlu0 %2079
    %2081 = vrot.lane.b32.xlu0 %v1906, 64
    %v2082 = vpop.permute.xlu0 %2081
    %2083 = vrot.lane.b32.xlu0 %v1907, 64
    %v2084 = vpop.permute.xlu0 %2083
    %2085 = vrot.lane.b32.xlu0 %v1908, 64
    %v2086 = vpop.permute.xlu0 %2085
    %2087 = vrot.lane.b32.xlu0 %v1909, 64
    %v2088 = vpop.permute.xlu0 %2087
    %2089 = vrot.lane.b32.xlu0 %v1910, 64
    %v2090 = vpop.permute.xlu0 %2089
    %2091 = vrot.lane.b32.xlu0 %v1911, 64
    %v2092 = vpop.permute.xlu0 %2091
    %2093 = vrot.lane.b32.xlu0 %v1912, 64
    %v2094 = vpop.permute.xlu0 %2093
    %2095 = vrot.lane.b32.xlu0 %v1913, 64
    %v2096 = vpop.permute.xlu0 %2095
    %2097 = vrot.lane.b32.xlu0 %v1914, 64
    %v2098 = vpop.permute.xlu0 %2097
    %2099 = vrot.lane.b32.xlu0 %v1915, 64
    %v2100 = vpop.permute.xlu0 %2099
    %2101 = vrot.lane.b32.xlu0 %v1916, 64
    %v2102 = vpop.permute.xlu0 %2101
    %2103 = vrot.lane.b32.xlu0 %v1917, 64
    %v2104 = vpop.permute.xlu0 %2103
    %2105 = vrot.lane.b32.xlu0 %v1918, 64
    %v2106 = vpop.permute.xlu0 %2105
    %2107 = vrot.lane.b32.xlu0 %v1919, 64
    %v2108 = vpop.permute.xlu0 %2107
    %2109 = vrot.lane.b32.xlu0 %v1920, 64
    %v2110 = vpop.permute.xlu0 %2109
    %2111 = vrot.lane.b32.xlu0 %v1921, 64
    %v2112 = vpop.permute.xlu0 %2111
    %2113 = vrot.lane.b32.xlu0 %v1922, 64
    %v2114 = vpop.permute.xlu0 %2113
    %v2179 = vsel %vm41, %v1795, %v1988
    %v2180 = vsel %vm41, %v1796, %v1990
    %v2181 = vsel %vm41, %v1797, %v1992
    %v2182 = vsel %vm41, %v1798, %v1994
    %v2183 = vsel %vm41, %v1799, %v1996
    %v2184 = vsel %vm41, %v1800, %v1998
    %v2185 = vsel %vm41, %v1801, %v2000
    %v2186 = vsel %vm41, %v1802, %v2002
    %v2187 = vsel %vm41, %v1803, %v2004
    %v2188 = vsel %vm41, %v1804, %v2006
    %v2189 = vsel %vm41, %v1805, %v2008
    %v2190 = vsel %vm41, %v1806, %v2010
    %v2191 = vsel %vm41, %v1807, %v2012
    %v2192 = vsel %vm41, %v1808, %v2014
    %v2193 = vsel %vm41, %v1809, %v2016
    %v2194 = vsel %vm41, %v1810, %v2018
    %v2195 = vsel %vm41, %v1811, %v2020
    %v2196 = vsel %vm41, %v1812, %v2022
    %v2197 = vsel %vm41, %v1813, %v2024
    %v2198 = vsel %vm41, %v1814, %v2026
    %v2199 = vsel %vm41, %v1815, %v2028
    %v2200 = vsel %vm41, %v1816, %v2030
    %v2201 = vsel %vm41, %v1817, %v2032
    %v2202 = vsel %vm41, %v1818, %v2034
    %v2203 = vsel %vm41, %v1819, %v2036
    %v2204 = vsel %vm41, %v1820, %v2038
    %v2205 = vsel %vm41, %v1821, %v2040
    %v2206 = vsel %vm41, %v1822, %v2042
    %v2207 = vsel %vm41, %v1823, %v2044
    %v2208 = vsel %vm41, %v1824, %v2046
    %v2209 = vsel %vm41, %v1825, %v2048
    %v2210 = vsel %vm41, %v1826, %v2050
    %v2211 = vsel %vm41, %v1827, %v2052
    %v2212 = vsel %vm41, %v1828, %v2054
    %v2213 = vsel %vm41, %v1829, %v2056
    %v2214 = vsel %vm41, %v1830, %v2058
    %v2215 = vsel %vm41, %v1831, %v2060
    %v2216 = vsel %vm41, %v1832, %v2062
    %v2217 = vsel %vm41, %v1833, %v2064
    %v2218 = vsel %vm41, %v1834, %v2066
    %v2219 = vsel %vm41, %v1835, %v2068
    %v2220 = vsel %vm41, %v1836, %v2070
    %v2221 = vsel %vm41, %v1837, %v2072
    %v2222 = vsel %vm41, %v1838, %v2074
    %v2223 = vsel %vm41, %v1839, %v2076
    %v2224 = vsel %vm41, %v1840, %v2078
    %v2225 = vsel %vm41, %v1841, %v2080
    %v2226 = vsel %vm41, %v1842, %v2082
    %v2227 = vsel %vm41, %v1843, %v2084
    %v2228 = vsel %vm41, %v1844, %v2086
    %v2229 = vsel %vm41, %v1845, %v2088
    %v2230 = vsel %vm41, %v1846, %v2090
    %v2231 = vsel %vm41, %v1847, %v2092
    %v2232 = vsel %vm41, %v1848, %v2094
    %v2233 = vsel %vm41, %v1849, %v2096
    %v2234 = vsel %vm41, %v1850, %v2098
    %v2235 = vsel %vm41, %v1851, %v2100
    %v2236 = vsel %vm41, %v1852, %v2102
    %v2237 = vsel %vm41, %v1853, %v2104
    %v2238 = vsel %vm41, %v1854, %v2106
    %v2239 = vsel %vm41, %v1855, %v2108
    %v2240 = vsel %vm41, %v1856, %v2110
    %v2241 = vsel %vm41, %v1857, %v2112
    %v2242 = vsel %vm41, %v1858, %v2114
    %v2243 = vpack.c.bf16 %v2180, %v2179
    %v2244 = vpack.c.bf16 %v2182, %v2181
    %v2245 = vpack.c.bf16 %v2184, %v2183
    %v2246 = vpack.c.bf16 %v2186, %v2185
    %v2247 = vpack.c.bf16 %v2188, %v2187
    %v2248 = vpack.c.bf16 %v2190, %v2189
    %v2249 = vpack.c.bf16 %v2192, %v2191
    %v2250 = vpack.c.bf16 %v2194, %v2193
    %v2251 = vpack.c.bf16 %v2196, %v2195
    %v2252 = vpack.c.bf16 %v2198, %v2197
    %v2253 = vpack.c.bf16 %v2200, %v2199
    %v2254 = vpack.c.bf16 %v2202, %v2201
    %v2255 = vpack.c.bf16 %v2204, %v2203
    %v2256 = vpack.c.bf16 %v2206, %v2205
    %v2257 = vpack.c.bf16 %v2208, %v2207
    %v2258 = vpack.c.bf16 %v2210, %v2209
    %v2259 = vpack.c.bf16 %v2212, %v2211
    %v2260 = vpack.c.bf16 %v2214, %v2213
    %v2261 = vpack.c.bf16 %v2216, %v2215
    %v2262 = vpack.c.bf16 %v2218, %v2217
    %v2263 = vpack.c.bf16 %v2220, %v2219
    %v2264 = vpack.c.bf16 %v2222, %v2221
    %v2265 = vpack.c.bf16 %v2224, %v2223
    %v2266 = vpack.c.bf16 %v2226, %v2225
    %v2267 = vpack.c.bf16 %v2228, %v2227
    %v2268 = vpack.c.bf16 %v2230, %v2229
    %v2269 = vpack.c.bf16 %v2232, %v2231
    %v2270 = vpack.c.bf16 %v2234, %v2233
    %v2271 = vpack.c.bf16 %v2236, %v2235
    %v2272 = vpack.c.bf16 %v2238, %v2237
    %v2273 = vpack.c.bf16 %v2240, %v2239
    %v2274 = vpack.c.bf16 %v2242, %v2241
    %2275 = vst [vmem:[#allocation3 + $0x18] sm:$0xff] %v2243
    %2276 = vst [vmem:[#allocation3 + $0x40] sm:$0xff] %v2244
    %2277 = vst [vmem:[#allocation3 + $0x68] sm:$0xff] %v2245
    %2278 = vst [vmem:[#allocation3 + $0x90] sm:$0xff] %v2246
    %2279 = vst [vmem:[#allocation3 + $0xb8] sm:$0xff] %v2247
    %2280 = vst [vmem:[#allocation3 + $0xe0] sm:$0xff] %v2248
    %2281 = vst [vmem:[#allocation3 + $0x108] sm:$0xff] %v2249
    %2282 = vst [vmem:[#allocation3 + $0x130] sm:$0xff] %v2250
    %2283 = vst [vmem:[#allocation3 + $0x158] sm:$0xff] %v2251
    %2284 = vst [vmem:[#allocation3 + $0x180] sm:$0xff] %v2252
    %2285 = vst [vmem:[#allocation3 + $0x1a8] sm:$0xff] %v2253
    %2286 = vst [vmem:[#allocation3 + $0x1d0] sm:$0xff] %v2254
    %2287 = vst [vmem:[#allocation3 + $0x1f8] sm:$0xff] %v2255
    %2288 = vst [vmem:[#allocation3 + $0x220] sm:$0xff] %v2256
    %2289 = vst [vmem:[#allocation3 + $0x248] sm:$0xff] %v2257
    %2290 = vst [vmem:[#allocation3 + $0x270] sm:$0xff] %v2258
    %2291 = vst [vmem:[#allocation3 + $0x298] sm:$0xff] %v2259
    %2292 = vst [vmem:[#allocation3 + $0x2c0] sm:$0xff] %v2260
    %2293 = vst [vmem:[#allocation3 + $0x2e8] sm:$0xff] %v2261
    %2294 = vst [vmem:[#allocation3 + $0x310] sm:$0xff] %v2262
    %2295 = vst [vmem:[#allocation3 + $0x338] sm:$0xff] %v2263
    %2296 = vst [vmem:[#allocation3 + $0x360] sm:$0xff] %v2264
    %2297 = vst [vmem:[#allocation3 + $0x388] sm:$0xff] %v2265
    %2298 = vst [vmem:[#allocation3 + $0x3b0] sm:$0xff] %v2266
    %2299 = vst [vmem:[#allocation3 + $0x3d8] sm:$0xff] %v2267
    %2300 = vst [vmem:[#allocation3 + $0x400] sm:$0xff] %v2268
    %2301 = vst [vmem:[#allocation3 + $0x428] sm:$0xff] %v2269
    %2302 = vst [vmem:[#allocation3 + $0x450] sm:$0xff] %v2270
    %2303 = vst [vmem:[#allocation3 + $0x478] sm:$0xff] %v2271
    %2304 = vst [vmem:[#allocation3 + $0x4a0] sm:$0xff] %v2272
    %2305 = vst [vmem:[#allocation3 + $0x4c8] sm:$0xff] %v2273
    %2306 = vst [vmem:[#allocation3 + $0x4f0] sm:$0xff] %v2274
    %v2307 = vld [vmem:[%s1794 + $0x2] sm:$0xff]
    %v2308 = vld [vmem:[%s1794 + $0xa] sm:$0xff]
    %v2309 = vld [vmem:[%s1794 + $0x1a] sm:$0xff]
    %v2310 = vld [vmem:[%s1794 + $0x22] sm:$0xff]
    %v2311 = vld [vmem:[%s1794 + $0x32] sm:$0xff]
    %v2312 = vld [vmem:[%s1794 + $0x3a] sm:$0xff]
    %v2313 = vld [vmem:[%s1794 + $0x4a] sm:$0xff]
    %v2314 = vld [vmem:[%s1794 + $0x52] sm:$0xff]
    %v2315 = vld [vmem:[%s1794 + $0x62] sm:$0xff]
    %v2316 = vld [vmem:[%s1794 + $0x6a] sm:$0xff]
    %v2317 = vld [vmem:[%s1794 + $0x7a] sm:$0xff]
    %v2318 = vld [vmem:[%s1794 + $0x82] sm:$0xff]
    %v2319 = vld [vmem:[%s1794 + $0x92] sm:$0xff]
    %v2320 = vld [vmem:[%s1794 + $0x9a] sm:$0xff]
    %v2321 = vld [vmem:[%s1794 + $0xaa] sm:$0xff]
    %v2322 = vld [vmem:[%s1794 + $0xb2] sm:$0xff]
    %v2323 = vld [vmem:[%s1794 + $0xc2] sm:$0xff]
    %v2324 = vld [vmem:[%s1794 + $0xca] sm:$0xff]
    %v2325 = vld [vmem:[%s1794 + $0xda] sm:$0xff]
    %v2326 = vld [vmem:[%s1794 + $0xe2] sm:$0xff]
    %v2327 = vld [vmem:[%s1794 + $0xf2] sm:$0xff]
    %v2328 = vld [vmem:[%s1794 + $0xfa] sm:$0xff]
    %v2329 = vld [vmem:[%s1794 + $0x10a] sm:$0xff]
    %v2330 = vld [vmem:[%s1794 + $0x112] sm:$0xff]
    %v2331 = vld [vmem:[%s1794 + $0x122] sm:$0xff]
    %v2332 = vld [vmem:[%s1794 + $0x12a] sm:$0xff]
    %v2333 = vld [vmem:[%s1794 + $0x13a] sm:$0xff]
    %v2334 = vld [vmem:[%s1794 + $0x142] sm:$0xff]
    %v2335 = vld [vmem:[%s1794 + $0x152] sm:$0xff]
    %v2336 = vld [vmem:[%s1794 + $0x15a] sm:$0xff]
    %v2337 = vld [vmem:[%s1794 + $0x16a] sm:$0xff]
    %v2338 = vld [vmem:[%s1794 + $0x172] sm:$0xff]
    %v2339 = vld [vmem:[%s1794 + $0x1b2] sm:$0xff]
    %v2340 = vld [vmem:[%s1794 + $0x1ba] sm:$0xff]
    %v2341 = vld [vmem:[%s1794 + $0x1ca] sm:$0xff]
    %v2342 = vld [vmem:[%s1794 + $0x1d2] sm:$0xff]
    %v2343 = vld [vmem:[%s1794 + $0x1e2] sm:$0xff]
    %v2344 = vld [vmem:[%s1794 + $0x1ea] sm:$0xff]
    %v2345 = vld [vmem:[%s1794 + $0x1fa] sm:$0xff]
    %v2346 = vld [vmem:[%s1794 + $0x202] sm:$0xff]
    %v2347 = vld [vmem:[%s1794 + $0x212] sm:$0xff]
    %v2348 = vld [vmem:[%s1794 + $0x21a] sm:$0xff]
    %v2349 = vld [vmem:[%s1794 + $0x22a] sm:$0xff]
    %v2350 = vld [vmem:[%s1794 + $0x232] sm:$0xff]
    %v2351 = vld [vmem:[%s1794 + $0x242] sm:$0xff]
    %v2352 = vld [vmem:[%s1794 + $0x24a] sm:$0xff]
    %v2353 = vld [vmem:[%s1794 + $0x25a] sm:$0xff]
    %v2354 = vld [vmem:[%s1794 + $0x262] sm:$0xff]
    %v2355 = vld [vmem:[%s1794 + $0x272] sm:$0xff]
    %v2356 = vld [vmem:[%s1794 + $0x27a] sm:$0xff]
    %v2357 = vld [vmem:[%s1794 + $0x28a] sm:$0xff]
    %v2358 = vld [vmem:[%s1794 + $0x292] sm:$0xff]
    %v2359 = vld [vmem:[%s1794 + $0x2a2] sm:$0xff]
    %v2360 = vld [vmem:[%s1794 + $0x2aa] sm:$0xff]
    %v2361 = vld [vmem:[%s1794 + $0x2ba] sm:$0xff]
    %v2362 = vld [vmem:[%s1794 + $0x2c2] sm:$0xff]
    %v2363 = vld [vmem:[%s1794 + $0x2d2] sm:$0xff]
    %v2364 = vld [vmem:[%s1794 + $0x2da] sm:$0xff]
    %v2365 = vld [vmem:[%s1794 + $0x2ea] sm:$0xff]
    %v2366 = vld [vmem:[%s1794 + $0x2f2] sm:$0xff]
    %v2367 = vld [vmem:[%s1794 + $0x302] sm:$0xff]
    %v2368 = vld [vmem:[%s1794 + $0x30a] sm:$0xff]
    %v2369 = vld [vmem:[%s1794 + $0x31a] sm:$0xff]
    %v2370 = vld [vmem:[%s1794 + $0x322] sm:$0xff]
    %v2371 = vsel %vm41, %v2307, 0.0
    %v2372 = vsel %vm41, %v2308, 0.0
    %v2373 = vsel %vm41, %v2309, 0.0
    %v2374 = vsel %vm41, %v2310, 0.0
    %v2375 = vsel %vm41, %v2311, 0.0
    %v2376 = vsel %vm41, %v2312, 0.0
    %v2377 = vsel %vm41, %v2313, 0.0
    %v2378 = vsel %vm41, %v2314, 0.0
    %v2379 = vsel %vm41, %v2315, 0.0
    %v2380 = vsel %vm41, %v2316, 0.0
    %v2381 = vsel %vm41, %v2317, 0.0
    %v2382 = vsel %vm41, %v2318, 0.0
    %v2383 = vsel %vm41, %v2319, 0.0
    %v2384 = vsel %vm41, %v2320, 0.0
    %v2385 = vsel %vm41, %v2321, 0.0
    %v2386 = vsel %vm41, %v2322, 0.0
    %v2387 = vsel %vm41, %v2323, 0.0
    %v2388 = vsel %vm41, %v2324, 0.0
    %v2389 = vsel %vm41, %v2325, 0.0
    %v2390 = vsel %vm41, %v2326, 0.0
    %v2391 = vsel %vm41, %v2327, 0.0
    %v2392 = vsel %vm41, %v2328, 0.0
    %v2393 = vsel %vm41, %v2329, 0.0
    %v2394 = vsel %vm41, %v2330, 0.0
    %v2395 = vsel %vm41, %v2331, 0.0
    %v2396 = vsel %vm41, %v2332, 0.0
    %v2397 = vsel %vm41, %v2333, 0.0
    %v2398 = vsel %vm41, %v2334, 0.0
    %v2399 = vsel %vm41, %v2335, 0.0
    %v2400 = vsel %vm41, %v2336, 0.0
    %v2401 = vsel %vm41, %v2337, 0.0
    %v2402 = vsel %vm41, %v2338, 0.0
    %v2403 = vsel %vm41, %v2339, 0.0
    %v2404 = vsel %vm41, %v2340, 0.0
    %v2405 = vsel %vm41, %v2341, 0.0
    %v2406 = vsel %vm41, %v2342, 0.0
    %v2407 = vsel %vm41, %v2343, 0.0
    %v2408 = vsel %vm41, %v2344, 0.0
    %v2409 = vsel %vm41, %v2345, 0.0
    %v2410 = vsel %vm41, %v2346, 0.0
    %v2411 = vsel %vm41, %v2347, 0.0
    %v2412 = vsel %vm41, %v2348, 0.0
    %v2413 = vsel %vm41, %v2349, 0.0
    %v2414 = vsel %vm41, %v2350, 0.0
    %v2415 = vsel %vm41, %v2351, 0.0
    %v2416 = vsel %vm41, %v2352, 0.0
    %v2417 = vsel %vm41, %v2353, 0.0
    %v2418 = vsel %vm41, %v2354, 0.0
    %v2419 = vsel %vm41, %v2355, 0.0
    %v2420 = vsel %vm41, %v2356, 0.0
    %v2421 = vsel %vm41, %v2357, 0.0
    %v2422 = vsel %vm41, %v2358, 0.0
    %v2423 = vsel %vm41, %v2359, 0.0
    %v2424 = vsel %vm41, %v2360, 0.0
    %v2425 = vsel %vm41, %v2361, 0.0
    %v2426 = vsel %vm41, %v2362, 0.0
    %v2427 = vsel %vm41, %v2363, 0.0
    %v2428 = vsel %vm41, %v2364, 0.0
    %v2429 = vsel %vm41, %v2365, 0.0
    %v2430 = vsel %vm41, %v2366, 0.0
    %v2431 = vsel %vm41, %v2367, 0.0
    %v2432 = vsel %vm41, %v2368, 0.0
    %v2433 = vsel %vm41, %v2369, 0.0
    %v2434 = vsel %vm41, %v2370, 0.0
    %v2435 = vpack.c.bf16 %v2372, %v2371
    %v2436 = vpack.c.bf16 %v2374, %v2373
    %v2437 = vpack.c.bf16 %v2376, %v2375
    %v2438 = vpack.c.bf16 %v2378, %v2377
    %v2439 = vpack.c.bf16 %v2380, %v2379
    %v2440 = vpack.c.bf16 %v2382, %v2381
    %v2441 = vpack.c.bf16 %v2384, %v2383
    %v2442 = vpack.c.bf16 %v2386, %v2385
    %v2443 = vpack.c.bf16 %v2388, %v2387
    %v2444 = vpack.c.bf16 %v2390, %v2389
    %v2445 = vpack.c.bf16 %v2392, %v2391
    %v2446 = vpack.c.bf16 %v2394, %v2393
    %v2447 = vpack.c.bf16 %v2396, %v2395
    %v2448 = vpack.c.bf16 %v2398, %v2397
    %v2449 = vpack.c.bf16 %v2400, %v2399
    %v2450 = vpack.c.bf16 %v2402, %v2401
    %v2451 = vpack.c.bf16 %v2404, %v2403
    %v2452 = vpack.c.bf16 %v2406, %v2405
    %v2453 = vpack.c.bf16 %v2408, %v2407
    %v2454 = vpack.c.bf16 %v2410, %v2409
    %v2455 = vpack.c.bf16 %v2412, %v2411
    %v2456 = vpack.c.bf16 %v2414, %v2413
    %v2457 = vpack.c.bf16 %v2416, %v2415
    %v2458 = vpack.c.bf16 %v2418, %v2417
    %v2459 = vpack.c.bf16 %v2420, %v2419
    %v2460 = vpack.c.bf16 %v2422, %v2421
    %v2461 = vpack.c.bf16 %v2424, %v2423
    %v2462 = vpack.c.bf16 %v2426, %v2425
    %v2463 = vpack.c.bf16 %v2428, %v2427
    %v2464 = vpack.c.bf16 %v2430, %v2429
    %v2465 = vpack.c.bf16 %v2432, %v2431
    %v2466 = vpack.c.bf16 %v2434, %v2433
    %2467 = vst [vmem:[#allocation3 + $0x20] sm:$0xff] %v2435
    %2468 = vst [vmem:[#allocation3 + $0x48] sm:$0xff] %v2436
    %2469 = vst [vmem:[#allocation3 + $0x70] sm:$0xff] %v2437
    %2470 = vst [vmem:[#allocation3 + $0x98] sm:$0xff] %v2438
    %2471 = vst [vmem:[#allocation3 + $0xc0] sm:$0xff] %v2439
    %2472 = vst [vmem:[#allocation3 + $0xe8] sm:$0xff] %v2440
    %2473 = vst [vmem:[#allocation3 + $0x110] sm:$0xff] %v2441
    %2474 = vst [vmem:[#allocation3 + $0x138] sm:$0xff] %v2442
    %2475 = vst [vmem:[#allocation3 + $0x160] sm:$0xff] %v2443
    %2476 = vst [vmem:[#allocation3 + $0x188] sm:$0xff] %v2444
    %2477 = vst [vmem:[#allocation3 + $0x1b0] sm:$0xff] %v2445
    %2478 = vst [vmem:[#allocation3 + $0x1d8] sm:$0xff] %v2446
    %2479 = vst [vmem:[#allocation3 + $0x200] sm:$0xff] %v2447
    %2480 = vst [vmem:[#allocation3 + $0x228] sm:$0xff] %v2448
    %2481 = vst [vmem:[#allocation3 + $0x250] sm:$0xff] %v2449
    %2482 = vst [vmem:[#allocation3 + $0x278] sm:$0xff] %v2450
    %2483 = vst [vmem:[#allocation3 + $0x2a0] sm:$0xff] %v2451
    %2484 = vst [vmem:[#allocation3 + $0x2c8] sm:$0xff] %v2452
    %2485 = vst [vmem:[#allocation3 + $0x2f0] sm:$0xff] %v2453
    %2486 = vst [vmem:[#allocation3 + $0x318] sm:$0xff] %v2454
    %2487 = vst [vmem:[#allocation3 + $0x340] sm:$0xff] %v2455
    %2488 = vst [vmem:[#allocation3 + $0x368] sm:$0xff] %v2456
    %2489 = vst [vmem:[#allocation3 + $0x390] sm:$0xff] %v2457
    %2490 = vst [vmem:[#allocation3 + $0x3b8] sm:$0xff] %v2458
    %2491 = vst [vmem:[#allocation3 + $0x3e0] sm:$0xff] %v2459
    %2492 = vst [vmem:[#allocation3 + $0x408] sm:$0xff] %v2460
    %2493 = vst [vmem:[#allocation3 + $0x430] sm:$0xff] %v2461
    %2494 = vst [vmem:[#allocation3 + $0x458] sm:$0xff] %v2462
    %2495 = vst [vmem:[#allocation3 + $0x480] sm:$0xff] %v2463
    %2496 = vst [vmem:[#allocation3 + $0x4a8] sm:$0xff] %v2464
    %2497 = vst [vmem:[#allocation3 + $0x4d0] sm:$0xff] %v2465
    %2498 = vst [vmem:[#allocation3 + $0x4f8] sm:$0xff] %v2466
    %v2499 = vld [vmem:[#allocation3] sm:$0xff]
    %v2500 = vld [vmem:[#allocation3 + $0x8] sm:$0xff]
    %v2501 = vld [vmem:[#allocation3 + $0x10] sm:$0xff]
    %v2502 = vld [vmem:[#allocation3 + $0x18] sm:$0xff]
    %v2503 = vld [vmem:[#allocation3 + $0x20] sm:$0xff]
    %v2504 = vld [vmem:[#allocation3 + $0x28] sm:$0xff]
    %v2505 = vld [vmem:[#allocation3 + $0x30] sm:$0xff]
    %v2506 = vld [vmem:[#allocation3 + $0x38] sm:$0xff]
    %v2507 = vld [vmem:[#allocation3 + $0x40] sm:$0xff]
    %v2508 = vld [vmem:[#allocation3 + $0x48] sm:$0xff]
    %v2509 = vld [vmem:[#allocation3 + $0x50] sm:$0xff]
    %v2510 = vld [vmem:[#allocation3 + $0x58] sm:$0xff]
    %v2511 = vld [vmem:[#allocation3 + $0x60] sm:$0xff]
    %v2512 = vld [vmem:[#allocation3 + $0x68] sm:$0xff]
    %v2513 = vld [vmem:[#allocation3 + $0x70] sm:$0xff]
    %v2514 = vld [vmem:[#allocation3 + $0x78] sm:$0xff]
    %v2515 = vld [vmem:[#allocation3 + $0x80] sm:$0xff]
    %v2516 = vld [vmem:[#allocation3 + $0x88] sm:$0xff]
    %v2517 = vld [vmem:[#allocation3 + $0x90] sm:$0xff]
    %v2518 = vld [vmem:[#allocation3 + $0x98] sm:$0xff]
    %v2519 = vld [vmem:[#allocation3 + $0xa0] sm:$0xff]
    %v2520 = vld [vmem:[#allocation3 + $0xa8] sm:$0xff]
    %v2521 = vld [vmem:[#allocation3 + $0xb0] sm:$0xff]
    %v2522 = vld [vmem:[#allocation3 + $0xb8] sm:$0xff]
    %v2523 = vld [vmem:[#allocation3 + $0xc0] sm:$0xff]
    %v2524 = vld [vmem:[#allocation3 + $0xc8] sm:$0xff]
    %v2525 = vld [vmem:[#allocation3 + $0xd0] sm:$0xff]
    %v2526 = vld [vmem:[#allocation3 + $0xd8] sm:$0xff]
    %v2527 = vld [vmem:[#allocation3 + $0xe0] sm:$0xff]
    %v2528 = vld [vmem:[#allocation3 + $0xe8] sm:$0xff]
    %v2529 = vld [vmem:[#allocation3 + $0xf0] sm:$0xff]
    %v2530 = vld [vmem:[#allocation3 + $0xf8] sm:$0xff]
    %v2531 = vld [vmem:[#allocation3 + $0x100] sm:$0xff]
    %v2532 = vld [vmem:[#allocation3 + $0x108] sm:$0xff]
    %v2533 = vld [vmem:[#allocation3 + $0x110] sm:$0xff]
    %v2534 = vld [vmem:[#allocation3 + $0x118] sm:$0xff]
    %v2535 = vld [vmem:[#allocation3 + $0x120] sm:$0xff]
    %v2536 = vld [vmem:[#allocation3 + $0x128] sm:$0xff]
    %v2537 = vld [vmem:[#allocation3 + $0x130] sm:$0xff]
    %v2538 = vld [vmem:[#allocation3 + $0x138] sm:$0xff]
    %v2539 = vld [vmem:[#allocation3 + $0x140] sm:$0xff]
    %v2540 = vld [vmem:[#allocation3 + $0x148] sm:$0xff]
    %v2541 = vld [vmem:[#allocation3 + $0x150] sm:$0xff]
    %v2542 = vld [vmem:[#allocation3 + $0x158] sm:$0xff]
    %v2543 = vld [vmem:[#allocation3 + $0x160] sm:$0xff]
    %v2544 = vld [vmem:[#allocation3 + $0x168] sm:$0xff]
    %v2545 = vld [vmem:[#allocation3 + $0x170] sm:$0xff]
    %v2546 = vld [vmem:[#allocation3 + $0x178] sm:$0xff]
    %v2547 = vld [vmem:[#allocation3 + $0x180] sm:$0xff]
    %v2548 = vld [vmem:[#allocation3 + $0x188] sm:$0xff]
    %v2549 = vld [vmem:[#allocation3 + $0x190] sm:$0xff]
    %v2550 = vld [vmem:[#allocation3 + $0x198] sm:$0xff]
    %v2551 = vld [vmem:[#allocation3 + $0x1a0] sm:$0xff]
    %v2552 = vld [vmem:[#allocation3 + $0x1a8] sm:$0xff]
    %v2553 = vld [vmem:[#allocation3 + $0x1b0] sm:$0xff]
    %v2554 = vld [vmem:[#allocation3 + $0x1b8] sm:$0xff]
    %v2555 = vld [vmem:[#allocation3 + $0x1c0] sm:$0xff]
    %v2556 = vld [vmem:[#allocation3 + $0x1c8] sm:$0xff]
    %v2557 = vld [vmem:[#allocation3 + $0x1d0] sm:$0xff]
    %v2558 = vld [vmem:[#allocation3 + $0x1d8] sm:$0xff]
    %v2559 = vld [vmem:[#allocation3 + $0x1e0] sm:$0xff]
    %v2560 = vld [vmem:[#allocation3 + $0x1e8] sm:$0xff]
    %v2561 = vld [vmem:[#allocation3 + $0x1f0] sm:$0xff]
    %v2562 = vld [vmem:[#allocation3 + $0x1f8] sm:$0xff]
    %v2563 = vld [vmem:[#allocation3 + $0x200] sm:$0xff]
    %v2564 = vld [vmem:[#allocation3 + $0x208] sm:$0xff]
    %v2565 = vld [vmem:[#allocation3 + $0x210] sm:$0xff]
    %v2566 = vld [vmem:[#allocation3 + $0x218] sm:$0xff]
    %v2567 = vld [vmem:[#allocation3 + $0x220] sm:$0xff]
    %v2568 = vld [vmem:[#allocation3 + $0x228] sm:$0xff]
    %v2569 = vld [vmem:[#allocation3 + $0x230] sm:$0xff]
    %v2570 = vld [vmem:[#allocation3 + $0x238] sm:$0xff]
    %v2571 = vld [vmem:[#allocation3 + $0x240] sm:$0xff]
    %v2572 = vld [vmem:[#allocation3 + $0x248] sm:$0xff]
    %v2573 = vld [vmem:[#allocation3 + $0x250] sm:$0xff]
    %v2574 = vld [vmem:[#allocation3 + $0x258] sm:$0xff]
    %v2575 = vld [vmem:[#allocation3 + $0x260] sm:$0xff]
    %v2576 = vld [vmem:[#allocation3 + $0x268] sm:$0xff]
    %v2577 = vld [vmem:[#allocation3 + $0x270] sm:$0xff]
    %v2578 = vld [vmem:[#allocation3 + $0x278] sm:$0xff]
    %v2579 = vld [vmem:[#allocation3 + $0x280] sm:$0xff]
    %v2580 = vld [vmem:[#allocation3 + $0x288] sm:$0xff]
    %v2581 = vld [vmem:[#allocation3 + $0x290] sm:$0xff]
    %v2582 = vld [vmem:[#allocation3 + $0x298] sm:$0xff]
    %v2583 = vld [vmem:[#allocation3 + $0x2a0] sm:$0xff]
    %v2584 = vld [vmem:[#allocation3 + $0x2a8] sm:$0xff]
    %v2585 = vld [vmem:[#allocation3 + $0x2b0] sm:$0xff]
    %v2586 = vld [vmem:[#allocation3 + $0x2b8] sm:$0xff]
    %v2587 = vld [vmem:[#allocation3 + $0x2c0] sm:$0xff]
    %v2588 = vld [vmem:[#allocation3 + $0x2c8] sm:$0xff]
    %v2589 = vld [vmem:[#allocation3 + $0x2d0] sm:$0xff]
    %v2590 = vld [vmem:[#allocation3 + $0x2d8] sm:$0xff]
    %v2591 = vld [vmem:[#allocation3 + $0x2e0] sm:$0xff]
    %v2592 = vld [vmem:[#allocation3 + $0x2e8] sm:$0xff]
    %v2593 = vld [vmem:[#allocation3 + $0x2f0] sm:$0xff]
    %v2594 = vld [vmem:[#allocation3 + $0x2f8] sm:$0xff]
    %v2595 = vld [vmem:[#allocation3 + $0x300] sm:$0xff]
    %v2596 = vld [vmem:[#allocation3 + $0x308] sm:$0xff]
    %v2597 = vld [vmem:[#allocation3 + $0x310] sm:$0xff]
    %v2598 = vld [vmem:[#allocation3 + $0x318] sm:$0xff]
    %v2599 = vld [vmem:[#allocation3 + $0x320] sm:$0xff]
    %v2600 = vld [vmem:[#allocation3 + $0x328] sm:$0xff]
    %v2601 = vld [vmem:[#allocation3 + $0x330] sm:$0xff]
    %v2602 = vld [vmem:[#allocation3 + $0x338] sm:$0xff]
    %v2603 = vld [vmem:[#allocation3 + $0x340] sm:$0xff]
    %v2604 = vld [vmem:[#allocation3 + $0x348] sm:$0xff]
    %v2605 = vld [vmem:[#allocation3 + $0x350] sm:$0xff]
    %v2606 = vld [vmem:[#allocation3 + $0x358] sm:$0xff]
    %v2607 = vld [vmem:[#allocation3 + $0x360] sm:$0xff]
    %v2608 = vld [vmem:[#allocation3 + $0x368] sm:$0xff]
    %v2609 = vld [vmem:[#allocation3 + $0x370] sm:$0xff]
    %v2610 = vld [vmem:[#allocation3 + $0x378] sm:$0xff]
    %v2611 = vld [vmem:[#allocation3 + $0x380] sm:$0xff]
    %v2612 = vld [vmem:[#allocation3 + $0x388] sm:$0xff]
    %v2613 = vld [vmem:[#allocation3 + $0x390] sm:$0xff]
    %v2614 = vld [vmem:[#allocation3 + $0x398] sm:$0xff]
    %v2615 = vld [vmem:[#allocation3 + $0x3a0] sm:$0xff]
    %v2616 = vld [vmem:[#allocation3 + $0x3a8] sm:$0xff]
    %v2617 = vld [vmem:[#allocation3 + $0x3b0] sm:$0xff]
    %v2618 = vld [vmem:[#allocation3 + $0x3b8] sm:$0xff]
    %v2619 = vld [vmem:[#allocation3 + $0x3c0] sm:$0xff]
    %v2620 = vld [vmem:[#allocation3 + $0x3c8] sm:$0xff]
    %v2621 = vld [vmem:[#allocation3 + $0x3d0] sm:$0xff]
    %v2622 = vld [vmem:[#allocation3 + $0x3d8] sm:$0xff]
    %v2623 = vld [vmem:[#allocation3 + $0x3e0] sm:$0xff]
    %v2624 = vld [vmem:[#allocation3 + $0x3e8] sm:$0xff]
    %v2625 = vld [vmem:[#allocation3 + $0x3f0] sm:$0xff]
    %v2626 = vld [vmem:[#allocation3 + $0x3f8] sm:$0xff]
    %v2627 = vld [vmem:[#allocation3 + $0x400] sm:$0xff]
    %v2628 = vld [vmem:[#allocation3 + $0x408] sm:$0xff]
    %v2629 = vld [vmem:[#allocation3 + $0x410] sm:$0xff]
    %v2630 = vld [vmem:[#allocation3 + $0x418] sm:$0xff]
    %v2631 = vld [vmem:[#allocation3 + $0x420] sm:$0xff]
    %v2632 = vld [vmem:[#allocation3 + $0x428] sm:$0xff]
    %v2633 = vld [vmem:[#allocation3 + $0x430] sm:$0xff]
    %v2634 = vld [vmem:[#allocation3 + $0x438] sm:$0xff]
    %v2635 = vld [vmem:[#allocation3 + $0x440] sm:$0xff]
    %v2636 = vld [vmem:[#allocation3 + $0x448] sm:$0xff]
    %v2637 = vld [vmem:[#allocation3 + $0x450] sm:$0xff]
    %v2638 = vld [vmem:[#allocation3 + $0x458] sm:$0xff]
    %v2639 = vld [vmem:[#allocation3 + $0x460] sm:$0xff]
    %v2640 = vld [vmem:[#allocation3 + $0x468] sm:$0xff]
    %v2641 = vld [vmem:[#allocation3 + $0x470] sm:$0xff]
    %v2642 = vld [vmem:[#allocation3 + $0x478] sm:$0xff]
    %v2643 = vld [vmem:[#allocation3 + $0x480] sm:$0xff]
    %v2644 = vld [vmem:[#allocation3 + $0x488] sm:$0xff]
    %v2645 = vld [vmem:[#allocation3 + $0x490] sm:$0xff]
    %v2646 = vld [vmem:[#allocation3 + $0x498] sm:$0xff]
    %v2647 = vld [vmem:[#allocation3 + $0x4a0] sm:$0xff]
    %v2648 = vld [vmem:[#allocation3 + $0x4a8] sm:$0xff]
    %v2649 = vld [vmem:[#allocation3 + $0x4b0] sm:$0xff]
    %v2650 = vld [vmem:[#allocation3 + $0x4b8] sm:$0xff]
    %v2651 = vld [vmem:[#allocation3 + $0x4c0] sm:$0xff]
    %v2652 = vld [vmem:[#allocation3 + $0x4c8] sm:$0xff]
    %v2653 = vld [vmem:[#allocation3 + $0x4d0] sm:$0xff]
    %v2654 = vld [vmem:[#allocation3 + $0x4d8] sm:$0xff]
    %v2655 = vld [vmem:[#allocation3 + $0x4e0] sm:$0xff]
    %v2656 = vld [vmem:[#allocation3 + $0x4e8] sm:$0xff]
    %v2657 = vld [vmem:[#allocation3 + $0x4f0] sm:$0xff]
    %v2658 = vld [vmem:[#allocation3 + $0x4f8] sm:$0xff]
    %v2659 = vld [vmem:[%s3] sm:$0xf]
    %v2660 = vld [vmem:[%s3 + $0x4] sm:$0xf]
    %v2661 = vld [vmem:[%s3 + $0x8] sm:$0xf]
    %v2662 = vld [vmem:[%s3 + $0xc] sm:$0xf]
    %v2663 = vld [vmem:[%s3 + $0x10] sm:$0xf]
    %v2664 = vld [vmem:[%s3 + $0x14] sm:$0xf]
    %v2665 = vld [vmem:[%s3 + $0x18] sm:$0xf]
    %v2666 = vld [vmem:[%s3 + $0x1c] sm:$0xf]
    %v2667 = vld [vmem:[%s3 + $0x20] sm:$0xf]
    %v2668 = vld [vmem:[%s3 + $0x24] sm:$0xf]
    %v2669 = vld [vmem:[%s3 + $0x28] sm:$0xf]
    %v2670 = vld [vmem:[%s3 + $0x2c] sm:$0xf]
    %v2671 = vld [vmem:[%s3 + $0x30] sm:$0xf]
    %v2672 = vld [vmem:[%s3 + $0x34] sm:$0xf]
    %v2673 = vld [vmem:[%s3 + $0x38] sm:$0xf]
    %v2674 = vld [vmem:[%s3 + $0x3c] sm:$0xf]
    %v2675 = vld [vmem:[%s3 + $0x40] sm:$0xf]
    %v2676 = vld [vmem:[%s3 + $0x44] sm:$0xf]
    %v2677 = vld [vmem:[%s3 + $0x48] sm:$0xf]
    %v2678 = vld [vmem:[%s3 + $0x4c] sm:$0xf]
    %v2679 = vld [vmem:[%s3 + $0x50] sm:$0xf]
    %v2680 = vld [vmem:[%s3 + $0x54] sm:$0xf]
    %v2681 = vld [vmem:[%s3 + $0x58] sm:$0xf]
    %v2682 = vld [vmem:[%s3 + $0x5c] sm:$0xf]
    %v2683 = vld [vmem:[%s3 + $0x60] sm:$0xf]
    %v2684 = vld [vmem:[%s3 + $0x64] sm:$0xf]
    %v2685 = vld [vmem:[%s3 + $0x68] sm:$0xf]
    %v2686 = vld [vmem:[%s3 + $0x6c] sm:$0xf]
    %v2687 = vld [vmem:[%s3 + $0x70] sm:$0xf]
    %v2688 = vld [vmem:[%s3 + $0x74] sm:$0xf]
    %v2689 = vld [vmem:[%s3 + $0x78] sm:$0xf]
    %v2690 = vld [vmem:[%s3 + $0x7c] sm:$0xf]
    %v2691 = vld [vmem:[%s3 + $0x80] sm:$0xf]
    %v2692 = vld [vmem:[%s3 + $0x84] sm:$0xf]
    %v2693 = vld [vmem:[%s3 + $0x88] sm:$0xf]
    %v2694 = vld [vmem:[%s3 + $0x8c] sm:$0xf]
    %v2695 = vld [vmem:[%s3 + $0x90] sm:$0xf]
    %v2696 = vld [vmem:[%s3 + $0x94] sm:$0xf]
    %v2697 = vld [vmem:[%s3 + $0x98] sm:$0xf]
    %v2698 = vld [vmem:[%s3 + $0x9c] sm:$0xf]
    %v2699 = vld [vmem:[%s3 + $0xa0] sm:$0xf]
    %v2700 = vld [vmem:[%s3 + $0xa4] sm:$0xf]
    %v2701 = vld [vmem:[%s3 + $0xa8] sm:$0xf]
    %v2702 = vld [vmem:[%s3 + $0xac] sm:$0xf]
    %v2703 = vld [vmem:[%s3 + $0xb0] sm:$0xf]
    %v2704 = vld [vmem:[%s3 + $0xb4] sm:$0xf]
    %v2705 = vld [vmem:[%s3 + $0xb8] sm:$0xf]
    %v2706 = vld [vmem:[%s3 + $0xbc] sm:$0xf]
    %v2707 = vld [vmem:[%s3 + $0xc0] sm:$0xf]
    %v2708 = vld [vmem:[%s3 + $0xc4] sm:$0xf]
    %v2709 = vld [vmem:[%s3 + $0xc8] sm:$0xf]
    %v2710 = vld [vmem:[%s3 + $0xcc] sm:$0xf]
    %v2711 = vld [vmem:[%s3 + $0xd0] sm:$0xf]
    %v2712 = vld [vmem:[%s3 + $0xd4] sm:$0xf]
    %v2713 = vld [vmem:[%s3 + $0xd8] sm:$0xf]
    %v2714 = vld [vmem:[%s3 + $0xdc] sm:$0xf]
    %v2715 = vld [vmem:[%s3 + $0xe0] sm:$0xf]
    %v2716 = vld [vmem:[%s3 + $0xe4] sm:$0xf]
    %v2717 = vld [vmem:[%s3 + $0xe8] sm:$0xf]
    %v2718 = vld [vmem:[%s3 + $0xec] sm:$0xf]
    %v2719 = vld [vmem:[%s3 + $0xf0] sm:$0xf]
    %v2720 = vld [vmem:[%s3 + $0xf4] sm:$0xf]
    %v2721 = vld [vmem:[%s3 + $0xf8] sm:$0xf]
    %v2722 = vld [vmem:[%s3 + $0xfc] sm:$0xf]
    %v2723 = vld [vmem:[%s3 + $0x100] sm:$0xf]
    %v2724 = vld [vmem:[%s3 + $0x104] sm:$0xf]
    %v2725 = vld [vmem:[%s3 + $0x108] sm:$0xf]
    %v2726 = vld [vmem:[%s3 + $0x10c] sm:$0xf]
    %v2727 = vld [vmem:[%s3 + $0x110] sm:$0xf]
    %v2728 = vld [vmem:[%s3 + $0x114] sm:$0xf]
    %v2729 = vld [vmem:[%s3 + $0x118] sm:$0xf]
    %v2730 = vld [vmem:[%s3 + $0x11c] sm:$0xf]
    %v2731 = vld [vmem:[%s3 + $0x120] sm:$0xf]
    %v2732 = vld [vmem:[%s3 + $0x124] sm:$0xf]
    %v2733 = vld [vmem:[%s3 + $0x128] sm:$0xf]
    %v2734 = vld [vmem:[%s3 + $0x12c] sm:$0xf]
    %v2735 = vld [vmem:[%s3 + $0x130] sm:$0xf]
    %v2736 = vld [vmem:[%s3 + $0x134] sm:$0xf]
    %v2737 = vld [vmem:[%s3 + $0x138] sm:$0xf]
    %v2738 = vld [vmem:[%s3 + $0x13c] sm:$0xf]
    %v2739 = vld [vmem:[%s4] sm:$0x1]
    %v2741 = vlaneseq
    %v2742 = vshrl.u32 %v2741, 7
    %v2743 = vsub.s32 0, %v2742
    %v2744 = vrot.slane %v2739, %v2743
    %v2826 = vunpack.c.l.b16 %v2659
    %v2827 = vunpack.c.l.b16 %v2660
    %v2828 = vunpack.c.l.b16 %v2661
    %v2829 = vunpack.c.l.b16 %v2662
    %v2830 = vunpack.c.l.b16 %v2663
    %v2831 = vunpack.c.l.b16 %v2664
    %v2832 = vunpack.c.l.b16 %v2665
    %v2833 = vunpack.c.l.b16 %v2666
    %v2834 = vunpack.c.l.b16 %v2667
    %v2835 = vunpack.c.l.b16 %v2668
    %v2836 = vunpack.c.l.b16 %v2669
    %v2837 = vunpack.c.l.b16 %v2670
    %v2838 = vunpack.c.l.b16 %v2671
    %v2839 = vunpack.c.l.b16 %v2672
    %v2840 = vunpack.c.l.b16 %v2673
    %v2841 = vunpack.c.l.b16 %v2674
    %v2842 = vunpack.c.l.b16 %v2675
    %v2843 = vunpack.c.l.b16 %v2676
    %v2844 = vunpack.c.l.b16 %v2677
    %v2845 = vunpack.c.l.b16 %v2678
    %v2846 = vunpack.c.l.b16 %v2679
    %v2847 = vunpack.c.l.b16 %v2680
    %v2848 = vunpack.c.l.b16 %v2681
    %v2849 = vunpack.c.l.b16 %v2682
    %v2850 = vunpack.c.l.b16 %v2683
    %v2851 = vunpack.c.l.b16 %v2684
    %v2852 = vunpack.c.l.b16 %v2685
    %v2853 = vunpack.c.l.b16 %v2686
    %v2854 = vunpack.c.l.b16 %v2687
    %v2855 = vunpack.c.l.b16 %v2688
    %v2856 = vunpack.c.l.b16 %v2689
    %v2857 = vunpack.c.l.b16 %v2690
    %v2858 = vunpack.c.l.b16 %v2691
    %v2859 = vunpack.c.l.b16 %v2692
    %v2860 = vunpack.c.l.b16 %v2693
    %v2861 = vunpack.c.l.b16 %v2694
    %v2862 = vunpack.c.l.b16 %v2695
    %v2863 = vunpack.c.l.b16 %v2696
    %v2864 = vunpack.c.l.b16 %v2697
    %v2865 = vunpack.c.l.b16 %v2698
    %v2866 = vunpack.c.l.b16 %v2699
    %v2867 = vunpack.c.l.b16 %v2700
    %v2868 = vunpack.c.l.b16 %v2701
    %v2869 = vunpack.c.l.b16 %v2702
    %v2870 = vunpack.c.l.b16 %v2703
    %v2871 = vunpack.c.l.b16 %v2704
    %v2872 = vunpack.c.l.b16 %v2705
    %v2873 = vunpack.c.l.b16 %v2706
    %v2874 = vunpack.c.l.b16 %v2707
    %v2875 = vunpack.c.l.b16 %v2708
    %v2876 = vunpack.c.l.b16 %v2709
    %v2877 = vunpack.c.l.b16 %v2710
    %v2878 = vunpack.c.l.b16 %v2711
    %v2879 = vunpack.c.l.b16 %v2712
    %v2880 = vunpack.c.l.b16 %v2713
    %v2881 = vunpack.c.l.b16 %v2714
    %v2882 = vunpack.c.l.b16 %v2715
    %v2883 = vunpack.c.l.b16 %v2716
    %v2884 = vunpack.c.l.b16 %v2717
    %v2885 = vunpack.c.l.b16 %v2718
    %v2886 = vunpack.c.l.b16 %v2719
    %v2887 = vunpack.c.l.b16 %v2720
    %v2888 = vunpack.c.l.b16 %v2721
    %v2889 = vunpack.c.l.b16 %v2722
    %v2890 = vunpack.c.l.b16 %v2723
    %v2891 = vunpack.c.l.b16 %v2724
    %v2892 = vunpack.c.l.b16 %v2725
    %v2893 = vunpack.c.l.b16 %v2726
    %v2894 = vunpack.c.l.b16 %v2727
    %v2895 = vunpack.c.l.b16 %v2728
    %v2896 = vunpack.c.l.b16 %v2729
    %v2897 = vunpack.c.l.b16 %v2730
    %v2898 = vunpack.c.l.b16 %v2731
    %v2899 = vunpack.c.l.b16 %v2732
    %v2900 = vunpack.c.l.b16 %v2733
    %v2901 = vunpack.c.l.b16 %v2734
    %v2902 = vunpack.c.l.b16 %v2735
    %v2903 = vunpack.c.l.b16 %v2736
    %v2904 = vunpack.c.l.b16 %v2737
    %v2905 = vunpack.c.l.b16 %v2738
    %v2906 = vpack.c.b16 %v2827, %v2826
    %v2907 = vpack.c.b16 %v2829, %v2828
    %v2908 = vpack.c.b16 %v2831, %v2830
    %v2909 = vpack.c.b16 %v2833, %v2832
    %v2910 = vpack.c.b16 %v2835, %v2834
    %v2911 = vpack.c.b16 %v2837, %v2836
    %v2912 = vpack.c.b16 %v2839, %v2838
    %v2913 = vpack.c.b16 %v2841, %v2840
    %v2914 = vpack.c.b16 %v2843, %v2842
    %v2915 = vpack.c.b16 %v2845, %v2844
    %v2916 = vpack.c.b16 %v2847, %v2846
    %v2917 = vpack.c.b16 %v2849, %v2848
    %v2918 = vpack.c.b16 %v2851, %v2850
    %v2919 = vpack.c.b16 %v2853, %v2852
    %v2920 = vpack.c.b16 %v2855, %v2854
    %v2921 = vpack.c.b16 %v2857, %v2856
    %v2922 = vpack.c.b16 %v2859, %v2858
    %v2923 = vpack.c.b16 %v2861, %v2860
    %v2924 = vpack.c.b16 %v2863, %v2862
    %v2925 = vpack.c.b16 %v2865, %v2864
    %v2926 = vpack.c.b16 %v2867, %v2866
    %v2927 = vpack.c.b16 %v2869, %v2868
    %v2928 = vpack.c.b16 %v2871, %v2870
    %v2929 = vpack.c.b16 %v2873, %v2872
    %v2930 = vpack.c.b16 %v2875, %v2874
    %v2931 = vpack.c.b16 %v2877, %v2876
    %v2932 = vpack.c.b16 %v2879, %v2878
    %v2933 = vpack.c.b16 %v2881, %v2880
    %v2934 = vpack.c.b16 %v2883, %v2882
    %v2935 = vpack.c.b16 %v2885, %v2884
    %v2936 = vpack.c.b16 %v2887, %v2886
    %v2937 = vpack.c.b16 %v2889, %v2888
    %v2938 = vpack.c.b16 %v2891, %v2890
    %v2939 = vpack.c.b16 %v2893, %v2892
    %v2940 = vpack.c.b16 %v2895, %v2894
    %v2941 = vpack.c.b16 %v2897, %v2896
    %v2942 = vpack.c.b16 %v2899, %v2898
    %v2943 = vpack.c.b16 %v2901, %v2900
    %v2944 = vpack.c.b16 %v2903, %v2902
    %v2945 = vpack.c.b16 %v2905, %v2904
    %2986 = vmatprep.subr.bf16.mxu0 0
    %2987 = vmatpush1.bf16.msra.mxu0 %v2906
    %2988 = vmatprep.subr.bf16.mxu0 0
    %2989 = vmatpush1.bf16.msra.mxu0 %v2907
    %2990 = vmatprep.subr.bf16.mxu0 0
    %2991 = vmatpush1.bf16.msra.mxu0 %v2908
    %2992 = vmatprep.subr.bf16.mxu0 0
    %2993 = vmatpush1.bf16.msra.mxu0 %v2909
    %2994 = vmatprep.subr.bf16.mxu0 0
    %2995 = vmatpush1.bf16.msra.mxu0 %v2910
    %2996 = vmatprep.subr.bf16.mxu0 0
    %2997 = vmatpush1.bf16.msra.mxu0 %v2911
    %2998 = vmatprep.subr.bf16.mxu0 0
    %2999 = vmatpush1.bf16.msra.mxu0 %v2912
    %3000 = vmatprep.subr.bf16.mxu0 0
    %3001 = vmatpush1.bf16.msra.mxu0 %v2913
    %3002 = vmatprep.subr.bf16.mxu0 0
    %3003 = vmatpush1.bf16.msra.mxu0 %v2914
    %3004 = vmatprep.subr.bf16.mxu0 0
    %3005 = vmatpush1.bf16.msra.mxu0 %v2915
    %3006 = vmatprep.subr.bf16.mxu0 0
    %3007 = vmatpush1.bf16.msra.mxu0 %v2916
    %3008 = vmatprep.subr.bf16.mxu0 0
    %3009 = vmatpush1.bf16.msra.mxu0 %v2917
    %3010 = vmatprep.subr.bf16.mxu0 0
    %3011 = vmatpush1.bf16.msra.mxu0 %v2918
    %3012 = vmatprep.subr.bf16.mxu0 0
    %3013 = vmatpush1.bf16.msra.mxu0 %v2919
    %3014 = vmatprep.subr.bf16.mxu0 0
    %3015 = vmatpush1.bf16.msra.mxu0 %v2920
    %3016 = vmatprep.subr.bf16.mxu0 0
    %3017 = vmatpush1.bf16.msra.mxu0 %v2921
    %3018 = vmatprep.mubr.bf16.mxu0 %v2500
    %3019 = vmatmul.mubr.bf16.gmra.mrb[0].mxu0 %v2499
    %v3020 = vpop.f32.mrb[0].mxu0
    %v3021 = vadd.f32 %v2744, %v3020
    %v3022 = vpop.f32.mrb[0].mxu0
    %v3023 = vpop.f32.mrb[0].mxu0
    %v3024 = vadd.f32 %v2744, %v3023
    %v3025 = vpop.f32.mrb[0].mxu0
    %3026 = vmatprep.mubr.bf16.mxu0 %v2505
    %3027 = vmatmul.mubr.bf16.gmra.mrb[0].mxu0 %v2504
    %v3028 = vpop.f32.mrb[0].mxu0
    %v3029 = vadd.f32 %v2744, %v3028
    %v3030 = vpop.f32.mrb[0].mxu0
    %v3031 = vpop.f32.mrb[0].mxu0
    %v3032 = vadd.f32 %v2744, %v3031
    %v3033 = vpop.f32.mrb[0].mxu0
    %3034 = vmatprep.mubr.bf16.mxu0 %v2510
    %3035 = vmatmul.mubr.bf16.gmra.mrb[0].mxu0 %v2509
    %v3036 = vpop.f32.mrb[0].mxu0
    %v3037 = vadd.f32 %v2744, %v3036
    %v3038 = vpop.f32.mrb[0].mxu0
    %v3039 = vpop.f32.mrb[0].mxu0
    %v3040 = vadd.f32 %v2744, %v3039
    %v3041 = vpop.f32.mrb[0].mxu0
    %3042 = vmatprep.mubr.bf16.mxu0 %v2515
    %3043 = vmatmul.mubr.bf16.gmra.mrb[0].mxu0 %v2514
    %v3044 = vpop.f32.mrb[0].mxu0
    %v3045 = vadd.f32 %v2744, %v3044
    %v3046 = vpop.f32.mrb[0].mxu0
    %v3047 = vpop.f32.mrb[0].mxu0
    %v3048 = vadd.f32 %v2744, %v3047
    %v3049 = vpop.f32.mrb[0].mxu0
    %3050 = vmatprep.mubr.bf16.mxu0 %v2520
    %3051 = vmatmul.mubr.bf16.gmra.mrb[0].mxu0 %v2519
    %v3052 = vpop.f32.mrb[0].mxu0
    %v3053 = vadd.f32 %v2744, %v3052
    %v3054 = vpop.f32.mrb[0].mxu0
    %v3055 = vpop.f32.mrb[0].mxu0
    %v3056 = vadd.f32 %v2744, %v3055
    %v3057 = vpop.f32.mrb[0].mxu0
    %3058 = vmatprep.mubr.bf16.mxu0 %v2525
    %3059 = vmatmul.mubr.bf16.gmra.mrb[0].mxu0 %v2524
    %v3060 = vpop.f32.mrb[0].mxu0
    %v3061 = vadd.f32 %v2744, %v3060
    %v3062 = vpop.f32.mrb[0].mxu0
    %v3063 = vpop.f32.mrb[0].mxu0
    %v3064 = vadd.f32 %v2744, %v3063
    %v3065 = vpop.f32.mrb[0].mxu0
    %3066 = vmatprep.mubr.bf16.mxu0 %v2530
    %3067 = vmatmul.mubr.bf16.gmra.mrb[0].mxu0 %v2529
    %v3068 = vpop.f32.mrb[0].mxu0
    %v3069 = vadd.f32 %v2744, %v3068
    %v3070 = vpop.f32.mrb[0].mxu0
    %v3071 = vpop.f32.mrb[0].mxu0
    %v3072 = vadd.f32 %v2744, %v3071
    %v3073 = vpop.f32.mrb[0].mxu0
    %3074 = vmatprep.mubr.bf16.mxu0 %v2535
    %3075 = vmatmul.mubr.bf16.gmra.mrb[0].mxu0 %v2534
    %v3076 = vpop.f32.mrb[0].mxu0
    %v3077 = vadd.f32 %v2744, %v3076
    %v3078 = vpop.f32.mrb[0].mxu0
    %v3079 = vpop.f32.mrb[0].mxu0
    %v3080 = vadd.f32 %v2744, %v3079
    %v3081 = vpop.f32.mrb[0].mxu0
    %3082 = vmatprep.mubr.bf16.mxu0 %v2540
    %3083 = vmatmul.mubr.bf16.gmra.mrb[0].mxu0 %v2539
    %v3084 = vpop.f32.mrb[0].mxu0
    %v3085 = vadd.f32 %v2744, %v3084
    %v3086 = vpop.f32.mrb[0].mxu0
    %v3087 = vpop.f32.mrb[0].mxu0
    %v3088 = vadd.f32 %v2744, %v3087
    %v3089 = vpop.f32.mrb[0].mxu0
    %3090 = vmatprep.mubr.bf16.mxu0 %v2545
    %3091 = vmatmul.mubr.bf16.gmra.mrb[0].mxu0 %v2544
    %v3092 = vpop.f32.mrb[0].mxu0
    %v3093 = vadd.f32 %v2744, %v3092
    %v3094 = vpop.f32.mrb[0].mxu0
    %v3095 = vpop.f32.mrb[0].mxu0
    %v3096 = vadd.f32 %v2744, %v3095
    %v3097 = vpop.f32.mrb[0].mxu0
    %3098 = vmatprep.mubr.bf16.mxu0 %v2550
    %3099 = vmatmul.mubr.bf16.gmra.mrb[0].mxu0 %v2549
    %v3100 = vpop.f32.mrb[0].mxu0
    %v3101 = vadd.f32 %v2744, %v3100
    %v3102 = vpop.f32.mrb[0].mxu0
    %v3103 = vpop.f32.mrb[0].mxu0
    %v3104 = vadd.f32 %v2744, %v3103
    %v3105 = vpop.f32.mrb[0].mxu0
    %3106 = vmatprep.mubr.bf16.mxu0 %v2555
    %3107 = vmatmul.mubr.bf16.gmra.mrb[0].mxu0 %v2554
    %v3108 = vpop.f32.mrb[0].mxu0
    %v3109 = vadd.f32 %v2744, %v3108
    %v3110 = vpop.f32.mrb[0].mxu0
    %v3111 = vpop.f32.mrb[0].mxu0
    %v3112 = vadd.f32 %v2744, %v3111
    %v3113 = vpop.f32.mrb[0].mxu0
    %3114 = vmatprep.mubr.bf16.mxu0 %v2560
    %3115 = vmatmul.mubr.bf16.gmra.mrb[0].mxu0 %v2559
    %v3116 = vpop.f32.mrb[0].mxu0
    %v3117 = vadd.f32 %v2744, %v3116
    %v3118 = vpop.f32.mrb[0].mxu0
    %v3119 = vpop.f32.mrb[0].mxu0
    %v3120 = vadd.f32 %v2744, %v3119
    %v3121 = vpop.f32.mrb[0].mxu0
    %3122 = vmatprep.mubr.bf16.mxu0 %v2565
    %3123 = vmatmul.mubr.bf16.gmra.mrb[0].mxu0 %v2564
    %v3124 = vpop.f32.mrb[0].mxu0
    %v3125 = vadd.f32 %v2744, %v3124
    %v3126 = vpop.f32.mrb[0].mxu0
    %v3127 = vpop.f32.mrb[0].mxu0
    %v3128 = vadd.f32 %v2744, %v3127
    %v3129 = vpop.f32.mrb[0].mxu0
    %3130 = vmatprep.mubr.bf16.mxu0 %v2570
    %3131 = vmatmul.mubr.bf16.gmra.mrb[0].mxu0 %v2569
    %v3132 = vpop.f32.mrb[0].mxu0
    %v3133 = vadd.f32 %v2744, %v3132
    %v3134 = vpop.f32.mrb[0].mxu0
    %v3135 = vpop.f32.mrb[0].mxu0
    %v3136 = vadd.f32 %v2744, %v3135
    %v3137 = vpop.f32.mrb[0].mxu0
    %3138 = vmatprep.mubr.bf16.mxu0 %v2575
    %3139 = vmatmul.mubr.bf16.gmra.mrb[0].mxu0 %v2574
    %v3140 = vpop.f32.mrb[0].mxu0
    %v3141 = vadd.f32 %v2744, %v3140
    %v3142 = vpop.f32.mrb[0].mxu0
    %v3143 = vpop.f32.mrb[0].mxu0
    %v3144 = vadd.f32 %v2744, %v3143
    %v3145 = vpop.f32.mrb[0].mxu0
    %3146 = vmatprep.mubr.bf16.mxu0 %v2580
    %3147 = vmatmul.mubr.bf16.gmra.mrb[0].mxu0 %v2579
    %v3148 = vpop.f32.mrb[0].mxu0
    %v3149 = vadd.f32 %v2744, %v3148
    %v3150 = vpop.f32.mrb[0].mxu0
    %v3151 = vpop.f32.mrb[0].mxu0
    %v3152 = vadd.f32 %v2744, %v3151
    %v3153 = vpop.f32.mrb[0].mxu0
    %3154 = vmatprep.mubr.bf16.mxu0 %v2585
    %3155 = vmatmul.mubr.bf16.gmra.mrb[0].mxu0 %v2584
    %v3156 = vpop.f32.mrb[0].mxu0
    %v3157 = vadd.f32 %v2744, %v3156
    %v3158 = vpop.f32.mrb[0].mxu0
    %v3159 = vpop.f32.mrb[0].mxu0
    %v3160 = vadd.f32 %v2744, %v3159
    %v3161 = vpop.f32.mrb[0].mxu0
    %3162 = vmatprep.mubr.bf16.mxu0 %v2590
    %3163 = vmatmul.mubr.bf16.gmra.mrb[0].mxu0 %v2589
    %v3164 = vpop.f32.mrb[0].mxu0
    %v3165 = vadd.f32 %v2744, %v3164
    %v3166 = vpop.f32.mrb[0].mxu0
    %v3167 = vpop.f32.mrb[0].mxu0
    %v3168 = vadd.f32 %v2744, %v3167
    %v3169 = vpop.f32.mrb[0].mxu0
    %3170 = vmatprep.mubr.bf16.mxu0 %v2595
    %3171 = vmatmul.mubr.bf16.gmra.mrb[0].mxu0 %v2594
    %v3172 = vpop.f32.mrb[0].mxu0
    %v3173 = vadd.f32 %v2744, %v3172
    %v3174 = vpop.f32.mrb[0].mxu0
    %v3175 = vpop.f32.mrb[0].mxu0
    %v3176 = vadd.f32 %v2744, %v3175
    %v3177 = vpop.f32.mrb[0].mxu0
    %3178 = vmatprep.mubr.bf16.mxu0 %v2600
    %3179 = vmatmul.mubr.bf16.gmra.mrb[0].mxu0 %v2599
    %v3180 = vpop.f32.mrb[0].mxu0
    %v3181 = vadd.f32 %v2744, %v3180
    %v3182 = vpop.f32.mrb[0].mxu0
    %v3183 = vpop.f32.mrb[0].mxu0
    %v3184 = vadd.f32 %v2744, %v3183
    %v3185 = vpop.f32.mrb[0].mxu0
    %3186 = vmatprep.mubr.bf16.mxu0 %v2605
    %3187 = vmatmul.mubr.bf16.gmra.mrb[0].mxu0 %v2604
    %v3188 = vpop.f32.mrb[0].mxu0
    %v3189 = vadd.f32 %v2744, %v3188
    %v3190 = vpop.f32.mrb[0].mxu0
    %v3191 = vpop.f32.mrb[0].mxu0
    %v3192 = vadd.f32 %v2744, %v3191
    %v3193 = vpop.f32.mrb[0].mxu0
    %3194 = vmatprep.mubr.bf16.mxu0 %v2610
    %3195 = vmatmul.mubr.bf16.gmra.mrb[0].mxu0 %v2609
    %v3196 = vpop.f32.mrb[0].mxu0
    %v3197 = vadd.f32 %v2744, %v3196
    %v3198 = vpop.f32.mrb[0].mxu0
    %v3199 = vpop.f32.mrb[0].mxu0
    %v3200 = vadd.f32 %v2744, %v3199
    %v3201 = vpop.f32.mrb[0].mxu0
    %3202 = vmatprep.mubr.bf16.mxu0 %v2615
    %3203 = vmatmul.mubr.bf16.gmra.mrb[0].mxu0 %v2614
    %v3204 = vpop.f32.mrb[0].mxu0
    %v3205 = vadd.f32 %v2744, %v3204
    %v3206 = vpop.f32.mrb[0].mxu0
    %v3207 = vpop.f32.mrb[0].mxu0
    %v3208 = vadd.f32 %v2744, %v3207
    %v3209 = vpop.f32.mrb[0].mxu0
    %3210 = vmatprep.mubr.bf16.mxu0 %v2620
    %3211 = vmatmul.mubr.bf16.gmra.mrb[0].mxu0 %v2619
    %v3212 = vpop.f32.mrb[0].mxu0
    %v3213 = vadd.f32 %v2744, %v3212
    %v3214 = vpop.f32.mrb[0].mxu0
    %v3215 = vpop.f32.mrb[0].mxu0
    %v3216 = vadd.f32 %v2744, %v3215
    %v3217 = vpop.f32.mrb[0].mxu0
    %3218 = vmatprep.mubr.bf16.mxu0 %v2625
    %3219 = vmatmul.mubr.bf16.gmra.mrb[0].mxu0 %v2624
    %v3220 = vpop.f32.mrb[0].mxu0
    %v3221 = vadd.f32 %v2744, %v3220
    %v3222 = vpop.f32.mrb[0].mxu0
    %v3223 = vpop.f32.mrb[0].mxu0
    %v3224 = vadd.f32 %v2744, %v3223
    %v3225 = vpop.f32.mrb[0].mxu0
    %3226 = vmatprep.mubr.bf16.mxu0 %v2630
    %3227 = vmatmul.mubr.bf16.gmra.mrb[0].mxu0 %v2629
    %v3228 = vpop.f32.mrb[0].mxu0
    %v3229 = vadd.f32 %v2744, %v3228
    %v3230 = vpop.f32.mrb[0].mxu0
    %v3231 = vpop.f32.mrb[0].mxu0
    %v3232 = vadd.f32 %v2744, %v3231
    %v3233 = vpop.f32.mrb[0].mxu0
    %3234 = vmatprep.mubr.bf16.mxu0 %v2635
    %3235 = vmatmul.mubr.bf16.gmra.mrb[0].mxu0 %v2634
    %v3236 = vpop.f32.mrb[0].mxu0
    %v3237 = vadd.f32 %v2744, %v3236
    %v3238 = vpop.f32.mrb[0].mxu0
    %v3239 = vpop.f32.mrb[0].mxu0
    %v3240 = vadd.f32 %v2744, %v3239
    %v3241 = vpop.f32.mrb[0].mxu0
    %3242 = vmatprep.mubr.bf16.mxu0 %v2640
    %3243 = vmatmul.mubr.bf16.gmra.mrb[0].mxu0 %v2639
    %v3244 = vpop.f32.mrb[0].mxu0
    %v3245 = vadd.f32 %v2744, %v3244
    %v3246 = vpop.f32.mrb[0].mxu0
    %v3247 = vpop.f32.mrb[0].mxu0
    %v3248 = vadd.f32 %v2744, %v3247
    %v3249 = vpop.f32.mrb[0].mxu0
    %3250 = vmatprep.mubr.bf16.mxu0 %v2645
    %3251 = vmatmul.mubr.bf16.gmra.mrb[0].mxu0 %v2644
    %v3252 = vpop.f32.mrb[0].mxu0
    %v3253 = vadd.f32 %v2744, %v3252
    %v3254 = vpop.f32.mrb[0].mxu0
    %v3255 = vpop.f32.mrb[0].mxu0
    %v3256 = vadd.f32 %v2744, %v3255
    %v3257 = vpop.f32.mrb[0].mxu0
    %3258 = vmatprep.mubr.bf16.mxu0 %v2650
    %3259 = vmatmul.mubr.bf16.gmra.mrb[0].mxu0 %v2649
    %v3260 = vpop.f32.mrb[0].mxu0
    %v3261 = vadd.f32 %v2744, %v3260
    %v3262 = vpop.f32.mrb[0].mxu0
    %v3263 = vpop.f32.mrb[0].mxu0
    %v3264 = vadd.f32 %v2744, %v3263
    %v3265 = vpop.f32.mrb[0].mxu0
    %3266 = vmatprep.mubr.bf16.mxu0 %v2655
    %3267 = vmatmul.mubr.bf16.gmra.mrb[0].mxu0 %v2654
    %v3268 = vpop.f32.mrb[0].mxu0
    %v3269 = vadd.f32 %v2744, %v3268
    %v3270 = vpop.f32.mrb[0].mxu0
    %v3271 = vpop.f32.mrb[0].mxu0
    %v3272 = vadd.f32 %v2744, %v3271
    %v3273 = vpop.f32.mrb[0].mxu0
    %3274 = vdwg.mxu0
    %3275 = vmatprep.subr.bf16.mxu0 0
    %3276 = vmatpush1.bf16.msra.mxu0 %v2922
    %3277 = vmatprep.subr.bf16.mxu0 0
    %3278 = vmatpush1.bf16.msra.mxu0 %v2923
    %3279 = vmatprep.subr.bf16.mxu0 0
    %3280 = vmatpush1.bf16.msra.mxu0 %v2924
    %3281 = vmatprep.subr.bf16.mxu0 0
    %3282 = vmatpush1.bf16.msra.mxu0 %v2925
    %3283 = vmatprep.subr.bf16.mxu0 0
    %3284 = vmatpush1.bf16.msra.mxu0 %v2926
    %3285 = vmatprep.subr.bf16.mxu0 0
    %3286 = vmatpush1.bf16.msra.mxu0 %v2927
    %3287 = vmatprep.subr.bf16.mxu0 0
    %3288 = vmatpush1.bf16.msra.mxu0 %v2928
    %3289 = vmatprep.subr.bf16.mxu0 0
    %3290 = vmatpush1.bf16.msra.mxu0 %v2929
    %3291 = vmatprep.subr.bf16.mxu0 0
    %3292 = vmatpush1.bf16.msra.mxu0 %v2930
    %3293 = vmatprep.subr.bf16.mxu0 0
    %3294 = vmatpush1.bf16.msra.mxu0 %v2931
    %3295 = vmatprep.subr.bf16.mxu0 0
    %3296 = vmatpush1.bf16.msra.mxu0 %v2932
    %3297 = vmatprep.subr.bf16.mxu0 0
    %3298 = vmatpush1.bf16.msra.mxu0 %v2933
    %3299 = vmatprep.subr.bf16.mxu0 0
    %3300 = vmatpush1.bf16.msra.mxu0 %v2934
    %3301 = vmatprep.subr.bf16.mxu0 0
    %3302 = vmatpush1.bf16.msra.mxu0 %v2935
    %3303 = vmatprep.subr.bf16.mxu0 0
    %3304 = vmatpush1.bf16.msra.mxu0 %v2936
    %3305 = vmatprep.subr.bf16.mxu0 0
    %3306 = vmatpush1.bf16.msra.mxu0 %v2937
    %3307 = vmatprep.mubr.bf16.mxu0 %v2502
    %3308 = vmatmul.mubr.bf16.gmra.mrb[0].mxu0 %v2501
    %v3309 = vpop.f32.mrb[0].mxu0
    %v3310 = vadd.f32 %v3021, %v3309
    %v3311 = vpop.f32.mrb[0].mxu0
    %v3312 = vpop.f32.mrb[0].mxu0
    %v3313 = vadd.f32 %v3024, %v3312
    %v3314 = vpop.f32.mrb[0].mxu0
    %3315 = vmatprep.mubr.bf16.mxu0 %v2507
    %3316 = vmatmul.mubr.bf16.gmra.mrb[0].mxu0 %v2506
    %v3317 = vpop.f32.mrb[0].mxu0
    %v3318 = vadd.f32 %v3029, %v3317
    %v3319 = vpop.f32.mrb[0].mxu0
    %v3320 = vpop.f32.mrb[0].mxu0
    %v3321 = vadd.f32 %v3032, %v3320
    %v3322 = vpop.f32.mrb[0].mxu0
    %3323 = vmatprep.mubr.bf16.mxu0 %v2512
    %3324 = vmatmul.mubr.bf16.gmra.mrb[0].mxu0 %v2511
    %v3325 = vpop.f32.mrb[0].mxu0
    %v3326 = vadd.f32 %v3037, %v3325
    %v3327 = vpop.f32.mrb[0].mxu0
    %v3328 = vpop.f32.mrb[0].mxu0
    %v3329 = vadd.f32 %v3040, %v3328
    %v3330 = vpop.f32.mrb[0].mxu0
    %3331 = vmatprep.mubr.bf16.mxu0 %v2517
    %3332 = vmatmul.mubr.bf16.gmra.mrb[0].mxu0 %v2516
    %v3333 = vpop.f32.mrb[0].mxu0
    %v3334 = vadd.f32 %v3045, %v3333
    %v3335 = vpop.f32.mrb[0].mxu0
    %v3336 = vpop.f32.mrb[0].mxu0
    %v3337 = vadd.f32 %v3048, %v3336
    %v3338 = vpop.f32.mrb[0].mxu0
    %3339 = vmatprep.mubr.bf16.mxu0 %v2522
    %3340 = vmatmul.mubr.bf16.gmra.mrb[0].mxu0 %v2521
    %v3341 = vpop.f32.mrb[0].mxu0
    %v3342 = vadd.f32 %v3053, %v3341
    %v3343 = vpop.f32.mrb[0].mxu0
    %v3344 = vpop.f32.mrb[0].mxu0
    %v3345 = vadd.f32 %v3056, %v3344
    %v3346 = vpop.f32.mrb[0].mxu0
    %3347 = vmatprep.mubr.bf16.mxu0 %v2527
    %3348 = vmatmul.mubr.bf16.gmra.mrb[0].mxu0 %v2526
    %v3349 = vpop.f32.mrb[0].mxu0
    %v3350 = vadd.f32 %v3061, %v3349
    %v3351 = vpop.f32.mrb[0].mxu0
    %v3352 = vpop.f32.mrb[0].mxu0
    %v3353 = vadd.f32 %v3064, %v3352
    %v3354 = vpop.f32.mrb[0].mxu0
    %3355 = vmatprep.mubr.bf16.mxu0 %v2532
    %3356 = vmatmul.mubr.bf16.gmra.mrb[0].mxu0 %v2531
    %v3357 = vpop.f32.mrb[0].mxu0
    %v3358 = vadd.f32 %v3069, %v3357
    %v3359 = vpop.f32.mrb[0].mxu0
    %v3360 = vpop.f32.mrb[0].mxu0
    %v3361 = vadd.f32 %v3072, %v3360
    %v3362 = vpop.f32.mrb[0].mxu0
    %3363 = vmatprep.mubr.bf16.mxu0 %v2537
    %3364 = vmatmul.mubr.bf16.gmra.mrb[0].mxu0 %v2536
    %v3365 = vpop.f32.mrb[0].mxu0
    %v3366 = vadd.f32 %v3077, %v3365
    %v3367 = vpop.f32.mrb[0].mxu0
    %v3368 = vpop.f32.mrb[0].mxu0
    %v3369 = vadd.f32 %v3080, %v3368
    %v3370 = vpop.f32.mrb[0].mxu0
    %3371 = vmatprep.mubr.bf16.mxu0 %v2542
    %3372 = vmatmul.mubr.bf16.gmra.mrb[0].mxu0 %v2541
    %v3373 = vpop.f32.mrb[0].mxu0
    %v3374 = vadd.f32 %v3085, %v3373
    %v3375 = vpop.f32.mrb[0].mxu0
    %v3376 = vpop.f32.mrb[0].mxu0
    %v3377 = vadd.f32 %v3088, %v3376
    %v3378 = vpop.f32.mrb[0].mxu0
    %3379 = vmatprep.mubr.bf16.mxu0 %v2547
    %3380 = vmatmul.mubr.bf16.gmra.mrb[0].mxu0 %v2546
    %v3381 = vpop.f32.mrb[0].mxu0
    %v3382 = vadd.f32 %v3093, %v3381
    %v3383 = vpop.f32.mrb[0].mxu0
    %v3384 = vpop.f32.mrb[0].mxu0
    %v3385 = vadd.f32 %v3096, %v3384
    %v3386 = vpop.f32.mrb[0].mxu0
    %3387 = vmatprep.mubr.bf16.mxu0 %v2552
    %3388 = vmatmul.mubr.bf16.gmra.mrb[0].mxu0 %v2551
    %v3389 = vpop.f32.mrb[0].mxu0
    %v3390 = vadd.f32 %v3101, %v3389
    %v3391 = vpop.f32.mrb[0].mxu0
    %v3392 = vpop.f32.mrb[0].mxu0
    %v3393 = vadd.f32 %v3104, %v3392
    %v3394 = vpop.f32.mrb[0].mxu0
    %3395 = vmatprep.mubr.bf16.mxu0 %v2557
    %3396 = vmatmul.mubr.bf16.gmra.mrb[0].mxu0 %v2556
    %v3397 = vpop.f32.mrb[0].mxu0
    %v3398 = vadd.f32 %v3109, %v3397
    %v3399 = vpop.f32.mrb[0].mxu0
    %v3400 = vpop.f32.mrb[0].mxu0
    %v3401 = vadd.f32 %v3112, %v3400
    %v3402 = vpop.f32.mrb[0].mxu0
    %3403 = vmatprep.mubr.bf16.mxu0 %v2562
    %3404 = vmatmul.mubr.bf16.gmra.mrb[0].mxu0 %v2561
    %v3405 = vpop.f32.mrb[0].mxu0
    %v3406 = vadd.f32 %v3117, %v3405
    %v3407 = vpop.f32.mrb[0].mxu0
    %v3408 = vpop.f32.mrb[0].mxu0
    %v3409 = vadd.f32 %v3120, %v3408
    %v3410 = vpop.f32.mrb[0].mxu0
    %3411 = vmatprep.mubr.bf16.mxu0 %v2567
    %3412 = vmatmul.mubr.bf16.gmra.mrb[0].mxu0 %v2566
    %v3413 = vpop.f32.mrb[0].mxu0
    %v3414 = vadd.f32 %v3125, %v3413
    %v3415 = vpop.f32.mrb[0].mxu0
    %v3416 = vpop.f32.mrb[0].mxu0
    %v3417 = vadd.f32 %v3128, %v3416
    %v3418 = vpop.f32.mrb[0].mxu0
    %3419 = vmatprep.mubr.bf16.mxu0 %v2572
    %3420 = vmatmul.mubr.bf16.gmra.mrb[0].mxu0 %v2571
    %v3421 = vpop.f32.mrb[0].mxu0
    %v3422 = vadd.f32 %v3133, %v3421
    %v3423 = vpop.f32.mrb[0].mxu0
    %v3424 = vpop.f32.mrb[0].mxu0
    %v3425 = vadd.f32 %v3136, %v3424
    %v3426 = vpop.f32.mrb[0].mxu0
    %3427 = vmatprep.mubr.bf16.mxu0 %v2577
    %3428 = vmatmul.mubr.bf16.gmra.mrb[0].mxu0 %v2576
    %v3429 = vpop.f32.mrb[0].mxu0
    %v3430 = vadd.f32 %v3141, %v3429
    %v3431 = vpop.f32.mrb[0].mxu0
    %v3432 = vpop.f32.mrb[0].mxu0
    %v3433 = vadd.f32 %v3144, %v3432
    %v3434 = vpop.f32.mrb[0].mxu0
    %3435 = vmatprep.mubr.bf16.mxu0 %v2582
    %3436 = vmatmul.mubr.bf16.gmra.mrb[0].mxu0 %v2581
    %v3437 = vpop.f32.mrb[0].mxu0
    %v3438 = vadd.f32 %v3149, %v3437
    %v3439 = vpop.f32.mrb[0].mxu0
    %v3440 = vpop.f32.mrb[0].mxu0
    %v3441 = vadd.f32 %v3152, %v3440
    %v3442 = vpop.f32.mrb[0].mxu0
    %3443 = vmatprep.mubr.bf16.mxu0 %v2587
    %3444 = vmatmul.mubr.bf16.gmra.mrb[0].mxu0 %v2586
    %v3445 = vpop.f32.mrb[0].mxu0
    %v3446 = vadd.f32 %v3157, %v3445
    %v3447 = vpop.f32.mrb[0].mxu0
    %v3448 = vpop.f32.mrb[0].mxu0
    %v3449 = vadd.f32 %v3160, %v3448
    %v3450 = vpop.f32.mrb[0].mxu0
    %3451 = vmatprep.mubr.bf16.mxu0 %v2592
    %3452 = vmatmul.mubr.bf16.gmra.mrb[0].mxu0 %v2591
    %v3453 = vpop.f32.mrb[0].mxu0
    %v3454 = vadd.f32 %v3165, %v3453
    %v3455 = vpop.f32.mrb[0].mxu0
    %v3456 = vpop.f32.mrb[0].mxu0
    %v3457 = vadd.f32 %v3168, %v3456
    %v3458 = vpop.f32.mrb[0].mxu0
    %3459 = vmatprep.mubr.bf16.mxu0 %v2597
    %3460 = vmatmul.mubr.bf16.gmra.mrb[0].mxu0 %v2596
    %v3461 = vpop.f32.mrb[0].mxu0
    %v3462 = vadd.f32 %v3173, %v3461
    %v3463 = vpop.f32.mrb[0].mxu0
    %v3464 = vpop.f32.mrb[0].mxu0
    %v3465 = vadd.f32 %v3176, %v3464
    %v3466 = vpop.f32.mrb[0].mxu0
    %3467 = vmatprep.mubr.bf16.mxu0 %v2602
    %3468 = vmatmul.mubr.bf16.gmra.mrb[0].mxu0 %v2601
    %v3469 = vpop.f32.mrb[0].mxu0
    %v3470 = vadd.f32 %v3181, %v3469
    %v3471 = vpop.f32.mrb[0].mxu0
    %v3472 = vpop.f32.mrb[0].mxu0
    %v3473 = vadd.f32 %v3184, %v3472
    %v3474 = vpop.f32.mrb[0].mxu0
    %3475 = vmatprep.mubr.bf16.mxu0 %v2607
    %3476 = vmatmul.mubr.bf16.gmra.mrb[0].mxu0 %v2606
    %v3477 = vpop.f32.mrb[0].mxu0
    %v3478 = vadd.f32 %v3189, %v3477
    %v3479 = vpop.f32.mrb[0].mxu0
    %v3480 = vpop.f32.mrb[0].mxu0
    %v3481 = vadd.f32 %v3192, %v3480
    %v3482 = vpop.f32.mrb[0].mxu0
    %3483 = vmatprep.mubr.bf16.mxu0 %v2612
    %3484 = vmatmul.mubr.bf16.gmra.mrb[0].mxu0 %v2611
    %v3485 = vpop.f32.mrb[0].mxu0
    %v3486 = vadd.f32 %v3197, %v3485
    %v3487 = vpop.f32.mrb[0].mxu0
    %v3488 = vpop.f32.mrb[0].mxu0
    %v3489 = vadd.f32 %v3200, %v3488
    %v3490 = vpop.f32.mrb[0].mxu0
    %3491 = vmatprep.mubr.bf16.mxu0 %v2617
    %3492 = vmatmul.mubr.bf16.gmra.mrb[0].mxu0 %v2616
    %v3493 = vpop.f32.mrb[0].mxu0
    %v3494 = vadd.f32 %v3205, %v3493
    %v3495 = vpop.f32.mrb[0].mxu0
    %v3496 = vpop.f32.mrb[0].mxu0
    %v3497 = vadd.f32 %v3208, %v3496
    %v3498 = vpop.f32.mrb[0].mxu0
    %3499 = vmatprep.mubr.bf16.mxu0 %v2622
    %3500 = vmatmul.mubr.bf16.gmra.mrb[0].mxu0 %v2621
    %v3501 = vpop.f32.mrb[0].mxu0
    %v3502 = vadd.f32 %v3213, %v3501
    %v3503 = vpop.f32.mrb[0].mxu0
    %v3504 = vpop.f32.mrb[0].mxu0
    %v3505 = vadd.f32 %v3216, %v3504
    %v3506 = vpop.f32.mrb[0].mxu0
    %3507 = vmatprep.mubr.bf16.mxu0 %v2627
    %3508 = vmatmul.mubr.bf16.gmra.mrb[0].mxu0 %v2626
    %v3509 = vpop.f32.mrb[0].mxu0
    %v3510 = vadd.f32 %v3221, %v3509
    %v3511 = vpop.f32.mrb[0].mxu0
    %v3512 = vpop.f32.mrb[0].mxu0
    %v3513 = vadd.f32 %v3224, %v3512
    %v3514 = vpop.f32.mrb[0].mxu0
    %3515 = vmatprep.mubr.bf16.mxu0 %v2632
    %3516 = vmatmul.mubr.bf16.gmra.mrb[0].mxu0 %v2631
    %v3517 = vpop.f32.mrb[0].mxu0
    %v3518 = vadd.f32 %v3229, %v3517
    %v3519 = vpop.f32.mrb[0].mxu0
    %v3520 = vpop.f32.mrb[0].mxu0
    %v3521 = vadd.f32 %v3232, %v3520
    %v3522 = vpop.f32.mrb[0].mxu0
    %3523 = vmatprep.mubr.bf16.mxu0 %v2637
    %3524 = vmatmul.mubr.bf16.gmra.mrb[0].mxu0 %v2636
    %v3525 = vpop.f32.mrb[0].mxu0
    %v3526 = vadd.f32 %v3237, %v3525
    %v3527 = vpop.f32.mrb[0].mxu0
    %v3528 = vpop.f32.mrb[0].mxu0
    %v3529 = vadd.f32 %v3240, %v3528
    %v3530 = vpop.f32.mrb[0].mxu0
    %3531 = vmatprep.mubr.bf16.mxu0 %v2642
    %3532 = vmatmul.mubr.bf16.gmra.mrb[0].mxu0 %v2641
    %v3533 = vpop.f32.mrb[0].mxu0
    %v3534 = vadd.f32 %v3245, %v3533
    %v3535 = vpop.f32.mrb[0].mxu0
    %v3536 = vpop.f32.mrb[0].mxu0
    %v3537 = vadd.f32 %v3248, %v3536
    %v3538 = vpop.f32.mrb[0].mxu0
    %3539 = vmatprep.mubr.bf16.mxu0 %v2647
    %3540 = vmatmul.mubr.bf16.gmra.mrb[0].mxu0 %v2646
    %v3541 = vpop.f32.mrb[0].mxu0
    %v3542 = vadd.f32 %v3253, %v3541
    %v3543 = vpop.f32.mrb[0].mxu0
    %v3544 = vpop.f32.mrb[0].mxu0
    %v3545 = vadd.f32 %v3256, %v3544
    %v3546 = vpop.f32.mrb[0].mxu0
    %3547 = vmatprep.mubr.bf16.mxu0 %v2652
    %3548 = vmatmul.mubr.bf16.gmra.mrb[0].mxu0 %v2651
    %v3549 = vpop.f32.mrb[0].mxu0
    %v3550 = vadd.f32 %v3261, %v3549
    %v3551 = vpop.f32.mrb[0].mxu0
    %v3552 = vpop.f32.mrb[0].mxu0
    %v3553 = vadd.f32 %v3264, %v3552
    %v3554 = vpop.f32.mrb[0].mxu0
    %3555 = vmatprep.mubr.bf16.mxu0 %v2657
    %3556 = vmatmul.mubr.bf16.gmra.mrb[0].mxu0 %v2656
    %v3557 = vpop.f32.mrb[0].mxu0
    %v3558 = vadd.f32 %v3269, %v3557
    %v3559 = vpop.f32.mrb[0].mxu0
    %v3560 = vpop.f32.mrb[0].mxu0
    %v3561 = vadd.f32 %v3272, %v3560
    %v3562 = vpop.f32.mrb[0].mxu0
    %3563 = vdwg.mxu0
    %3564 = vmatprep.subr.bf16.mxu0 0
    %3565 = vmatpush1.bf16.msra.mxu0 %v2938
    %3566 = vmatprep.subr.bf16.mxu0 0
    %3567 = vmatpush1.bf16.msra.mxu0 %v2939
    %3568 = vmatprep.subr.bf16.mxu0 0
    %3569 = vmatpush1.bf16.msra.mxu0 %v2940
    %3570 = vmatprep.subr.bf16.mxu0 0
    %3571 = vmatpush1.bf16.msra.mxu0 %v2941
    %3572 = vmatprep.subr.bf16.mxu0 0
    %3573 = vmatpush1.bf16.msra.mxu0 %v2942
    %3574 = vmatprep.subr.bf16.mxu0 0
    %3575 = vmatpush1.bf16.msra.mxu0 %v2943
    %3576 = vmatprep.subr.bf16.mxu0 0
    %3577 = vmatpush1.bf16.msra.mxu0 %v2944
    %3578 = vmatprep.subr.bf16.mxu0 0
    %3579 = vmatpush1.bf16.msra.mxu0 %v2945
    %3580 = vmatprep.subr.bf16.mxu0 0
    %3581 = vmatpush1.bf16.msra.mxu0 0
    %3582 = vmatprep.subr.bf16.mxu0 0
    %3583 = vmatpush1.bf16.msra.mxu0 0
    %3584 = vmatprep.subr.bf16.mxu0 0
    %3585 = vmatpush1.bf16.msra.mxu0 0
    %3586 = vmatprep.subr.bf16.mxu0 0
    %3587 = vmatpush1.bf16.msra.mxu0 0
    %3588 = vmatprep.subr.bf16.mxu0 0
    %3589 = vmatpush1.bf16.msra.mxu0 0
    %3590 = vmatprep.subr.bf16.mxu0 0
    %3591 = vmatpush1.bf16.msra.mxu0 0
    %3592 = vmatprep.subr.bf16.mxu0 0
    %3593 = vmatpush1.bf16.msra.mxu0 0
    %3594 = vmatprep.subr.bf16.mxu0 0
    %3595 = vmatpush1.bf16.msra.mxu0 0
    %3596 = vmatprep.mubr.bf16.mxu0 0
    %3597 = vmatmul.mubr.bf16.gmra.mrb[0].mxu0 %v2503
    %v3598 = vpop.f32.mrb[0].mxu0
    %v3599 = vadd.f32 %v3310, %v3598
    %v3600 = vpop.f32.mrb[0].mxu0
    %v3601 = vpop.f32.mrb[0].mxu0
    %v3602 = vadd.f32 %v3313, %v3601
    %v3603 = vpop.f32.mrb[0].mxu0
    %3604 = vmatprep.mubr.bf16.mxu0 0
    %3605 = vmatmul.mubr.bf16.gmra.mrb[0].mxu0 %v2508
    %v3606 = vpop.f32.mrb[0].mxu0
    %v3607 = vadd.f32 %v3318, %v3606
    %v3608 = vpop.f32.mrb[0].mxu0
    %v3609 = vpop.f32.mrb[0].mxu0
    %v3610 = vadd.f32 %v3321, %v3609
    %v3611 = vpop.f32.mrb[0].mxu0
    %3612 = vmatprep.mubr.bf16.mxu0 0
    %3613 = vmatmul.mubr.bf16.gmra.mrb[0].mxu0 %v2513
    %v3614 = vpop.f32.mrb[0].mxu0
    %v3615 = vadd.f32 %v3326, %v3614
    %v3616 = vpop.f32.mrb[0].mxu0
    %v3617 = vpop.f32.mrb[0].mxu0
    %v3618 = vadd.f32 %v3329, %v3617
    %v3619 = vpop.f32.mrb[0].mxu0
    %3620 = vmatprep.mubr.bf16.mxu0 0
    %3621 = vmatmul.mubr.bf16.gmra.mrb[0].mxu0 %v2518
    %v3622 = vpop.f32.mrb[0].mxu0
    %v3623 = vadd.f32 %v3334, %v3622
    %v3624 = vpop.f32.mrb[0].mxu0
    %v3625 = vpop.f32.mrb[0].mxu0
    %v3626 = vadd.f32 %v3337, %v3625
    %v3627 = vpop.f32.mrb[0].mxu0
    %3628 = vmatprep.mubr.bf16.mxu0 0
    %3629 = vmatmul.mubr.bf16.gmra.mrb[0].mxu0 %v2523
    %v3630 = vpop.f32.mrb[0].mxu0
    %v3631 = vadd.f32 %v3342, %v3630
    %v3632 = vpop.f32.mrb[0].mxu0
    %v3633 = vpop.f32.mrb[0].mxu0
    %v3634 = vadd.f32 %v3345, %v3633
    %v3635 = vpop.f32.mrb[0].mxu0
    %3636 = vmatprep.mubr.bf16.mxu0 0
    %3637 = vmatmul.mubr.bf16.gmra.mrb[0].mxu0 %v2528
    %v3638 = vpop.f32.mrb[0].mxu0
    %v3639 = vadd.f32 %v3350, %v3638
    %v3640 = vpop.f32.mrb[0].mxu0
    %v3641 = vpop.f32.mrb[0].mxu0
    %v3642 = vadd.f32 %v3353, %v3641
    %v3643 = vpop.f32.mrb[0].mxu0
    %3644 = vmatprep.mubr.bf16.mxu0 0
    %3645 = vmatmul.mubr.bf16.gmra.mrb[0].mxu0 %v2533
    %v3646 = vpop.f32.mrb[0].mxu0
    %v3647 = vadd.f32 %v3358, %v3646
    %v3648 = vpop.f32.mrb[0].mxu0
    %v3649 = vpop.f32.mrb[0].mxu0
    %v3650 = vadd.f32 %v3361, %v3649
    %v3651 = vpop.f32.mrb[0].mxu0
    %3652 = vmatprep.mubr.bf16.mxu0 0
    %3653 = vmatmul.mubr.bf16.gmra.mrb[0].mxu0 %v2538
    %v3654 = vpop.f32.mrb[0].mxu0
    %v3655 = vadd.f32 %v3366, %v3654
    %v3656 = vpop.f32.mrb[0].mxu0
    %v3657 = vpop.f32.mrb[0].mxu0
    %v3658 = vadd.f32 %v3369, %v3657
    %v3659 = vpop.f32.mrb[0].mxu0
    %3660 = vmatprep.mubr.bf16.mxu0 0
    %3661 = vmatmul.mubr.bf16.gmra.mrb[0].mxu0 %v2543
    %v3662 = vpop.f32.mrb[0].mxu0
    %v3663 = vadd.f32 %v3374, %v3662
    %v3664 = vpop.f32.mrb[0].mxu0
    %v3665 = vpop.f32.mrb[0].mxu0
    %v3666 = vadd.f32 %v3377, %v3665
    %v3667 = vpop.f32.mrb[0].mxu0
    %3668 = vmatprep.mubr.bf16.mxu0 0
    %3669 = vmatmul.mubr.bf16.gmra.mrb[0].mxu0 %v2548
    %v3670 = vpop.f32.mrb[0].mxu0
    %v3671 = vadd.f32 %v3382, %v3670
    %v3672 = vpop.f32.mrb[0].mxu0
    %v3673 = vpop.f32.mrb[0].mxu0
    %v3674 = vadd.f32 %v3385, %v3673
    %v3675 = vpop.f32.mrb[0].mxu0
    %3676 = vmatprep.mubr.bf16.mxu0 0
    %3677 = vmatmul.mubr.bf16.gmra.mrb[0].mxu0 %v2553
    %v3678 = vpop.f32.mrb[0].mxu0
    %v3679 = vadd.f32 %v3390, %v3678
    %v3680 = vpop.f32.mrb[0].mxu0
    %v3681 = vpop.f32.mrb[0].mxu0
    %v3682 = vadd.f32 %v3393, %v3681
    %v3683 = vpop.f32.mrb[0].mxu0
    %3684 = vmatprep.mubr.bf16.mxu0 0
    %3685 = vmatmul.mubr.bf16.gmra.mrb[0].mxu0 %v2558
    %v3686 = vpop.f32.mrb[0].mxu0
    %v3687 = vadd.f32 %v3398, %v3686
    %v3688 = vpop.f32.mrb[0].mxu0
    %v3689 = vpop.f32.mrb[0].mxu0
    %v3690 = vadd.f32 %v3401, %v3689
    %v3691 = vpop.f32.mrb[0].mxu0
    %3692 = vmatprep.mubr.bf16.mxu0 0
    %3693 = vmatmul.mubr.bf16.gmra.mrb[0].mxu0 %v2563
    %v3694 = vpop.f32.mrb[0].mxu0
    %v3695 = vadd.f32 %v3406, %v3694
    %v3696 = vpop.f32.mrb[0].mxu0
    %v3697 = vpop.f32.mrb[0].mxu0
    %v3698 = vadd.f32 %v3409, %v3697
    %v3699 = vpop.f32.mrb[0].mxu0
    %3700 = vmatprep.mubr.bf16.mxu0 0
    %3701 = vmatmul.mubr.bf16.gmra.mrb[0].mxu0 %v2568
    %v3702 = vpop.f32.mrb[0].mxu0
    %v3703 = vadd.f32 %v3414, %v3702
    %v3704 = vpop.f32.mrb[0].mxu0
    %v3705 = vpop.f32.mrb[0].mxu0
    %v3706 = vadd.f32 %v3417, %v3705
    %v3707 = vpop.f32.mrb[0].mxu0
    %3708 = vmatprep.mubr.bf16.mxu0 0
    %3709 = vmatmul.mubr.bf16.gmra.mrb[0].mxu0 %v2573
    %v3710 = vpop.f32.mrb[0].mxu0
    %v3711 = vadd.f32 %v3422, %v3710
    %v3712 = vpop.f32.mrb[0].mxu0
    %v3713 = vpop.f32.mrb[0].mxu0
    %v3714 = vadd.f32 %v3425, %v3713
    %v3715 = vpop.f32.mrb[0].mxu0
    %3716 = vmatprep.mubr.bf16.mxu0 0
    %3717 = vmatmul.mubr.bf16.gmra.mrb[0].mxu0 %v2578
    %v3718 = vpop.f32.mrb[0].mxu0
    %v3719 = vadd.f32 %v3430, %v3718
    %v3720 = vpop.f32.mrb[0].mxu0
    %v3721 = vpop.f32.mrb[0].mxu0
    %v3722 = vadd.f32 %v3433, %v3721
    %v3723 = vpop.f32.mrb[0].mxu0
    %3724 = vmatprep.mubr.bf16.mxu0 0
    %3725 = vmatmul.mubr.bf16.gmra.mrb[0].mxu0 %v2583
    %v3726 = vpop.f32.mrb[0].mxu0
    %v3727 = vadd.f32 %v3438, %v3726
    %v3728 = vpop.f32.mrb[0].mxu0
    %v3729 = vpop.f32.mrb[0].mxu0
    %v3730 = vadd.f32 %v3441, %v3729
    %v3731 = vpop.f32.mrb[0].mxu0
    %3732 = vmatprep.mubr.bf16.mxu0 0
    %3733 = vmatmul.mubr.bf16.gmra.mrb[0].mxu0 %v2588
    %v3734 = vpop.f32.mrb[0].mxu0
    %v3735 = vadd.f32 %v3446, %v3734
    %v3736 = vpop.f32.mrb[0].mxu0
    %v3737 = vpop.f32.mrb[0].mxu0
    %v3738 = vadd.f32 %v3449, %v3737
    %v3739 = vpop.f32.mrb[0].mxu0
    %3740 = vmatprep.mubr.bf16.mxu0 0
    %3741 = vmatmul.mubr.bf16.gmra.mrb[0].mxu0 %v2593
    %v3742 = vpop.f32.mrb[0].mxu0
    %v3743 = vadd.f32 %v3454, %v3742
    %v3744 = vpop.f32.mrb[0].mxu0
    %v3745 = vpop.f32.mrb[0].mxu0
    %v3746 = vadd.f32 %v3457, %v3745
    %v3747 = vpop.f32.mrb[0].mxu0
    %3748 = vmatprep.mubr.bf16.mxu0 0
    %3749 = vmatmul.mubr.bf16.gmra.mrb[0].mxu0 %v2598
    %v3750 = vpop.f32.mrb[0].mxu0
    %v3751 = vadd.f32 %v3462, %v3750
    %v3752 = vpop.f32.mrb[0].mxu0
    %v3753 = vpop.f32.mrb[0].mxu0
    %v3754 = vadd.f32 %v3465, %v3753
    %v3755 = vpop.f32.mrb[0].mxu0
    %3756 = vmatprep.mubr.bf16.mxu0 0
    %3757 = vmatmul.mubr.bf16.gmra.mrb[0].mxu0 %v2603
    %v3758 = vpop.f32.mrb[0].mxu0
    %v3759 = vadd.f32 %v3470, %v3758
    %v3760 = vpop.f32.mrb[0].mxu0
    %v3761 = vpop.f32.mrb[0].mxu0
    %v3762 = vadd.f32 %v3473, %v3761
    %v3763 = vpop.f32.mrb[0].mxu0
    %3764 = vmatprep.mubr.bf16.mxu0 0
    %3765 = vmatmul.mubr.bf16.gmra.mrb[0].mxu0 %v2608
    %v3766 = vpop.f32.mrb[0].mxu0
    %v3767 = vadd.f32 %v3478, %v3766
    %v3768 = vpop.f32.mrb[0].mxu0
    %v3769 = vpop.f32.mrb[0].mxu0
    %v3770 = vadd.f32 %v3481, %v3769
    %v3771 = vpop.f32.mrb[0].mxu0
    %3772 = vmatprep.mubr.bf16.mxu0 0
    %3773 = vmatmul.mubr.bf16.gmra.mrb[0].mxu0 %v2613
    %v3774 = vpop.f32.mrb[0].mxu0
    %v3775 = vadd.f32 %v3486, %v3774
    %v3776 = vpop.f32.mrb[0].mxu0
    %v3777 = vpop.f32.mrb[0].mxu0
    %v3778 = vadd.f32 %v3489, %v3777
    %v3779 = vpop.f32.mrb[0].mxu0
    %3780 = vmatprep.mubr.bf16.mxu0 0
    %3781 = vmatmul.mubr.bf16.gmra.mrb[0].mxu0 %v2618
    %v3782 = vpop.f32.mrb[0].mxu0
    %v3783 = vadd.f32 %v3494, %v3782
    %v3784 = vpop.f32.mrb[0].mxu0
    %v3785 = vpop.f32.mrb[0].mxu0
    %v3786 = vadd.f32 %v3497, %v3785
    %v3787 = vpop.f32.mrb[0].mxu0
    %3788 = vmatprep.mubr.bf16.mxu0 0
    %3789 = vmatmul.mubr.bf16.gmra.mrb[0].mxu0 %v2623
    %v3790 = vpop.f32.mrb[0].mxu0
    %v3791 = vadd.f32 %v3502, %v3790
    %v3792 = vpop.f32.mrb[0].mxu0
    %v3793 = vpop.f32.mrb[0].mxu0
    %v3794 = vadd.f32 %v3505, %v3793
    %v3795 = vpop.f32.mrb[0].mxu0
    %3796 = vmatprep.mubr.bf16.mxu0 0
    %3797 = vmatmul.mubr.bf16.gmra.mrb[0].mxu0 %v2628
    %v3798 = vpop.f32.mrb[0].mxu0
    %v3799 = vadd.f32 %v3510, %v3798
    %v3800 = vpop.f32.mrb[0].mxu0
    %v3801 = vpop.f32.mrb[0].mxu0
    %v3802 = vadd.f32 %v3513, %v3801
    %v3803 = vpop.f32.mrb[0].mxu0
    %3804 = vmatprep.mubr.bf16.mxu0 0
    %3805 = vmatmul.mubr.bf16.gmra.mrb[0].mxu0 %v2633
    %v3806 = vpop.f32.mrb[0].mxu0
    %v3807 = vadd.f32 %v3518, %v3806
    %v3808 = vpop.f32.mrb[0].mxu0
    %v3809 = vpop.f32.mrb[0].mxu0
    %v3810 = vadd.f32 %v3521, %v3809
    %v3811 = vpop.f32.mrb[0].mxu0
    %3812 = vmatprep.mubr.bf16.mxu0 0
    %3813 = vmatmul.mubr.bf16.gmra.mrb[0].mxu0 %v2638
    %v3814 = vpop.f32.mrb[0].mxu0
    %v3815 = vadd.f32 %v3526, %v3814
    %v3816 = vpop.f32.mrb[0].mxu0
    %v3817 = vpop.f32.mrb[0].mxu0
    %v3818 = vadd.f32 %v3529, %v3817
    %v3819 = vpop.f32.mrb[0].mxu0
    %3820 = vmatprep.mubr.bf16.mxu0 0
    %3821 = vmatmul.mubr.bf16.gmra.mrb[0].mxu0 %v2643
    %v3822 = vpop.f32.mrb[0].mxu0
    %v3823 = vadd.f32 %v3534, %v3822
    %v3824 = vpop.f32.mrb[0].mxu0
    %v3825 = vpop.f32.mrb[0].mxu0
    %v3826 = vadd.f32 %v3537, %v3825
    %v3827 = vpop.f32.mrb[0].mxu0
    %3828 = vmatprep.mubr.bf16.mxu0 0
    %3829 = vmatmul.mubr.bf16.gmra.mrb[0].mxu0 %v2648
    %v3830 = vpop.f32.mrb[0].mxu0
    %v3831 = vadd.f32 %v3542, %v3830
    %v3832 = vpop.f32.mrb[0].mxu0
    %v3833 = vpop.f32.mrb[0].mxu0
    %v3834 = vadd.f32 %v3545, %v3833
    %v3835 = vpop.f32.mrb[0].mxu0
    %3836 = vmatprep.mubr.bf16.mxu0 0
    %3837 = vmatmul.mubr.bf16.gmra.mrb[0].mxu0 %v2653
    %v3838 = vpop.f32.mrb[0].mxu0
    %v3839 = vadd.f32 %v3550, %v3838
    %v3840 = vpop.f32.mrb[0].mxu0
    %v3841 = vpop.f32.mrb[0].mxu0
    %v3842 = vadd.f32 %v3553, %v3841
    %v3843 = vpop.f32.mrb[0].mxu0
    %3844 = vmatprep.mubr.bf16.mxu0 0
    %3845 = vmatmul.mubr.bf16.gmra.mrb[0].mxu0 %v2658
    %v3846 = vpop.f32.mrb[0].mxu0
    %v3847 = vadd.f32 %v3558, %v3846
    %v3848 = vpop.f32.mrb[0].mxu0
    %v3849 = vpop.f32.mrb[0].mxu0
    %v3850 = vadd.f32 %v3561, %v3849
    %v3851 = vpop.f32.mrb[0].mxu0
    %3852 = vdwg.mxu0
    %v3853 = vld [vmem:[%s5] sm:$0x1]
    %v3854 = vld [vmem:[%s6] sm:$0x1]
    %v3855 = vsel %vm41, %v3599, 0.0
    %v3856 = vsel %vm41, %v3602, 0.0
    %v3857 = vadd.f32 %v3855, %v3856
    %v3858 = vsel %vm41, %v3607, 0.0
    %v3859 = vadd.f32 %v3857, %v3858
    %v3860 = vsel %vm41, %v3610, 0.0
    %v3861 = vadd.f32 %v3859, %v3860
    %v3862 = vsel %vm41, %v3615, 0.0
    %v3863 = vadd.f32 %v3861, %v3862
    %v3864 = vsel %vm41, %v3618, 0.0
    %v3865 = vadd.f32 %v3863, %v3864
    %v3866 = vsel %vm41, %v3623, 0.0
    %v3867 = vadd.f32 %v3865, %v3866
    %v3868 = vsel %vm41, %v3626, 0.0
    %v3869 = vadd.f32 %v3867, %v3868
    %v3870 = vsel %vm41, %v3631, 0.0
    %v3871 = vadd.f32 %v3869, %v3870
    %v3872 = vsel %vm41, %v3634, 0.0
    %v3873 = vadd.f32 %v3871, %v3872
    %v3874 = vsel %vm41, %v3639, 0.0
    %v3875 = vadd.f32 %v3873, %v3874
    %v3876 = vsel %vm41, %v3642, 0.0
    %v3877 = vadd.f32 %v3875, %v3876
    %v3878 = vsel %vm41, %v3647, 0.0
    %v3879 = vadd.f32 %v3877, %v3878
    %v3880 = vsel %vm41, %v3650, 0.0
    %v3881 = vadd.f32 %v3879, %v3880
    %v3882 = vsel %vm41, %v3655, 0.0
    %v3883 = vadd.f32 %v3881, %v3882
    %v3884 = vsel %vm41, %v3658, 0.0
    %v3885 = vadd.f32 %v3883, %v3884
    %v3886 = vsel %vm41, %v3663, 0.0
    %v3887 = vadd.f32 %v3885, %v3886
    %v3888 = vsel %vm41, %v3666, 0.0
    %v3889 = vadd.f32 %v3887, %v3888
    %v3890 = vsel %vm41, %v3671, 0.0
    %v3891 = vadd.f32 %v3889, %v3890
    %v3892 = vsel %vm41, %v3674, 0.0
    %v3893 = vadd.f32 %v3891, %v3892
    %v3894 = vsel %vm41, %v3679, 0.0
    %v3895 = vadd.f32 %v3893, %v3894
    %v3896 = vsel %vm41, %v3682, 0.0
    %v3897 = vadd.f32 %v3895, %v3896
    %v3898 = vsel %vm41, %v3687, 0.0
    %v3899 = vadd.f32 %v3897, %v3898
    %v3900 = vsel %vm41, %v3690, 0.0
    %v3901 = vadd.f32 %v3899, %v3900
    %v3902 = vsel %vm41, %v3695, 0.0
    %v3903 = vadd.f32 %v3901, %v3902
    %v3904 = vsel %vm41, %v3698, 0.0
    %v3905 = vadd.f32 %v3903, %v3904
    %v3906 = vsel %vm41, %v3703, 0.0
    %v3907 = vadd.f32 %v3905, %v3906
    %v3908 = vsel %vm41, %v3706, 0.0
    %v3909 = vadd.f32 %v3907, %v3908
    %v3910 = vsel %vm41, %v3711, 0.0
    %v3911 = vadd.f32 %v3909, %v3910
    %v3912 = vsel %vm41, %v3714, 0.0
    %v3913 = vadd.f32 %v3911, %v3912
    %v3914 = vsel %vm41, %v3719, 0.0
    %v3915 = vadd.f32 %v3913, %v3914
    %v3916 = vsel %vm41, %v3722, 0.0
    %v3917 = vadd.f32 %v3915, %v3916
    %v3918 = vsel %vm41, %v3727, 0.0
    %v3919 = vadd.f32 %v3917, %v3918
    %v3920 = vsel %vm41, %v3730, 0.0
    %v3921 = vadd.f32 %v3919, %v3920
    %v3922 = vsel %vm41, %v3735, 0.0
    %v3923 = vadd.f32 %v3921, %v3922
    %v3924 = vsel %vm41, %v3738, 0.0
    %v3925 = vadd.f32 %v3923, %v3924
    %v3926 = vsel %vm41, %v3743, 0.0
    %v3927 = vadd.f32 %v3925, %v3926
    %v3928 = vsel %vm41, %v3746, 0.0
    %v3929 = vadd.f32 %v3927, %v3928
    %v3930 = vsel %vm41, %v3751, 0.0
    %v3931 = vadd.f32 %v3929, %v3930
    %v3932 = vsel %vm41, %v3754, 0.0
    %v3933 = vadd.f32 %v3931, %v3932
    %v3934 = vsel %vm41, %v3759, 0.0
    %v3935 = vadd.f32 %v3933, %v3934
    %v3936 = vsel %vm41, %v3762, 0.0
    %v3937 = vadd.f32 %v3935, %v3936
    %v3938 = vsel %vm41, %v3767, 0.0
    %v3939 = vadd.f32 %v3937, %v3938
    %v3940 = vsel %vm41, %v3770, 0.0
    %v3941 = vadd.f32 %v3939, %v3940
    %v3942 = vsel %vm41, %v3775, 0.0
    %v3943 = vadd.f32 %v3941, %v3942
    %v3944 = vsel %vm41, %v3778, 0.0
    %v3945 = vadd.f32 %v3943, %v3944
    %v3946 = vsel %vm41, %v3783, 0.0
    %v3947 = vadd.f32 %v3945, %v3946
    %v3948 = vsel %vm41, %v3786, 0.0
    %v3949 = vadd.f32 %v3947, %v3948
    %v3950 = vsel %vm41, %v3791, 0.0
    %v3951 = vadd.f32 %v3949, %v3950
    %v3952 = vsel %vm41, %v3794, 0.0
    %v3953 = vadd.f32 %v3951, %v3952
    %v3954 = vsel %vm41, %v3799, 0.0
    %v3955 = vadd.f32 %v3953, %v3954
    %v3956 = vsel %vm41, %v3802, 0.0
    %v3957 = vadd.f32 %v3955, %v3956
    %v3958 = vsel %vm41, %v3807, 0.0
    %v3959 = vadd.f32 %v3957, %v3958
    %v3960 = vsel %vm41, %v3810, 0.0
    %v3961 = vadd.f32 %v3959, %v3960
    %v3962 = vsel %vm41, %v3815, 0.0
    %v3963 = vadd.f32 %v3961, %v3962
    %v3964 = vsel %vm41, %v3818, 0.0
    %v3965 = vadd.f32 %v3963, %v3964
    %v3966 = vsel %vm41, %v3823, 0.0
    %v3967 = vadd.f32 %v3965, %v3966
    %v3968 = vsel %vm41, %v3826, 0.0
    %v3969 = vadd.f32 %v3967, %v3968
    %v3970 = vsel %vm41, %v3831, 0.0
    %v3971 = vadd.f32 %v3969, %v3970
    %v3972 = vsel %vm41, %v3834, 0.0
    %v3973 = vadd.f32 %v3971, %v3972
    %v3974 = vsel %vm41, %v3839, 0.0
    %v3975 = vadd.f32 %v3973, %v3974
    %v3976 = vsel %vm41, %v3842, 0.0
    %v3977 = vadd.f32 %v3975, %v3976
    %v3978 = vsel %vm41, %v3847, 0.0
    %v3979 = vadd.f32 %v3977, %v3978
    %v3980 = vsel %vm41, %v3850, 0.0
    %v3981 = vadd.f32 %v3979, %v3980
    %v3982 = vrot.slane %v3981, 4
    %v3983 = vadd.f32 %v3981, %v3982
    %v3984 = vrot.slane %v3983, 2
    %v3985 = vadd.f32 %v3983, %v3984
    %v3986 = vrot.slane %v3985, 1
    %v3987 = vadd.f32 %v3985, %v3986
    %v3988 = vmul.f32 %v3987, 0.001953125
    %v3989 = vsub.f32 %v3599, %v3988
    %v3990 = vsub.f32 %v3602, %v3988
    %v3991 = vsub.f32 %v3607, %v3988
    %v3992 = vsub.f32 %v3610, %v3988
    %v3993 = vsub.f32 %v3615, %v3988
    %v3994 = vsub.f32 %v3618, %v3988
    %v3995 = vsub.f32 %v3623, %v3988
    %v3996 = vsub.f32 %v3626, %v3988
    %v3997 = vsub.f32 %v3631, %v3988
    %v3998 = vsub.f32 %v3634, %v3988
    %v3999 = vsub.f32 %v3639, %v3988
    %v4000 = vsub.f32 %v3642, %v3988
    %v4001 = vsub.f32 %v3647, %v3988
    %v4002 = vsub.f32 %v3650, %v3988
    %v4003 = vsub.f32 %v3655, %v3988
    %v4004 = vsub.f32 %v3658, %v3988
    %v4005 = vsub.f32 %v3663, %v3988
    %v4006 = vsub.f32 %v3666, %v3988
    %v4007 = vsub.f32 %v3671, %v3988
    %v4008 = vsub.f32 %v3674, %v3988
    %v4009 = vsub.f32 %v3679, %v3988
    %v4010 = vsub.f32 %v3682, %v3988
    %v4011 = vsub.f32 %v3687, %v3988
    %v4012 = vsub.f32 %v3690, %v3988
    %v4013 = vsub.f32 %v3695, %v3988
    %v4014 = vsub.f32 %v3698, %v3988
    %v4015 = vsub.f32 %v3703, %v3988
    %v4016 = vsub.f32 %v3706, %v3988
    %v4017 = vsub.f32 %v3711, %v3988
    %v4018 = vsub.f32 %v3714, %v3988
    %v4019 = vsub.f32 %v3719, %v3988
    %v4020 = vsub.f32 %v3722, %v3988
    %v4021 = vsub.f32 %v3727, %v3988
    %v4022 = vsub.f32 %v3730, %v3988
    %v4023 = vsub.f32 %v3735, %v3988
    %v4024 = vsub.f32 %v3738, %v3988
    %v4025 = vsub.f32 %v3743, %v3988
    %v4026 = vsub.f32 %v3746, %v3988
    %v4027 = vsub.f32 %v3751, %v3988
    %v4028 = vsub.f32 %v3754, %v3988
    %v4029 = vsub.f32 %v3759, %v3988
    %v4030 = vsub.f32 %v3762, %v3988
    %v4031 = vsub.f32 %v3767, %v3988
    %v4032 = vsub.f32 %v3770, %v3988
    %v4033 = vsub.f32 %v3775, %v3988
    %v4034 = vsub.f32 %v3778, %v3988
    %v4035 = vsub.f32 %v3783, %v3988
    %v4036 = vsub.f32 %v3786, %v3988
    %v4037 = vsub.f32 %v3791, %v3988
    %v4038 = vsub.f32 %v3794, %v3988
    %v4039 = vsub.f32 %v3799, %v3988
    %v4040 = vsub.f32 %v3802, %v3988
    %v4041 = vsub.f32 %v3807, %v3988
    %v4042 = vsub.f32 %v3810, %v3988
    %v4043 = vsub.f32 %v3815, %v3988
    %v4044 = vsub.f32 %v3818, %v3988
    %v4045 = vsub.f32 %v3823, %v3988
    %v4046 = vsub.f32 %v3826, %v3988
    %v4047 = vsub.f32 %v3831, %v3988
    %v4048 = vsub.f32 %v3834, %v3988
    %v4049 = vsub.f32 %v3839, %v3988
    %v4050 = vsub.f32 %v3842, %v3988
    %v4051 = vsub.f32 %v3847, %v3988
    %v4052 = vsub.f32 %v3850, %v3988
    %v4053 = vmul.f32 %v3989, %v3989
    %v4054 = vmul.f32 %v3990, %v3990
    %v4055 = vmul.f32 %v3991, %v3991
    %v4056 = vmul.f32 %v3992, %v3992
    %v4057 = vmul.f32 %v3993, %v3993
    %v4058 = vmul.f32 %v3994, %v3994
    %v4059 = vmul.f32 %v3995, %v3995
    %v4060 = vmul.f32 %v3996, %v3996
    %v4061 = vmul.f32 %v3997, %v3997
    %v4062 = vmul.f32 %v3998, %v3998
    %v4063 = vmul.f32 %v3999, %v3999
    %v4064 = vmul.f32 %v4000, %v4000
    %v4065 = vmul.f32 %v4001, %v4001
    %v4066 = vmul.f32 %v4002, %v4002
    %v4067 = vmul.f32 %v4003, %v4003
    %v4068 = vmul.f32 %v4004, %v4004
    %v4069 = vmul.f32 %v4005, %v4005
    %v4070 = vmul.f32 %v4006, %v4006
    %v4071 = vmul.f32 %v4007, %v4007
    %v4072 = vmul.f32 %v4008, %v4008
    %v4073 = vmul.f32 %v4009, %v4009
    %v4074 = vmul.f32 %v4010, %v4010
    %v4075 = vmul.f32 %v4011, %v4011
    %v4076 = vmul.f32 %v4012, %v4012
    %v4077 = vmul.f32 %v4013, %v4013
    %v4078 = vmul.f32 %v4014, %v4014
    %v4079 = vmul.f32 %v4015, %v4015
    %v4080 = vmul.f32 %v4016, %v4016
    %v4081 = vmul.f32 %v4017, %v4017
    %v4082 = vmul.f32 %v4018, %v4018
    %v4083 = vmul.f32 %v4019, %v4019
    %v4084 = vmul.f32 %v4020, %v4020
    %v4085 = vmul.f32 %v4021, %v4021
    %v4086 = vmul.f32 %v4022, %v4022
    %v4087 = vmul.f32 %v4023, %v4023
    %v4088 = vmul.f32 %v4024, %v4024
    %v4089 = vmul.f32 %v4025, %v4025
    %v4090 = vmul.f32 %v4026, %v4026
    %v4091 = vmul.f32 %v4027, %v4027
    %v4092 = vmul.f32 %v4028, %v4028
    %v4093 = vmul.f32 %v4029, %v4029
    %v4094 = vmul.f32 %v4030, %v4030
    %v4095 = vmul.f32 %v4031, %v4031
    %v4096 = vmul.f32 %v4032, %v4032
    %v4097 = vmul.f32 %v4033, %v4033
    %v4098 = vmul.f32 %v4034, %v4034
    %v4099 = vmul.f32 %v4035, %v4035
    %v4100 = vmul.f32 %v4036, %v4036
    %v4101 = vmul.f32 %v4037, %v4037
    %v4102 = vmul.f32 %v4038, %v4038
    %v4103 = vmul.f32 %v4039, %v4039
    %v4104 = vmul.f32 %v4040, %v4040
    %v4105 = vmul.f32 %v4041, %v4041
    %v4106 = vmul.f32 %v4042, %v4042
    %v4107 = vmul.f32 %v4043, %v4043
    %v4108 = vmul.f32 %v4044, %v4044
    %v4109 = vmul.f32 %v4045, %v4045
    %v4110 = vmul.f32 %v4046, %v4046
    %v4111 = vmul.f32 %v4047, %v4047
    %v4112 = vmul.f32 %v4048, %v4048
    %v4113 = vmul.f32 %v4049, %v4049
    %v4114 = vmul.f32 %v4050, %v4050
    %v4115 = vmul.f32 %v4051, %v4051
    %v4116 = vmul.f32 %v4052, %v4052
    %v4117 = vsel %vm41, %v4053, 0.0
    %v4118 = vsel %vm41, %v4054, 0.0
    %v4119 = vadd.f32 %v4117, %v4118
    %v4120 = vsel %vm41, %v4055, 0.0
    %v4121 = vadd.f32 %v4119, %v4120
    %v4122 = vsel %vm41, %v4056, 0.0
    %v4123 = vadd.f32 %v4121, %v4122
    %v4124 = vsel %vm41, %v4057, 0.0
    %v4125 = vadd.f32 %v4123, %v4124
    %v4126 = vsel %vm41, %v4058, 0.0
    %v4127 = vadd.f32 %v4125, %v4126
    %v4128 = vsel %vm41, %v4059, 0.0
    %v4129 = vadd.f32 %v4127, %v4128
    %v4130 = vsel %vm41, %v4060, 0.0
    %v4131 = vadd.f32 %v4129, %v4130
    %v4132 = vsel %vm41, %v4061, 0.0
    %v4133 = vadd.f32 %v4131, %v4132
    %v4134 = vsel %vm41, %v4062, 0.0
    %v4135 = vadd.f32 %v4133, %v4134
    %v4136 = vsel %vm41, %v4063, 0.0
    %v4137 = vadd.f32 %v4135, %v4136
    %v4138 = vsel %vm41, %v4064, 0.0
    %v4139 = vadd.f32 %v4137, %v4138
    %v4140 = vsel %vm41, %v4065, 0.0
    %v4141 = vadd.f32 %v4139, %v4140
    %v4142 = vsel %vm41, %v4066, 0.0
    %v4143 = vadd.f32 %v4141, %v4142
    %v4144 = vsel %vm41, %v4067, 0.0
    %v4145 = vadd.f32 %v4143, %v4144
    %v4146 = vsel %vm41, %v4068, 0.0
    %v4147 = vadd.f32 %v4145, %v4146
    %v4148 = vsel %vm41, %v4069, 0.0
    %v4149 = vadd.f32 %v4147, %v4148
    %v4150 = vsel %vm41, %v4070, 0.0
    %v4151 = vadd.f32 %v4149, %v4150
    %v4152 = vsel %vm41, %v4071, 0.0
    %v4153 = vadd.f32 %v4151, %v4152
    %v4154 = vsel %vm41, %v4072, 0.0
    %v4155 = vadd.f32 %v4153, %v4154
    %v4156 = vsel %vm41, %v4073, 0.0
    %v4157 = vadd.f32 %v4155, %v4156
    %v4158 = vsel %vm41, %v4074, 0.0
    %v4159 = vadd.f32 %v4157, %v4158
    %v4160 = vsel %vm41, %v4075, 0.0
    %v4161 = vadd.f32 %v4159, %v4160
    %v4162 = vsel %vm41, %v4076, 0.0
    %v4163 = vadd.f32 %v4161, %v4162
    %v4164 = vsel %vm41, %v4077, 0.0
    %v4165 = vadd.f32 %v4163, %v4164
    %v4166 = vsel %vm41, %v4078, 0.0
    %v4167 = vadd.f32 %v4165, %v4166
    %v4168 = vsel %vm41, %v4079, 0.0
    %v4169 = vadd.f32 %v4167, %v4168
    %v4170 = vsel %vm41, %v4080, 0.0
    %v4171 = vadd.f32 %v4169, %v4170
    %v4172 = vsel %vm41, %v4081, 0.0
    %v4173 = vadd.f32 %v4171, %v4172
    %v4174 = vsel %vm41, %v4082, 0.0
    %v4175 = vadd.f32 %v4173, %v4174
    %v4176 = vsel %vm41, %v4083, 0.0
    %v4177 = vadd.f32 %v4175, %v4176
    %v4178 = vsel %vm41, %v4084, 0.0
    %v4179 = vadd.f32 %v4177, %v4178
    %v4180 = vsel %vm41, %v4085, 0.0
    %v4181 = vadd.f32 %v4179, %v4180
    %v4182 = vsel %vm41, %v4086, 0.0
    %v4183 = vadd.f32 %v4181, %v4182
    %v4184 = vsel %vm41, %v4087, 0.0
    %v4185 = vadd.f32 %v4183, %v4184
    %v4186 = vsel %vm41, %v4088, 0.0
    %v4187 = vadd.f32 %v4185, %v4186
    %v4188 = vsel %vm41, %v4089, 0.0
    %v4189 = vadd.f32 %v4187, %v4188
    %v4190 = vsel %vm41, %v4090, 0.0
    %v4191 = vadd.f32 %v4189, %v4190
    %v4192 = vsel %vm41, %v4091, 0.0
    %v4193 = vadd.f32 %v4191, %v4192
    %v4194 = vsel %vm41, %v4092, 0.0
    %v4195 = vadd.f32 %v4193, %v4194
    %v4196 = vsel %vm41, %v4093, 0.0
    %v4197 = vadd.f32 %v4195, %v4196
    %v4198 = vsel %vm41, %v4094, 0.0
    %v4199 = vadd.f32 %v4197, %v4198
    %v4200 = vsel %vm41, %v4095, 0.0
    %v4201 = vadd.f32 %v4199, %v4200
    %v4202 = vsel %vm41, %v4096, 0.0
    %v4203 = vadd.f32 %v4201, %v4202
    %v4204 = vsel %vm41, %v4097, 0.0
    %v4205 = vadd.f32 %v4203, %v4204
    %v4206 = vsel %vm41, %v4098, 0.0
    %v4207 = vadd.f32 %v4205, %v4206
    %v4208 = vsel %vm41, %v4099, 0.0
    %v4209 = vadd.f32 %v4207, %v4208
    %v4210 = vsel %vm41, %v4100, 0.0
    %v4211 = vadd.f32 %v4209, %v4210
    %v4212 = vsel %vm41, %v4101, 0.0
    %v4213 = vadd.f32 %v4211, %v4212
    %v4214 = vsel %vm41, %v4102, 0.0
    %v4215 = vadd.f32 %v4213, %v4214
    %v4216 = vsel %vm41, %v4103, 0.0
    %v4217 = vadd.f32 %v4215, %v4216
    %v4218 = vsel %vm41, %v4104, 0.0
    %v4219 = vadd.f32 %v4217, %v4218
    %v4220 = vsel %vm41, %v4105, 0.0
    %v4221 = vadd.f32 %v4219, %v4220
    %v4222 = vsel %vm41, %v4106, 0.0
    %v4223 = vadd.f32 %v4221, %v4222
    %v4224 = vsel %vm41, %v4107, 0.0
    %v4225 = vadd.f32 %v4223, %v4224
    %v4226 = vsel %vm41, %v4108, 0.0
    %v4227 = vadd.f32 %v4225, %v4226
    %v4228 = vsel %vm41, %v4109, 0.0
    %v4229 = vadd.f32 %v4227, %v4228
    %v4230 = vsel %vm41, %v4110, 0.0
    %v4231 = vadd.f32 %v4229, %v4230
    %v4232 = vsel %vm41, %v4111, 0.0
    %v4233 = vadd.f32 %v4231, %v4232
    %v4234 = vsel %vm41, %v4112, 0.0
    %v4235 = vadd.f32 %v4233, %v4234
    %v4236 = vsel %vm41, %v4113, 0.0
    %v4237 = vadd.f32 %v4235, %v4236
    %v4238 = vsel %vm41, %v4114, 0.0
    %v4239 = vadd.f32 %v4237, %v4238
    %v4240 = vsel %vm41, %v4115, 0.0
    %v4241 = vadd.f32 %v4239, %v4240
    %v4242 = vsel %vm41, %v4116, 0.0
    %v4243 = vadd.f32 %v4241, %v4242
    %v4244 = vrot.slane %v4243, 4
    %v4245 = vadd.f32 %v4243, %v4244
    %v4246 = vrot.slane %v4245, 2
    %v4247 = vadd.f32 %v4245, %v4246
    %v4248 = vrot.slane %v4247, 1
    %v4249 = vadd.f32 %v4247, %v4248
    %v4250 = vmul.f32 %v4249, 0.001953125
    %v4251 = vadd.f32 %v4250, 1e-05
    %v4252 = vrsqrt.pop %v4251
    %v4253 = vmul.f32 %v4252, %v3853
    %v4254 = vlaneseq
    %v4255 = vshrl.u32 %v4254, 7
    %v4256 = vsub.s32 0, %v4255
    %v4257 = vrot.slane %v4253, %v4256
    %v4258 = vmul.f32 %v3989, %v4257
    %v4259 = vmul.f32 %v3990, %v4257
    %v4260 = vmul.f32 %v3991, %v4257
    %v4261 = vmul.f32 %v3992, %v4257
    %v4262 = vmul.f32 %v3993, %v4257
    %v4263 = vmul.f32 %v3994, %v4257
    %v4264 = vmul.f32 %v3995, %v4257
    %v4265 = vmul.f32 %v3996, %v4257
    %v4266 = vmul.f32 %v3997, %v4257
    %v4267 = vmul.f32 %v3998, %v4257
    %v4268 = vmul.f32 %v3999, %v4257
    %v4269 = vmul.f32 %v4000, %v4257
    %v4270 = vmul.f32 %v4001, %v4257
    %v4271 = vmul.f32 %v4002, %v4257
    %v4272 = vmul.f32 %v4003, %v4257
    %v4273 = vmul.f32 %v4004, %v4257
    %v4274 = vmul.f32 %v4005, %v4257
    %v4275 = vmul.f32 %v4006, %v4257
    %v4276 = vmul.f32 %v4007, %v4257
    %v4277 = vmul.f32 %v4008, %v4257
    %v4278 = vmul.f32 %v4009, %v4257
    %v4279 = vmul.f32 %v4010, %v4257
    %v4280 = vmul.f32 %v4011, %v4257
    %v4281 = vmul.f32 %v4012, %v4257
    %v4282 = vmul.f32 %v4013, %v4257
    %v4283 = vmul.f32 %v4014, %v4257
    %v4284 = vmul.f32 %v4015, %v4257
    %v4285 = vmul.f32 %v4016, %v4257
    %v4286 = vmul.f32 %v4017, %v4257
    %v4287 = vmul.f32 %v4018, %v4257
    %v4288 = vmul.f32 %v4019, %v4257
    %v4289 = vmul.f32 %v4020, %v4257
    %v4290 = vmul.f32 %v4021, %v4257
    %v4291 = vmul.f32 %v4022, %v4257
    %v4292 = vmul.f32 %v4023, %v4257
    %v4293 = vmul.f32 %v4024, %v4257
    %v4294 = vmul.f32 %v4025, %v4257
    %v4295 = vmul.f32 %v4026, %v4257
    %v4296 = vmul.f32 %v4027, %v4257
    %v4297 = vmul.f32 %v4028, %v4257
    %v4298 = vmul.f32 %v4029, %v4257
    %v4299 = vmul.f32 %v4030, %v4257
    %v4300 = vmul.f32 %v4031, %v4257
    %v4301 = vmul.f32 %v4032, %v4257
    %v4302 = vmul.f32 %v4033, %v4257
    %v4303 = vmul.f32 %v4034, %v4257
    %v4304 = vmul.f32 %v4035, %v4257
    %v4305 = vmul.f32 %v4036, %v4257
    %v4306 = vmul.f32 %v4037, %v4257
    %v4307 = vmul.f32 %v4038, %v4257
    %v4308 = vmul.f32 %v4039, %v4257
    %v4309 = vmul.f32 %v4040, %v4257
    %v4310 = vmul.f32 %v4041, %v4257
    %v4311 = vmul.f32 %v4042, %v4257
    %v4312 = vmul.f32 %v4043, %v4257
    %v4313 = vmul.f32 %v4044, %v4257
    %v4314 = vmul.f32 %v4045, %v4257
    %v4315 = vmul.f32 %v4046, %v4257
    %v4316 = vmul.f32 %v4047, %v4257
    %v4317 = vmul.f32 %v4048, %v4257
    %v4318 = vmul.f32 %v4049, %v4257
    %v4319 = vmul.f32 %v4050, %v4257
    %v4320 = vmul.f32 %v4051, %v4257
    %v4321 = vmul.f32 %v4052, %v4257
    %v4323 = vlaneseq
    %v4324 = vshrl.u32 %v4323, 7
    %v4325 = vsub.s32 0, %v4324
    %v4326 = vrot.slane %v3854, %v4325
    %v4328 = vadd.f32 %v4258, %v4326
    %v4329 = vadd.f32 %v4259, %v4326
    %v4330 = vadd.f32 %v4260, %v4326
    %v4331 = vadd.f32 %v4261, %v4326
    %v4332 = vadd.f32 %v4262, %v4326
    %v4333 = vadd.f32 %v4263, %v4326
    %v4334 = vadd.f32 %v4264, %v4326
    %v4335 = vadd.f32 %v4265, %v4326
    %v4336 = vadd.f32 %v4266, %v4326
    %v4337 = vadd.f32 %v4267, %v4326
    %v4338 = vadd.f32 %v4268, %v4326
    %v4339 = vadd.f32 %v4269, %v4326
    %v4340 = vadd.f32 %v4270, %v4326
    %v4341 = vadd.f32 %v4271, %v4326
    %v4342 = vadd.f32 %v4272, %v4326
    %v4343 = vadd.f32 %v4273, %v4326
    %v4344 = vadd.f32 %v4274, %v4326
    %v4345 = vadd.f32 %v4275, %v4326
    %v4346 = vadd.f32 %v4276, %v4326
    %v4347 = vadd.f32 %v4277, %v4326
    %v4348 = vadd.f32 %v4278, %v4326
    %v4349 = vadd.f32 %v4279, %v4326
    %v4350 = vadd.f32 %v4280, %v4326
    %v4351 = vadd.f32 %v4281, %v4326
    %v4352 = vadd.f32 %v4282, %v4326
    %v4353 = vadd.f32 %v4283, %v4326
    %v4354 = vadd.f32 %v4284, %v4326
    %v4355 = vadd.f32 %v4285, %v4326
    %v4356 = vadd.f32 %v4286, %v4326
    %v4357 = vadd.f32 %v4287, %v4326
    %v4358 = vadd.f32 %v4288, %v4326
    %v4359 = vadd.f32 %v4289, %v4326
    %v4360 = vadd.f32 %v4290, %v4326
    %v4361 = vadd.f32 %v4291, %v4326
    %v4362 = vadd.f32 %v4292, %v4326
    %v4363 = vadd.f32 %v4293, %v4326
    %v4364 = vadd.f32 %v4294, %v4326
    %v4365 = vadd.f32 %v4295, %v4326
    %v4366 = vadd.f32 %v4296, %v4326
    %v4367 = vadd.f32 %v4297, %v4326
    %v4368 = vadd.f32 %v4298, %v4326
    %v4369 = vadd.f32 %v4299, %v4326
    %v4370 = vadd.f32 %v4300, %v4326
    %v4371 = vadd.f32 %v4301, %v4326
    %v4372 = vadd.f32 %v4302, %v4326
    %v4373 = vadd.f32 %v4303, %v4326
    %v4374 = vadd.f32 %v4304, %v4326
    %v4375 = vadd.f32 %v4305, %v4326
    %v4376 = vadd.f32 %v4306, %v4326
    %v4377 = vadd.f32 %v4307, %v4326
    %v4378 = vadd.f32 %v4308, %v4326
    %v4379 = vadd.f32 %v4309, %v4326
    %v4380 = vadd.f32 %v4310, %v4326
    %v4381 = vadd.f32 %v4311, %v4326
    %v4382 = vadd.f32 %v4312, %v4326
    %v4383 = vadd.f32 %v4313, %v4326
    %v4384 = vadd.f32 %v4314, %v4326
    %v4385 = vadd.f32 %v4315, %v4326
    %v4386 = vadd.f32 %v4316, %v4326
    %v4387 = vadd.f32 %v4317, %v4326
    %v4388 = vadd.f32 %v4318, %v4326
    %v4389 = vadd.f32 %v4319, %v4326
    %v4390 = vadd.f32 %v4320, %v4326
    %v4391 = vadd.f32 %v4321, %v4326
    %s4392 = sld [smem:[#allocation4]]
    %vm4393 = vcmp.gt.f32.partialorder %v4328, 0.0
    %vm4394 = vcmp.gt.f32.partialorder %v4329, 0.0
    %vm4395 = vcmp.gt.f32.partialorder %v4330, 0.0
    %vm4396 = vcmp.gt.f32.partialorder %v4331, 0.0
    %vm4397 = vcmp.gt.f32.partialorder %v4332, 0.0
    %vm4398 = vcmp.gt.f32.partialorder %v4333, 0.0
    %vm4399 = vcmp.gt.f32.partialorder %v4334, 0.0
    %vm4400 = vcmp.gt.f32.partialorder %v4335, 0.0
    %vm4401 = vcmp.gt.f32.partialorder %v4336, 0.0
    %vm4402 = vcmp.gt.f32.partialorder %v4337, 0.0
    %vm4403 = vcmp.gt.f32.partialorder %v4338, 0.0
    %vm4404 = vcmp.gt.f32.partialorder %v4339, 0.0
    %vm4405 = vcmp.gt.f32.partialorder %v4340, 0.0
    %vm4406 = vcmp.gt.f32.partialorder %v4341, 0.0
    %vm4407 = vcmp.gt.f32.partialorder %v4342, 0.0
    %vm4408 = vcmp.gt.f32.partialorder %v4343, 0.0
    %vm4409 = vcmp.gt.f32.partialorder %v4344, 0.0
    %vm4410 = vcmp.gt.f32.partialorder %v4345, 0.0
    %vm4411 = vcmp.gt.f32.partialorder %v4346, 0.0
    %vm4412 = vcmp.gt.f32.partialorder %v4347, 0.0
    %vm4413 = vcmp.gt.f32.partialorder %v4348, 0.0
    %vm4414 = vcmp.gt.f32.partialorder %v4349, 0.0
    %vm4415 = vcmp.gt.f32.partialorder %v4350, 0.0
    %vm4416 = vcmp.gt.f32.partialorder %v4351, 0.0
    %vm4417 = vcmp.gt.f32.partialorder %v4352, 0.0
    %vm4418 = vcmp.gt.f32.partialorder %v4353, 0.0
    %vm4419 = vcmp.gt.f32.partialorder %v4354, 0.0
    %vm4420 = vcmp.gt.f32.partialorder %v4355, 0.0
    %vm4421 = vcmp.gt.f32.partialorder %v4356, 0.0
    %vm4422 = vcmp.gt.f32.partialorder %v4357, 0.0
    %vm4423 = vcmp.gt.f32.partialorder %v4358, 0.0
    %vm4424 = vcmp.gt.f32.partialorder %v4359, 0.0
    %vm4425 = vcmp.gt.f32.partialorder %v4360, 0.0
    %vm4426 = vcmp.gt.f32.partialorder %v4361, 0.0
    %vm4427 = vcmp.gt.f32.partialorder %v4362, 0.0
    %vm4428 = vcmp.gt.f32.partialorder %v4363, 0.0
    %vm4429 = vcmp.gt.f32.partialorder %v4364, 0.0
    %vm4430 = vcmp.gt.f32.partialorder %v4365, 0.0
    %vm4431 = vcmp.gt.f32.partialorder %v4366, 0.0
    %vm4432 = vcmp.gt.f32.partialorder %v4367, 0.0
    %vm4433 = vcmp.gt.f32.partialorder %v4368, 0.0
    %vm4434 = vcmp.gt.f32.partialorder %v4369, 0.0
    %vm4435 = vcmp.gt.f32.partialorder %v4370, 0.0
    %vm4436 = vcmp.gt.f32.partialorder %v4371, 0.0
    %vm4437 = vcmp.gt.f32.partialorder %v4372, 0.0
    %vm4438 = vcmp.gt.f32.partialorder %v4373, 0.0
    %vm4439 = vcmp.gt.f32.partialorder %v4374, 0.0
    %vm4440 = vcmp.gt.f32.partialorder %v4375, 0.0
    %vm4441 = vcmp.gt.f32.partialorder %v4376, 0.0
    %vm4442 = vcmp.gt.f32.partialorder %v4377, 0.0
    %vm4443 = vcmp.gt.f32.partialorder %v4378, 0.0
    %vm4444 = vcmp.gt.f32.partialorder %v4379, 0.0
    %vm4445 = vcmp.gt.f32.partialorder %v4380, 0.0
    %vm4446 = vcmp.gt.f32.partialorder %v4381, 0.0
    %vm4447 = vcmp.gt.f32.partialorder %v4382, 0.0
    %vm4448 = vcmp.gt.f32.partialorder %v4383, 0.0
    %vm4449 = vcmp.gt.f32.partialorder %v4384, 0.0
    %vm4450 = vcmp.gt.f32.partialorder %v4385, 0.0
    %vm4451 = vcmp.gt.f32.partialorder %v4386, 0.0
    %vm4452 = vcmp.gt.f32.partialorder %v4387, 0.0
    %vm4453 = vcmp.gt.f32.partialorder %v4388, 0.0
    %vm4454 = vcmp.gt.f32.partialorder %v4389, 0.0
    %vm4455 = vcmp.gt.f32.partialorder %v4390, 0.0
    %vm4456 = vcmp.gt.f32.partialorder %v4391, 0.0
    %v4457 = vstv %s4392
    %v4458 = vmul.f32 %v4457, %v4328
    %v4459 = vmul.f32 %v4457, %v4329
    %v4460 = vmul.f32 %v4457, %v4330
    %v4461 = vmul.f32 %v4457, %v4331
    %v4462 = vmul.f32 %v4457, %v4332
    %v4463 = vmul.f32 %v4457, %v4333
    %v4464 = vmul.f32 %v4457, %v4334
    %v4465 = vmul.f32 %v4457, %v4335
    %v4466 = vmul.f32 %v4457, %v4336
    %v4467 = vmul.f32 %v4457, %v4337
    %v4468 = vmul.f32 %v4457, %v4338
    %v4469 = vmul.f32 %v4457, %v4339
    %v4470 = vmul.f32 %v4457, %v4340
    %v4471 = vmul.f32 %v4457, %v4341
    %v4472 = vmul.f32 %v4457, %v4342
    %v4473 = vmul.f32 %v4457, %v4343
    %v4474 = vmul.f32 %v4457, %v4344
    %v4475 = vmul.f32 %v4457, %v4345
    %v4476 = vmul.f32 %v4457, %v4346
    %v4477 = vmul.f32 %v4457, %v4347
    %v4478 = vmul.f32 %v4457, %v4348
    %v4479 = vmul.f32 %v4457, %v4349
    %v4480 = vmul.f32 %v4457, %v4350
    %v4481 = vmul.f32 %v4457, %v4351
    %v4482 = vmul.f32 %v4457, %v4352
    %v4483 = vmul.f32 %v4457, %v4353
    %v4484 = vmul.f32 %v4457, %v4354
    %v4485 = vmul.f32 %v4457, %v4355
    %v4486 = vmul.f32 %v4457, %v4356
    %v4487 = vmul.f32 %v4457, %v4357
    %v4488 = vmul.f32 %v4457, %v4358
    %v4489 = vmul.f32 %v4457, %v4359
    %v4490 = vmul.f32 %v4457, %v4360
    %v4491 = vmul.f32 %v4457, %v4361
    %v4492 = vmul.f32 %v4457, %v4362
    %v4493 = vmul.f32 %v4457, %v4363
    %v4494 = vmul.f32 %v4457, %v4364
    %v4495 = vmul.f32 %v4457, %v4365
    %v4496 = vmul.f32 %v4457, %v4366
    %v4497 = vmul.f32 %v4457, %v4367
    %v4498 = vmul.f32 %v4457, %v4368
    %v4499 = vmul.f32 %v4457, %v4369
    %v4500 = vmul.f32 %v4457, %v4370
    %v4501 = vmul.f32 %v4457, %v4371
    %v4502 = vmul.f32 %v4457, %v4372
    %v4503 = vmul.f32 %v4457, %v4373
    %v4504 = vmul.f32 %v4457, %v4374
    %v4505 = vmul.f32 %v4457, %v4375
    %v4506 = vmul.f32 %v4457, %v4376
    %v4507 = vmul.f32 %v4457, %v4377
    %v4508 = vmul.f32 %v4457, %v4378
    %v4509 = vmul.f32 %v4457, %v4379
    %v4510 = vmul.f32 %v4457, %v4380
    %v4511 = vmul.f32 %v4457, %v4381
    %v4512 = vmul.f32 %v4457, %v4382
    %v4513 = vmul.f32 %v4457, %v4383
    %v4514 = vmul.f32 %v4457, %v4384
    %v4515 = vmul.f32 %v4457, %v4385
    %v4516 = vmul.f32 %v4457, %v4386
    %v4517 = vmul.f32 %v4457, %v4387
    %v4518 = vmul.f32 %v4457, %v4388
    %v4519 = vmul.f32 %v4457, %v4389
    %v4520 = vmul.f32 %v4457, %v4390
    %v4521 = vmul.f32 %v4457, %v4391
    %v4522 = vsel %vm4393, %v4328, %v4458
    %v4523 = vsel %vm4394, %v4329, %v4459
    %v4524 = vsel %vm4395, %v4330, %v4460
    %v4525 = vsel %vm4396, %v4331, %v4461
    %v4526 = vsel %vm4397, %v4332, %v4462
    %v4527 = vsel %vm4398, %v4333, %v4463
    %v4528 = vsel %vm4399, %v4334, %v4464
    %v4529 = vsel %vm4400, %v4335, %v4465
    %v4530 = vsel %vm4401, %v4336, %v4466
    %v4531 = vsel %vm4402, %v4337, %v4467
    %v4532 = vsel %vm4403, %v4338, %v4468
    %v4533 = vsel %vm4404, %v4339, %v4469
    %v4534 = vsel %vm4405, %v4340, %v4470
    %v4535 = vsel %vm4406, %v4341, %v4471
    %v4536 = vsel %vm4407, %v4342, %v4472
    %v4537 = vsel %vm4408, %v4343, %v4473
    %v4538 = vsel %vm4409, %v4344, %v4474
    %v4539 = vsel %vm4410, %v4345, %v4475
    %v4540 = vsel %vm4411, %v4346, %v4476
    %v4541 = vsel %vm4412, %v4347, %v4477
    %v4542 = vsel %vm4413, %v4348, %v4478
    %v4543 = vsel %vm4414, %v4349, %v4479
    %v4544 = vsel %vm4415, %v4350, %v4480
    %v4545 = vsel %vm4416, %v4351, %v4481
    %v4546 = vsel %vm4417, %v4352, %v4482
    %v4547 = vsel %vm4418, %v4353, %v4483
    %v4548 = vsel %vm4419, %v4354, %v4484
    %v4549 = vsel %vm4420, %v4355, %v4485
    %v4550 = vsel %vm4421, %v4356, %v4486
    %v4551 = vsel %vm4422, %v4357, %v4487
    %v4552 = vsel %vm4423, %v4358, %v4488
    %v4553 = vsel %vm4424, %v4359, %v4489
    %v4554 = vsel %vm4425, %v4360, %v4490
    %v4555 = vsel %vm4426, %v4361, %v4491
    %v4556 = vsel %vm4427, %v4362, %v4492
    %v4557 = vsel %vm4428, %v4363, %v4493
    %v4558 = vsel %vm4429, %v4364, %v4494
    %v4559 = vsel %vm4430, %v4365, %v4495
    %v4560 = vsel %vm4431, %v4366, %v4496
    %v4561 = vsel %vm4432, %v4367, %v4497
    %v4562 = vsel %vm4433, %v4368, %v4498
    %v4563 = vsel %vm4434, %v4369, %v4499
    %v4564 = vsel %vm4435, %v4370, %v4500
    %v4565 = vsel %vm4436, %v4371, %v4501
    %v4566 = vsel %vm4437, %v4372, %v4502
    %v4567 = vsel %vm4438, %v4373, %v4503
    %v4568 = vsel %vm4439, %v4374, %v4504
    %v4569 = vsel %vm4440, %v4375, %v4505
    %v4570 = vsel %vm4441, %v4376, %v4506
    %v4571 = vsel %vm4442, %v4377, %v4507
    %v4572 = vsel %vm4443, %v4378, %v4508
    %v4573 = vsel %vm4444, %v4379, %v4509
    %v4574 = vsel %vm4445, %v4380, %v4510
    %v4575 = vsel %vm4446, %v4381, %v4511
    %v4576 = vsel %vm4447, %v4382, %v4512
    %v4577 = vsel %vm4448, %v4383, %v4513
    %v4578 = vsel %vm4449, %v4384, %v4514
    %v4579 = vsel %vm4450, %v4385, %v4515
    %v4580 = vsel %vm4451, %v4386, %v4516
    %v4581 = vsel %vm4452, %v4387, %v4517
    %v4582 = vsel %vm4453, %v4388, %v4518
    %v4583 = vsel %vm4454, %v4389, %v4519
    %v4584 = vsel %vm4455, %v4390, %v4520
    %v4585 = vsel %vm4456, %v4391, %v4521
    %4586 = vst.msk [vmem:[%s193 + $0x1] sm:$0xff] %vm41, %v4522
    %4587 = vst.msk [vmem:[%s193 + $0x9] sm:$0xff] %vm41, %v4523
    %4588 = vst.msk [vmem:[%s193 + $0x19] sm:$0xff] %vm41, %v4524
    %4589 = vst.msk [vmem:[%s193 + $0x21] sm:$0xff] %vm41, %v4525
    %4590 = vst.msk [vmem:[%s193 + $0x31] sm:$0xff] %vm41, %v4526
    %4591 = vst.msk [vmem:[%s193 + $0x39] sm:$0xff] %vm41, %v4527
    %4592 = vst.msk [vmem:[%s193 + $0x49] sm:$0xff] %vm41, %v4528
    %4593 = vst.msk [vmem:[%s193 + $0x51] sm:$0xff] %vm41, %v4529
    %4594 = vst.msk [vmem:[%s193 + $0x61] sm:$0xff] %vm41, %v4530
    %4595 = vst.msk [vmem:[%s193 + $0x69] sm:$0xff] %vm41, %v4531
    %4596 = vst.msk [vmem:[%s193 + $0x79] sm:$0xff] %vm41, %v4532
    %4597 = vst.msk [vmem:[%s193 + $0x81] sm:$0xff] %vm41, %v4533
    %4598 = vst.msk [vmem:[%s193 + $0x91] sm:$0xff] %vm41, %v4534
    %4599 = vst.msk [vmem:[%s193 + $0x99] sm:$0xff] %vm41, %v4535
    %4600 = vst.msk [vmem:[%s193 + $0xa9] sm:$0xff] %vm41, %v4536
    %4601 = vst.msk [vmem:[%s193 + $0xb1] sm:$0xff] %vm41, %v4537
    %4602 = vst.msk [vmem:[%s193 + $0xc1] sm:$0xff] %vm41, %v4538
    %4603 = vst.msk [vmem:[%s193 + $0xc9] sm:$0xff] %vm41, %v4539
    %4604 = vst.msk [vmem:[%s193 + $0xd9] sm:$0xff] %vm41, %v4540
    %4605 = vst.msk [vmem:[%s193 + $0xe1] sm:$0xff] %vm41, %v4541
    %4606 = vst.msk [vmem:[%s193 + $0xf1] sm:$0xff] %vm41, %v4542
    %4607 = vst.msk [vmem:[%s193 + $0xf9] sm:$0xff] %vm41, %v4543
    %4608 = vst.msk [vmem:[%s193 + $0x109] sm:$0xff] %vm41, %v4544
    %4609 = vst.msk [vmem:[%s193 + $0x111] sm:$0xff] %vm41, %v4545
    %4610 = vst.msk [vmem:[%s193 + $0x121] sm:$0xff] %vm41, %v4546
    %4611 = vst.msk [vmem:[%s193 + $0x129] sm:$0xff] %vm41, %v4547
    %4612 = vst.msk [vmem:[%s193 + $0x139] sm:$0xff] %vm41, %v4548
    %4613 = vst.msk [vmem:[%s193 + $0x141] sm:$0xff] %vm41, %v4549
    %4614 = vst.msk [vmem:[%s193 + $0x151] sm:$0xff] %vm41, %v4550
    %4615 = vst.msk [vmem:[%s193 + $0x159] sm:$0xff] %vm41, %v4551
    %4616 = vst.msk [vmem:[%s193 + $0x169] sm:$0xff] %vm41, %v4552
    %4617 = vst.msk [vmem:[%s193 + $0x171] sm:$0xff] %vm41, %v4553
    %4618 = vst.msk [vmem:[%s193 + $0x1b1] sm:$0xff] %vm41, %v4554
    %4619 = vst.msk [vmem:[%s193 + $0x1b9] sm:$0xff] %vm41, %v4555
    %4620 = vst.msk [vmem:[%s193 + $0x1c9] sm:$0xff] %vm41, %v4556
    %4621 = vst.msk [vmem:[%s193 + $0x1d1] sm:$0xff] %vm41, %v4557
    %4622 = vst.msk [vmem:[%s193 + $0x1e1] sm:$0xff] %vm41, %v4558
    %4623 = vst.msk [vmem:[%s193 + $0x1e9] sm:$0xff] %vm41, %v4559
    %4624 = vst.msk [vmem:[%s193 + $0x1f9] sm:$0xff] %vm41, %v4560
    %4625 = vst.msk [vmem:[%s193 + $0x201] sm:$0xff] %vm41, %v4561
    %4626 = vst.msk [vmem:[%s193 + $0x211] sm:$0xff] %vm41, %v4562
    %4627 = vst.msk [vmem:[%s193 + $0x219] sm:$0xff] %vm41, %v4563
    %4628 = vst.msk [vmem:[%s193 + $0x229] sm:$0xff] %vm41, %v4564
    %4629 = vst.msk [vmem:[%s193 + $0x231] sm:$0xff] %vm41, %v4565
    %4630 = vst.msk [vmem:[%s193 + $0x241] sm:$0xff] %vm41, %v4566
    %4631 = vst.msk [vmem:[%s193 + $0x249] sm:$0xff] %vm41, %v4567
    %4632 = vst.msk [vmem:[%s193 + $0x259] sm:$0xff] %vm41, %v4568
    %4633 = vst.msk [vmem:[%s193 + $0x261] sm:$0xff] %vm41, %v4569
    %4634 = vst.msk [vmem:[%s193 + $0x271] sm:$0xff] %vm41, %v4570
    %4635 = vst.msk [vmem:[%s193 + $0x279] sm:$0xff] %vm41, %v4571
    %4636 = vst.msk [vmem:[%s193 + $0x289] sm:$0xff] %vm41, %v4572
    %4637 = vst.msk [vmem:[%s193 + $0x291] sm:$0xff] %vm41, %v4573
    %4638 = vst.msk [vmem:[%s193 + $0x2a1] sm:$0xff] %vm41, %v4574
    %4639 = vst.msk [vmem:[%s193 + $0x2a9] sm:$0xff] %vm41, %v4575
    %4640 = vst.msk [vmem:[%s193 + $0x2b9] sm:$0xff] %vm41, %v4576
    %4641 = vst.msk [vmem:[%s193 + $0x2c1] sm:$0xff] %vm41, %v4577
    %4642 = vst.msk [vmem:[%s193 + $0x2d1] sm:$0xff] %vm41, %v4578
    %4643 = vst.msk [vmem:[%s193 + $0x2d9] sm:$0xff] %vm41, %v4579
    %4644 = vst.msk [vmem:[%s193 + $0x2e9] sm:$0xff] %vm41, %v4580
    %4645 = vst.msk [vmem:[%s193 + $0x2f1] sm:$0xff] %vm41, %v4581
    %4646 = vst.msk [vmem:[%s193 + $0x301] sm:$0xff] %vm41, %v4582
    %4647 = vst.msk [vmem:[%s193 + $0x309] sm:$0xff] %vm41, %v4583
    %4648 = vst.msk [vmem:[%s193 + $0x319] sm:$0xff] %vm41, %v4584
    %4649 = vst.msk [vmem:[%s193 + $0x321] sm:$0xff] %vm41, %v4585
    %v4650 = vld [vmem:[#allocation2] sm:$0xff]
    %v4651 = vld [vmem:[#allocation2 + $0x8] sm:$0xff]
    %v4652 = vld [vmem:[#allocation2 + $0x18] sm:$0xff]
    %v4653 = vld [vmem:[#allocation2 + $0x20] sm:$0xff]
    %v4654 = vld [vmem:[#allocation2 + $0x30] sm:$0xff]
    %v4655 = vld [vmem:[#allocation2 + $0x38] sm:$0xff]
    %v4656 = vld [vmem:[#allocation2 + $0x48] sm:$0xff]
    %v4657 = vld [vmem:[#allocation2 + $0x50] sm:$0xff]
    %v4658 = vld [vmem:[#allocation2 + $0x60] sm:$0xff]
    %v4659 = vld [vmem:[#allocation2 + $0x68] sm:$0xff]
    %v4660 = vld [vmem:[#allocation2 + $0x78] sm:$0xff]
    %v4661 = vld [vmem:[#allocation2 + $0x80] sm:$0xff]
    %v4662 = vld [vmem:[#allocation2 + $0x90] sm:$0xff]
    %v4663 = vld [vmem:[#allocation2 + $0x98] sm:$0xff]
    %v4664 = vld [vmem:[#allocation2 + $0xa8] sm:$0xff]
    %v4665 = vld [vmem:[#allocation2 + $0xb0] sm:$0xff]
    %v4666 = vld [vmem:[#allocation2 + $0xc0] sm:$0xff]
    %v4667 = vld [vmem:[#allocation2 + $0xc8] sm:$0xff]
    %v4668 = vld [vmem:[#allocation2 + $0xd8] sm:$0xff]
    %v4669 = vld [vmem:[#allocation2 + $0xe0] sm:$0xff]
    %v4670 = vld [vmem:[#allocation2 + $0xf0] sm:$0xff]
    %v4671 = vld [vmem:[#allocation2 + $0xf8] sm:$0xff]
    %v4672 = vld [vmem:[#allocation2 + $0x108] sm:$0xff]
    %v4673 = vld [vmem:[#allocation2 + $0x110] sm:$0xff]
    %v4674 = vld [vmem:[#allocation2 + $0x120] sm:$0xff]
    %v4675 = vld [vmem:[#allocation2 + $0x128] sm:$0xff]
    %v4676 = vld [vmem:[#allocation2 + $0x138] sm:$0xff]
    %v4677 = vld [vmem:[#allocation2 + $0x140] sm:$0xff]
    %v4678 = vld [vmem:[#allocation2 + $0x150] sm:$0xff]
    %v4679 = vld [vmem:[#allocation2 + $0x158] sm:$0xff]
    %v4680 = vld [vmem:[#allocation2 + $0x168] sm:$0xff]
    %v4681 = vld [vmem:[#allocation2 + $0x170] sm:$0xff]
    %v4682 = vld [vmem:[#allocation2 + $0x1b0] sm:$0xff]
    %v4683 = vld [vmem:[#allocation2 + $0x1b8] sm:$0xff]
    %v4684 = vld [vmem:[#allocation2 + $0x1c8] sm:$0xff]
    %v4685 = vld [vmem:[#allocation2 + $0x1d0] sm:$0xff]
    %v4686 = vld [vmem:[#allocation2 + $0x1e0] sm:$0xff]
    %v4687 = vld [vmem:[#allocation2 + $0x1e8] sm:$0xff]
    %v4688 = vld [vmem:[#allocation2 + $0x1f8] sm:$0xff]
    %v4689 = vld [vmem:[#allocation2 + $0x200] sm:$0xff]
    %v4690 = vld [vmem:[#allocation2 + $0x210] sm:$0xff]
    %v4691 = vld [vmem:[#allocation2 + $0x218] sm:$0xff]
    %v4692 = vld [vmem:[#allocation2 + $0x228] sm:$0xff]
    %v4693 = vld [vmem:[#allocation2 + $0x230] sm:$0xff]
    %v4694 = vld [vmem:[#allocation2 + $0x240] sm:$0xff]
    %v4695 = vld [vmem:[#allocation2 + $0x248] sm:$0xff]
    %v4696 = vld [vmem:[#allocation2 + $0x258] sm:$0xff]
    %v4697 = vld [vmem:[#allocation2 + $0x260] sm:$0xff]
    %v4698 = vld [vmem:[#allocation2 + $0x270] sm:$0xff]
    %v4699 = vld [vmem:[#allocation2 + $0x278] sm:$0xff]
    %v4700 = vld [vmem:[#allocation2 + $0x288] sm:$0xff]
    %v4701 = vld [vmem:[#allocation2 + $0x290] sm:$0xff]
    %v4702 = vld [vmem:[#allocation2 + $0x2a0] sm:$0xff]
    %v4703 = vld [vmem:[#allocation2 + $0x2a8] sm:$0xff]
    %v4704 = vld [vmem:[#allocation2 + $0x2b8] sm:$0xff]
    %v4705 = vld [vmem:[#allocation2 + $0x2c0] sm:$0xff]
    %v4706 = vld [vmem:[#allocation2 + $0x2d0] sm:$0xff]
    %v4707 = vld [vmem:[#allocation2 + $0x2d8] sm:$0xff]
    %v4708 = vld [vmem:[#allocation2 + $0x2e8] sm:$0xff]
    %v4709 = vld [vmem:[#allocation2 + $0x2f0] sm:$0xff]
    %v4710 = vld [vmem:[#allocation2 + $0x300] sm:$0xff]
    %v4711 = vld [vmem:[#allocation2 + $0x308] sm:$0xff]
    %v4712 = vld [vmem:[#allocation2 + $0x318] sm:$0xff]
    %v4713 = vld [vmem:[#allocation2 + $0x320] sm:$0xff]
    %v4714 = vld [vmem:[#allocation2 + $0x1] sm:$0xff]
    %v4715 = vld [vmem:[#allocation2 + $0x9] sm:$0xff]
    %v4716 = vld [vmem:[#allocation2 + $0x19] sm:$0xff]
    %v4717 = vld [vmem:[#allocation2 + $0x21] sm:$0xff]
    %v4718 = vld [vmem:[#allocation2 + $0x31] sm:$0xff]
    %v4719 = vld [vmem:[#allocation2 + $0x39] sm:$0xff]
    %v4720 = vld [vmem:[#allocation2 + $0x49] sm:$0xff]
    %v4721 = vld [vmem:[#allocation2 + $0x51] sm:$0xff]
    %v4722 = vld [vmem:[#allocation2 + $0x61] sm:$0xff]
    %v4723 = vld [vmem:[#allocation2 + $0x69] sm:$0xff]
    %v4724 = vld [vmem:[#allocation2 + $0x79] sm:$0xff]
    %v4725 = vld [vmem:[#allocation2 + $0x81] sm:$0xff]
    %v4726 = vld [vmem:[#allocation2 + $0x91] sm:$0xff]
    %v4727 = vld [vmem:[#allocation2 + $0x99] sm:$0xff]
    %v4728 = vld [vmem:[#allocation2 + $0xa9] sm:$0xff]
    %v4729 = vld [vmem:[#allocation2 + $0xb1] sm:$0xff]
    %v4730 = vld [vmem:[#allocation2 + $0xc1] sm:$0xff]
    %v4731 = vld [vmem:[#allocation2 + $0xc9] sm:$0xff]
    %v4732 = vld [vmem:[#allocation2 + $0xd9] sm:$0xff]
    %v4733 = vld [vmem:[#allocation2 + $0xe1] sm:$0xff]
    %v4734 = vld [vmem:[#allocation2 + $0xf1] sm:$0xff]
    %v4735 = vld [vmem:[#allocation2 + $0xf9] sm:$0xff]
    %v4736 = vld [vmem:[#allocation2 + $0x109] sm:$0xff]
    %v4737 = vld [vmem:[#allocation2 + $0x111] sm:$0xff]
    %v4738 = vld [vmem:[#allocation2 + $0x121] sm:$0xff]
    %v4739 = vld [vmem:[#allocation2 + $0x129] sm:$0xff]
    %v4740 = vld [vmem:[#allocation2 + $0x139] sm:$0xff]
    %v4741 = vld [vmem:[#allocation2 + $0x141] sm:$0xff]
    %v4742 = vld [vmem:[#allocation2 + $0x151] sm:$0xff]
    %v4743 = vld [vmem:[#allocation2 + $0x159] sm:$0xff]
    %v4744 = vld [vmem:[#allocation2 + $0x169] sm:$0xff]
    %v4745 = vld [vmem:[#allocation2 + $0x171] sm:$0xff]
    %v4746 = vld [vmem:[#allocation2 + $0x1b1] sm:$0xff]
    %v4747 = vld [vmem:[#allocation2 + $0x1b9] sm:$0xff]
    %v4748 = vld [vmem:[#allocation2 + $0x1c9] sm:$0xff]
    %v4749 = vld [vmem:[#allocation2 + $0x1d1] sm:$0xff]
    %v4750 = vld [vmem:[#allocation2 + $0x1e1] sm:$0xff]
    %v4751 = vld [vmem:[#allocation2 + $0x1e9] sm:$0xff]
    %v4752 = vld [vmem:[#allocation2 + $0x1f9] sm:$0xff]
    %v4753 = vld [vmem:[#allocation2 + $0x201] sm:$0xff]
    %v4754 = vld [vmem:[#allocation2 + $0x211] sm:$0xff]
    %v4755 = vld [vmem:[#allocation2 + $0x219] sm:$0xff]
    %v4756 = vld [vmem:[#allocation2 + $0x229] sm:$0xff]
    %v4757 = vld [vmem:[#allocation2 + $0x231] sm:$0xff]
    %v4758 = vld [vmem:[#allocation2 + $0x241] sm:$0xff]
    %v4759 = vld [vmem:[#allocation2 + $0x249] sm:$0xff]
    %v4760 = vld [vmem:[#allocation2 + $0x259] sm:$0xff]
    %v4761 = vld [vmem:[#allocation2 + $0x261] sm:$0xff]
    %v4762 = vld [vmem:[#allocation2 + $0x271] sm:$0xff]
    %v4763 = vld [vmem:[#allocation2 + $0x279] sm:$0xff]
    %v4764 = vld [vmem:[#allocation2 + $0x289] sm:$0xff]
    %v4765 = vld [vmem:[#allocation2 + $0x291] sm:$0xff]
    %v4766 = vld [vmem:[#allocation2 + $0x2a1] sm:$0xff]
    %v4767 = vld [vmem:[#allocation2 + $0x2a9] sm:$0xff]
    %v4768 = vld [vmem:[#allocation2 + $0x2b9] sm:$0xff]
    %v4769 = vld [vmem:[#allocation2 + $0x2c1] sm:$0xff]
    %v4770 = vld [vmem:[#allocation2 + $0x2d1] sm:$0xff]
    %v4771 = vld [vmem:[#allocation2 + $0x2d9] sm:$0xff]
    %v4772 = vld [vmem:[#allocation2 + $0x2e9] sm:$0xff]
    %v4773 = vld [vmem:[#allocation2 + $0x2f1] sm:$0xff]
    %v4774 = vld [vmem:[#allocation2 + $0x301] sm:$0xff]
    %v4775 = vld [vmem:[#allocation2 + $0x309] sm:$0xff]
    %v4776 = vld [vmem:[#allocation2 + $0x319] sm:$0xff]
    %v4777 = vld [vmem:[#allocation2 + $0x321] sm:$0xff]
    %4842 = vrot.lane.b32.xlu0 %v4714, 64
    %v4843 = vpop.permute.xlu0 %4842
    %4844 = vrot.lane.b32.xlu0 %v4715, 64
    %v4845 = vpop.permute.xlu0 %4844
    %4846 = vrot.lane.b32.xlu0 %v4716, 64
    %v4847 = vpop.permute.xlu0 %4846
    %4848 = vrot.lane.b32.xlu0 %v4717, 64
    %v4849 = vpop.permute.xlu0 %4848
    %4850 = vrot.lane.b32.xlu0 %v4718, 64
    %v4851 = vpop.permute.xlu0 %4850
    %4852 = vrot.lane.b32.xlu0 %v4719, 64
    %v4853 = vpop.permute.xlu0 %4852
    %4854 = vrot.lane.b32.xlu0 %v4720, 64
    %v4855 = vpop.permute.xlu0 %4854
    %4856 = vrot.lane.b32.xlu0 %v4721, 64
    %v4857 = vpop.permute.xlu0 %4856
    %4858 = vrot.lane.b32.xlu0 %v4722, 64
    %v4859 = vpop.permute.xlu0 %4858
    %4860 = vrot.lane.b32.xlu0 %v4723, 64
    %v4861 = vpop.permute.xlu0 %4860
    %4862 = vrot.lane.b32.xlu0 %v4724, 64
    %v4863 = vpop.permute.xlu0 %4862
    %4864 = vrot.lane.b32.xlu0 %v4725, 64
    %v4865 = vpop.permute.xlu0 %4864
    %4866 = vrot.lane.b32.xlu0 %v4726, 64
    %v4867 = vpop.permute.xlu0 %4866
    %4868 = vrot.lane.b32.xlu0 %v4727, 64
    %v4869 = vpop.permute.xlu0 %4868
    %4870 = vrot.lane.b32.xlu0 %v4728, 64
    %v4871 = vpop.permute.xlu0 %4870
    %4872 = vrot.lane.b32.xlu0 %v4729, 64
    %v4873 = vpop.permute.xlu0 %4872
    %4874 = vrot.lane.b32.xlu0 %v4730, 64
    %v4875 = vpop.permute.xlu0 %4874
    %4876 = vrot.lane.b32.xlu0 %v4731, 64
    %v4877 = vpop.permute.xlu0 %4876
    %4878 = vrot.lane.b32.xlu0 %v4732, 64
    %v4879 = vpop.permute.xlu0 %4878
    %4880 = vrot.lane.b32.xlu0 %v4733, 64
    %v4881 = vpop.permute.xlu0 %4880
    %4882 = vrot.lane.b32.xlu0 %v4734, 64
    %v4883 = vpop.permute.xlu0 %4882
    %4884 = vrot.lane.b32.xlu0 %v4735, 64
    %v4885 = vpop.permute.xlu0 %4884
    %4886 = vrot.lane.b32.xlu0 %v4736, 64
    %v4887 = vpop.permute.xlu0 %4886
    %4888 = vrot.lane.b32.xlu0 %v4737, 64
    %v4889 = vpop.permute.xlu0 %4888
    %4890 = vrot.lane.b32.xlu0 %v4738, 64
    %v4891 = vpop.permute.xlu0 %4890
    %4892 = vrot.lane.b32.xlu0 %v4739, 64
    %v4893 = vpop.permute.xlu0 %4892
    %4894 = vrot.lane.b32.xlu0 %v4740, 64
    %v4895 = vpop.permute.xlu0 %4894
    %4896 = vrot.lane.b32.xlu0 %v4741, 64
    %v4897 = vpop.permute.xlu0 %4896
    %4898 = vrot.lane.b32.xlu0 %v4742, 64
    %v4899 = vpop.permute.xlu0 %4898
    %4900 = vrot.lane.b32.xlu0 %v4743, 64
    %v4901 = vpop.permute.xlu0 %4900
    %4902 = vrot.lane.b32.xlu0 %v4744, 64
    %v4903 = vpop.permute.xlu0 %4902
    %4904 = vrot.lane.b32.xlu0 %v4745, 64
    %v4905 = vpop.permute.xlu0 %4904
    %4906 = vrot.lane.b32.xlu0 %v4746, 64
    %v4907 = vpop.permute.xlu0 %4906
    %4908 = vrot.lane.b32.xlu0 %v4747, 64
    %v4909 = vpop.permute.xlu0 %4908
    %4910 = vrot.lane.b32.xlu0 %v4748, 64
    %v4911 = vpop.permute.xlu0 %4910
    %4912 = vrot.lane.b32.xlu0 %v4749, 64
    %v4913 = vpop.permute.xlu0 %4912
    %4914 = vrot.lane.b32.xlu0 %v4750, 64
    %v4915 = vpop.permute.xlu0 %4914
    %4916 = vrot.lane.b32.xlu0 %v4751, 64
    %v4917 = vpop.permute.xlu0 %4916
    %4918 = vrot.lane.b32.xlu0 %v4752, 64
    %v4919 = vpop.permute.xlu0 %4918
    %4920 = vrot.lane.b32.xlu0 %v4753, 64
    %v4921 = vpop.permute.xlu0 %4920
    %4922 = vrot.lane.b32.xlu0 %v4754, 64
    %v4923 = vpop.permute.xlu0 %4922
    %4924 = vrot.lane.b32.xlu0 %v4755, 64
    %v4925 = vpop.permute.xlu0 %4924
    %4926 = vrot.lane.b32.xlu0 %v4756, 64
    %v4927 = vpop.permute.xlu0 %4926
    %4928 = vrot.lane.b32.xlu0 %v4757, 64
    %v4929 = vpop.permute.xlu0 %4928
    %4930 = vrot.lane.b32.xlu0 %v4758, 64
    %v4931 = vpop.permute.xlu0 %4930
    %4932 = vrot.lane.b32.xlu0 %v4759, 64
    %v4933 = vpop.permute.xlu0 %4932
    %4934 = vrot.lane.b32.xlu0 %v4760, 64
    %v4935 = vpop.permute.xlu0 %4934
    %4936 = vrot.lane.b32.xlu0 %v4761, 64
    %v4937 = vpop.permute.xlu0 %4936
    %4938 = vrot.lane.b32.xlu0 %v4762, 64
    %v4939 = vpop.permute.xlu0 %4938
    %4940 = vrot.lane.b32.xlu0 %v4763, 64
    %v4941 = vpop.permute.xlu0 %4940
    %4942 = vrot.lane.b32.xlu0 %v4764, 64
    %v4943 = vpop.permute.xlu0 %4942
    %4944 = vrot.lane.b32.xlu0 %v4765, 64
    %v4945 = vpop.permute.xlu0 %4944
    %4946 = vrot.lane.b32.xlu0 %v4766, 64
    %v4947 = vpop.permute.xlu0 %4946
    %4948 = vrot.lane.b32.xlu0 %v4767, 64
    %v4949 = vpop.permute.xlu0 %4948
    %4950 = vrot.lane.b32.xlu0 %v4768, 64
    %v4951 = vpop.permute.xlu0 %4950
    %4952 = vrot.lane.b32.xlu0 %v4769, 64
    %v4953 = vpop.permute.xlu0 %4952
    %4954 = vrot.lane.b32.xlu0 %v4770, 64
    %v4955 = vpop.permute.xlu0 %4954
    %4956 = vrot.lane.b32.xlu0 %v4771, 64
    %v4957 = vpop.permute.xlu0 %4956
    %4958 = vrot.lane.b32.xlu0 %v4772, 64
    %v4959 = vpop.permute.xlu0 %4958
    %4960 = vrot.lane.b32.xlu0 %v4773, 64
    %v4961 = vpop.permute.xlu0 %4960
    %4962 = vrot.lane.b32.xlu0 %v4774, 64
    %v4963 = vpop.permute.xlu0 %4962
    %4964 = vrot.lane.b32.xlu0 %v4775, 64
    %v4965 = vpop.permute.xlu0 %4964
    %4966 = vrot.lane.b32.xlu0 %v4776, 64
    %v4967 = vpop.permute.xlu0 %4966
    %4968 = vrot.lane.b32.xlu0 %v4777, 64
    %v4969 = vpop.permute.xlu0 %4968
    %v5034 = vsel %vm41, %v4650, %v4843
    %v5035 = vsel %vm41, %v4651, %v4845
    %v5036 = vsel %vm41, %v4652, %v4847
    %v5037 = vsel %vm41, %v4653, %v4849
    %v5038 = vsel %vm41, %v4654, %v4851
    %v5039 = vsel %vm41, %v4655, %v4853
    %v5040 = vsel %vm41, %v4656, %v4855
    %v5041 = vsel %vm41, %v4657, %v4857
    %v5042 = vsel %vm41, %v4658, %v4859
    %v5043 = vsel %vm41, %v4659, %v4861
    %v5044 = vsel %vm41, %v4660, %v4863
    %v5045 = vsel %vm41, %v4661, %v4865
    %v5046 = vsel %vm41, %v4662, %v4867
    %v5047 = vsel %vm41, %v4663, %v4869
    %v5048 = vsel %vm41, %v4664, %v4871
    %v5049 = vsel %vm41, %v4665, %v4873
    %v5050 = vsel %vm41, %v4666, %v4875
    %v5051 = vsel %vm41, %v4667, %v4877
    %v5052 = vsel %vm41, %v4668, %v4879
    %v5053 = vsel %vm41, %v4669, %v4881
    %v5054 = vsel %vm41, %v4670, %v4883
    %v5055 = vsel %vm41, %v4671, %v4885
    %v5056 = vsel %vm41, %v4672, %v4887
    %v5057 = vsel %vm41, %v4673, %v4889
    %v5058 = vsel %vm41, %v4674, %v4891
    %v5059 = vsel %vm41, %v4675, %v4893
    %v5060 = vsel %vm41, %v4676, %v4895
    %v5061 = vsel %vm41, %v4677, %v4897
    %v5062 = vsel %vm41, %v4678, %v4899
    %v5063 = vsel %vm41, %v4679, %v4901
    %v5064 = vsel %vm41, %v4680, %v4903
    %v5065 = vsel %vm41, %v4681, %v4905
    %v5066 = vsel %vm41, %v4682, %v4907
    %v5067 = vsel %vm41, %v4683, %v4909
    %v5068 = vsel %vm41, %v4684, %v4911
    %v5069 = vsel %vm41, %v4685, %v4913
    %v5070 = vsel %vm41, %v4686, %v4915
    %v5071 = vsel %vm41, %v4687, %v4917
    %v5072 = vsel %vm41, %v4688, %v4919
    %v5073 = vsel %vm41, %v4689, %v4921
    %v5074 = vsel %vm41, %v4690, %v4923
    %v5075 = vsel %vm41, %v4691, %v4925
    %v5076 = vsel %vm41, %v4692, %v4927
    %v5077 = vsel %vm41, %v4693, %v4929
    %v5078 = vsel %vm41, %v4694, %v4931
    %v5079 = vsel %vm41, %v4695, %v4933
    %v5080 = vsel %vm41, %v4696, %v4935
    %v5081 = vsel %vm41, %v4697, %v4937
    %v5082 = vsel %vm41, %v4698, %v4939
    %v5083 = vsel %vm41, %v4699, %v4941
    %v5084 = vsel %vm41, %v4700, %v4943
    %v5085 = vsel %vm41, %v4701, %v4945
    %v5086 = vsel %vm41, %v4702, %v4947
    %v5087 = vsel %vm41, %v4703, %v4949
    %v5088 = vsel %vm41, %v4704, %v4951
    %v5089 = vsel %vm41, %v4705, %v4953
    %v5090 = vsel %vm41, %v4706, %v4955
    %v5091 = vsel %vm41, %v4707, %v4957
    %v5092 = vsel %vm41, %v4708, %v4959
    %v5093 = vsel %vm41, %v4709, %v4961
    %v5094 = vsel %vm41, %v4710, %v4963
    %v5095 = vsel %vm41, %v4711, %v4965
    %v5096 = vsel %vm41, %v4712, %v4967
    %v5097 = vsel %vm41, %v4713, %v4969
    %v5098 = vpack.c.bf16 %v5035, %v5034
    %v5099 = vpack.c.bf16 %v5037, %v5036
    %v5100 = vpack.c.bf16 %v5039, %v5038
    %v5101 = vpack.c.bf16 %v5041, %v5040
    %v5102 = vpack.c.bf16 %v5043, %v5042
    %v5103 = vpack.c.bf16 %v5045, %v5044
    %v5104 = vpack.c.bf16 %v5047, %v5046
    %v5105 = vpack.c.bf16 %v5049, %v5048
    %v5106 = vpack.c.bf16 %v5051, %v5050
    %v5107 = vpack.c.bf16 %v5053, %v5052
    %v5108 = vpack.c.bf16 %v5055, %v5054
    %v5109 = vpack.c.bf16 %v5057, %v5056
    %v5110 = vpack.c.bf16 %v5059, %v5058
    %v5111 = vpack.c.bf16 %v5061, %v5060
    %v5112 = vpack.c.bf16 %v5063, %v5062
    %v5113 = vpack.c.bf16 %v5065, %v5064
    %v5114 = vpack.c.bf16 %v5067, %v5066
    %v5115 = vpack.c.bf16 %v5069, %v5068
    %v5116 = vpack.c.bf16 %v5071, %v5070
    %v5117 = vpack.c.bf16 %v5073, %v5072
    %v5118 = vpack.c.bf16 %v5075, %v5074
    %v5119 = vpack.c.bf16 %v5077, %v5076
    %v5120 = vpack.c.bf16 %v5079, %v5078
    %v5121 = vpack.c.bf16 %v5081, %v5080
    %v5122 = vpack.c.bf16 %v5083, %v5082
    %v5123 = vpack.c.bf16 %v5085, %v5084
    %v5124 = vpack.c.bf16 %v5087, %v5086
    %v5125 = vpack.c.bf16 %v5089, %v5088
    %v5126 = vpack.c.bf16 %v5091, %v5090
    %v5127 = vpack.c.bf16 %v5093, %v5092
    %v5128 = vpack.c.bf16 %v5095, %v5094
    %v5129 = vpack.c.bf16 %v5097, %v5096
    %5130 = vst [vmem:[#allocation3] sm:$0xff] %v5098
    %5131 = vst [vmem:[#allocation3 + $0x28] sm:$0xff] %v5099
    %5132 = vst [vmem:[#allocation3 + $0x50] sm:$0xff] %v5100
    %5133 = vst [vmem:[#allocation3 + $0x78] sm:$0xff] %v5101
    %5134 = vst [vmem:[#allocation3 + $0xa0] sm:$0xff] %v5102
    %5135 = vst [vmem:[#allocation3 + $0xc8] sm:$0xff] %v5103
    %5136 = vst [vmem:[#allocation3 + $0xf0] sm:$0xff] %v5104
    %5137 = vst [vmem:[#allocation3 + $0x118] sm:$0xff] %v5105
    %5138 = vst [vmem:[#allocation3 + $0x140] sm:$0xff] %v5106
    %5139 = vst [vmem:[#allocation3 + $0x168] sm:$0xff] %v5107
    %5140 = vst [vmem:[#allocation3 + $0x190] sm:$0xff] %v5108
    %5141 = vst [vmem:[#allocation3 + $0x1b8] sm:$0xff] %v5109
    %5142 = vst [vmem:[#allocation3 + $0x1e0] sm:$0xff] %v5110
    %5143 = vst [vmem:[#allocation3 + $0x208] sm:$0xff] %v5111
    %5144 = vst [vmem:[#allocation3 + $0x230] sm:$0xff] %v5112
    %5145 = vst [vmem:[#allocation3 + $0x258] sm:$0xff] %v5113
    %5146 = vst [vmem:[#allocation3 + $0x280] sm:$0xff] %v5114
    %5147 = vst [vmem:[#allocation3 + $0x2a8] sm:$0xff] %v5115
    %5148 = vst [vmem:[#allocation3 + $0x2d0] sm:$0xff] %v5116
    %5149 = vst [vmem:[#allocation3 + $0x2f8] sm:$0xff] %v5117
    %5150 = vst [vmem:[#allocation3 + $0x320] sm:$0xff] %v5118
    %5151 = vst [vmem:[#allocation3 + $0x348] sm:$0xff] %v5119
    %5152 = vst [vmem:[#allocation3 + $0x370] sm:$0xff] %v5120
    %5153 = vst [vmem:[#allocation3 + $0x398] sm:$0xff] %v5121
    %5154 = vst [vmem:[#allocation3 + $0x3c0] sm:$0xff] %v5122
    %5155 = vst [vmem:[#allocation3 + $0x3e8] sm:$0xff] %v5123
    %5156 = vst [vmem:[#allocation3 + $0x410] sm:$0xff] %v5124
    %5157 = vst [vmem:[#allocation3 + $0x438] sm:$0xff] %v5125
    %5158 = vst [vmem:[#allocation3 + $0x460] sm:$0xff] %v5126
    %5159 = vst [vmem:[#allocation3 + $0x488] sm:$0xff] %v5127
    %5160 = vst [vmem:[#allocation3 + $0x4b0] sm:$0xff] %v5128
    %5161 = vst [vmem:[#allocation3 + $0x4d8] sm:$0xff] %v5129
    %v5162 = vld [vmem:[#allocation2 + $0x2] sm:$0xff]
    %v5163 = vld [vmem:[#allocation2 + $0xa] sm:$0xff]
    %v5164 = vld [vmem:[#allocation2 + $0x1a] sm:$0xff]
    %v5165 = vld [vmem:[#allocation2 + $0x22] sm:$0xff]
    %v5166 = vld [vmem:[#allocation2 + $0x32] sm:$0xff]
    %v5167 = vld [vmem:[#allocation2 + $0x3a] sm:$0xff]
    %v5168 = vld [vmem:[#allocation2 + $0x4a] sm:$0xff]
    %v5169 = vld [vmem:[#allocation2 + $0x52] sm:$0xff]
    %v5170 = vld [vmem:[#allocation2 + $0x62] sm:$0xff]
    %v5171 = vld [vmem:[#allocation2 + $0x6a] sm:$0xff]
    %v5172 = vld [vmem:[#allocation2 + $0x7a] sm:$0xff]
    %v5173 = vld [vmem:[#allocation2 + $0x82] sm:$0xff]
    %v5174 = vld [vmem:[#allocation2 + $0x92] sm:$0xff]
    %v5175 = vld [vmem:[#allocation2 + $0x9a] sm:$0xff]
    %v5176 = vld [vmem:[#allocation2 + $0xaa] sm:$0xff]
    %v5177 = vld [vmem:[#allocation2 + $0xb2] sm:$0xff]
    %v5178 = vld [vmem:[#allocation2 + $0xc2] sm:$0xff]
    %v5179 = vld [vmem:[#allocation2 + $0xca] sm:$0xff]
    %v5180 = vld [vmem:[#allocation2 + $0xda] sm:$0xff]
    %v5181 = vld [vmem:[#allocation2 + $0xe2] sm:$0xff]
    %v5182 = vld [vmem:[#allocation2 + $0xf2] sm:$0xff]
    %v5183 = vld [vmem:[#allocation2 + $0xfa] sm:$0xff]
    %v5184 = vld [vmem:[#allocation2 + $0x10a] sm:$0xff]
    %v5185 = vld [vmem:[#allocation2 + $0x112] sm:$0xff]
    %v5186 = vld [vmem:[#allocation2 + $0x122] sm:$0xff]
    %v5187 = vld [vmem:[#allocation2 + $0x12a] sm:$0xff]
    %v5188 = vld [vmem:[#allocation2 + $0x13a] sm:$0xff]
    %v5189 = vld [vmem:[#allocation2 + $0x142] sm:$0xff]
    %v5190 = vld [vmem:[#allocation2 + $0x152] sm:$0xff]
    %v5191 = vld [vmem:[#allocation2 + $0x15a] sm:$0xff]
    %v5192 = vld [vmem:[#allocation2 + $0x16a] sm:$0xff]
    %v5193 = vld [vmem:[#allocation2 + $0x172] sm:$0xff]
    %v5194 = vld [vmem:[#allocation2 + $0x1b2] sm:$0xff]
    %v5195 = vld [vmem:[#allocation2 + $0x1ba] sm:$0xff]
    %v5196 = vld [vmem:[#allocation2 + $0x1ca] sm:$0xff]
    %v5197 = vld [vmem:[#allocation2 + $0x1d2] sm:$0xff]
    %v5198 = vld [vmem:[#allocation2 + $0x1e2] sm:$0xff]
    %v5199 = vld [vmem:[#allocation2 + $0x1ea] sm:$0xff]
    %v5200 = vld [vmem:[#allocation2 + $0x1fa] sm:$0xff]
    %v5201 = vld [vmem:[#allocation2 + $0x202] sm:$0xff]
    %v5202 = vld [vmem:[#allocation2 + $0x212] sm:$0xff]
    %v5203 = vld [vmem:[#allocation2 + $0x21a] sm:$0xff]
    %v5204 = vld [vmem:[#allocation2 + $0x22a] sm:$0xff]
    %v5205 = vld [vmem:[#allocation2 + $0x232] sm:$0xff]
    %v5206 = vld [vmem:[#allocation2 + $0x242] sm:$0xff]
    %v5207 = vld [vmem:[#allocation2 + $0x24a] sm:$0xff]
    %v5208 = vld [vmem:[#allocation2 + $0x25a] sm:$0xff]
    %v5209 = vld [vmem:[#allocation2 + $0x262] sm:$0xff]
    %v5210 = vld [vmem:[#allocation2 + $0x272] sm:$0xff]
    %v5211 = vld [vmem:[#allocation2 + $0x27a] sm:$0xff]
    %v5212 = vld [vmem:[#allocation2 + $0x28a] sm:$0xff]
    %v5213 = vld [vmem:[#allocation2 + $0x292] sm:$0xff]
    %v5214 = vld [vmem:[#allocation2 + $0x2a2] sm:$0xff]
    %v5215 = vld [vmem:[#allocation2 + $0x2aa] sm:$0xff]
    %v5216 = vld [vmem:[#allocation2 + $0x2ba] sm:$0xff]
    %v5217 = vld [vmem:[#allocation2 + $0x2c2] sm:$0xff]
    %v5218 = vld [vmem:[#allocation2 + $0x2d2] sm:$0xff]
    %v5219 = vld [vmem:[#allocation2 + $0x2da] sm:$0xff]
    %v5220 = vld [vmem:[#allocation2 + $0x2ea] sm:$0xff]
    %v5221 = vld [vmem:[#allocation2 + $0x2f2] sm:$0xff]
    %v5222 = vld [vmem:[#allocation2 + $0x302] sm:$0xff]
    %v5223 = vld [vmem:[#allocation2 + $0x30a] sm:$0xff]
    %v5224 = vld [vmem:[#allocation2 + $0x31a] sm:$0xff]
    %v5225 = vld [vmem:[#allocation2 + $0x322] sm:$0xff]
    %v5226 = vld [vmem:[%s193] sm:$0xff]
    %v5227 = vld [vmem:[%s193 + $0x8] sm:$0xff]
    %v5228 = vld [vmem:[%s193 + $0x18] sm:$0xff]
    %v5229 = vld [vmem:[%s193 + $0x20] sm:$0xff]
    %v5230 = vld [vmem:[%s193 + $0x30] sm:$0xff]
    %v5231 = vld [vmem:[%s193 + $0x38] sm:$0xff]
    %v5232 = vld [vmem:[%s193 + $0x48] sm:$0xff]
    %v5233 = vld [vmem:[%s193 + $0x50] sm:$0xff]
    %v5234 = vld [vmem:[%s193 + $0x60] sm:$0xff]
    %v5235 = vld [vmem:[%s193 + $0x68] sm:$0xff]
    %v5236 = vld [vmem:[%s193 + $0x78] sm:$0xff]
    %v5237 = vld [vmem:[%s193 + $0x80] sm:$0xff]
    %v5238 = vld [vmem:[%s193 + $0x90] sm:$0xff]
    %v5239 = vld [vmem:[%s193 + $0x98] sm:$0xff]
    %v5240 = vld [vmem:[%s193 + $0xa8] sm:$0xff]
    %v5241 = vld [vmem:[%s193 + $0xb0] sm:$0xff]
    %v5242 = vld [vmem:[%s193 + $0xc0] sm:$0xff]
    %v5243 = vld [vmem:[%s193 + $0xc8] sm:$0xff]
    %v5244 = vld [vmem:[%s193 + $0xd8] sm:$0xff]
    %v5245 = vld [vmem:[%s193 + $0xe0] sm:$0xff]
    %v5246 = vld [vmem:[%s193 + $0xf0] sm:$0xff]
    %v5247 = vld [vmem:[%s193 + $0xf8] sm:$0xff]
    %v5248 = vld [vmem:[%s193 + $0x108] sm:$0xff]
    %v5249 = vld [vmem:[%s193 + $0x110] sm:$0xff]
    %v5250 = vld [vmem:[%s193 + $0x120] sm:$0xff]
    %v5251 = vld [vmem:[%s193 + $0x128] sm:$0xff]
    %v5252 = vld [vmem:[%s193 + $0x138] sm:$0xff]
    %v5253 = vld [vmem:[%s193 + $0x140] sm:$0xff]
    %v5254 = vld [vmem:[%s193 + $0x150] sm:$0xff]
    %v5255 = vld [vmem:[%s193 + $0x158] sm:$0xff]
    %v5256 = vld [vmem:[%s193 + $0x168] sm:$0xff]
    %v5257 = vld [vmem:[%s193 + $0x170] sm:$0xff]
    %v5258 = vld [vmem:[%s193 + $0x1b0] sm:$0xff]
    %v5259 = vld [vmem:[%s193 + $0x1b8] sm:$0xff]
    %v5260 = vld [vmem:[%s193 + $0x1c8] sm:$0xff]
    %v5261 = vld [vmem:[%s193 + $0x1d0] sm:$0xff]
    %v5262 = vld [vmem:[%s193 + $0x1e0] sm:$0xff]
    %v5263 = vld [vmem:[%s193 + $0x1e8] sm:$0xff]
    %v5264 = vld [vmem:[%s193 + $0x1f8] sm:$0xff]
    %v5265 = vld [vmem:[%s193 + $0x200] sm:$0xff]
    %v5266 = vld [vmem:[%s193 + $0x210] sm:$0xff]
    %v5267 = vld [vmem:[%s193 + $0x218] sm:$0xff]
    %v5268 = vld [vmem:[%s193 + $0x228] sm:$0xff]
    %v5269 = vld [vmem:[%s193 + $0x230] sm:$0xff]
    %v5270 = vld [vmem:[%s193 + $0x240] sm:$0xff]
    %v5271 = vld [vmem:[%s193 + $0x248] sm:$0xff]
    %v5272 = vld [vmem:[%s193 + $0x258] sm:$0xff]
    %v5273 = vld [vmem:[%s193 + $0x260] sm:$0xff]
    %v5274 = vld [vmem:[%s193 + $0x270] sm:$0xff]
    %v5275 = vld [vmem:[%s193 + $0x278] sm:$0xff]
    %v5276 = vld [vmem:[%s193 + $0x288] sm:$0xff]
    %v5277 = vld [vmem:[%s193 + $0x290] sm:$0xff]
    %v5278 = vld [vmem:[%s193 + $0x2a0] sm:$0xff]
    %v5279 = vld [vmem:[%s193 + $0x2a8] sm:$0xff]
    %v5280 = vld [vmem:[%s193 + $0x2b8] sm:$0xff]
    %v5281 = vld [vmem:[%s193 + $0x2c0] sm:$0xff]
    %v5282 = vld [vmem:[%s193 + $0x2d0] sm:$0xff]
    %v5283 = vld [vmem:[%s193 + $0x2d8] sm:$0xff]
    %v5284 = vld [vmem:[%s193 + $0x2e8] sm:$0xff]
    %v5285 = vld [vmem:[%s193 + $0x2f0] sm:$0xff]
    %v5286 = vld [vmem:[%s193 + $0x300] sm:$0xff]
    %v5287 = vld [vmem:[%s193 + $0x308] sm:$0xff]
    %v5288 = vld [vmem:[%s193 + $0x318] sm:$0xff]
    %v5289 = vld [vmem:[%s193 + $0x320] sm:$0xff]
    %5354 = vrot.lane.b32.xlu0 %v5226, 64
    %v5355 = vpop.permute.xlu0 %5354
    %5356 = vrot.lane.b32.xlu0 %v5227, 64
    %v5357 = vpop.permute.xlu0 %5356
    %5358 = vrot.lane.b32.xlu0 %v5228, 64
    %v5359 = vpop.permute.xlu0 %5358
    %5360 = vrot.lane.b32.xlu0 %v5229, 64
    %v5361 = vpop.permute.xlu0 %5360
    %5362 = vrot.lane.b32.xlu0 %v5230, 64
    %v5363 = vpop.permute.xlu0 %5362
    %5364 = vrot.lane.b32.xlu0 %v5231, 64
    %v5365 = vpop.permute.xlu0 %5364
    %5366 = vrot.lane.b32.xlu0 %v5232, 64
    %v5367 = vpop.permute.xlu0 %5366
    %5368 = vrot.lane.b32.xlu0 %v5233, 64
    %v5369 = vpop.permute.xlu0 %5368
    %5370 = vrot.lane.b32.xlu0 %v5234, 64
    %v5371 = vpop.permute.xlu0 %5370
    %5372 = vrot.lane.b32.xlu0 %v5235, 64
    %v5373 = vpop.permute.xlu0 %5372
    %5374 = vrot.lane.b32.xlu0 %v5236, 64
    %v5375 = vpop.permute.xlu0 %5374
    %5376 = vrot.lane.b32.xlu0 %v5237, 64
    %v5377 = vpop.permute.xlu0 %5376
    %5378 = vrot.lane.b32.xlu0 %v5238, 64
    %v5379 = vpop.permute.xlu0 %5378
    %5380 = vrot.lane.b32.xlu0 %v5239, 64
    %v5381 = vpop.permute.xlu0 %5380
    %5382 = vrot.lane.b32.xlu0 %v5240, 64
    %v5383 = vpop.permute.xlu0 %5382
    %5384 = vrot.lane.b32.xlu0 %v5241, 64
    %v5385 = vpop.permute.xlu0 %5384
    %5386 = vrot.lane.b32.xlu0 %v5242, 64
    %v5387 = vpop.permute.xlu0 %5386
    %5388 = vrot.lane.b32.xlu0 %v5243, 64
    %v5389 = vpop.permute.xlu0 %5388
    %5390 = vrot.lane.b32.xlu0 %v5244, 64
    %v5391 = vpop.permute.xlu0 %5390
    %5392 = vrot.lane.b32.xlu0 %v5245, 64
    %v5393 = vpop.permute.xlu0 %5392
    %5394 = vrot.lane.b32.xlu0 %v5246, 64
    %v5395 = vpop.permute.xlu0 %5394
    %5396 = vrot.lane.b32.xlu0 %v5247, 64
    %v5397 = vpop.permute.xlu0 %5396
    %5398 = vrot.lane.b32.xlu0 %v5248, 64
    %v5399 = vpop.permute.xlu0 %5398
    %5400 = vrot.lane.b32.xlu0 %v5249, 64
    %v5401 = vpop.permute.xlu0 %5400
    %5402 = vrot.lane.b32.xlu0 %v5250, 64
    %v5403 = vpop.permute.xlu0 %5402
    %5404 = vrot.lane.b32.xlu0 %v5251, 64
    %v5405 = vpop.permute.xlu0 %5404
    %5406 = vrot.lane.b32.xlu0 %v5252, 64
    %v5407 = vpop.permute.xlu0 %5406
    %5408 = vrot.lane.b32.xlu0 %v5253, 64
    %v5409 = vpop.permute.xlu0 %5408
    %5410 = vrot.lane.b32.xlu0 %v5254, 64
    %v5411 = vpop.permute.xlu0 %5410
    %5412 = vrot.lane.b32.xlu0 %v5255, 64
    %v5413 = vpop.permute.xlu0 %5412
    %5414 = vrot.lane.b32.xlu0 %v5256, 64
    %v5415 = vpop.permute.xlu0 %5414
    %5416 = vrot.lane.b32.xlu0 %v5257, 64
    %v5417 = vpop.permute.xlu0 %5416
    %5418 = vrot.lane.b32.xlu0 %v5258, 64
    %v5419 = vpop.permute.xlu0 %5418
    %5420 = vrot.lane.b32.xlu0 %v5259, 64
    %v5421 = vpop.permute.xlu0 %5420
    %5422 = vrot.lane.b32.xlu0 %v5260, 64
    %v5423 = vpop.permute.xlu0 %5422
    %5424 = vrot.lane.b32.xlu0 %v5261, 64
    %v5425 = vpop.permute.xlu0 %5424
    %5426 = vrot.lane.b32.xlu0 %v5262, 64
    %v5427 = vpop.permute.xlu0 %5426
    %5428 = vrot.lane.b32.xlu0 %v5263, 64
    %v5429 = vpop.permute.xlu0 %5428
    %5430 = vrot.lane.b32.xlu0 %v5264, 64
    %v5431 = vpop.permute.xlu0 %5430
    %5432 = vrot.lane.b32.xlu0 %v5265, 64
    %v5433 = vpop.permute.xlu0 %5432
    %5434 = vrot.lane.b32.xlu0 %v5266, 64
    %v5435 = vpop.permute.xlu0 %5434
    %5436 = vrot.lane.b32.xlu0 %v5267, 64
    %v5437 = vpop.permute.xlu0 %5436
    %5438 = vrot.lane.b32.xlu0 %v5268, 64
    %v5439 = vpop.permute.xlu0 %5438
    %5440 = vrot.lane.b32.xlu0 %v5269, 64
    %v5441 = vpop.permute.xlu0 %5440
    %5442 = vrot.lane.b32.xlu0 %v5270, 64
    %v5443 = vpop.permute.xlu0 %5442
    %5444 = vrot.lane.b32.xlu0 %v5271, 64
    %v5445 = vpop.permute.xlu0 %5444
    %5446 = vrot.lane.b32.xlu0 %v5272, 64
    %v5447 = vpop.permute.xlu0 %5446
    %5448 = vrot.lane.b32.xlu0 %v5273, 64
    %v5449 = vpop.permute.xlu0 %5448
    %5450 = vrot.lane.b32.xlu0 %v5274, 64
    %v5451 = vpop.permute.xlu0 %5450
    %5452 = vrot.lane.b32.xlu0 %v5275, 64
    %v5453 = vpop.permute.xlu0 %5452
    %5454 = vrot.lane.b32.xlu0 %v5276, 64
    %v5455 = vpop.permute.xlu0 %5454
    %5456 = vrot.lane.b32.xlu0 %v5277, 64
    %v5457 = vpop.permute.xlu0 %5456
    %5458 = vrot.lane.b32.xlu0 %v5278, 64
    %v5459 = vpop.permute.xlu0 %5458
    %5460 = vrot.lane.b32.xlu0 %v5279, 64
    %v5461 = vpop.permute.xlu0 %5460
    %5462 = vrot.lane.b32.xlu0 %v5280, 64
    %v5463 = vpop.permute.xlu0 %5462
    %5464 = vrot.lane.b32.xlu0 %v5281, 64
    %v5465 = vpop.permute.xlu0 %5464
    %5466 = vrot.lane.b32.xlu0 %v5282, 64
    %v5467 = vpop.permute.xlu0 %5466
    %5468 = vrot.lane.b32.xlu0 %v5283, 64
    %v5469 = vpop.permute.xlu0 %5468
    %5470 = vrot.lane.b32.xlu0 %v5284, 64
    %v5471 = vpop.permute.xlu0 %5470
    %5472 = vrot.lane.b32.xlu0 %v5285, 64
    %v5473 = vpop.permute.xlu0 %5472
    %5474 = vrot.lane.b32.xlu0 %v5286, 64
    %v5475 = vpop.permute.xlu0 %5474
    %5476 = vrot.lane.b32.xlu0 %v5287, 64
    %v5477 = vpop.permute.xlu0 %5476
    %5478 = vrot.lane.b32.xlu0 %v5288, 64
    %v5479 = vpop.permute.xlu0 %5478
    %5480 = vrot.lane.b32.xlu0 %v5289, 64
    %v5481 = vpop.permute.xlu0 %5480
    %v5546 = vsel %vm41, %v5162, %v5355
    %v5547 = vsel %vm41, %v5163, %v5357
    %v5548 = vsel %vm41, %v5164, %v5359
    %v5549 = vsel %vm41, %v5165, %v5361
    %v5550 = vsel %vm41, %v5166, %v5363
    %v5551 = vsel %vm41, %v5167, %v5365
    %v5552 = vsel %vm41, %v5168, %v5367
    %v5553 = vsel %vm41, %v5169, %v5369
    %v5554 = vsel %vm41, %v5170, %v5371
    %v5555 = vsel %vm41, %v5171, %v5373
    %v5556 = vsel %vm41, %v5172, %v5375
    %v5557 = vsel %vm41, %v5173, %v5377
    %v5558 = vsel %vm41, %v5174, %v5379
    %v5559 = vsel %vm41, %v5175, %v5381
    %v5560 = vsel %vm41, %v5176, %v5383
    %v5561 = vsel %vm41, %v5177, %v5385
    %v5562 = vsel %vm41, %v5178, %v5387
    %v5563 = vsel %vm41, %v5179, %v5389
    %v5564 = vsel %vm41, %v5180, %v5391
    %v5565 = vsel %vm41, %v5181, %v5393
    %v5566 = vsel %vm41, %v5182, %v5395
    %v5567 = vsel %vm41, %v5183, %v5397
    %v5568 = vsel %vm41, %v5184, %v5399
    %v5569 = vsel %vm41, %v5185, %v5401
    %v5570 = vsel %vm41, %v5186, %v5403
    %v5571 = vsel %vm41, %v5187, %v5405
    %v5572 = vsel %vm41, %v5188, %v5407
    %v5573 = vsel %vm41, %v5189, %v5409
    %v5574 = vsel %vm41, %v5190, %v5411
    %v5575 = vsel %vm41, %v5191, %v5413
    %v5576 = vsel %vm41, %v5192, %v5415
    %v5577 = vsel %vm41, %v5193, %v5417
    %v5578 = vsel %vm41, %v5194, %v5419
    %v5579 = vsel %vm41, %v5195, %v5421
    %v5580 = vsel %vm41, %v5196, %v5423
    %v5581 = vsel %vm41, %v5197, %v5425
    %v5582 = vsel %vm41, %v5198, %v5427
    %v5583 = vsel %vm41, %v5199, %v5429
    %v5584 = vsel %vm41, %v5200, %v5431
    %v5585 = vsel %vm41, %v5201, %v5433
    %v5586 = vsel %vm41, %v5202, %v5435
    %v5587 = vsel %vm41, %v5203, %v5437
    %v5588 = vsel %vm41, %v5204, %v5439
    %v5589 = vsel %vm41, %v5205, %v5441
    %v5590 = vsel %vm41, %v5206, %v5443
    %v5591 = vsel %vm41, %v5207, %v5445
    %v5592 = vsel %vm41, %v5208, %v5447
    %v5593 = vsel %vm41, %v5209, %v5449
    %v5594 = vsel %vm41, %v5210, %v5451
    %v5595 = vsel %vm41, %v5211, %v5453
    %v5596 = vsel %vm41, %v5212, %v5455
    %v5597 = vsel %vm41, %v5213, %v5457
    %v5598 = vsel %vm41, %v5214, %v5459
    %v5599 = vsel %vm41, %v5215, %v5461
    %v5600 = vsel %vm41, %v5216, %v5463
    %v5601 = vsel %vm41, %v5217, %v5465
    %v5602 = vsel %vm41, %v5218, %v5467
    %v5603 = vsel %vm41, %v5219, %v5469
    %v5604 = vsel %vm41, %v5220, %v5471
    %v5605 = vsel %vm41, %v5221, %v5473
    %v5606 = vsel %vm41, %v5222, %v5475
    %v5607 = vsel %vm41, %v5223, %v5477
    %v5608 = vsel %vm41, %v5224, %v5479
    %v5609 = vsel %vm41, %v5225, %v5481
    %v5610 = vpack.c.bf16 %v5547, %v5546
    %v5611 = vpack.c.bf16 %v5549, %v5548
    %v5612 = vpack.c.bf16 %v5551, %v5550
    %v5613 = vpack.c.bf16 %v5553, %v5552
    %v5614 = vpack.c.bf16 %v5555, %v5554
    %v5615 = vpack.c.bf16 %v5557, %v5556
    %v5616 = vpack.c.bf16 %v5559, %v5558
    %v5617 = vpack.c.bf16 %v5561, %v5560
    %v5618 = vpack.c.bf16 %v5563, %v5562
    %v5619 = vpack.c.bf16 %v5565, %v5564
    %v5620 = vpack.c.bf16 %v5567, %v5566
    %v5621 = vpack.c.bf16 %v5569, %v5568
    %v5622 = vpack.c.bf16 %v5571, %v5570
    %v5623 = vpack.c.bf16 %v5573, %v5572
    %v5624 = vpack.c.bf16 %v5575, %v5574
    %v5625 = vpack.c.bf16 %v5577, %v5576
    %v5626 = vpack.c.bf16 %v5579, %v5578
    %v5627 = vpack.c.bf16 %v5581, %v5580
    %v5628 = vpack.c.bf16 %v5583, %v5582
    %v5629 = vpack.c.bf16 %v5585, %v5584
    %v5630 = vpack.c.bf16 %v5587, %v5586
    %v5631 = vpack.c.bf16 %v5589, %v5588
    %v5632 = vpack.c.bf16 %v5591, %v5590
    %v5633 = vpack.c.bf16 %v5593, %v5592
    %v5634 = vpack.c.bf16 %v5595, %v5594
    %v5635 = vpack.c.bf16 %v5597, %v5596
    %v5636 = vpack.c.bf16 %v5599, %v5598
    %v5637 = vpack.c.bf16 %v5601, %v5600
    %v5638 = vpack.c.bf16 %v5603, %v5602
    %v5639 = vpack.c.bf16 %v5605, %v5604
    %v5640 = vpack.c.bf16 %v5607, %v5606
    %v5641 = vpack.c.bf16 %v5609, %v5608
    %5642 = vst [vmem:[#allocation3 + $0x8] sm:$0xff] %v5610
    %5643 = vst [vmem:[#allocation3 + $0x30] sm:$0xff] %v5611
    %5644 = vst [vmem:[#allocation3 + $0x58] sm:$0xff] %v5612
    %5645 = vst [vmem:[#allocation3 + $0x80] sm:$0xff] %v5613
    %5646 = vst [vmem:[#allocation3 + $0xa8] sm:$0xff] %v5614
    %5647 = vst [vmem:[#allocation3 + $0xd0] sm:$0xff] %v5615
    %5648 = vst [vmem:[#allocation3 + $0xf8] sm:$0xff] %v5616
    %5649 = vst [vmem:[#allocation3 + $0x120] sm:$0xff] %v5617
    %5650 = vst [vmem:[#allocation3 + $0x148] sm:$0xff] %v5618
    %5651 = vst [vmem:[#allocation3 + $0x170] sm:$0xff] %v5619
    %5652 = vst [vmem:[#allocation3 + $0x198] sm:$0xff] %v5620
    %5653 = vst [vmem:[#allocation3 + $0x1c0] sm:$0xff] %v5621
    %5654 = vst [vmem:[#allocation3 + $0x1e8] sm:$0xff] %v5622
    %5655 = vst [vmem:[#allocation3 + $0x210] sm:$0xff] %v5623
    %5656 = vst [vmem:[#allocation3 + $0x238] sm:$0xff] %v5624
    %5657 = vst [vmem:[#allocation3 + $0x260] sm:$0xff] %v5625
    %5658 = vst [vmem:[#allocation3 + $0x288] sm:$0xff] %v5626
    %5659 = vst [vmem:[#allocation3 + $0x2b0] sm:$0xff] %v5627
    %5660 = vst [vmem:[#allocation3 + $0x2d8] sm:$0xff] %v5628
    %5661 = vst [vmem:[#allocation3 + $0x300] sm:$0xff] %v5629
    %5662 = vst [vmem:[#allocation3 + $0x328] sm:$0xff] %v5630
    %5663 = vst [vmem:[#allocation3 + $0x350] sm:$0xff] %v5631
    %5664 = vst [vmem:[#allocation3 + $0x378] sm:$0xff] %v5632
    %5665 = vst [vmem:[#allocation3 + $0x3a0] sm:$0xff] %v5633
    %5666 = vst [vmem:[#allocation3 + $0x3c8] sm:$0xff] %v5634
    %5667 = vst [vmem:[#allocation3 + $0x3f0] sm:$0xff] %v5635
    %5668 = vst [vmem:[#allocation3 + $0x418] sm:$0xff] %v5636
    %5669 = vst [vmem:[#allocation3 + $0x440] sm:$0xff] %v5637
    %5670 = vst [vmem:[#allocation3 + $0x468] sm:$0xff] %v5638
    %5671 = vst [vmem:[#allocation3 + $0x490] sm:$0xff] %v5639
    %5672 = vst [vmem:[#allocation3 + $0x4b8] sm:$0xff] %v5640
    %5673 = vst [vmem:[#allocation3 + $0x4e0] sm:$0xff] %v5641
    %v5674 = vld [vmem:[%s193 + $0x1] sm:$0xff]
    %v5675 = vld [vmem:[%s193 + $0x9] sm:$0xff]
    %v5676 = vld [vmem:[%s193 + $0x19] sm:$0xff]
    %v5677 = vld [vmem:[%s193 + $0x21] sm:$0xff]
    %v5678 = vld [vmem:[%s193 + $0x31] sm:$0xff]
    %v5679 = vld [vmem:[%s193 + $0x39] sm:$0xff]
    %v5680 = vld [vmem:[%s193 + $0x49] sm:$0xff]
    %v5681 = vld [vmem:[%s193 + $0x51] sm:$0xff]
    %v5682 = vld [vmem:[%s193 + $0x61] sm:$0xff]
    %v5683 = vld [vmem:[%s193 + $0x69] sm:$0xff]
    %v5684 = vld [vmem:[%s193 + $0x79] sm:$0xff]
    %v5685 = vld [vmem:[%s193 + $0x81] sm:$0xff]
    %v5686 = vld [vmem:[%s193 + $0x91] sm:$0xff]
    %v5687 = vld [vmem:[%s193 + $0x99] sm:$0xff]
    %v5688 = vld [vmem:[%s193 + $0xa9] sm:$0xff]
    %v5689 = vld [vmem:[%s193 + $0xb1] sm:$0xff]
    %v5690 = vld [vmem:[%s193 + $0xc1] sm:$0xff]
    %v5691 = vld [vmem:[%s193 + $0xc9] sm:$0xff]
    %v5692 = vld [vmem:[%s193 + $0xd9] sm:$0xff]
    %v5693 = vld [vmem:[%s193 + $0xe1] sm:$0xff]
    %v5694 = vld [vmem:[%s193 + $0xf1] sm:$0xff]
    %v5695 = vld [vmem:[%s193 + $0xf9] sm:$0xff]
    %v5696 = vld [vmem:[%s193 + $0x109] sm:$0xff]
    %v5697 = vld [vmem:[%s193 + $0x111] sm:$0xff]
    %v5698 = vld [vmem:[%s193 + $0x121] sm:$0xff]
    %v5699 = vld [vmem:[%s193 + $0x129] sm:$0xff]
    %v5700 = vld [vmem:[%s193 + $0x139] sm:$0xff]
    %v5701 = vld [vmem:[%s193 + $0x141] sm:$0xff]
    %v5702 = vld [vmem:[%s193 + $0x151] sm:$0xff]
    %v5703 = vld [vmem:[%s193 + $0x159] sm:$0xff]
    %v5704 = vld [vmem:[%s193 + $0x169] sm:$0xff]
    %v5705 = vld [vmem:[%s193 + $0x171] sm:$0xff]
    %v5706 = vld [vmem:[%s193 + $0x1b1] sm:$0xff]
    %v5707 = vld [vmem:[%s193 + $0x1b9] sm:$0xff]
    %v5708 = vld [vmem:[%s193 + $0x1c9] sm:$0xff]
    %v5709 = vld [vmem:[%s193 + $0x1d1] sm:$0xff]
    %v5710 = vld [vmem:[%s193 + $0x1e1] sm:$0xff]
    %v5711 = vld [vmem:[%s193 + $0x1e9] sm:$0xff]
    %v5712 = vld [vmem:[%s193 + $0x1f9] sm:$0xff]
    %v5713 = vld [vmem:[%s193 + $0x201] sm:$0xff]
    %v5714 = vld [vmem:[%s193 + $0x211] sm:$0xff]
    %v5715 = vld [vmem:[%s193 + $0x219] sm:$0xff]
    %v5716 = vld [vmem:[%s193 + $0x229] sm:$0xff]
    %v5717 = vld [vmem:[%s193 + $0x231] sm:$0xff]
    %v5718 = vld [vmem:[%s193 + $0x241] sm:$0xff]
    %v5719 = vld [vmem:[%s193 + $0x249] sm:$0xff]
    %v5720 = vld [vmem:[%s193 + $0x259] sm:$0xff]
    %v5721 = vld [vmem:[%s193 + $0x261] sm:$0xff]
    %v5722 = vld [vmem:[%s193 + $0x271] sm:$0xff]
    %v5723 = vld [vmem:[%s193 + $0x279] sm:$0xff]
    %v5724 = vld [vmem:[%s193 + $0x289] sm:$0xff]
    %v5725 = vld [vmem:[%s193 + $0x291] sm:$0xff]
    %v5726 = vld [vmem:[%s193 + $0x2a1] sm:$0xff]
    %v5727 = vld [vmem:[%s193 + $0x2a9] sm:$0xff]
    %v5728 = vld [vmem:[%s193 + $0x2b9] sm:$0xff]
    %v5729 = vld [vmem:[%s193 + $0x2c1] sm:$0xff]
    %v5730 = vld [vmem:[%s193 + $0x2d1] sm:$0xff]
    %v5731 = vld [vmem:[%s193 + $0x2d9] sm:$0xff]
    %v5732 = vld [vmem:[%s193 + $0x2e9] sm:$0xff]
    %v5733 = vld [vmem:[%s193 + $0x2f1] sm:$0xff]
    %v5734 = vld [vmem:[%s193 + $0x301] sm:$0xff]
    %v5735 = vld [vmem:[%s193 + $0x309] sm:$0xff]
    %v5736 = vld [vmem:[%s193 + $0x319] sm:$0xff]
    %v5737 = vld [vmem:[%s193 + $0x321] sm:$0xff]
    %v5738 = vld [vmem:[%s193 + $0x2] sm:$0xff]
    %v5739 = vld [vmem:[%s193 + $0xa] sm:$0xff]
    %v5740 = vld [vmem:[%s193 + $0x1a] sm:$0xff]
    %v5741 = vld [vmem:[%s193 + $0x22] sm:$0xff]
    %v5742 = vld [vmem:[%s193 + $0x32] sm:$0xff]
    %v5743 = vld [vmem:[%s193 + $0x3a] sm:$0xff]
    %v5744 = vld [vmem:[%s193 + $0x4a] sm:$0xff]
    %v5745 = vld [vmem:[%s193 + $0x52] sm:$0xff]
    %v5746 = vld [vmem:[%s193 + $0x62] sm:$0xff]
    %v5747 = vld [vmem:[%s193 + $0x6a] sm:$0xff]
    %v5748 = vld [vmem:[%s193 + $0x7a] sm:$0xff]
    %v5749 = vld [vmem:[%s193 + $0x82] sm:$0xff]
    %v5750 = vld [vmem:[%s193 + $0x92] sm:$0xff]
    %v5751 = vld [vmem:[%s193 + $0x9a] sm:$0xff]
    %v5752 = vld [vmem:[%s193 + $0xaa] sm:$0xff]
    %v5753 = vld [vmem:[%s193 + $0xb2] sm:$0xff]
    %v5754 = vld [vmem:[%s193 + $0xc2] sm:$0xff]
    %v5755 = vld [vmem:[%s193 + $0xca] sm:$0xff]
    %v5756 = vld [vmem:[%s193 + $0xda] sm:$0xff]
    %v5757 = vld [vmem:[%s193 + $0xe2] sm:$0xff]
    %v5758 = vld [vmem:[%s193 + $0xf2] sm:$0xff]
    %v5759 = vld [vmem:[%s193 + $0xfa] sm:$0xff]
    %v5760 = vld [vmem:[%s193 + $0x10a] sm:$0xff]
    %v5761 = vld [vmem:[%s193 + $0x112] sm:$0xff]
    %v5762 = vld [vmem:[%s193 + $0x122] sm:$0xff]
    %v5763 = vld [vmem:[%s193 + $0x12a] sm:$0xff]
    %v5764 = vld [vmem:[%s193 + $0x13a] sm:$0xff]
    %v5765 = vld [vmem:[%s193 + $0x142] sm:$0xff]
    %v5766 = vld [vmem:[%s193 + $0x152] sm:$0xff]
    %v5767 = vld [vmem:[%s193 + $0x15a] sm:$0xff]
    %v5768 = vld [vmem:[%s193 + $0x16a] sm:$0xff]
    %v5769 = vld [vmem:[%s193 + $0x172] sm:$0xff]
    %v5770 = vld [vmem:[%s193 + $0x1b2] sm:$0xff]
    %v5771 = vld [vmem:[%s193 + $0x1ba] sm:$0xff]
    %v5772 = vld [vmem:[%s193 + $0x1ca] sm:$0xff]
    %v5773 = vld [vmem:[%s193 + $0x1d2] sm:$0xff]
    %v5774 = vld [vmem:[%s193 + $0x1e2] sm:$0xff]
    %v5775 = vld [vmem:[%s193 + $0x1ea] sm:$0xff]
    %v5776 = vld [vmem:[%s193 + $0x1fa] sm:$0xff]
    %v5777 = vld [vmem:[%s193 + $0x202] sm:$0xff]
    %v5778 = vld [vmem:[%s193 + $0x212] sm:$0xff]
    %v5779 = vld [vmem:[%s193 + $0x21a] sm:$0xff]
    %v5780 = vld [vmem:[%s193 + $0x22a] sm:$0xff]
    %v5781 = vld [vmem:[%s193 + $0x232] sm:$0xff]
    %v5782 = vld [vmem:[%s193 + $0x242] sm:$0xff]
    %v5783 = vld [vmem:[%s193 + $0x24a] sm:$0xff]
    %v5784 = vld [vmem:[%s193 + $0x25a] sm:$0xff]
    %v5785 = vld [vmem:[%s193 + $0x262] sm:$0xff]
    %v5786 = vld [vmem:[%s193 + $0x272] sm:$0xff]
    %v5787 = vld [vmem:[%s193 + $0x27a] sm:$0xff]
    %v5788 = vld [vmem:[%s193 + $0x28a] sm:$0xff]
    %v5789 = vld [vmem:[%s193 + $0x292] sm:$0xff]
    %v5790 = vld [vmem:[%s193 + $0x2a2] sm:$0xff]
    %v5791 = vld [vmem:[%s193 + $0x2aa] sm:$0xff]
    %v5792 = vld [vmem:[%s193 + $0x2ba] sm:$0xff]
    %v5793 = vld [vmem:[%s193 + $0x2c2] sm:$0xff]
    %v5794 = vld [vmem:[%s193 + $0x2d2] sm:$0xff]
    %v5795 = vld [vmem:[%s193 + $0x2da] sm:$0xff]
    %v5796 = vld [vmem:[%s193 + $0x2ea] sm:$0xff]
    %v5797 = vld [vmem:[%s193 + $0x2f2] sm:$0xff]
    %v5798 = vld [vmem:[%s193 + $0x302] sm:$0xff]
    %v5799 = vld [vmem:[%s193 + $0x30a] sm:$0xff]
    %v5800 = vld [vmem:[%s193 + $0x31a] sm:$0xff]
    %v5801 = vld [vmem:[%s193 + $0x322] sm:$0xff]
    %5866 = vrot.lane.b32.xlu0 %v5738, 64
    %v5867 = vpop.permute.xlu0 %5866
    %5868 = vrot.lane.b32.xlu0 %v5739, 64
    %v5869 = vpop.permute.xlu0 %5868
    %5870 = vrot.lane.b32.xlu0 %v5740, 64
    %v5871 = vpop.permute.xlu0 %5870
    %5872 = vrot.lane.b32.xlu0 %v5741, 64
    %v5873 = vpop.permute.xlu0 %5872
    %5874 = vrot.lane.b32.xlu0 %v5742, 64
    %v5875 = vpop.permute.xlu0 %5874
    %5876 = vrot.lane.b32.xlu0 %v5743, 64
    %v5877 = vpop.permute.xlu0 %5876
    %5878 = vrot.lane.b32.xlu0 %v5744, 64
    %v5879 = vpop.permute.xlu0 %5878
    %5880 = vrot.lane.b32.xlu0 %v5745, 64
    %v5881 = vpop.permute.xlu0 %5880
    %5882 = vrot.lane.b32.xlu0 %v5746, 64
    %v5883 = vpop.permute.xlu0 %5882
    %5884 = vrot.lane.b32.xlu0 %v5747, 64
    %v5885 = vpop.permute.xlu0 %5884
    %5886 = vrot.lane.b32.xlu0 %v5748, 64
    %v5887 = vpop.permute.xlu0 %5886
    %5888 = vrot.lane.b32.xlu0 %v5749, 64
    %v5889 = vpop.permute.xlu0 %5888
    %5890 = vrot.lane.b32.xlu0 %v5750, 64
    %v5891 = vpop.permute.xlu0 %5890
    %5892 = vrot.lane.b32.xlu0 %v5751, 64
    %v5893 = vpop.permute.xlu0 %5892
    %5894 = vrot.lane.b32.xlu0 %v5752, 64
    %v5895 = vpop.permute.xlu0 %5894
    %5896 = vrot.lane.b32.xlu0 %v5753, 64
    %v5897 = vpop.permute.xlu0 %5896
    %5898 = vrot.lane.b32.xlu0 %v5754, 64
    %v5899 = vpop.permute.xlu0 %5898
    %5900 = vrot.lane.b32.xlu0 %v5755, 64
    %v5901 = vpop.permute.xlu0 %5900
    %5902 = vrot.lane.b32.xlu0 %v5756, 64
    %v5903 = vpop.permute.xlu0 %5902
    %5904 = vrot.lane.b32.xlu0 %v5757, 64
    %v5905 = vpop.permute.xlu0 %5904
    %5906 = vrot.lane.b32.xlu0 %v5758, 64
    %v5907 = vpop.permute.xlu0 %5906
    %5908 = vrot.lane.b32.xlu0 %v5759, 64
    %v5909 = vpop.permute.xlu0 %5908
    %5910 = vrot.lane.b32.xlu0 %v5760, 64
    %v5911 = vpop.permute.xlu0 %5910
    %5912 = vrot.lane.b32.xlu0 %v5761, 64
    %v5913 = vpop.permute.xlu0 %5912
    %5914 = vrot.lane.b32.xlu0 %v5762, 64
    %v5915 = vpop.permute.xlu0 %5914
    %5916 = vrot.lane.b32.xlu0 %v5763, 64
    %v5917 = vpop.permute.xlu0 %5916
    %5918 = vrot.lane.b32.xlu0 %v5764, 64
    %v5919 = vpop.permute.xlu0 %5918
    %5920 = vrot.lane.b32.xlu0 %v5765, 64
    %v5921 = vpop.permute.xlu0 %5920
    %5922 = vrot.lane.b32.xlu0 %v5766, 64
    %v5923 = vpop.permute.xlu0 %5922
    %5924 = vrot.lane.b32.xlu0 %v5767, 64
    %v5925 = vpop.permute.xlu0 %5924
    %5926 = vrot.lane.b32.xlu0 %v5768, 64
    %v5927 = vpop.permute.xlu0 %5926
    %5928 = vrot.lane.b32.xlu0 %v5769, 64
    %v5929 = vpop.permute.xlu0 %5928
    %5930 = vrot.lane.b32.xlu0 %v5770, 64
    %v5931 = vpop.permute.xlu0 %5930
    %5932 = vrot.lane.b32.xlu0 %v5771, 64
    %v5933 = vpop.permute.xlu0 %5932
    %5934 = vrot.lane.b32.xlu0 %v5772, 64
    %v5935 = vpop.permute.xlu0 %5934
    %5936 = vrot.lane.b32.xlu0 %v5773, 64
    %v5937 = vpop.permute.xlu0 %5936
    %5938 = vrot.lane.b32.xlu0 %v5774, 64
    %v5939 = vpop.permute.xlu0 %5938
    %5940 = vrot.lane.b32.xlu0 %v5775, 64
    %v5941 = vpop.permute.xlu0 %5940
    %5942 = vrot.lane.b32.xlu0 %v5776, 64
    %v5943 = vpop.permute.xlu0 %5942
    %5944 = vrot.lane.b32.xlu0 %v5777, 64
    %v5945 = vpop.permute.xlu0 %5944
    %5946 = vrot.lane.b32.xlu0 %v5778, 64
    %v5947 = vpop.permute.xlu0 %5946
    %5948 = vrot.lane.b32.xlu0 %v5779, 64
    %v5949 = vpop.permute.xlu0 %5948
    %5950 = vrot.lane.b32.xlu0 %v5780, 64
    %v5951 = vpop.permute.xlu0 %5950
    %5952 = vrot.lane.b32.xlu0 %v5781, 64
    %v5953 = vpop.permute.xlu0 %5952
    %5954 = vrot.lane.b32.xlu0 %v5782, 64
    %v5955 = vpop.permute.xlu0 %5954
    %5956 = vrot.lane.b32.xlu0 %v5783, 64
    %v5957 = vpop.permute.xlu0 %5956
    %5958 = vrot.lane.b32.xlu0 %v5784, 64
    %v5959 = vpop.permute.xlu0 %5958
    %5960 = vrot.lane.b32.xlu0 %v5785, 64
    %v5961 = vpop.permute.xlu0 %5960
    %5962 = vrot.lane.b32.xlu0 %v5786, 64
    %v5963 = vpop.permute.xlu0 %5962
    %5964 = vrot.lane.b32.xlu0 %v5787, 64
    %v5965 = vpop.permute.xlu0 %5964
    %5966 = vrot.lane.b32.xlu0 %v5788, 64
    %v5967 = vpop.permute.xlu0 %5966
    %5968 = vrot.lane.b32.xlu0 %v5789, 64
    %v5969 = vpop.permute.xlu0 %5968
    %5970 = vrot.lane.b32.xlu0 %v5790, 64
    %v5971 = vpop.permute.xlu0 %5970
    %5972 = vrot.lane.b32.xlu0 %v5791, 64
    %v5973 = vpop.permute.xlu0 %5972
    %5974 = vrot.lane.b32.xlu0 %v5792, 64
    %v5975 = vpop.permute.xlu0 %5974
    %5976 = vrot.lane.b32.xlu0 %v5793, 64
    %v5977 = vpop.permute.xlu0 %5976
    %5978 = vrot.lane.b32.xlu0 %v5794, 64
    %v5979 = vpop.permute.xlu0 %5978
    %5980 = vrot.lane.b32.xlu0 %v5795, 64
    %v5981 = vpop.permute.xlu0 %5980
    %5982 = vrot.lane.b32.xlu0 %v5796, 64
    %v5983 = vpop.permute.xlu0 %5982
    %5984 = vrot.lane.b32.xlu0 %v5797, 64
    %v5985 = vpop.permute.xlu0 %5984
    %5986 = vrot.lane.b32.xlu0 %v5798, 64
    %v5987 = vpop.permute.xlu0 %5986
    %5988 = vrot.lane.b32.xlu0 %v5799, 64
    %v5989 = vpop.permute.xlu0 %5988
    %5990 = vrot.lane.b32.xlu0 %v5800, 64
    %v5991 = vpop.permute.xlu0 %5990
    %5992 = vrot.lane.b32.xlu0 %v5801, 64
    %v5993 = vpop.permute.xlu0 %5992
    %v6058 = vsel %vm41, %v5674, %v5867
    %v6059 = vsel %vm41, %v5675, %v5869
    %v6060 = vsel %vm41, %v5676, %v5871
    %v6061 = vsel %vm41, %v5677, %v5873
    %v6062 = vsel %vm41, %v5678, %v5875
    %v6063 = vsel %vm41, %v5679, %v5877
    %v6064 = vsel %vm41, %v5680, %v5879
    %v6065 = vsel %vm41, %v5681, %v5881
    %v6066 = vsel %vm41, %v5682, %v5883
    %v6067 = vsel %vm41, %v5683, %v5885
    %v6068 = vsel %vm41, %v5684, %v5887
    %v6069 = vsel %vm41, %v5685, %v5889
    %v6070 = vsel %vm41, %v5686, %v5891
    %v6071 = vsel %vm41, %v5687, %v5893
    %v6072 = vsel %vm41, %v5688, %v5895
    %v6073 = vsel %vm41, %v5689, %v5897
    %v6074 = vsel %vm41, %v5690, %v5899
    %v6075 = vsel %vm41, %v5691, %v5901
    %v6076 = vsel %vm41, %v5692, %v5903
    %v6077 = vsel %vm41, %v5693, %v5905
    %v6078 = vsel %vm41, %v5694, %v5907
    %v6079 = vsel %vm41, %v5695, %v5909
    %v6080 = vsel %vm41, %v5696, %v5911
    %v6081 = vsel %vm41, %v5697, %v5913
    %v6082 = vsel %vm41, %v5698, %v5915
    %v6083 = vsel %vm41, %v5699, %v5917
    %v6084 = vsel %vm41, %v5700, %v5919
    %v6085 = vsel %vm41, %v5701, %v5921
    %v6086 = vsel %vm41, %v5702, %v5923
    %v6087 = vsel %vm41, %v5703, %v5925
    %v6088 = vsel %vm41, %v5704, %v5927
    %v6089 = vsel %vm41, %v5705, %v5929
    %v6090 = vsel %vm41, %v5706, %v5931
    %v6091 = vsel %vm41, %v5707, %v5933
    %v6092 = vsel %vm41, %v5708, %v5935
    %v6093 = vsel %vm41, %v5709, %v5937
    %v6094 = vsel %vm41, %v5710, %v5939
    %v6095 = vsel %vm41, %v5711, %v5941
    %v6096 = vsel %vm41, %v5712, %v5943
    %v6097 = vsel %vm41, %v5713, %v5945
    %v6098 = vsel %vm41, %v5714, %v5947
    %v6099 = vsel %vm41, %v5715, %v5949
    %v6100 = vsel %vm41, %v5716, %v5951
    %v6101 = vsel %vm41, %v5717, %v5953
    %v6102 = vsel %vm41, %v5718, %v5955
    %v6103 = vsel %vm41, %v5719, %v5957
    %v6104 = vsel %vm41, %v5720, %v5959
    %v6105 = vsel %vm41, %v5721, %v5961
    %v6106 = vsel %vm41, %v5722, %v5963
    %v6107 = vsel %vm41, %v5723, %v5965
    %v6108 = vsel %vm41, %v5724, %v5967
    %v6109 = vsel %vm41, %v5725, %v5969
    %v6110 = vsel %vm41, %v5726, %v5971
    %v6111 = vsel %vm41, %v5727, %v5973
    %v6112 = vsel %vm41, %v5728, %v5975
    %v6113 = vsel %vm41, %v5729, %v5977
    %v6114 = vsel %vm41, %v5730, %v5979
    %v6115 = vsel %vm41, %v5731, %v5981
    %v6116 = vsel %vm41, %v5732, %v5983
    %v6117 = vsel %vm41, %v5733, %v5985
    %v6118 = vsel %vm41, %v5734, %v5987
    %v6119 = vsel %vm41, %v5735, %v5989
    %v6120 = vsel %vm41, %v5736, %v5991
    %v6121 = vsel %vm41, %v5737, %v5993
    %v6122 = vpack.c.bf16 %v6059, %v6058
    %v6123 = vpack.c.bf16 %v6061, %v6060
    %v6124 = vpack.c.bf16 %v6063, %v6062
    %v6125 = vpack.c.bf16 %v6065, %v6064
    %v6126 = vpack.c.bf16 %v6067, %v6066
    %v6127 = vpack.c.bf16 %v6069, %v6068
    %v6128 = vpack.c.bf16 %v6071, %v6070
    %v6129 = vpack.c.bf16 %v6073, %v6072
    %v6130 = vpack.c.bf16 %v6075, %v6074
    %v6131 = vpack.c.bf16 %v6077, %v6076
    %v6132 = vpack.c.bf16 %v6079, %v6078
    %v6133 = vpack.c.bf16 %v6081, %v6080
    %v6134 = vpack.c.bf16 %v6083, %v6082
    %v6135 = vpack.c.bf16 %v6085, %v6084
    %v6136 = vpack.c.bf16 %v6087, %v6086
    %v6137 = vpack.c.bf16 %v6089, %v6088
    %v6138 = vpack.c.bf16 %v6091, %v6090
    %v6139 = vpack.c.bf16 %v6093, %v6092
    %v6140 = vpack.c.bf16 %v6095, %v6094
    %v6141 = vpack.c.bf16 %v6097, %v6096
    %v6142 = vpack.c.bf16 %v6099, %v6098
    %v6143 = vpack.c.bf16 %v6101, %v6100
    %v6144 = vpack.c.bf16 %v6103, %v6102
    %v6145 = vpack.c.bf16 %v6105, %v6104
    %v6146 = vpack.c.bf16 %v6107, %v6106
    %v6147 = vpack.c.bf16 %v6109, %v6108
    %v6148 = vpack.c.bf16 %v6111, %v6110
    %v6149 = vpack.c.bf16 %v6113, %v6112
    %v6150 = vpack.c.bf16 %v6115, %v6114
    %v6151 = vpack.c.bf16 %v6117, %v6116
    %v6152 = vpack.c.bf16 %v6119, %v6118
    %v6153 = vpack.c.bf16 %v6121, %v6120
    %6154 = vst [vmem:[#allocation3 + $0x10] sm:$0xff] %v6122
    %6155 = vst [vmem:[#allocation3 + $0x38] sm:$0xff] %v6123
    %6156 = vst [vmem:[#allocation3 + $0x60] sm:$0xff] %v6124
    %6157 = vst [vmem:[#allocation3 + $0x88] sm:$0xff] %v6125
    %6158 = vst [vmem:[#allocation3 + $0xb0] sm:$0xff] %v6126
    %6159 = vst [vmem:[#allocation3 + $0xd8] sm:$0xff] %v6127
    %6160 = vst [vmem:[#allocation3 + $0x100] sm:$0xff] %v6128
    %6161 = vst [vmem:[#allocation3 + $0x128] sm:$0xff] %v6129
    %6162 = vst [vmem:[#allocation3 + $0x150] sm:$0xff] %v6130
    %6163 = vst [vmem:[#allocation3 + $0x178] sm:$0xff] %v6131
    %6164 = vst [vmem:[#allocation3 + $0x1a0] sm:$0xff] %v6132
    %6165 = vst [vmem:[#allocation3 + $0x1c8] sm:$0xff] %v6133
    %6166 = vst [vmem:[#allocation3 + $0x1f0] sm:$0xff] %v6134
    %6167 = vst [vmem:[#allocation3 + $0x218] sm:$0xff] %v6135
    %6168 = vst [vmem:[#allocation3 + $0x240] sm:$0xff] %v6136
    %6169 = vst [vmem:[#allocation3 + $0x268] sm:$0xff] %v6137
    %6170 = vst [vmem:[#allocation3 + $0x290] sm:$0xff] %v6138
    %6171 = vst [vmem:[#allocation3 + $0x2b8] sm:$0xff] %v6139
    %6172 = vst [vmem:[#allocation3 + $0x2e0] sm:$0xff] %v6140
    %6173 = vst [vmem:[#allocation3 + $0x308] sm:$0xff] %v6141
    %6174 = vst [vmem:[#allocation3 + $0x330] sm:$0xff] %v6142
    %6175 = vst [vmem:[#allocation3 + $0x358] sm:$0xff] %v6143
    %6176 = vst [vmem:[#allocation3 + $0x380] sm:$0xff] %v6144
    %6177 = vst [vmem:[#allocation3 + $0x3a8] sm:$0xff] %v6145
    %6178 = vst [vmem:[#allocation3 + $0x3d0] sm:$0xff] %v6146
    %6179 = vst [vmem:[#allocation3 + $0x3f8] sm:$0xff] %v6147
    %6180 = vst [vmem:[#allocation3 + $0x420] sm:$0xff] %v6148
    %6181 = vst [vmem:[#allocation3 + $0x448] sm:$0xff] %v6149
    %6182 = vst [vmem:[#allocation3 + $0x470] sm:$0xff] %v6150
    %6183 = vst [vmem:[#allocation3 + $0x498] sm:$0xff] %v6151
    %6184 = vst [vmem:[#allocation3 + $0x4c0] sm:$0xff] %v6152
    %6185 = vst [vmem:[#allocation3 + $0x4e8] sm:$0xff] %v6153
    %v6186 = vld [vmem:[%s1794] sm:$0xff]
    %v6187 = vld [vmem:[%s1794 + $0x8] sm:$0xff]
    %v6188 = vld [vmem:[%s1794 + $0x18] sm:$0xff]
    %v6189 = vld [vmem:[%s1794 + $0x20] sm:$0xff]
    %v6190 = vld [vmem:[%s1794 + $0x30] sm:$0xff]
    %v6191 = vld [vmem:[%s1794 + $0x38] sm:$0xff]
    %v6192 = vld [vmem:[%s1794 + $0x48] sm:$0xff]
    %v6193 = vld [vmem:[%s1794 + $0x50] sm:$0xff]
    %v6194 = vld [vmem:[%s1794 + $0x60] sm:$0xff]
    %v6195 = vld [vmem:[%s1794 + $0x68] sm:$0xff]
    %v6196 = vld [vmem:[%s1794 + $0x78] sm:$0xff]
    %v6197 = vld [vmem:[%s1794 + $0x80] sm:$0xff]
    %v6198 = vld [vmem:[%s1794 + $0x90] sm:$0xff]
    %v6199 = vld [vmem:[%s1794 + $0x98] sm:$0xff]
    %v6200 = vld [vmem:[%s1794 + $0xa8] sm:$0xff]
    %v6201 = vld [vmem:[%s1794 + $0xb0] sm:$0xff]
    %v6202 = vld [vmem:[%s1794 + $0xc0] sm:$0xff]
    %v6203 = vld [vmem:[%s1794 + $0xc8] sm:$0xff]
    %v6204 = vld [vmem:[%s1794 + $0xd8] sm:$0xff]
    %v6205 = vld [vmem:[%s1794 + $0xe0] sm:$0xff]
    %v6206 = vld [vmem:[%s1794 + $0xf0] sm:$0xff]
    %v6207 = vld [vmem:[%s1794 + $0xf8] sm:$0xff]
    %v6208 = vld [vmem:[%s1794 + $0x108] sm:$0xff]
    %v6209 = vld [vmem:[%s1794 + $0x110] sm:$0xff]
    %v6210 = vld [vmem:[%s1794 + $0x120] sm:$0xff]
    %v6211 = vld [vmem:[%s1794 + $0x128] sm:$0xff]
    %v6212 = vld [vmem:[%s1794 + $0x138] sm:$0xff]
    %v6213 = vld [vmem:[%s1794 + $0x140] sm:$0xff]
    %v6214 = vld [vmem:[%s1794 + $0x150] sm:$0xff]
    %v6215 = vld [vmem:[%s1794 + $0x158] sm:$0xff]
    %v6216 = vld [vmem:[%s1794 + $0x168] sm:$0xff]
    %v6217 = vld [vmem:[%s1794 + $0x170] sm:$0xff]
    %v6218 = vld [vmem:[%s1794 + $0x1b0] sm:$0xff]
    %v6219 = vld [vmem:[%s1794 + $0x1b8] sm:$0xff]
    %v6220 = vld [vmem:[%s1794 + $0x1c8] sm:$0xff]
    %v6221 = vld [vmem:[%s1794 + $0x1d0] sm:$0xff]
    %v6222 = vld [vmem:[%s1794 + $0x1e0] sm:$0xff]
    %v6223 = vld [vmem:[%s1794 + $0x1e8] sm:$0xff]
    %v6224 = vld [vmem:[%s1794 + $0x1f8] sm:$0xff]
    %v6225 = vld [vmem:[%s1794 + $0x200] sm:$0xff]
    %v6226 = vld [vmem:[%s1794 + $0x210] sm:$0xff]
    %v6227 = vld [vmem:[%s1794 + $0x218] sm:$0xff]
    %v6228 = vld [vmem:[%s1794 + $0x228] sm:$0xff]
    %v6229 = vld [vmem:[%s1794 + $0x230] sm:$0xff]
    %v6230 = vld [vmem:[%s1794 + $0x240] sm:$0xff]
    %v6231 = vld [vmem:[%s1794 + $0x248] sm:$0xff]
    %v6232 = vld [vmem:[%s1794 + $0x258] sm:$0xff]
    %v6233 = vld [vmem:[%s1794 + $0x260] sm:$0xff]
    %v6234 = vld [vmem:[%s1794 + $0x270] sm:$0xff]
    %v6235 = vld [vmem:[%s1794 + $0x278] sm:$0xff]
    %v6236 = vld [vmem:[%s1794 + $0x288] sm:$0xff]
    %v6237 = vld [vmem:[%s1794 + $0x290] sm:$0xff]
    %v6238 = vld [vmem:[%s1794 + $0x2a0] sm:$0xff]
    %v6239 = vld [vmem:[%s1794 + $0x2a8] sm:$0xff]
    %v6240 = vld [vmem:[%s1794 + $0x2b8] sm:$0xff]
    %v6241 = vld [vmem:[%s1794 + $0x2c0] sm:$0xff]
    %v6242 = vld [vmem:[%s1794 + $0x2d0] sm:$0xff]
    %v6243 = vld [vmem:[%s1794 + $0x2d8] sm:$0xff]
    %v6244 = vld [vmem:[%s1794 + $0x2e8] sm:$0xff]
    %v6245 = vld [vmem:[%s1794 + $0x2f0] sm:$0xff]
    %v6246 = vld [vmem:[%s1794 + $0x300] sm:$0xff]
    %v6247 = vld [vmem:[%s1794 + $0x308] sm:$0xff]
    %v6248 = vld [vmem:[%s1794 + $0x318] sm:$0xff]
    %v6249 = vld [vmem:[%s1794 + $0x320] sm:$0xff]
    %v6250 = vld [vmem:[%s1794 + $0x1] sm:$0xff]
    %v6251 = vld [vmem:[%s1794 + $0x9] sm:$0xff]
    %v6252 = vld [vmem:[%s1794 + $0x19] sm:$0xff]
    %v6253 = vld [vmem:[%s1794 + $0x21] sm:$0xff]
    %v6254 = vld [vmem:[%s1794 + $0x31] sm:$0xff]
    %v6255 = vld [vmem:[%s1794 + $0x39] sm:$0xff]
    %v6256 = vld [vmem:[%s1794 + $0x49] sm:$0xff]
    %v6257 = vld [vmem:[%s1794 + $0x51] sm:$0xff]
    %v6258 = vld [vmem:[%s1794 + $0x61] sm:$0xff]
    %v6259 = vld [vmem:[%s1794 + $0x69] sm:$0xff]
    %v6260 = vld [vmem:[%s1794 + $0x79] sm:$0xff]
    %v6261 = vld [vmem:[%s1794 + $0x81] sm:$0xff]
    %v6262 = vld [vmem:[%s1794 + $0x91] sm:$0xff]
    %v6263 = vld [vmem:[%s1794 + $0x99] sm:$0xff]
    %v6264 = vld [vmem:[%s1794 + $0xa9] sm:$0xff]
    %v6265 = vld [vmem:[%s1794 + $0xb1] sm:$0xff]
    %v6266 = vld [vmem:[%s1794 + $0xc1] sm:$0xff]
    %v6267 = vld [vmem:[%s1794 + $0xc9] sm:$0xff]
    %v6268 = vld [vmem:[%s1794 + $0xd9] sm:$0xff]
    %v6269 = vld [vmem:[%s1794 + $0xe1] sm:$0xff]
    %v6270 = vld [vmem:[%s1794 + $0xf1] sm:$0xff]
    %v6271 = vld [vmem:[%s1794 + $0xf9] sm:$0xff]
    %v6272 = vld [vmem:[%s1794 + $0x109] sm:$0xff]
    %v6273 = vld [vmem:[%s1794 + $0x111] sm:$0xff]
    %v6274 = vld [vmem:[%s1794 + $0x121] sm:$0xff]
    %v6275 = vld [vmem:[%s1794 + $0x129] sm:$0xff]
    %v6276 = vld [vmem:[%s1794 + $0x139] sm:$0xff]
    %v6277 = vld [vmem:[%s1794 + $0x141] sm:$0xff]
    %v6278 = vld [vmem:[%s1794 + $0x151] sm:$0xff]
    %v6279 = vld [vmem:[%s1794 + $0x159] sm:$0xff]
    %v6280 = vld [vmem:[%s1794 + $0x169] sm:$0xff]
    %v6281 = vld [vmem:[%s1794 + $0x171] sm:$0xff]
    %v6282 = vld [vmem:[%s1794 + $0x1b1] sm:$0xff]
    %v6283 = vld [vmem:[%s1794 + $0x1b9] sm:$0xff]
    %v6284 = vld [vmem:[%s1794 + $0x1c9] sm:$0xff]
    %v6285 = vld [vmem:[%s1794 + $0x1d1] sm:$0xff]
    %v6286 = vld [vmem:[%s1794 + $0x1e1] sm:$0xff]
    %v6287 = vld [vmem:[%s1794 + $0x1e9] sm:$0xff]
    %v6288 = vld [vmem:[%s1794 + $0x1f9] sm:$0xff]
    %v6289 = vld [vmem:[%s1794 + $0x201] sm:$0xff]
    %v6290 = vld [vmem:[%s1794 + $0x211] sm:$0xff]
    %v6291 = vld [vmem:[%s1794 + $0x219] sm:$0xff]
    %v6292 = vld [vmem:[%s1794 + $0x229] sm:$0xff]
    %v6293 = vld [vmem:[%s1794 + $0x231] sm:$0xff]
    %v6294 = vld [vmem:[%s1794 + $0x241] sm:$0xff]
    %v6295 = vld [vmem:[%s1794 + $0x249] sm:$0xff]
    %v6296 = vld [vmem:[%s1794 + $0x259] sm:$0xff]
    %v6297 = vld [vmem:[%s1794 + $0x261] sm:$0xff]
    %v6298 = vld [vmem:[%s1794 + $0x271] sm:$0xff]
    %v6299 = vld [vmem:[%s1794 + $0x279] sm:$0xff]
    %v6300 = vld [vmem:[%s1794 + $0x289] sm:$0xff]
    %v6301 = vld [vmem:[%s1794 + $0x291] sm:$0xff]
    %v6302 = vld [vmem:[%s1794 + $0x2a1] sm:$0xff]
    %v6303 = vld [vmem:[%s1794 + $0x2a9] sm:$0xff]
    %v6304 = vld [vmem:[%s1794 + $0x2b9] sm:$0xff]
    %v6305 = vld [vmem:[%s1794 + $0x2c1] sm:$0xff]
    %v6306 = vld [vmem:[%s1794 + $0x2d1] sm:$0xff]
    %v6307 = vld [vmem:[%s1794 + $0x2d9] sm:$0xff]
    %v6308 = vld [vmem:[%s1794 + $0x2e9] sm:$0xff]
    %v6309 = vld [vmem:[%s1794 + $0x2f1] sm:$0xff]
    %v6310 = vld [vmem:[%s1794 + $0x301] sm:$0xff]
    %v6311 = vld [vmem:[%s1794 + $0x309] sm:$0xff]
    %v6312 = vld [vmem:[%s1794 + $0x319] sm:$0xff]
    %v6313 = vld [vmem:[%s1794 + $0x321] sm:$0xff]
    %6378 = vrot.lane.b32.xlu0 %v6250, 64
    %v6379 = vpop.permute.xlu0 %6378
    %6380 = vrot.lane.b32.xlu0 %v6251, 64
    %v6381 = vpop.permute.xlu0 %6380
    %6382 = vrot.lane.b32.xlu0 %v6252, 64
    %v6383 = vpop.permute.xlu0 %6382
    %6384 = vrot.lane.b32.xlu0 %v6253, 64
    %v6385 = vpop.permute.xlu0 %6384
    %6386 = vrot.lane.b32.xlu0 %v6254, 64
    %v6387 = vpop.permute.xlu0 %6386
    %6388 = vrot.lane.b32.xlu0 %v6255, 64
    %v6389 = vpop.permute.xlu0 %6388
    %6390 = vrot.lane.b32.xlu0 %v6256, 64
    %v6391 = vpop.permute.xlu0 %6390
    %6392 = vrot.lane.b32.xlu0 %v6257, 64
    %v6393 = vpop.permute.xlu0 %6392
    %6394 = vrot.lane.b32.xlu0 %v6258, 64
    %v6395 = vpop.permute.xlu0 %6394
    %6396 = vrot.lane.b32.xlu0 %v6259, 64
    %v6397 = vpop.permute.xlu0 %6396
    %6398 = vrot.lane.b32.xlu0 %v6260, 64
    %v6399 = vpop.permute.xlu0 %6398
    %6400 = vrot.lane.b32.xlu0 %v6261, 64
    %v6401 = vpop.permute.xlu0 %6400
    %6402 = vrot.lane.b32.xlu0 %v6262, 64
    %v6403 = vpop.permute.xlu0 %6402
    %6404 = vrot.lane.b32.xlu0 %v6263, 64
    %v6405 = vpop.permute.xlu0 %6404
    %6406 = vrot.lane.b32.xlu0 %v6264, 64
    %v6407 = vpop.permute.xlu0 %6406
    %6408 = vrot.lane.b32.xlu0 %v6265, 64
    %v6409 = vpop.permute.xlu0 %6408
    %6410 = vrot.lane.b32.xlu0 %v6266, 64
    %v6411 = vpop.permute.xlu0 %6410
    %6412 = vrot.lane.b32.xlu0 %v6267, 64
    %v6413 = vpop.permute.xlu0 %6412
    %6414 = vrot.lane.b32.xlu0 %v6268, 64
    %v6415 = vpop.permute.xlu0 %6414
    %6416 = vrot.lane.b32.xlu0 %v6269, 64
    %v6417 = vpop.permute.xlu0 %6416
    %6418 = vrot.lane.b32.xlu0 %v6270, 64
    %v6419 = vpop.permute.xlu0 %6418
    %6420 = vrot.lane.b32.xlu0 %v6271, 64
    %v6421 = vpop.permute.xlu0 %6420
    %6422 = vrot.lane.b32.xlu0 %v6272, 64
    %v6423 = vpop.permute.xlu0 %6422
    %6424 = vrot.lane.b32.xlu0 %v6273, 64
    %v6425 = vpop.permute.xlu0 %6424
    %6426 = vrot.lane.b32.xlu0 %v6274, 64
    %v6427 = vpop.permute.xlu0 %6426
    %6428 = vrot.lane.b32.xlu0 %v6275, 64
    %v6429 = vpop.permute.xlu0 %6428
    %6430 = vrot.lane.b32.xlu0 %v6276, 64
    %v6431 = vpop.permute.xlu0 %6430
    %6432 = vrot.lane.b32.xlu0 %v6277, 64
    %v6433 = vpop.permute.xlu0 %6432
    %6434 = vrot.lane.b32.xlu0 %v6278, 64
    %v6435 = vpop.permute.xlu0 %6434
    %6436 = vrot.lane.b32.xlu0 %v6279, 64
    %v6437 = vpop.permute.xlu0 %6436
    %6438 = vrot.lane.b32.xlu0 %v6280, 64
    %v6439 = vpop.permute.xlu0 %6438
    %6440 = vrot.lane.b32.xlu0 %v6281, 64
    %v6441 = vpop.permute.xlu0 %6440
    %6442 = vrot.lane.b32.xlu0 %v6282, 64
    %v6443 = vpop.permute.xlu0 %6442
    %6444 = vrot.lane.b32.xlu0 %v6283, 64
    %v6445 = vpop.permute.xlu0 %6444
    %6446 = vrot.lane.b32.xlu0 %v6284, 64
    %v6447 = vpop.permute.xlu0 %6446
    %6448 = vrot.lane.b32.xlu0 %v6285, 64
    %v6449 = vpop.permute.xlu0 %6448
    %6450 = vrot.lane.b32.xlu0 %v6286, 64
    %v6451 = vpop.permute.xlu0 %6450
    %6452 = vrot.lane.b32.xlu0 %v6287, 64
    %v6453 = vpop.permute.xlu0 %6452
    %6454 = vrot.lane.b32.xlu0 %v6288, 64
    %v6455 = vpop.permute.xlu0 %6454
    %6456 = vrot.lane.b32.xlu0 %v6289, 64
    %v6457 = vpop.permute.xlu0 %6456
    %6458 = vrot.lane.b32.xlu0 %v6290, 64
    %v6459 = vpop.permute.xlu0 %6458
    %6460 = vrot.lane.b32.xlu0 %v6291, 64
    %v6461 = vpop.permute.xlu0 %6460
    %6462 = vrot.lane.b32.xlu0 %v6292, 64
    %v6463 = vpop.permute.xlu0 %6462
    %6464 = vrot.lane.b32.xlu0 %v6293, 64
    %v6465 = vpop.permute.xlu0 %6464
    %6466 = vrot.lane.b32.xlu0 %v6294, 64
    %v6467 = vpop.permute.xlu0 %6466
    %6468 = vrot.lane.b32.xlu0 %v6295, 64
    %v6469 = vpop.permute.xlu0 %6468
    %6470 = vrot.lane.b32.xlu0 %v6296, 64
    %v6471 = vpop.permute.xlu0 %6470
    %6472 = vrot.lane.b32.xlu0 %v6297, 64
    %v6473 = vpop.permute.xlu0 %6472
    %6474 = vrot.lane.b32.xlu0 %v6298, 64
    %v6475 = vpop.permute.xlu0 %6474
    %6476 = vrot.lane.b32.xlu0 %v6299, 64
    %v6477 = vpop.permute.xlu0 %6476
    %6478 = vrot.lane.b32.xlu0 %v6300, 64
    %v6479 = vpop.permute.xlu0 %6478
    %6480 = vrot.lane.b32.xlu0 %v6301, 64
    %v6481 = vpop.permute.xlu0 %6480
    %6482 = vrot.lane.b32.xlu0 %v6302, 64
    %v6483 = vpop.permute.xlu0 %6482
    %6484 = vrot.lane.b32.xlu0 %v6303, 64
    %v6485 = vpop.permute.xlu0 %6484
    %6486 = vrot.lane.b32.xlu0 %v6304, 64
    %v6487 = vpop.permute.xlu0 %6486
    %6488 = vrot.lane.b32.xlu0 %v6305, 64
    %v6489 = vpop.permute.xlu0 %6488
    %6490 = vrot.lane.b32.xlu0 %v6306, 64
    %v6491 = vpop.permute.xlu0 %6490
    %6492 = vrot.lane.b32.xlu0 %v6307, 64
    %v6493 = vpop.permute.xlu0 %6492
    %6494 = vrot.lane.b32.xlu0 %v6308, 64
    %v6495 = vpop.permute.xlu0 %6494
    %6496 = vrot.lane.b32.xlu0 %v6309, 64
    %v6497 = vpop.permute.xlu0 %6496
    %6498 = vrot.lane.b32.xlu0 %v6310, 64
    %v6499 = vpop.permute.xlu0 %6498
    %6500 = vrot.lane.b32.xlu0 %v6311, 64
    %v6501 = vpop.permute.xlu0 %6500
    %6502 = vrot.lane.b32.xlu0 %v6312, 64
    %v6503 = vpop.permute.xlu0 %6502
    %6504 = vrot.lane.b32.xlu0 %v6313, 64
    %v6505 = vpop.permute.xlu0 %6504
    %v6570 = vsel %vm41, %v6186, %v6379
    %v6571 = vsel %vm41, %v6187, %v6381
    %v6572 = vsel %vm41, %v6188, %v6383
    %v6573 = vsel %vm41, %v6189, %v6385
    %v6574 = vsel %vm41, %v6190, %v6387
    %v6575 = vsel %vm41, %v6191, %v6389
    %v6576 = vsel %vm41, %v6192, %v6391
    %v6577 = vsel %vm41, %v6193, %v6393
    %v6578 = vsel %vm41, %v6194, %v6395
    %v6579 = vsel %vm41, %v6195, %v6397
    %v6580 = vsel %vm41, %v6196, %v6399
    %v6581 = vsel %vm41, %v6197, %v6401
    %v6582 = vsel %vm41, %v6198, %v6403
    %v6583 = vsel %vm41, %v6199, %v6405
    %v6584 = vsel %vm41, %v6200, %v6407
    %v6585 = vsel %vm41, %v6201, %v6409
    %v6586 = vsel %vm41, %v6202, %v6411
    %v6587 = vsel %vm41, %v6203, %v6413
    %v6588 = vsel %vm41, %v6204, %v6415
    %v6589 = vsel %vm41, %v6205, %v6417
    %v6590 = vsel %vm41, %v6206, %v6419
    %v6591 = vsel %vm41, %v6207, %v6421
    %v6592 = vsel %vm41, %v6208, %v6423
    %v6593 = vsel %vm41, %v6209, %v6425
    %v6594 = vsel %vm41, %v6210, %v6427
    %v6595 = vsel %vm41, %v6211, %v6429
    %v6596 = vsel %vm41, %v6212, %v6431
    %v6597 = vsel %vm41, %v6213, %v6433
    %v6598 = vsel %vm41, %v6214, %v6435
    %v6599 = vsel %vm41, %v6215, %v6437
    %v6600 = vsel %vm41, %v6216, %v6439
    %v6601 = vsel %vm41, %v6217, %v6441
    %v6602 = vsel %vm41, %v6218, %v6443
    %v6603 = vsel %vm41, %v6219, %v6445
    %v6604 = vsel %vm41, %v6220, %v6447
    %v6605 = vsel %vm41, %v6221, %v6449
    %v6606 = vsel %vm41, %v6222, %v6451
    %v6607 = vsel %vm41, %v6223, %v6453
    %v6608 = vsel %vm41, %v6224, %v6455
    %v6609 = vsel %vm41, %v6225, %v6457
    %v6610 = vsel %vm41, %v6226, %v6459
    %v6611 = vsel %vm41, %v6227, %v6461
    %v6612 = vsel %vm41, %v6228, %v6463
    %v6613 = vsel %vm41, %v6229, %v6465
    %v6614 = vsel %vm41, %v6230, %v6467
    %v6615 = vsel %vm41, %v6231, %v6469
    %v6616 = vsel %vm41, %v6232, %v6471
    %v6617 = vsel %vm41, %v6233, %v6473
    %v6618 = vsel %vm41, %v6234, %v6475
    %v6619 = vsel %vm41, %v6235, %v6477
    %v6620 = vsel %vm41, %v6236, %v6479
    %v6621 = vsel %vm41, %v6237, %v6481
    %v6622 = vsel %vm41, %v6238, %v6483
    %v6623 = vsel %vm41, %v6239, %v6485
    %v6624 = vsel %vm41, %v6240, %v6487
    %v6625 = vsel %vm41, %v6241, %v6489
    %v6626 = vsel %vm41, %v6242, %v6491
    %v6627 = vsel %vm41, %v6243, %v6493
    %v6628 = vsel %vm41, %v6244, %v6495
    %v6629 = vsel %vm41, %v6245, %v6497
    %v6630 = vsel %vm41, %v6246, %v6499
    %v6631 = vsel %vm41, %v6247, %v6501
    %v6632 = vsel %vm41, %v6248, %v6503
    %v6633 = vsel %vm41, %v6249, %v6505
    %v6634 = vpack.c.bf16 %v6571, %v6570
    %v6635 = vpack.c.bf16 %v6573, %v6572
    %v6636 = vpack.c.bf16 %v6575, %v6574
    %v6637 = vpack.c.bf16 %v6577, %v6576
    %v6638 = vpack.c.bf16 %v6579, %v6578
    %v6639 = vpack.c.bf16 %v6581, %v6580
    %v6640 = vpack.c.bf16 %v6583, %v6582
    %v6641 = vpack.c.bf16 %v6585, %v6584
    %v6642 = vpack.c.bf16 %v6587, %v6586
    %v6643 = vpack.c.bf16 %v6589, %v6588
    %v6644 = vpack.c.bf16 %v6591, %v6590
    %v6645 = vpack.c.bf16 %v6593, %v6592
    %v6646 = vpack.c.bf16 %v6595, %v6594
    %v6647 = vpack.c.bf16 %v6597, %v6596
    %v6648 = vpack.c.bf16 %v6599, %v6598
    %v6649 = vpack.c.bf16 %v6601, %v6600
    %v6650 = vpack.c.bf16 %v6603, %v6602
    %v6651 = vpack.c.bf16 %v6605, %v6604
    %v6652 = vpack.c.bf16 %v6607, %v6606
    %v6653 = vpack.c.bf16 %v6609, %v6608
    %v6654 = vpack.c.bf16 %v6611, %v6610
    %v6655 = vpack.c.bf16 %v6613, %v6612
    %v6656 = vpack.c.bf16 %v6615, %v6614
    %v6657 = vpack.c.bf16 %v6617, %v6616
    %v6658 = vpack.c.bf16 %v6619, %v6618
    %v6659 = vpack.c.bf16 %v6621, %v6620
    %v6660 = vpack.c.bf16 %v6623, %v6622
    %v6661 = vpack.c.bf16 %v6625, %v6624
    %v6662 = vpack.c.bf16 %v6627, %v6626
    %v6663 = vpack.c.bf16 %v6629, %v6628
    %v6664 = vpack.c.bf16 %v6631, %v6630
    %v6665 = vpack.c.bf16 %v6633, %v6632
    %6666 = vst [vmem:[#allocation3 + $0x18] sm:$0xff] %v6634
    %6667 = vst [vmem:[#allocation3 + $0x40] sm:$0xff] %v6635
    %6668 = vst [vmem:[#allocation3 + $0x68] sm:$0xff] %v6636
    %6669 = vst [vmem:[#allocation3 + $0x90] sm:$0xff] %v6637
    %6670 = vst [vmem:[#allocation3 + $0xb8] sm:$0xff] %v6638
    %6671 = vst [vmem:[#allocation3 + $0xe0] sm:$0xff] %v6639
    %6672 = vst [vmem:[#allocation3 + $0x108] sm:$0xff] %v6640
    %6673 = vst [vmem:[#allocation3 + $0x130] sm:$0xff] %v6641
    %6674 = vst [vmem:[#allocation3 + $0x158] sm:$0xff] %v6642
    %6675 = vst [vmem:[#allocation3 + $0x180] sm:$0xff] %v6643
    %6676 = vst [vmem:[#allocation3 + $0x1a8] sm:$0xff] %v6644
    %6677 = vst [vmem:[#allocation3 + $0x1d0] sm:$0xff] %v6645
    %6678 = vst [vmem:[#allocation3 + $0x1f8] sm:$0xff] %v6646
    %6679 = vst [vmem:[#allocation3 + $0x220] sm:$0xff] %v6647
    %6680 = vst [vmem:[#allocation3 + $0x248] sm:$0xff] %v6648
    %6681 = vst [vmem:[#allocation3 + $0x270] sm:$0xff] %v6649
    %6682 = vst [vmem:[#allocation3 + $0x298] sm:$0xff] %v6650
    %6683 = vst [vmem:[#allocation3 + $0x2c0] sm:$0xff] %v6651
    %6684 = vst [vmem:[#allocation3 + $0x2e8] sm:$0xff] %v6652
    %6685 = vst [vmem:[#allocation3 + $0x310] sm:$0xff] %v6653
    %6686 = vst [vmem:[#allocation3 + $0x338] sm:$0xff] %v6654
    %6687 = vst [vmem:[#allocation3 + $0x360] sm:$0xff] %v6655
    %6688 = vst [vmem:[#allocation3 + $0x388] sm:$0xff] %v6656
    %6689 = vst [vmem:[#allocation3 + $0x3b0] sm:$0xff] %v6657
    %6690 = vst [vmem:[#allocation3 + $0x3d8] sm:$0xff] %v6658
    %6691 = vst [vmem:[#allocation3 + $0x400] sm:$0xff] %v6659
    %6692 = vst [vmem:[#allocation3 + $0x428] sm:$0xff] %v6660
    %6693 = vst [vmem:[#allocation3 + $0x450] sm:$0xff] %v6661
    %6694 = vst [vmem:[#allocation3 + $0x478] sm:$0xff] %v6662
    %6695 = vst [vmem:[#allocation3 + $0x4a0] sm:$0xff] %v6663
    %6696 = vst [vmem:[#allocation3 + $0x4c8] sm:$0xff] %v6664
    %6697 = vst [vmem:[#allocation3 + $0x4f0] sm:$0xff] %v6665
    %v6698 = vld [vmem:[%s1794 + $0x2] sm:$0xff]
    %v6699 = vld [vmem:[%s1794 + $0xa] sm:$0xff]
    %v6700 = vld [vmem:[%s1794 + $0x1a] sm:$0xff]
    %v6701 = vld [vmem:[%s1794 + $0x22] sm:$0xff]
    %v6702 = vld [vmem:[%s1794 + $0x32] sm:$0xff]
    %v6703 = vld [vmem:[%s1794 + $0x3a] sm:$0xff]
    %v6704 = vld [vmem:[%s1794 + $0x4a] sm:$0xff]
    %v6705 = vld [vmem:[%s1794 + $0x52] sm:$0xff]
    %v6706 = vld [vmem:[%s1794 + $0x62] sm:$0xff]
    %v6707 = vld [vmem:[%s1794 + $0x6a] sm:$0xff]
    %v6708 = vld [vmem:[%s1794 + $0x7a] sm:$0xff]
    %v6709 = vld [vmem:[%s1794 + $0x82] sm:$0xff]
    %v6710 = vld [vmem:[%s1794 + $0x92] sm:$0xff]
    %v6711 = vld [vmem:[%s1794 + $0x9a] sm:$0xff]
    %v6712 = vld [vmem:[%s1794 + $0xaa] sm:$0xff]
    %v6713 = vld [vmem:[%s1794 + $0xb2] sm:$0xff]
    %v6714 = vld [vmem:[%s1794 + $0xc2] sm:$0xff]
    %v6715 = vld [vmem:[%s1794 + $0xca] sm:$0xff]
    %v6716 = vld [vmem:[%s1794 + $0xda] sm:$0xff]
    %v6717 = vld [vmem:[%s1794 + $0xe2] sm:$0xff]
    %v6718 = vld [vmem:[%s1794 + $0xf2] sm:$0xff]
    %v6719 = vld [vmem:[%s1794 + $0xfa] sm:$0xff]
    %v6720 = vld [vmem:[%s1794 + $0x10a] sm:$0xff]
    %v6721 = vld [vmem:[%s1794 + $0x112] sm:$0xff]
    %v6722 = vld [vmem:[%s1794 + $0x122] sm:$0xff]
    %v6723 = vld [vmem:[%s1794 + $0x12a] sm:$0xff]
    %v6724 = vld [vmem:[%s1794 + $0x13a] sm:$0xff]
    %v6725 = vld [vmem:[%s1794 + $0x142] sm:$0xff]
    %v6726 = vld [vmem:[%s1794 + $0x152] sm:$0xff]
    %v6727 = vld [vmem:[%s1794 + $0x15a] sm:$0xff]
    %v6728 = vld [vmem:[%s1794 + $0x16a] sm:$0xff]
    %v6729 = vld [vmem:[%s1794 + $0x172] sm:$0xff]
    %v6730 = vld [vmem:[%s1794 + $0x1b2] sm:$0xff]
    %v6731 = vld [vmem:[%s1794 + $0x1ba] sm:$0xff]
    %v6732 = vld [vmem:[%s1794 + $0x1ca] sm:$0xff]
    %v6733 = vld [vmem:[%s1794 + $0x1d2] sm:$0xff]
    %v6734 = vld [vmem:[%s1794 + $0x1e2] sm:$0xff]
    %v6735 = vld [vmem:[%s1794 + $0x1ea] sm:$0xff]
    %v6736 = vld [vmem:[%s1794 + $0x1fa] sm:$0xff]
    %v6737 = vld [vmem:[%s1794 + $0x202] sm:$0xff]
    %v6738 = vld [vmem:[%s1794 + $0x212] sm:$0xff]
    %v6739 = vld [vmem:[%s1794 + $0x21a] sm:$0xff]
    %v6740 = vld [vmem:[%s1794 + $0x22a] sm:$0xff]
    %v6741 = vld [vmem:[%s1794 + $0x232] sm:$0xff]
    %v6742 = vld [vmem:[%s1794 + $0x242] sm:$0xff]
    %v6743 = vld [vmem:[%s1794 + $0x24a] sm:$0xff]
    %v6744 = vld [vmem:[%s1794 + $0x25a] sm:$0xff]
    %v6745 = vld [vmem:[%s1794 + $0x262] sm:$0xff]
    %v6746 = vld [vmem:[%s1794 + $0x272] sm:$0xff]
    %v6747 = vld [vmem:[%s1794 + $0x27a] sm:$0xff]
    %v6748 = vld [vmem:[%s1794 + $0x28a] sm:$0xff]
    %v6749 = vld [vmem:[%s1794 + $0x292] sm:$0xff]
    %v6750 = vld [vmem:[%s1794 + $0x2a2] sm:$0xff]
    %v6751 = vld [vmem:[%s1794 + $0x2aa] sm:$0xff]
    %v6752 = vld [vmem:[%s1794 + $0x2ba] sm:$0xff]
    %v6753 = vld [vmem:[%s1794 + $0x2c2] sm:$0xff]
    %v6754 = vld [vmem:[%s1794 + $0x2d2] sm:$0xff]
    %v6755 = vld [vmem:[%s1794 + $0x2da] sm:$0xff]
    %v6756 = vld [vmem:[%s1794 + $0x2ea] sm:$0xff]
    %v6757 = vld [vmem:[%s1794 + $0x2f2] sm:$0xff]
    %v6758 = vld [vmem:[%s1794 + $0x302] sm:$0xff]
    %v6759 = vld [vmem:[%s1794 + $0x30a] sm:$0xff]
    %v6760 = vld [vmem:[%s1794 + $0x31a] sm:$0xff]
    %v6761 = vld [vmem:[%s1794 + $0x322] sm:$0xff]
    %v6762 = vsel %vm41, %v6698, 0.0
    %v6763 = vsel %vm41, %v6699, 0.0
    %v6764 = vsel %vm41, %v6700, 0.0
    %v6765 = vsel %vm41, %v6701, 0.0
    %v6766 = vsel %vm41, %v6702, 0.0
    %v6767 = vsel %vm41, %v6703, 0.0
    %v6768 = vsel %vm41, %v6704, 0.0
    %v6769 = vsel %vm41, %v6705, 0.0
    %v6770 = vsel %vm41, %v6706, 0.0
    %v6771 = vsel %vm41, %v6707, 0.0
    %v6772 = vsel %vm41, %v6708, 0.0
    %v6773 = vsel %vm41, %v6709, 0.0
    %v6774 = vsel %vm41, %v6710, 0.0
    %v6775 = vsel %vm41, %v6711, 0.0
    %v6776 = vsel %vm41, %v6712, 0.0
    %v6777 = vsel %vm41, %v6713, 0.0
    %v6778 = vsel %vm41, %v6714, 0.0
    %v6779 = vsel %vm41, %v6715, 0.0
    %v6780 = vsel %vm41, %v6716, 0.0
    %v6781 = vsel %vm41, %v6717, 0.0
    %v6782 = vsel %vm41, %v6718, 0.0
    %v6783 = vsel %vm41, %v6719, 0.0
    %v6784 = vsel %vm41, %v6720, 0.0
    %v6785 = vsel %vm41, %v6721, 0.0
    %v6786 = vsel %vm41, %v6722, 0.0
    %v6787 = vsel %vm41, %v6723, 0.0
    %v6788 = vsel %vm41, %v6724, 0.0
    %v6789 = vsel %vm41, %v6725, 0.0
    %v6790 = vsel %vm41, %v6726, 0.0
    %v6791 = vsel %vm41, %v6727, 0.0
    %v6792 = vsel %vm41, %v6728, 0.0
    %v6793 = vsel %vm41, %v6729, 0.0
    %v6794 = vsel %vm41, %v6730, 0.0
    %v6795 = vsel %vm41, %v6731, 0.0
    %v6796 = vsel %vm41, %v6732, 0.0
    %v6797 = vsel %vm41, %v6733, 0.0
    %v6798 = vsel %vm41, %v6734, 0.0
    %v6799 = vsel %vm41, %v6735, 0.0
    %v6800 = vsel %vm41, %v6736, 0.0
    %v6801 = vsel %vm41, %v6737, 0.0
    %v6802 = vsel %vm41, %v6738, 0.0
    %v6803 = vsel %vm41, %v6739, 0.0
    %v6804 = vsel %vm41, %v6740, 0.0
    %v6805 = vsel %vm41, %v6741, 0.0
    %v6806 = vsel %vm41, %v6742, 0.0
    %v6807 = vsel %vm41, %v6743, 0.0
    %v6808 = vsel %vm41, %v6744, 0.0
    %v6809 = vsel %vm41, %v6745, 0.0
    %v6810 = vsel %vm41, %v6746, 0.0
    %v6811 = vsel %vm41, %v6747, 0.0
    %v6812 = vsel %vm41, %v6748, 0.0
    %v6813 = vsel %vm41, %v6749, 0.0
    %v6814 = vsel %vm41, %v6750, 0.0
    %v6815 = vsel %vm41, %v6751, 0.0
    %v6816 = vsel %vm41, %v6752, 0.0
    %v6817 = vsel %vm41, %v6753, 0.0
    %v6818 = vsel %vm41, %v6754, 0.0
    %v6819 = vsel %vm41, %v6755, 0.0
    %v6820 = vsel %vm41, %v6756, 0.0
    %v6821 = vsel %vm41, %v6757, 0.0
    %v6822 = vsel %vm41, %v6758, 0.0
    %v6823 = vsel %vm41, %v6759, 0.0
    %v6824 = vsel %vm41, %v6760, 0.0
    %v6825 = vsel %vm41, %v6761, 0.0
    %v6826 = vpack.c.bf16 %v6763, %v6762
    %v6827 = vpack.c.bf16 %v6765, %v6764
    %v6828 = vpack.c.bf16 %v6767, %v6766
    %v6829 = vpack.c.bf16 %v6769, %v6768
    %v6830 = vpack.c.bf16 %v6771, %v6770
    %v6831 = vpack.c.bf16 %v6773, %v6772
    %v6832 = vpack.c.bf16 %v6775, %v6774
    %v6833 = vpack.c.bf16 %v6777, %v6776
    %v6834 = vpack.c.bf16 %v6779, %v6778
    %v6835 = vpack.c.bf16 %v6781, %v6780
    %v6836 = vpack.c.bf16 %v6783, %v6782
    %v6837 = vpack.c.bf16 %v6785, %v6784
    %v6838 = vpack.c.bf16 %v6787, %v6786
    %v6839 = vpack.c.bf16 %v6789, %v6788
    %v6840 = vpack.c.bf16 %v6791, %v6790
    %v6841 = vpack.c.bf16 %v6793, %v6792
    %v6842 = vpack.c.bf16 %v6795, %v6794
    %v6843 = vpack.c.bf16 %v6797, %v6796
    %v6844 = vpack.c.bf16 %v6799, %v6798
    %v6845 = vpack.c.bf16 %v6801, %v6800
    %v6846 = vpack.c.bf16 %v6803, %v6802
    %v6847 = vpack.c.bf16 %v6805, %v6804
    %v6848 = vpack.c.bf16 %v6807, %v6806
    %v6849 = vpack.c.bf16 %v6809, %v6808
    %v6850 = vpack.c.bf16 %v6811, %v6810
    %v6851 = vpack.c.bf16 %v6813, %v6812
    %v6852 = vpack.c.bf16 %v6815, %v6814
    %v6853 = vpack.c.bf16 %v6817, %v6816
    %v6854 = vpack.c.bf16 %v6819, %v6818
    %v6855 = vpack.c.bf16 %v6821, %v6820
    %v6856 = vpack.c.bf16 %v6823, %v6822
    %v6857 = vpack.c.bf16 %v6825, %v6824
    %6858 = vst [vmem:[#allocation3 + $0x20] sm:$0xff] %v6826
    %6859 = vst [vmem:[#allocation3 + $0x48] sm:$0xff] %v6827
    %6860 = vst [vmem:[#allocation3 + $0x70] sm:$0xff] %v6828
    %6861 = vst [vmem:[#allocation3 + $0x98] sm:$0xff] %v6829
    %6862 = vst [vmem:[#allocation3 + $0xc0] sm:$0xff] %v6830
    %6863 = vst [vmem:[#allocation3 + $0xe8] sm:$0xff] %v6831
    %6864 = vst [vmem:[#allocation3 + $0x110] sm:$0xff] %v6832
    %6865 = vst [vmem:[#allocation3 + $0x138] sm:$0xff] %v6833
    %6866 = vst [vmem:[#allocation3 + $0x160] sm:$0xff] %v6834
    %6867 = vst [vmem:[#allocation3 + $0x188] sm:$0xff] %v6835
    %6868 = vst [vmem:[#allocation3 + $0x1b0] sm:$0xff] %v6836
    %6869 = vst [vmem:[#allocation3 + $0x1d8] sm:$0xff] %v6837
    %6870 = vst [vmem:[#allocation3 + $0x200] sm:$0xff] %v6838
    %6871 = vst [vmem:[#allocation3 + $0x228] sm:$0xff] %v6839
    %6872 = vst [vmem:[#allocation3 + $0x250] sm:$0xff] %v6840
    %6873 = vst [vmem:[#allocation3 + $0x278] sm:$0xff] %v6841
    %6874 = vst [vmem:[#allocation3 + $0x2a0] sm:$0xff] %v6842
    %6875 = vst [vmem:[#allocation3 + $0x2c8] sm:$0xff] %v6843
    %6876 = vst [vmem:[#allocation3 + $0x2f0] sm:$0xff] %v6844
    %6877 = vst [vmem:[#allocation3 + $0x318] sm:$0xff] %v6845
    %6878 = vst [vmem:[#allocation3 + $0x340] sm:$0xff] %v6846
    %6879 = vst [vmem:[#allocation3 + $0x368] sm:$0xff] %v6847
    %6880 = vst [vmem:[#allocation3 + $0x390] sm:$0xff] %v6848
    %6881 = vst [vmem:[#allocation3 + $0x3b8] sm:$0xff] %v6849
    %6882 = vst [vmem:[#allocation3 + $0x3e0] sm:$0xff] %v6850
    %6883 = vst [vmem:[#allocation3 + $0x408] sm:$0xff] %v6851
    %6884 = vst [vmem:[#allocation3 + $0x430] sm:$0xff] %v6852
    %6885 = vst [vmem:[#allocation3 + $0x458] sm:$0xff] %v6853
    %6886 = vst [vmem:[#allocation3 + $0x480] sm:$0xff] %v6854
    %6887 = vst [vmem:[#allocation3 + $0x4a8] sm:$0xff] %v6855
    %6888 = vst [vmem:[#allocation3 + $0x4d0] sm:$0xff] %v6856
    %6889 = vst [vmem:[#allocation3 + $0x4f8] sm:$0xff] %v6857
    %v6890 = vld [vmem:[#allocation3] sm:$0xff]
    %v6891 = vld [vmem:[#allocation3 + $0x8] sm:$0xff]
    %v6892 = vld [vmem:[#allocation3 + $0x10] sm:$0xff]
    %v6893 = vld [vmem:[#allocation3 + $0x18] sm:$0xff]
    %v6894 = vld [vmem:[#allocation3 + $0x20] sm:$0xff]
    %v6895 = vld [vmem:[#allocation3 + $0x28] sm:$0xff]
    %v6896 = vld [vmem:[#allocation3 + $0x30] sm:$0xff]
    %v6897 = vld [vmem:[#allocation3 + $0x38] sm:$0xff]
    %v6898 = vld [vmem:[#allocation3 + $0x40] sm:$0xff]
    %v6899 = vld [vmem:[#allocation3 + $0x48] sm:$0xff]
    %v6900 = vld [vmem:[#allocation3 + $0x50] sm:$0xff]
    %v6901 = vld [vmem:[#allocation3 + $0x58] sm:$0xff]
    %v6902 = vld [vmem:[#allocation3 + $0x60] sm:$0xff]
    %v6903 = vld [vmem:[#allocation3 + $0x68] sm:$0xff]
    %v6904 = vld [vmem:[#allocation3 + $0x70] sm:$0xff]
    %v6905 = vld [vmem:[#allocation3 + $0x78] sm:$0xff]
    %v6906 = vld [vmem:[#allocation3 + $0x80] sm:$0xff]
    %v6907 = vld [vmem:[#allocation3 + $0x88] sm:$0xff]
    %v6908 = vld [vmem:[#allocation3 + $0x90] sm:$0xff]
    %v6909 = vld [vmem:[#allocation3 + $0x98] sm:$0xff]
    %v6910 = vld [vmem:[#allocation3 + $0xa0] sm:$0xff]
    %v6911 = vld [vmem:[#allocation3 + $0xa8] sm:$0xff]
    %v6912 = vld [vmem:[#allocation3 + $0xb0] sm:$0xff]
    %v6913 = vld [vmem:[#allocation3 + $0xb8] sm:$0xff]
    %v6914 = vld [vmem:[#allocation3 + $0xc0] sm:$0xff]
    %v6915 = vld [vmem:[#allocation3 + $0xc8] sm:$0xff]
    %v6916 = vld [vmem:[#allocation3 + $0xd0] sm:$0xff]
    %v6917 = vld [vmem:[#allocation3 + $0xd8] sm:$0xff]
    %v6918 = vld [vmem:[#allocation3 + $0xe0] sm:$0xff]
    %v6919 = vld [vmem:[#allocation3 + $0xe8] sm:$0xff]
    %v6920 = vld [vmem:[#allocation3 + $0xf0] sm:$0xff]
    %v6921 = vld [vmem:[#allocation3 + $0xf8] sm:$0xff]
    %v6922 = vld [vmem:[#allocation3 + $0x100] sm:$0xff]
    %v6923 = vld [vmem:[#allocation3 + $0x108] sm:$0xff]
    %v6924 = vld [vmem:[#allocation3 + $0x110] sm:$0xff]
    %v6925 = vld [vmem:[#allocation3 + $0x118] sm:$0xff]
    %v6926 = vld [vmem:[#allocation3 + $0x120] sm:$0xff]
    %v6927 = vld [vmem:[#allocation3 + $0x128] sm:$0xff]
    %v6928 = vld [vmem:[#allocation3 + $0x130] sm:$0xff]
    %v6929 = vld [vmem:[#allocation3 + $0x138] sm:$0xff]
    %v6930 = vld [vmem:[#allocation3 + $0x140] sm:$0xff]
    %v6931 = vld [vmem:[#allocation3 + $0x148] sm:$0xff]
    %v6932 = vld [vmem:[#allocation3 + $0x150] sm:$0xff]
    %v6933 = vld [vmem:[#allocation3 + $0x158] sm:$0xff]
    %v6934 = vld [vmem:[#allocation3 + $0x160] sm:$0xff]
    %v6935 = vld [vmem:[#allocation3 + $0x168] sm:$0xff]
    %v6936 = vld [vmem:[#allocation3 + $0x170] sm:$0xff]
    %v6937 = vld [vmem:[#allocation3 + $0x178] sm:$0xff]
    %v6938 = vld [vmem:[#allocation3 + $0x180] sm:$0xff]
    %v6939 = vld [vmem:[#allocation3 + $0x188] sm:$0xff]
    %v6940 = vld [vmem:[#allocation3 + $0x190] sm:$0xff]
    %v6941 = vld [vmem:[#allocation3 + $0x198] sm:$0xff]
    %v6942 = vld [vmem:[#allocation3 + $0x1a0] sm:$0xff]
    %v6943 = vld [vmem:[#allocation3 + $0x1a8] sm:$0xff]
    %v6944 = vld [vmem:[#allocation3 + $0x1b0] sm:$0xff]
    %v6945 = vld [vmem:[#allocation3 + $0x1b8] sm:$0xff]
    %v6946 = vld [vmem:[#allocation3 + $0x1c0] sm:$0xff]
    %v6947 = vld [vmem:[#allocation3 + $0x1c8] sm:$0xff]
    %v6948 = vld [vmem:[#allocation3 + $0x1d0] sm:$0xff]
    %v6949 = vld [vmem:[#allocation3 + $0x1d8] sm:$0xff]
    %v6950 = vld [vmem:[#allocation3 + $0x1e0] sm:$0xff]
    %v6951 = vld [vmem:[#allocation3 + $0x1e8] sm:$0xff]
    %v6952 = vld [vmem:[#allocation3 + $0x1f0] sm:$0xff]
    %v6953 = vld [vmem:[#allocation3 + $0x1f8] sm:$0xff]
    %v6954 = vld [vmem:[#allocation3 + $0x200] sm:$0xff]
    %v6955 = vld [vmem:[#allocation3 + $0x208] sm:$0xff]
    %v6956 = vld [vmem:[#allocation3 + $0x210] sm:$0xff]
    %v6957 = vld [vmem:[#allocation3 + $0x218] sm:$0xff]
    %v6958 = vld [vmem:[#allocation3 + $0x220] sm:$0xff]
    %v6959 = vld [vmem:[#allocation3 + $0x228] sm:$0xff]
    %v6960 = vld [vmem:[#allocation3 + $0x230] sm:$0xff]
    %v6961 = vld [vmem:[#allocation3 + $0x238] sm:$0xff]
    %v6962 = vld [vmem:[#allocation3 + $0x240] sm:$0xff]
    %v6963 = vld [vmem:[#allocation3 + $0x248] sm:$0xff]
    %v6964 = vld [vmem:[#allocation3 + $0x250] sm:$0xff]
    %v6965 = vld [vmem:[#allocation3 + $0x258] sm:$0xff]
    %v6966 = vld [vmem:[#allocation3 + $0x260] sm:$0xff]
    %v6967 = vld [vmem:[#allocation3 + $0x268] sm:$0xff]
    %v6968 = vld [vmem:[#allocation3 + $0x270] sm:$0xff]
    %v6969 = vld [vmem:[#allocation3 + $0x278] sm:$0xff]
    %v6970 = vld [vmem:[#allocation3 + $0x280] sm:$0xff]
    %v6971 = vld [vmem:[#allocation3 + $0x288] sm:$0xff]
    %v6972 = vld [vmem:[#allocation3 + $0x290] sm:$0xff]
    %v6973 = vld [vmem:[#allocation3 + $0x298] sm:$0xff]
    %v6974 = vld [vmem:[#allocation3 + $0x2a0] sm:$0xff]
    %v6975 = vld [vmem:[#allocation3 + $0x2a8] sm:$0xff]
    %v6976 = vld [vmem:[#allocation3 + $0x2b0] sm:$0xff]
    %v6977 = vld [vmem:[#allocation3 + $0x2b8] sm:$0xff]
    %v6978 = vld [vmem:[#allocation3 + $0x2c0] sm:$0xff]
    %v6979 = vld [vmem:[#allocation3 + $0x2c8] sm:$0xff]
    %v6980 = vld [vmem:[#allocation3 + $0x2d0] sm:$0xff]
    %v6981 = vld [vmem:[#allocation3 + $0x2d8] sm:$0xff]
    %v6982 = vld [vmem:[#allocation3 + $0x2e0] sm:$0xff]
    %v6983 = vld [vmem:[#allocation3 + $0x2e8] sm:$0xff]
    %v6984 = vld [vmem:[#allocation3 + $0x2f0] sm:$0xff]
    %v6985 = vld [vmem:[#allocation3 + $0x2f8] sm:$0xff]
    %v6986 = vld [vmem:[#allocation3 + $0x300] sm:$0xff]
    %v6987 = vld [vmem:[#allocation3 + $0x308] sm:$0xff]
    %v6988 = vld [vmem:[#allocation3 + $0x310] sm:$0xff]
    %v6989 = vld [vmem:[#allocation3 + $0x318] sm:$0xff]
    %v6990 = vld [vmem:[#allocation3 + $0x320] sm:$0xff]
    %v6991 = vld [vmem:[#allocation3 + $0x328] sm:$0xff]
    %v6992 = vld [vmem:[#allocation3 + $0x330] sm:$0xff]
    %v6993 = vld [vmem:[#allocation3 + $0x338] sm:$0xff]
    %v6994 = vld [vmem:[#allocation3 + $0x340] sm:$0xff]
    %v6995 = vld [vmem:[#allocation3 + $0x348] sm:$0xff]
    %v6996 = vld [vmem:[#allocation3 + $0x350] sm:$0xff]
    %v6997 = vld [vmem:[#allocation3 + $0x358] sm:$0xff]
    %v6998 = vld [vmem:[#allocation3 + $0x360] sm:$0xff]
    %v6999 = vld [vmem:[#allocation3 + $0x368] sm:$0xff]
    %v7000 = vld [vmem:[#allocation3 + $0x370] sm:$0xff]
    %v7001 = vld [vmem:[#allocation3 + $0x378] sm:$0xff]
    %v7002 = vld [vmem:[#allocation3 + $0x380] sm:$0xff]
    %v7003 = vld [vmem:[#allocation3 + $0x388] sm:$0xff]
    %v7004 = vld [vmem:[#allocation3 + $0x390] sm:$0xff]
    %v7005 = vld [vmem:[#allocation3 + $0x398] sm:$0xff]
    %v7006 = vld [vmem:[#allocation3 + $0x3a0] sm:$0xff]
    %v7007 = vld [vmem:[#allocation3 + $0x3a8] sm:$0xff]
    %v7008 = vld [vmem:[#allocation3 + $0x3b0] sm:$0xff]
    %v7009 = vld [vmem:[#allocation3 + $0x3b8] sm:$0xff]
    %v7010 = vld [vmem:[#allocation3 + $0x3c0] sm:$0xff]
    %v7011 = vld [vmem:[#allocation3 + $0x3c8] sm:$0xff]
    %v7012 = vld [vmem:[#allocation3 + $0x3d0] sm:$0xff]
    %v7013 = vld [vmem:[#allocation3 + $0x3d8] sm:$0xff]
    %v7014 = vld [vmem:[#allocation3 + $0x3e0] sm:$0xff]
    %v7015 = vld [vmem:[#allocation3 + $0x3e8] sm:$0xff]
    %v7016 = vld [vmem:[#allocation3 + $0x3f0] sm:$0xff]
    %v7017 = vld [vmem:[#allocation3 + $0x3f8] sm:$0xff]
    %v7018 = vld [vmem:[#allocation3 + $0x400] sm:$0xff]
    %v7019 = vld [vmem:[#allocation3 + $0x408] sm:$0xff]
    %v7020 = vld [vmem:[#allocation3 + $0x410] sm:$0xff]
    %v7021 = vld [vmem:[#allocation3 + $0x418] sm:$0xff]
    %v7022 = vld [vmem:[#allocation3 + $0x420] sm:$0xff]
    %v7023 = vld [vmem:[#allocation3 + $0x428] sm:$0xff]
    %v7024 = vld [vmem:[#allocation3 + $0x430] sm:$0xff]
    %v7025 = vld [vmem:[#allocation3 + $0x438] sm:$0xff]
    %v7026 = vld [vmem:[#allocation3 + $0x440] sm:$0xff]
    %v7027 = vld [vmem:[#allocation3 + $0x448] sm:$0xff]
    %v7028 = vld [vmem:[#allocation3 + $0x450] sm:$0xff]
    %v7029 = vld [vmem:[#allocation3 + $0x458] sm:$0xff]
    %v7030 = vld [vmem:[#allocation3 + $0x460] sm:$0xff]
    %v7031 = vld [vmem:[#allocation3 + $0x468] sm:$0xff]
    %v7032 = vld [vmem:[#allocation3 + $0x470] sm:$0xff]
    %v7033 = vld [vmem:[#allocation3 + $0x478] sm:$0xff]
    %v7034 = vld [vmem:[#allocation3 + $0x480] sm:$0xff]
    %v7035 = vld [vmem:[#allocation3 + $0x488] sm:$0xff]
    %v7036 = vld [vmem:[#allocation3 + $0x490] sm:$0xff]
    %v7037 = vld [vmem:[#allocation3 + $0x498] sm:$0xff]
    %v7038 = vld [vmem:[#allocation3 + $0x4a0] sm:$0xff]
    %v7039 = vld [vmem:[#allocation3 + $0x4a8] sm:$0xff]
    %v7040 = vld [vmem:[#allocation3 + $0x4b0] sm:$0xff]
    %v7041 = vld [vmem:[#allocation3 + $0x4b8] sm:$0xff]
    %v7042 = vld [vmem:[#allocation3 + $0x4c0] sm:$0xff]
    %v7043 = vld [vmem:[#allocation3 + $0x4c8] sm:$0xff]
    %v7044 = vld [vmem:[#allocation3 + $0x4d0] sm:$0xff]
    %v7045 = vld [vmem:[#allocation3 + $0x4d8] sm:$0xff]
    %v7046 = vld [vmem:[#allocation3 + $0x4e0] sm:$0xff]
    %v7047 = vld [vmem:[#allocation3 + $0x4e8] sm:$0xff]
    %v7048 = vld [vmem:[#allocation3 + $0x4f0] sm:$0xff]
    %v7049 = vld [vmem:[#allocation3 + $0x4f8] sm:$0xff]
    %v7050 = vld [vmem:[%s7] sm:$0xf]
    %v7051 = vld [vmem:[%s7 + $0x4] sm:$0xf]
    %v7052 = vld [vmem:[%s7 + $0x8] sm:$0xf]
    %v7053 = vld [vmem:[%s7 + $0xc] sm:$0xf]
    %v7054 = vld [vmem:[%s7 + $0x10] sm:$0xf]
    %v7055 = vld [vmem:[%s7 + $0x14] sm:$0xf]
    %v7056 = vld [vmem:[%s7 + $0x18] sm:$0xf]
    %v7057 = vld [vmem:[%s7 + $0x1c] sm:$0xf]
    %v7058 = vld [vmem:[%s7 + $0x20] sm:$0xf]
    %v7059 = vld [vmem:[%s7 + $0x24] sm:$0xf]
    %v7060 = vld [vmem:[%s7 + $0x28] sm:$0xf]
    %v7061 = vld [vmem:[%s7 + $0x2c] sm:$0xf]
    %v7062 = vld [vmem:[%s7 + $0x30] sm:$0xf]
    %v7063 = vld [vmem:[%s7 + $0x34] sm:$0xf]
    %v7064 = vld [vmem:[%s7 + $0x38] sm:$0xf]
    %v7065 = vld [vmem:[%s7 + $0x3c] sm:$0xf]
    %v7066 = vld [vmem:[%s7 + $0x40] sm:$0xf]
    %v7067 = vld [vmem:[%s7 + $0x44] sm:$0xf]
    %v7068 = vld [vmem:[%s7 + $0x48] sm:$0xf]
    %v7069 = vld [vmem:[%s7 + $0x4c] sm:$0xf]
    %v7070 = vld [vmem:[%s7 + $0x50] sm:$0xf]
    %v7071 = vld [vmem:[%s7 + $0x54] sm:$0xf]
    %v7072 = vld [vmem:[%s7 + $0x58] sm:$0xf]
    %v7073 = vld [vmem:[%s7 + $0x5c] sm:$0xf]
    %v7074 = vld [vmem:[%s7 + $0x60] sm:$0xf]
    %v7075 = vld [vmem:[%s7 + $0x64] sm:$0xf]
    %v7076 = vld [vmem:[%s7 + $0x68] sm:$0xf]
    %v7077 = vld [vmem:[%s7 + $0x6c] sm:$0xf]
    %v7078 = vld [vmem:[%s7 + $0x70] sm:$0xf]
    %v7079 = vld [vmem:[%s7 + $0x74] sm:$0xf]
    %v7080 = vld [vmem:[%s7 + $0x78] sm:$0xf]
    %v7081 = vld [vmem:[%s7 + $0x7c] sm:$0xf]
    %v7082 = vld [vmem:[%s7 + $0x80] sm:$0xf]
    %v7083 = vld [vmem:[%s7 + $0x84] sm:$0xf]
    %v7084 = vld [vmem:[%s7 + $0x88] sm:$0xf]
    %v7085 = vld [vmem:[%s7 + $0x8c] sm:$0xf]
    %v7086 = vld [vmem:[%s7 + $0x90] sm:$0xf]
    %v7087 = vld [vmem:[%s7 + $0x94] sm:$0xf]
    %v7088 = vld [vmem:[%s7 + $0x98] sm:$0xf]
    %v7089 = vld [vmem:[%s7 + $0x9c] sm:$0xf]
    %v7090 = vld [vmem:[%s7 + $0xa0] sm:$0xf]
    %v7091 = vld [vmem:[%s7 + $0xa4] sm:$0xf]
    %v7092 = vld [vmem:[%s7 + $0xa8] sm:$0xf]
    %v7093 = vld [vmem:[%s7 + $0xac] sm:$0xf]
    %v7094 = vld [vmem:[%s7 + $0xb0] sm:$0xf]
    %v7095 = vld [vmem:[%s7 + $0xb4] sm:$0xf]
    %v7096 = vld [vmem:[%s7 + $0xb8] sm:$0xf]
    %v7097 = vld [vmem:[%s7 + $0xbc] sm:$0xf]
    %v7098 = vld [vmem:[%s7 + $0xc0] sm:$0xf]
    %v7099 = vld [vmem:[%s7 + $0xc4] sm:$0xf]
    %v7100 = vld [vmem:[%s7 + $0xc8] sm:$0xf]
    %v7101 = vld [vmem:[%s7 + $0xcc] sm:$0xf]
    %v7102 = vld [vmem:[%s7 + $0xd0] sm:$0xf]
    %v7103 = vld [vmem:[%s7 + $0xd4] sm:$0xf]
    %v7104 = vld [vmem:[%s7 + $0xd8] sm:$0xf]
    %v7105 = vld [vmem:[%s7 + $0xdc] sm:$0xf]
    %v7106 = vld [vmem:[%s7 + $0xe0] sm:$0xf]
    %v7107 = vld [vmem:[%s7 + $0xe4] sm:$0xf]
    %v7108 = vld [vmem:[%s7 + $0xe8] sm:$0xf]
    %v7109 = vld [vmem:[%s7 + $0xec] sm:$0xf]
    %v7110 = vld [vmem:[%s7 + $0xf0] sm:$0xf]
    %v7111 = vld [vmem:[%s7 + $0xf4] sm:$0xf]
    %v7112 = vld [vmem:[%s7 + $0xf8] sm:$0xf]
    %v7113 = vld [vmem:[%s7 + $0xfc] sm:$0xf]
    %v7114 = vld [vmem:[%s7 + $0x100] sm:$0xf]
    %v7115 = vld [vmem:[%s7 + $0x104] sm:$0xf]
    %v7116 = vld [vmem:[%s7 + $0x108] sm:$0xf]
    %v7117 = vld [vmem:[%s7 + $0x10c] sm:$0xf]
    %v7118 = vld [vmem:[%s7 + $0x110] sm:$0xf]
    %v7119 = vld [vmem:[%s7 + $0x114] sm:$0xf]
    %v7120 = vld [vmem:[%s7 + $0x118] sm:$0xf]
    %v7121 = vld [vmem:[%s7 + $0x11c] sm:$0xf]
    %v7122 = vld [vmem:[%s7 + $0x120] sm:$0xf]
    %v7123 = vld [vmem:[%s7 + $0x124] sm:$0xf]
    %v7124 = vld [vmem:[%s7 + $0x128] sm:$0xf]
    %v7125 = vld [vmem:[%s7 + $0x12c] sm:$0xf]
    %v7126 = vld [vmem:[%s7 + $0x130] sm:$0xf]
    %v7127 = vld [vmem:[%s7 + $0x134] sm:$0xf]
    %v7128 = vld [vmem:[%s7 + $0x138] sm:$0xf]
    %v7129 = vld [vmem:[%s7 + $0x13c] sm:$0xf]
    %v7130 = vld [vmem:[%s8] sm:$0x1]
    %v7132 = vlaneseq
    %v7133 = vshrl.u32 %v7132, 7
    %v7134 = vsub.s32 0, %v7133
    %v7135 = vrot.slane %v7130, %v7134
    %v7217 = vunpack.c.l.b16 %v7050
    %v7218 = vunpack.c.l.b16 %v7051
    %v7219 = vunpack.c.l.b16 %v7052
    %v7220 = vunpack.c.l.b16 %v7053
    %v7221 = vunpack.c.l.b16 %v7054
    %v7222 = vunpack.c.l.b16 %v7055
    %v7223 = vunpack.c.l.b16 %v7056
    %v7224 = vunpack.c.l.b16 %v7057
    %v7225 = vunpack.c.l.b16 %v7058
    %v7226 = vunpack.c.l.b16 %v7059
    %v7227 = vunpack.c.l.b16 %v7060
    %v7228 = vunpack.c.l.b16 %v7061
    %v7229 = vunpack.c.l.b16 %v7062
    %v7230 = vunpack.c.l.b16 %v7063
    %v7231 = vunpack.c.l.b16 %v7064
    %v7232 = vunpack.c.l.b16 %v7065
    %v7233 = vunpack.c.l.b16 %v7066
    %v7234 = vunpack.c.l.b16 %v7067
    %v7235 = vunpack.c.l.b16 %v7068
    %v7236 = vunpack.c.l.b16 %v7069
    %v7237 = vunpack.c.l.b16 %v7070
    %v7238 = vunpack.c.l.b16 %v7071
    %v7239 = vunpack.c.l.b16 %v7072
    %v7240 = vunpack.c.l.b16 %v7073
    %v7241 = vunpack.c.l.b16 %v7074
    %v7242 = vunpack.c.l.b16 %v7075
    %v7243 = vunpack.c.l.b16 %v7076
    %v7244 = vunpack.c.l.b16 %v7077
    %v7245 = vunpack.c.l.b16 %v7078
    %v7246 = vunpack.c.l.b16 %v7079
    %v7247 = vunpack.c.l.b16 %v7080
    %v7248 = vunpack.c.l.b16 %v7081
    %v7249 = vunpack.c.l.b16 %v7082
    %v7250 = vunpack.c.l.b16 %v7083
    %v7251 = vunpack.c.l.b16 %v7084
    %v7252 = vunpack.c.l.b16 %v7085
    %v7253 = vunpack.c.l.b16 %v7086
    %v7254 = vunpack.c.l.b16 %v7087
    %v7255 = vunpack.c.l.b16 %v7088
    %v7256 = vunpack.c.l.b16 %v7089
    %v7257 = vunpack.c.l.b16 %v7090
    %v7258 = vunpack.c.l.b16 %v7091
    %v7259 = vunpack.c.l.b16 %v7092
    %v7260 = vunpack.c.l.b16 %v7093
    %v7261 = vunpack.c.l.b16 %v7094
    %v7262 = vunpack.c.l.b16 %v7095
    %v7263 = vunpack.c.l.b16 %v7096
    %v7264 = vunpack.c.l.b16 %v7097
    %v7265 = vunpack.c.l.b16 %v7098
    %v7266 = vunpack.c.l.b16 %v7099
    %v7267 = vunpack.c.l.b16 %v7100
    %v7268 = vunpack.c.l.b16 %v7101
    %v7269 = vunpack.c.l.b16 %v7102
    %v7270 = vunpack.c.l.b16 %v7103
    %v7271 = vunpack.c.l.b16 %v7104
    %v7272 = vunpack.c.l.b16 %v7105
    %v7273 = vunpack.c.l.b16 %v7106
    %v7274 = vunpack.c.l.b16 %v7107
    %v7275 = vunpack.c.l.b16 %v7108
    %v7276 = vunpack.c.l.b16 %v7109
    %v7277 = vunpack.c.l.b16 %v7110
    %v7278 = vunpack.c.l.b16 %v7111
    %v7279 = vunpack.c.l.b16 %v7112
    %v7280 = vunpack.c.l.b16 %v7113
    %v7281 = vunpack.c.l.b16 %v7114
    %v7282 = vunpack.c.l.b16 %v7115
    %v7283 = vunpack.c.l.b16 %v7116
    %v7284 = vunpack.c.l.b16 %v7117
    %v7285 = vunpack.c.l.b16 %v7118
    %v7286 = vunpack.c.l.b16 %v7119
    %v7287 = vunpack.c.l.b16 %v7120
    %v7288 = vunpack.c.l.b16 %v7121
    %v7289 = vunpack.c.l.b16 %v7122
    %v7290 = vunpack.c.l.b16 %v7123
    %v7291 = vunpack.c.l.b16 %v7124
    %v7292 = vunpack.c.l.b16 %v7125
    %v7293 = vunpack.c.l.b16 %v7126
    %v7294 = vunpack.c.l.b16 %v7127
    %v7295 = vunpack.c.l.b16 %v7128
    %v7296 = vunpack.c.l.b16 %v7129
    %v7297 = vpack.c.b16 %v7218, %v7217
    %v7298 = vpack.c.b16 %v7220, %v7219
    %v7299 = vpack.c.b16 %v7222, %v7221
    %v7300 = vpack.c.b16 %v7224, %v7223
    %v7301 = vpack.c.b16 %v7226, %v7225
    %v7302 = vpack.c.b16 %v7228, %v7227
    %v7303 = vpack.c.b16 %v7230, %v7229
    %v7304 = vpack.c.b16 %v7232, %v7231
    %v7305 = vpack.c.b16 %v7234, %v7233
    %v7306 = vpack.c.b16 %v7236, %v7235
    %v7307 = vpack.c.b16 %v7238, %v7237
    %v7308 = vpack.c.b16 %v7240, %v7239
    %v7309 = vpack.c.b16 %v7242, %v7241
    %v7310 = vpack.c.b16 %v7244, %v7243
    %v7311 = vpack.c.b16 %v7246, %v7245
    %v7312 = vpack.c.b16 %v7248, %v7247
    %v7313 = vpack.c.b16 %v7250, %v7249
    %v7314 = vpack.c.b16 %v7252, %v7251
    %v7315 = vpack.c.b16 %v7254, %v7253
    %v7316 = vpack.c.b16 %v7256, %v7255
    %v7317 = vpack.c.b16 %v7258, %v7257
    %v7318 = vpack.c.b16 %v7260, %v7259
    %v7319 = vpack.c.b16 %v7262, %v7261
    %v7320 = vpack.c.b16 %v7264, %v7263
    %v7321 = vpack.c.b16 %v7266, %v7265
    %v7322 = vpack.c.b16 %v7268, %v7267
    %v7323 = vpack.c.b16 %v7270, %v7269
    %v7324 = vpack.c.b16 %v7272, %v7271
    %v7325 = vpack.c.b16 %v7274, %v7273
    %v7326 = vpack.c.b16 %v7276, %v7275
    %v7327 = vpack.c.b16 %v7278, %v7277
    %v7328 = vpack.c.b16 %v7280, %v7279
    %v7329 = vpack.c.b16 %v7282, %v7281
    %v7330 = vpack.c.b16 %v7284, %v7283
    %v7331 = vpack.c.b16 %v7286, %v7285
    %v7332 = vpack.c.b16 %v7288, %v7287
    %v7333 = vpack.c.b16 %v7290, %v7289
    %v7334 = vpack.c.b16 %v7292, %v7291
    %v7335 = vpack.c.b16 %v7294, %v7293
    %v7336 = vpack.c.b16 %v7296, %v7295
    %7377 = vmatprep.subr.bf16.mxu0 0
    %7378 = vmatpush1.bf16.msra.mxu0 %v7297
    %7379 = vmatprep.subr.bf16.mxu0 0
    %7380 = vmatpush1.bf16.msra.mxu0 %v7298
    %7381 = vmatprep.subr.bf16.mxu0 0
    %7382 = vmatpush1.bf16.msra.mxu0 %v7299
    %7383 = vmatprep.subr.bf16.mxu0 0
    %7384 = vmatpush1.bf16.msra.mxu0 %v7300
    %7385 = vmatprep.subr.bf16.mxu0 0
    %7386 = vmatpush1.bf16.msra.mxu0 %v7301
    %7387 = vmatprep.subr.bf16.mxu0 0
    %7388 = vmatpush1.bf16.msra.mxu0 %v7302
    %7389 = vmatprep.subr.bf16.mxu0 0
    %7390 = vmatpush1.bf16.msra.mxu0 %v7303
    %7391 = vmatprep.subr.bf16.mxu0 0
    %7392 = vmatpush1.bf16.msra.mxu0 %v7304
    %7393 = vmatprep.subr.bf16.mxu0 0
    %7394 = vmatpush1.bf16.msra.mxu0 %v7305
    %7395 = vmatprep.subr.bf16.mxu0 0
    %7396 = vmatpush1.bf16.msra.mxu0 %v7306
    %7397 = vmatprep.subr.bf16.mxu0 0
    %7398 = vmatpush1.bf16.msra.mxu0 %v7307
    %7399 = vmatprep.subr.bf16.mxu0 0
    %7400 = vmatpush1.bf16.msra.mxu0 %v7308
    %7401 = vmatprep.subr.bf16.mxu0 0
    %7402 = vmatpush1.bf16.msra.mxu0 %v7309
    %7403 = vmatprep.subr.bf16.mxu0 0
    %7404 = vmatpush1.bf16.msra.mxu0 %v7310
    %7405 = vmatprep.subr.bf16.mxu0 0
    %7406 = vmatpush1.bf16.msra.mxu0 %v7311
    %7407 = vmatprep.subr.bf16.mxu0 0
    %7408 = vmatpush1.bf16.msra.mxu0 %v7312
    %7409 = vmatprep.mubr.bf16.mxu0 %v6891
    %7410 = vmatmul.mubr.bf16.gmra.mrb[0].mxu0 %v6890
    %v7411 = vpop.f32.mrb[0].mxu0
    %v7412 = vadd.f32 %v7135, %v7411
    %v7413 = vpop.f32.mrb[0].mxu0
    %v7414 = vpop.f32.mrb[0].mxu0
    %v7415 = vadd.f32 %v7135, %v7414
    %v7416 = vpop.f32.mrb[0].mxu0
    %7417 = vmatprep.mubr.bf16.mxu0 %v6896
    %7418 = vmatmul.mubr.bf16.gmra.mrb[0].mxu0 %v6895
    %v7419 = vpop.f32.mrb[0].mxu0
    %v7420 = vadd.f32 %v7135, %v7419
    %v7421 = vpop.f32.mrb[0].mxu0
    %v7422 = vpop.f32.mrb[0].mxu0
    %v7423 = vadd.f32 %v7135, %v7422
    %v7424 = vpop.f32.mrb[0].mxu0
    %7425 = vmatprep.mubr.bf16.mxu0 %v6901
    %7426 = vmatmul.mubr.bf16.gmra.mrb[0].mxu0 %v6900
    %v7427 = vpop.f32.mrb[0].mxu0
    %v7428 = vadd.f32 %v7135, %v7427
    %v7429 = vpop.f32.mrb[0].mxu0
    %v7430 = vpop.f32.mrb[0].mxu0
    %v7431 = vadd.f32 %v7135, %v7430
    %v7432 = vpop.f32.mrb[0].mxu0
    %7433 = vmatprep.mubr.bf16.mxu0 %v6906
    %7434 = vmatmul.mubr.bf16.gmra.mrb[0].mxu0 %v6905
    %v7435 = vpop.f32.mrb[0].mxu0
    %v7436 = vadd.f32 %v7135, %v7435
    %v7437 = vpop.f32.mrb[0].mxu0
    %v7438 = vpop.f32.mrb[0].mxu0
    %v7439 = vadd.f32 %v7135, %v7438
    %v7440 = vpop.f32.mrb[0].mxu0
    %7441 = vmatprep.mubr.bf16.mxu0 %v6911
    %7442 = vmatmul.mubr.bf16.gmra.mrb[0].mxu0 %v6910
    %v7443 = vpop.f32.mrb[0].mxu0
    %v7444 = vadd.f32 %v7135, %v7443
    %v7445 = vpop.f32.mrb[0].mxu0
    %v7446 = vpop.f32.mrb[0].mxu0
    %v7447 = vadd.f32 %v7135, %v7446
    %v7448 = vpop.f32.mrb[0].mxu0
    %7449 = vmatprep.mubr.bf16.mxu0 %v6916
    %7450 = vmatmul.mubr.bf16.gmra.mrb[0].mxu0 %v6915
    %v7451 = vpop.f32.mrb[0].mxu0
    %v7452 = vadd.f32 %v7135, %v7451
    %v7453 = vpop.f32.mrb[0].mxu0
    %v7454 = vpop.f32.mrb[0].mxu0
    %v7455 = vadd.f32 %v7135, %v7454
    %v7456 = vpop.f32.mrb[0].mxu0
    %7457 = vmatprep.mubr.bf16.mxu0 %v6921
    %7458 = vmatmul.mubr.bf16.gmra.mrb[0].mxu0 %v6920
    %v7459 = vpop.f32.mrb[0].mxu0
    %v7460 = vadd.f32 %v7135, %v7459
    %v7461 = vpop.f32.mrb[0].mxu0
    %v7462 = vpop.f32.mrb[0].mxu0
    %v7463 = vadd.f32 %v7135, %v7462
    %v7464 = vpop.f32.mrb[0].mxu0
    %7465 = vmatprep.mubr.bf16.mxu0 %v6926
    %7466 = vmatmul.mubr.bf16.gmra.mrb[0].mxu0 %v6925
    %v7467 = vpop.f32.mrb[0].mxu0
    %v7468 = vadd.f32 %v7135, %v7467
    %v7469 = vpop.f32.mrb[0].mxu0
    %v7470 = vpop.f32.mrb[0].mxu0
    %v7471 = vadd.f32 %v7135, %v7470
    %v7472 = vpop.f32.mrb[0].mxu0
    %7473 = vmatprep.mubr.bf16.mxu0 %v6931
    %7474 = vmatmul.mubr.bf16.gmra.mrb[0].mxu0 %v6930
    %v7475 = vpop.f32.mrb[0].mxu0
    %v7476 = vadd.f32 %v7135, %v7475
    %v7477 = vpop.f32.mrb[0].mxu0
    %v7478 = vpop.f32.mrb[0].mxu0
    %v7479 = vadd.f32 %v7135, %v7478
    %v7480 = vpop.f32.mrb[0].mxu0
    %7481 = vmatprep.mubr.bf16.mxu0 %v6936
    %7482 = vmatmul.mubr.bf16.gmra.mrb[0].mxu0 %v6935
    %v7483 = vpop.f32.mrb[0].mxu0
    %v7484 = vadd.f32 %v7135, %v7483
    %v7485 = vpop.f32.mrb[0].mxu0
    %v7486 = vpop.f32.mrb[0].mxu0
    %v7487 = vadd.f32 %v7135, %v7486
    %v7488 = vpop.f32.mrb[0].mxu0
    %7489 = vmatprep.mubr.bf16.mxu0 %v6941
    %7490 = vmatmul.mubr.bf16.gmra.mrb[0].mxu0 %v6940
    %v7491 = vpop.f32.mrb[0].mxu0
    %v7492 = vadd.f32 %v7135, %v7491
    %v7493 = vpop.f32.mrb[0].mxu0
    %v7494 = vpop.f32.mrb[0].mxu0
    %v7495 = vadd.f32 %v7135, %v7494
    %v7496 = vpop.f32.mrb[0].mxu0
    %7497 = vmatprep.mubr.bf16.mxu0 %v6946
    %7498 = vmatmul.mubr.bf16.gmra.mrb[0].mxu0 %v6945
    %v7499 = vpop.f32.mrb[0].mxu0
    %v7500 = vadd.f32 %v7135, %v7499
    %v7501 = vpop.f32.mrb[0].mxu0
    %v7502 = vpop.f32.mrb[0].mxu0
    %v7503 = vadd.f32 %v7135, %v7502
    %v7504 = vpop.f32.mrb[0].mxu0
    %7505 = vmatprep.mubr.bf16.mxu0 %v6951
    %7506 = vmatmul.mubr.bf16.gmra.mrb[0].mxu0 %v6950
    %v7507 = vpop.f32.mrb[0].mxu0
    %v7508 = vadd.f32 %v7135, %v7507
    %v7509 = vpop.f32.mrb[0].mxu0
    %v7510 = vpop.f32.mrb[0].mxu0
    %v7511 = vadd.f32 %v7135, %v7510
    %v7512 = vpop.f32.mrb[0].mxu0
    %7513 = vmatprep.mubr.bf16.mxu0 %v6956
    %7514 = vmatmul.mubr.bf16.gmra.mrb[0].mxu0 %v6955
    %v7515 = vpop.f32.mrb[0].mxu0
    %v7516 = vadd.f32 %v7135, %v7515
    %v7517 = vpop.f32.mrb[0].mxu0
    %v7518 = vpop.f32.mrb[0].mxu0
    %v7519 = vadd.f32 %v7135, %v7518
    %v7520 = vpop.f32.mrb[0].mxu0
    %7521 = vmatprep.mubr.bf16.mxu0 %v6961
    %7522 = vmatmul.mubr.bf16.gmra.mrb[0].mxu0 %v6960
    %v7523 = vpop.f32.mrb[0].mxu0
    %v7524 = vadd.f32 %v7135, %v7523
    %v7525 = vpop.f32.mrb[0].mxu0
    %v7526 = vpop.f32.mrb[0].mxu0
    %v7527 = vadd.f32 %v7135, %v7526
    %v7528 = vpop.f32.mrb[0].mxu0
    %7529 = vmatprep.mubr.bf16.mxu0 %v6966
    %7530 = vmatmul.mubr.bf16.gmra.mrb[0].mxu0 %v6965
    %v7531 = vpop.f32.mrb[0].mxu0
    %v7532 = vadd.f32 %v7135, %v7531
    %v7533 = vpop.f32.mrb[0].mxu0
    %v7534 = vpop.f32.mrb[0].mxu0
    %v7535 = vadd.f32 %v7135, %v7534
    %v7536 = vpop.f32.mrb[0].mxu0
    %7537 = vmatprep.mubr.bf16.mxu0 %v6971
    %7538 = vmatmul.mubr.bf16.gmra.mrb[0].mxu0 %v6970
    %v7539 = vpop.f32.mrb[0].mxu0
    %v7540 = vadd.f32 %v7135, %v7539
    %v7541 = vpop.f32.mrb[0].mxu0
    %v7542 = vpop.f32.mrb[0].mxu0
    %v7543 = vadd.f32 %v7135, %v7542
    %v7544 = vpop.f32.mrb[0].mxu0
    %7545 = vmatprep.mubr.bf16.mxu0 %v6976
    %7546 = vmatmul.mubr.bf16.gmra.mrb[0].mxu0 %v6975
    %v7547 = vpop.f32.mrb[0].mxu0
    %v7548 = vadd.f32 %v7135, %v7547
    %v7549 = vpop.f32.mrb[0].mxu0
    %v7550 = vpop.f32.mrb[0].mxu0
    %v7551 = vadd.f32 %v7135, %v7550
    %v7552 = vpop.f32.mrb[0].mxu0
    %7553 = vmatprep.mubr.bf16.mxu0 %v6981
    %7554 = vmatmul.mubr.bf16.gmra.mrb[0].mxu0 %v6980
    %v7555 = vpop.f32.mrb[0].mxu0
    %v7556 = vadd.f32 %v7135, %v7555
    %v7557 = vpop.f32.mrb[0].mxu0
    %v7558 = vpop.f32.mrb[0].mxu0
    %v7559 = vadd.f32 %v7135, %v7558
    %v7560 = vpop.f32.mrb[0].mxu0
    %7561 = vmatprep.mubr.bf16.mxu0 %v6986
    %7562 = vmatmul.mubr.bf16.gmra.mrb[0].mxu0 %v6985
    %v7563 = vpop.f32.mrb[0].mxu0
    %v7564 = vadd.f32 %v7135, %v7563
    %v7565 = vpop.f32.mrb[0].mxu0
    %v7566 = vpop.f32.mrb[0].mxu0
    %v7567 = vadd.f32 %v7135, %v7566
    %v7568 = vpop.f32.mrb[0].mxu0
    %7569 = vmatprep.mubr.bf16.mxu0 %v6991
    %7570 = vmatmul.mubr.bf16.gmra.mrb[0].mxu0 %v6990
    %v7571 = vpop.f32.mrb[0].mxu0
    %v7572 = vadd.f32 %v7135, %v7571
    %v7573 = vpop.f32.mrb[0].mxu0
    %v7574 = vpop.f32.mrb[0].mxu0
    %v7575 = vadd.f32 %v7135, %v7574
    %v7576 = vpop.f32.mrb[0].mxu0
    %7577 = vmatprep.mubr.bf16.mxu0 %v6996
    %7578 = vmatmul.mubr.bf16.gmra.mrb[0].mxu0 %v6995
    %v7579 = vpop.f32.mrb[0].mxu0
    %v7580 = vadd.f32 %v7135, %v7579
    %v7581 = vpop.f32.mrb[0].mxu0
    %v7582 = vpop.f32.mrb[0].mxu0
    %v7583 = vadd.f32 %v7135, %v7582
    %v7584 = vpop.f32.mrb[0].mxu0
    %7585 = vmatprep.mubr.bf16.mxu0 %v7001
    %7586 = vmatmul.mubr.bf16.gmra.mrb[0].mxu0 %v7000
    %v7587 = vpop.f32.mrb[0].mxu0
    %v7588 = vadd.f32 %v7135, %v7587
    %v7589 = vpop.f32.mrb[0].mxu0
    %v7590 = vpop.f32.mrb[0].mxu0
    %v7591 = vadd.f32 %v7135, %v7590
    %v7592 = vpop.f32.mrb[0].mxu0
    %7593 = vmatprep.mubr.bf16.mxu0 %v7006
    %7594 = vmatmul.mubr.bf16.gmra.mrb[0].mxu0 %v7005
    %v7595 = vpop.f32.mrb[0].mxu0
    %v7596 = vadd.f32 %v7135, %v7595
    %v7597 = vpop.f32.mrb[0].mxu0
    %v7598 = vpop.f32.mrb[0].mxu0
    %v7599 = vadd.f32 %v7135, %v7598
    %v7600 = vpop.f32.mrb[0].mxu0
    %7601 = vmatprep.mubr.bf16.mxu0 %v7011
    %7602 = vmatmul.mubr.bf16.gmra.mrb[0].mxu0 %v7010
    %v7603 = vpop.f32.mrb[0].mxu0
    %v7604 = vadd.f32 %v7135, %v7603
    %v7605 = vpop.f32.mrb[0].mxu0
    %v7606 = vpop.f32.mrb[0].mxu0
    %v7607 = vadd.f32 %v7135, %v7606
    %v7608 = vpop.f32.mrb[0].mxu0
    %7609 = vmatprep.mubr.bf16.mxu0 %v7016
    %7610 = vmatmul.mubr.bf16.gmra.mrb[0].mxu0 %v7015
    %v7611 = vpop.f32.mrb[0].mxu0
    %v7612 = vadd.f32 %v7135, %v7611
    %v7613 = vpop.f32.mrb[0].mxu0
    %v7614 = vpop.f32.mrb[0].mxu0
    %v7615 = vadd.f32 %v7135, %v7614
    %v7616 = vpop.f32.mrb[0].mxu0
    %7617 = vmatprep.mubr.bf16.mxu0 %v7021
    %7618 = vmatmul.mubr.bf16.gmra.mrb[0].mxu0 %v7020
    %v7619 = vpop.f32.mrb[0].mxu0
    %v7620 = vadd.f32 %v7135, %v7619
    %v7621 = vpop.f32.mrb[0].mxu0
    %v7622 = vpop.f32.mrb[0].mxu0
    %v7623 = vadd.f32 %v7135, %v7622
    %v7624 = vpop.f32.mrb[0].mxu0
    %7625 = vmatprep.mubr.bf16.mxu0 %v7026
    %7626 = vmatmul.mubr.bf16.gmra.mrb[0].mxu0 %v7025
    %v7627 = vpop.f32.mrb[0].mxu0
    %v7628 = vadd.f32 %v7135, %v7627
    %v7629 = vpop.f32.mrb[0].mxu0
    %v7630 = vpop.f32.mrb[0].mxu0
    %v7631 = vadd.f32 %v7135, %v7630
    %v7632 = vpop.f32.mrb[0].mxu0
    %7633 = vmatprep.mubr.bf16.mxu0 %v7031
    %7634 = vmatmul.mubr.bf16.gmra.mrb[0].mxu0 %v7030
    %v7635 = vpop.f32.mrb[0].mxu0
    %v7636 = vadd.f32 %v7135, %v7635
    %v7637 = vpop.f32.mrb[0].mxu0
    %v7638 = vpop.f32.mrb[0].mxu0
    %v7639 = vadd.f32 %v7135, %v7638
    %v7640 = vpop.f32.mrb[0].mxu0
    %7641 = vmatprep.mubr.bf16.mxu0 %v7036
    %7642 = vmatmul.mubr.bf16.gmra.mrb[0].mxu0 %v7035
    %v7643 = vpop.f32.mrb[0].mxu0
    %v7644 = vadd.f32 %v7135, %v7643
    %v7645 = vpop.f32.mrb[0].mxu0
    %v7646 = vpop.f32.mrb[0].mxu0
    %v7647 = vadd.f32 %v7135, %v7646
    %v7648 = vpop.f32.mrb[0].mxu0
    %7649 = vmatprep.mubr.bf16.mxu0 %v7041
    %7650 = vmatmul.mubr.bf16.gmra.mrb[0].mxu0 %v7040
    %v7651 = vpop.f32.mrb[0].mxu0
    %v7652 = vadd.f32 %v7135, %v7651
    %v7653 = vpop.f32.mrb[0].mxu0
    %v7654 = vpop.f32.mrb[0].mxu0
    %v7655 = vadd.f32 %v7135, %v7654
    %v7656 = vpop.f32.mrb[0].mxu0
    %7657 = vmatprep.mubr.bf16.mxu0 %v7046
    %7658 = vmatmul.mubr.bf16.gmra.mrb[0].mxu0 %v7045
    %v7659 = vpop.f32.mrb[0].mxu0
    %v7660 = vadd.f32 %v7135, %v7659
    %v7661 = vpop.f32.mrb[0].mxu0
    %v7662 = vpop.f32.mrb[0].mxu0
    %v7663 = vadd.f32 %v7135, %v7662
    %v7664 = vpop.f32.mrb[0].mxu0
    %7665 = vdwg.mxu0
    %7666 = vmatprep.subr.bf16.mxu0 0
    %7667 = vmatpush1.bf16.msra.mxu0 %v7313
    %7668 = vmatprep.subr.bf16.mxu0 0
    %7669 = vmatpush1.bf16.msra.mxu0 %v7314
    %7670 = vmatprep.subr.bf16.mxu0 0
    %7671 = vmatpush1.bf16.msra.mxu0 %v7315
    %7672 = vmatprep.subr.bf16.mxu0 0
    %7673 = vmatpush1.bf16.msra.mxu0 %v7316
    %7674 = vmatprep.subr.bf16.mxu0 0
    %7675 = vmatpush1.bf16.msra.mxu0 %v7317
    %7676 = vmatprep.subr.bf16.mxu0 0
    %7677 = vmatpush1.bf16.msra.mxu0 %v7318
    %7678 = vmatprep.subr.bf16.mxu0 0
    %7679 = vmatpush1.bf16.msra.mxu0 %v7319
    %7680 = vmatprep.subr.bf16.mxu0 0
    %7681 = vmatpush1.bf16.msra.mxu0 %v7320
    %7682 = vmatprep.subr.bf16.mxu0 0
    %7683 = vmatpush1.bf16.msra.mxu0 %v7321
    %7684 = vmatprep.subr.bf16.mxu0 0
    %7685 = vmatpush1.bf16.msra.mxu0 %v7322
    %7686 = vmatprep.subr.bf16.mxu0 0
    %7687 = vmatpush1.bf16.msra.mxu0 %v7323
    %7688 = vmatprep.subr.bf16.mxu0 0
    %7689 = vmatpush1.bf16.msra.mxu0 %v7324
    %7690 = vmatprep.subr.bf16.mxu0 0
    %7691 = vmatpush1.bf16.msra.mxu0 %v7325
    %7692 = vmatprep.subr.bf16.mxu0 0
    %7693 = vmatpush1.bf16.msra.mxu0 %v7326
    %7694 = vmatprep.subr.bf16.mxu0 0
    %7695 = vmatpush1.bf16.msra.mxu0 %v7327
    %7696 = vmatprep.subr.bf16.mxu0 0
    %7697 = vmatpush1.bf16.msra.mxu0 %v7328
    %7698 = vmatprep.mubr.bf16.mxu0 %v6893
    %7699 = vmatmul.mubr.bf16.gmra.mrb[0].mxu0 %v6892
    %v7700 = vpop.f32.mrb[0].mxu0
    %v7701 = vadd.f32 %v7412, %v7700
    %v7702 = vpop.f32.mrb[0].mxu0
    %v7703 = vpop.f32.mrb[0].mxu0
    %v7704 = vadd.f32 %v7415, %v7703
    %v7705 = vpop.f32.mrb[0].mxu0
    %7706 = vmatprep.mubr.bf16.mxu0 %v6898
    %7707 = vmatmul.mubr.bf16.gmra.mrb[0].mxu0 %v6897
    %v7708 = vpop.f32.mrb[0].mxu0
    %v7709 = vadd.f32 %v7420, %v7708
    %v7710 = vpop.f32.mrb[0].mxu0
    %v7711 = vpop.f32.mrb[0].mxu0
    %v7712 = vadd.f32 %v7423, %v7711
    %v7713 = vpop.f32.mrb[0].mxu0
    %7714 = vmatprep.mubr.bf16.mxu0 %v6903
    %7715 = vmatmul.mubr.bf16.gmra.mrb[0].mxu0 %v6902
    %v7716 = vpop.f32.mrb[0].mxu0
    %v7717 = vadd.f32 %v7428, %v7716
    %v7718 = vpop.f32.mrb[0].mxu0
    %v7719 = vpop.f32.mrb[0].mxu0
    %v7720 = vadd.f32 %v7431, %v7719
    %v7721 = vpop.f32.mrb[0].mxu0
    %7722 = vmatprep.mubr.bf16.mxu0 %v6908
    %7723 = vmatmul.mubr.bf16.gmra.mrb[0].mxu0 %v6907
    %v7724 = vpop.f32.mrb[0].mxu0
    %v7725 = vadd.f32 %v7436, %v7724
    %v7726 = vpop.f32.mrb[0].mxu0
    %v7727 = vpop.f32.mrb[0].mxu0
    %v7728 = vadd.f32 %v7439, %v7727
    %v7729 = vpop.f32.mrb[0].mxu0
    %7730 = vmatprep.mubr.bf16.mxu0 %v6913
    %7731 = vmatmul.mubr.bf16.gmra.mrb[0].mxu0 %v6912
    %v7732 = vpop.f32.mrb[0].mxu0
    %v7733 = vadd.f32 %v7444, %v7732
    %v7734 = vpop.f32.mrb[0].mxu0
    %v7735 = vpop.f32.mrb[0].mxu0
    %v7736 = vadd.f32 %v7447, %v7735
    %v7737 = vpop.f32.mrb[0].mxu0
    %7738 = vmatprep.mubr.bf16.mxu0 %v6918
    %7739 = vmatmul.mubr.bf16.gmra.mrb[0].mxu0 %v6917
    %v7740 = vpop.f32.mrb[0].mxu0
    %v7741 = vadd.f32 %v7452, %v7740
    %v7742 = vpop.f32.mrb[0].mxu0
    %v7743 = vpop.f32.mrb[0].mxu0
    %v7744 = vadd.f32 %v7455, %v7743
    %v7745 = vpop.f32.mrb[0].mxu0
    %7746 = vmatprep.mubr.bf16.mxu0 %v6923
    %7747 = vmatmul.mubr.bf16.gmra.mrb[0].mxu0 %v6922
    %v7748 = vpop.f32.mrb[0].mxu0
    %v7749 = vadd.f32 %v7460, %v7748
    %v7750 = vpop.f32.mrb[0].mxu0
    %v7751 = vpop.f32.mrb[0].mxu0
    %v7752 = vadd.f32 %v7463, %v7751
    %v7753 = vpop.f32.mrb[0].mxu0
    %7754 = vmatprep.mubr.bf16.mxu0 %v6928
    %7755 = vmatmul.mubr.bf16.gmra.mrb[0].mxu0 %v6927
    %v7756 = vpop.f32.mrb[0].mxu0
    %v7757 = vadd.f32 %v7468, %v7756
    %v7758 = vpop.f32.mrb[0].mxu0
    %v7759 = vpop.f32.mrb[0].mxu0
    %v7760 = vadd.f32 %v7471, %v7759
    %v7761 = vpop.f32.mrb[0].mxu0
    %7762 = vmatprep.mubr.bf16.mxu0 %v6933
    %7763 = vmatmul.mubr.bf16.gmra.mrb[0].mxu0 %v6932
    %v7764 = vpop.f32.mrb[0].mxu0
    %v7765 = vadd.f32 %v7476, %v7764
    %v7766 = vpop.f32.mrb[0].mxu0
    %v7767 = vpop.f32.mrb[0].mxu0
    %v7768 = vadd.f32 %v7479, %v7767
    %v7769 = vpop.f32.mrb[0].mxu0
    %7770 = vmatprep.mubr.bf16.mxu0 %v6938
    %7771 = vmatmul.mubr.bf16.gmra.mrb[0].mxu0 %v6937
    %v7772 = vpop.f32.mrb[0].mxu0
    %v7773 = vadd.f32 %v7484, %v7772
    %v7774 = vpop.f32.mrb[0].mxu0
    %v7775 = vpop.f32.mrb[0].mxu0
    %v7776 = vadd.f32 %v7487, %v7775
    %v7777 = vpop.f32.mrb[0].mxu0
    %7778 = vmatprep.mubr.bf16.mxu0 %v6943
    %7779 = vmatmul.mubr.bf16.gmra.mrb[0].mxu0 %v6942
    %v7780 = vpop.f32.mrb[0].mxu0
    %v7781 = vadd.f32 %v7492, %v7780
    %v7782 = vpop.f32.mrb[0].mxu0
    %v7783 = vpop.f32.mrb[0].mxu0
    %v7784 = vadd.f32 %v7495, %v7783
    %v7785 = vpop.f32.mrb[0].mxu0
    %7786 = vmatprep.mubr.bf16.mxu0 %v6948
    %7787 = vmatmul.mubr.bf16.gmra.mrb[0].mxu0 %v6947
    %v7788 = vpop.f32.mrb[0].mxu0
    %v7789 = vadd.f32 %v7500, %v7788
    %v7790 = vpop.f32.mrb[0].mxu0
    %v7791 = vpop.f32.mrb[0].mxu0
    %v7792 = vadd.f32 %v7503, %v7791
    %v7793 = vpop.f32.mrb[0].mxu0
    %7794 = vmatprep.mubr.bf16.mxu0 %v6953
    %7795 = vmatmul.mubr.bf16.gmra.mrb[0].mxu0 %v6952
    %v7796 = vpop.f32.mrb[0].mxu0
    %v7797 = vadd.f32 %v7508, %v7796
    %v7798 = vpop.f32.mrb[0].mxu0
    %v7799 = vpop.f32.mrb[0].mxu0
    %v7800 = vadd.f32 %v7511, %v7799
    %v7801 = vpop.f32.mrb[0].mxu0
    %7802 = vmatprep.mubr.bf16.mxu0 %v6958
    %7803 = vmatmul.mubr.bf16.gmra.mrb[0].mxu0 %v6957
    %v7804 = vpop.f32.mrb[0].mxu0
    %v7805 = vadd.f32 %v7516, %v7804
    %v7806 = vpop.f32.mrb[0].mxu0
    %v7807 = vpop.f32.mrb[0].mxu0
    %v7808 = vadd.f32 %v7519, %v7807
    %v7809 = vpop.f32.mrb[0].mxu0
    %7810 = vmatprep.mubr.bf16.mxu0 %v6963
    %7811 = vmatmul.mubr.bf16.gmra.mrb[0].mxu0 %v6962
    %v7812 = vpop.f32.mrb[0].mxu0
    %v7813 = vadd.f32 %v7524, %v7812
    %v7814 = vpop.f32.mrb[0].mxu0
    %v7815 = vpop.f32.mrb[0].mxu0
    %v7816 = vadd.f32 %v7527, %v7815
    %v7817 = vpop.f32.mrb[0].mxu0
    %7818 = vmatprep.mubr.bf16.mxu0 %v6968
    %7819 = vmatmul.mubr.bf16.gmra.mrb[0].mxu0 %v6967
    %v7820 = vpop.f32.mrb[0].mxu0
    %v7821 = vadd.f32 %v7532, %v7820
    %v7822 = vpop.f32.mrb[0].mxu0
    %v7823 = vpop.f32.mrb[0].mxu0
    %v7824 = vadd.f32 %v7535, %v7823
    %v7825 = vpop.f32.mrb[0].mxu0
    %7826 = vmatprep.mubr.bf16.mxu0 %v6973
    %7827 = vmatmul.mubr.bf16.gmra.mrb[0].mxu0 %v6972
    %v7828 = vpop.f32.mrb[0].mxu0
    %v7829 = vadd.f32 %v7540, %v7828
    %v7830 = vpop.f32.mrb[0].mxu0
    %v7831 = vpop.f32.mrb[0].mxu0
    %v7832 = vadd.f32 %v7543, %v7831
    %v7833 = vpop.f32.mrb[0].mxu0
    %7834 = vmatprep.mubr.bf16.mxu0 %v6978
    %7835 = vmatmul.mubr.bf16.gmra.mrb[0].mxu0 %v6977
    %v7836 = vpop.f32.mrb[0].mxu0
    %v7837 = vadd.f32 %v7548, %v7836
    %v7838 = vpop.f32.mrb[0].mxu0
    %v7839 = vpop.f32.mrb[0].mxu0
    %v7840 = vadd.f32 %v7551, %v7839
    %v7841 = vpop.f32.mrb[0].mxu0
    %7842 = vmatprep.mubr.bf16.mxu0 %v6983
    %7843 = vmatmul.mubr.bf16.gmra.mrb[0].mxu0 %v6982
    %v7844 = vpop.f32.mrb[0].mxu0
    %v7845 = vadd.f32 %v7556, %v7844
    %v7846 = vpop.f32.mrb[0].mxu0
    %v7847 = vpop.f32.mrb[0].mxu0
    %v7848 = vadd.f32 %v7559, %v7847
    %v7849 = vpop.f32.mrb[0].mxu0
    %7850 = vmatprep.mubr.bf16.mxu0 %v6988
    %7851 = vmatmul.mubr.bf16.gmra.mrb[0].mxu0 %v6987
    %v7852 = vpop.f32.mrb[0].mxu0
    %v7853 = vadd.f32 %v7564, %v7852
    %v7854 = vpop.f32.mrb[0].mxu0
    %v7855 = vpop.f32.mrb[0].mxu0
    %v7856 = vadd.f32 %v7567, %v7855
    %v7857 = vpop.f32.mrb[0].mxu0
    %7858 = vmatprep.mubr.bf16.mxu0 %v6993
    %7859 = vmatmul.mubr.bf16.gmra.mrb[0].mxu0 %v6992
    %v7860 = vpop.f32.mrb[0].mxu0
    %v7861 = vadd.f32 %v7572, %v7860
    %v7862 = vpop.f32.mrb[0].mxu0
    %v7863 = vpop.f32.mrb[0].mxu0
    %v7864 = vadd.f32 %v7575, %v7863
    %v7865 = vpop.f32.mrb[0].mxu0
    %7866 = vmatprep.mubr.bf16.mxu0 %v6998
    %7867 = vmatmul.mubr.bf16.gmra.mrb[0].mxu0 %v6997
    %v7868 = vpop.f32.mrb[0].mxu0
    %v7869 = vadd.f32 %v7580, %v7868
    %v7870 = vpop.f32.mrb[0].mxu0
    %v7871 = vpop.f32.mrb[0].mxu0
    %v7872 = vadd.f32 %v7583, %v7871
    %v7873 = vpop.f32.mrb[0].mxu0
    %7874 = vmatprep.mubr.bf16.mxu0 %v7003
    %7875 = vmatmul.mubr.bf16.gmra.mrb[0].mxu0 %v7002
    %v7876 = vpop.f32.mrb[0].mxu0
    %v7877 = vadd.f32 %v7588, %v7876
    %v7878 = vpop.f32.mrb[0].mxu0
    %v7879 = vpop.f32.mrb[0].mxu0
    %v7880 = vadd.f32 %v7591, %v7879
    %v7881 = vpop.f32.mrb[0].mxu0
    %7882 = vmatprep.mubr.bf16.mxu0 %v7008
    %7883 = vmatmul.mubr.bf16.gmra.mrb[0].mxu0 %v7007
    %v7884 = vpop.f32.mrb[0].mxu0
    %v7885 = vadd.f32 %v7596, %v7884
    %v7886 = vpop.f32.mrb[0].mxu0
    %v7887 = vpop.f32.mrb[0].mxu0
    %v7888 = vadd.f32 %v7599, %v7887
    %v7889 = vpop.f32.mrb[0].mxu0
    %7890 = vmatprep.mubr.bf16.mxu0 %v7013
    %7891 = vmatmul.mubr.bf16.gmra.mrb[0].mxu0 %v7012
    %v7892 = vpop.f32.mrb[0].mxu0
    %v7893 = vadd.f32 %v7604, %v7892
    %v7894 = vpop.f32.mrb[0].mxu0
    %v7895 = vpop.f32.mrb[0].mxu0
    %v7896 = vadd.f32 %v7607, %v7895
    %v7897 = vpop.f32.mrb[0].mxu0
    %7898 = vmatprep.mubr.bf16.mxu0 %v7018
    %7899 = vmatmul.mubr.bf16.gmra.mrb[0].mxu0 %v7017
    %v7900 = vpop.f32.mrb[0].mxu0
    %v7901 = vadd.f32 %v7612, %v7900
    %v7902 = vpop.f32.mrb[0].mxu0
    %v7903 = vpop.f32.mrb[0].mxu0
    %v7904 = vadd.f32 %v7615, %v7903
    %v7905 = vpop.f32.mrb[0].mxu0
    %7906 = vmatprep.mubr.bf16.mxu0 %v7023
    %7907 = vmatmul.mubr.bf16.gmra.mrb[0].mxu0 %v7022
    %v7908 = vpop.f32.mrb[0].mxu0
    %v7909 = vadd.f32 %v7620, %v7908
    %v7910 = vpop.f32.mrb[0].mxu0
    %v7911 = vpop.f32.mrb[0].mxu0
    %v7912 = vadd.f32 %v7623, %v7911
    %v7913 = vpop.f32.mrb[0].mxu0
    %7914 = vmatprep.mubr.bf16.mxu0 %v7028
    %7915 = vmatmul.mubr.bf16.gmra.mrb[0].mxu0 %v7027
    %v7916 = vpop.f32.mrb[0].mxu0
    %v7917 = vadd.f32 %v7628, %v7916
    %v7918 = vpop.f32.mrb[0].mxu0
    %v7919 = vpop.f32.mrb[0].mxu0
    %v7920 = vadd.f32 %v7631, %v7919
    %v7921 = vpop.f32.mrb[0].mxu0
    %7922 = vmatprep.mubr.bf16.mxu0 %v7033
    %7923 = vmatmul.mubr.bf16.gmra.mrb[0].mxu0 %v7032
    %v7924 = vpop.f32.mrb[0].mxu0
    %v7925 = vadd.f32 %v7636, %v7924
    %v7926 = vpop.f32.mrb[0].mxu0
    %v7927 = vpop.f32.mrb[0].mxu0
    %v7928 = vadd.f32 %v7639, %v7927
    %v7929 = vpop.f32.mrb[0].mxu0
    %7930 = vmatprep.mubr.bf16.mxu0 %v7038
    %7931 = vmatmul.mubr.bf16.gmra.mrb[0].mxu0 %v7037
    %v7932 = vpop.f32.mrb[0].mxu0
    %v7933 = vadd.f32 %v7644, %v7932
    %v7934 = vpop.f32.mrb[0].mxu0
    %v7935 = vpop.f32.mrb[0].mxu0
    %v7936 = vadd.f32 %v7647, %v7935
    %v7937 = vpop.f32.mrb[0].mxu0
    %7938 = vmatprep.mubr.bf16.mxu0 %v7043
    %7939 = vmatmul.mubr.bf16.gmra.mrb[0].mxu0 %v7042
    %v7940 = vpop.f32.mrb[0].mxu0
    %v7941 = vadd.f32 %v7652, %v7940
    %v7942 = vpop.f32.mrb[0].mxu0
    %v7943 = vpop.f32.mrb[0].mxu0
    %v7944 = vadd.f32 %v7655, %v7943
    %v7945 = vpop.f32.mrb[0].mxu0
    %7946 = vmatprep.mubr.bf16.mxu0 %v7048
    %7947 = vmatmul.mubr.bf16.gmra.mrb[0].mxu0 %v7047
    %v7948 = vpop.f32.mrb[0].mxu0
    %v7949 = vadd.f32 %v7660, %v7948
    %v7950 = vpop.f32.mrb[0].mxu0
    %v7951 = vpop.f32.mrb[0].mxu0
    %v7952 = vadd.f32 %v7663, %v7951
    %v7953 = vpop.f32.mrb[0].mxu0
    %7954 = vdwg.mxu0
    %7955 = vmatprep.subr.bf16.mxu0 0
    %7956 = vmatpush1.bf16.msra.mxu0 %v7329
    %7957 = vmatprep.subr.bf16.mxu0 0
    %7958 = vmatpush1.bf16.msra.mxu0 %v7330
    %7959 = vmatprep.subr.bf16.mxu0 0
    %7960 = vmatpush1.bf16.msra.mxu0 %v7331
    %7961 = vmatprep.subr.bf16.mxu0 0
    %7962 = vmatpush1.bf16.msra.mxu0 %v7332
    %7963 = vmatprep.subr.bf16.mxu0 0
    %7964 = vmatpush1.bf16.msra.mxu0 %v7333
    %7965 = vmatprep.subr.bf16.mxu0 0
    %7966 = vmatpush1.bf16.msra.mxu0 %v7334
    %7967 = vmatprep.subr.bf16.mxu0 0
    %7968 = vmatpush1.bf16.msra.mxu0 %v7335
    %7969 = vmatprep.subr.bf16.mxu0 0
    %7970 = vmatpush1.bf16.msra.mxu0 %v7336
    %7971 = vmatprep.subr.bf16.mxu0 0
    %7972 = vmatpush1.bf16.msra.mxu0 0
    %7973 = vmatprep.subr.bf16.mxu0 0
    %7974 = vmatpush1.bf16.msra.mxu0 0
    %7975 = vmatprep.subr.bf16.mxu0 0
    %7976 = vmatpush1.bf16.msra.mxu0 0
    %7977 = vmatprep.subr.bf16.mxu0 0
    %7978 = vmatpush1.bf16.msra.mxu0 0
    %7979 = vmatprep.subr.bf16.mxu0 0
    %7980 = vmatpush1.bf16.msra.mxu0 0
    %7981 = vmatprep.subr.bf16.mxu0 0
    %7982 = vmatpush1.bf16.msra.mxu0 0
    %7983 = vmatprep.subr.bf16.mxu0 0
    %7984 = vmatpush1.bf16.msra.mxu0 0
    %7985 = vmatprep.subr.bf16.mxu0 0
    %7986 = vmatpush1.bf16.msra.mxu0 0
    %7987 = vmatprep.mubr.bf16.mxu0 0
    %7988 = vmatmul.mubr.bf16.gmra.mrb[0].mxu0 %v6894
    %v7989 = vpop.f32.mrb[0].mxu0
    %v7990 = vadd.f32 %v7701, %v7989
    %v7991 = vpop.f32.mrb[0].mxu0
    %v7992 = vpop.f32.mrb[0].mxu0
    %v7993 = vadd.f32 %v7704, %v7992
    %v7994 = vpop.f32.mrb[0].mxu0
    %7995 = vmatprep.mubr.bf16.mxu0 0
    %7996 = vmatmul.mubr.bf16.gmra.mrb[0].mxu0 %v6899
    %v7997 = vpop.f32.mrb[0].mxu0
    %v7998 = vadd.f32 %v7709, %v7997
    %v7999 = vpop.f32.mrb[0].mxu0
    %v8000 = vpop.f32.mrb[0].mxu0
    %v8001 = vadd.f32 %v7712, %v8000
    %v8002 = vpop.f32.mrb[0].mxu0
    %8003 = vmatprep.mubr.bf16.mxu0 0
    %8004 = vmatmul.mubr.bf16.gmra.mrb[0].mxu0 %v6904
    %v8005 = vpop.f32.mrb[0].mxu0
    %v8006 = vadd.f32 %v7717, %v8005
    %v8007 = vpop.f32.mrb[0].mxu0
    %v8008 = vpop.f32.mrb[0].mxu0
    %v8009 = vadd.f32 %v7720, %v8008
    %v8010 = vpop.f32.mrb[0].mxu0
    %8011 = vmatprep.mubr.bf16.mxu0 0
    %8012 = vmatmul.mubr.bf16.gmra.mrb[0].mxu0 %v6909
    %v8013 = vpop.f32.mrb[0].mxu0
    %v8014 = vadd.f32 %v7725, %v8013
    %v8015 = vpop.f32.mrb[0].mxu0
    %v8016 = vpop.f32.mrb[0].mxu0
    %v8017 = vadd.f32 %v7728, %v8016
    %v8018 = vpop.f32.mrb[0].mxu0
    %8019 = vmatprep.mubr.bf16.mxu0 0
    %8020 = vmatmul.mubr.bf16.gmra.mrb[0].mxu0 %v6914
    %v8021 = vpop.f32.mrb[0].mxu0
    %v8022 = vadd.f32 %v7733, %v8021
    %v8023 = vpop.f32.mrb[0].mxu0
    %v8024 = vpop.f32.mrb[0].mxu0
    %v8025 = vadd.f32 %v7736, %v8024
    %v8026 = vpop.f32.mrb[0].mxu0
    %8027 = vmatprep.mubr.bf16.mxu0 0
    %8028 = vmatmul.mubr.bf16.gmra.mrb[0].mxu0 %v6919
    %v8029 = vpop.f32.mrb[0].mxu0
    %v8030 = vadd.f32 %v7741, %v8029
    %v8031 = vpop.f32.mrb[0].mxu0
    %v8032 = vpop.f32.mrb[0].mxu0
    %v8033 = vadd.f32 %v7744, %v8032
    %v8034 = vpop.f32.mrb[0].mxu0
    %8035 = vmatprep.mubr.bf16.mxu0 0
    %8036 = vmatmul.mubr.bf16.gmra.mrb[0].mxu0 %v6924
    %v8037 = vpop.f32.mrb[0].mxu0
    %v8038 = vadd.f32 %v7749, %v8037
    %v8039 = vpop.f32.mrb[0].mxu0
    %v8040 = vpop.f32.mrb[0].mxu0
    %v8041 = vadd.f32 %v7752, %v8040
    %v8042 = vpop.f32.mrb[0].mxu0
    %8043 = vmatprep.mubr.bf16.mxu0 0
    %8044 = vmatmul.mubr.bf16.gmra.mrb[0].mxu0 %v6929
    %v8045 = vpop.f32.mrb[0].mxu0
    %v8046 = vadd.f32 %v7757, %v8045
    %v8047 = vpop.f32.mrb[0].mxu0
    %v8048 = vpop.f32.mrb[0].mxu0
    %v8049 = vadd.f32 %v7760, %v8048
    %v8050 = vpop.f32.mrb[0].mxu0
    %8051 = vmatprep.mubr.bf16.mxu0 0
    %8052 = vmatmul.mubr.bf16.gmra.mrb[0].mxu0 %v6934
    %v8053 = vpop.f32.mrb[0].mxu0
    %v8054 = vadd.f32 %v7765, %v8053
    %v8055 = vpop.f32.mrb[0].mxu0
    %v8056 = vpop.f32.mrb[0].mxu0
    %v8057 = vadd.f32 %v7768, %v8056
    %v8058 = vpop.f32.mrb[0].mxu0
    %8059 = vmatprep.mubr.bf16.mxu0 0
    %8060 = vmatmul.mubr.bf16.gmra.mrb[0].mxu0 %v6939
    %v8061 = vpop.f32.mrb[0].mxu0
    %v8062 = vadd.f32 %v7773, %v8061
    %v8063 = vpop.f32.mrb[0].mxu0
    %v8064 = vpop.f32.mrb[0].mxu0
    %v8065 = vadd.f32 %v7776, %v8064
    %v8066 = vpop.f32.mrb[0].mxu0
    %8067 = vmatprep.mubr.bf16.mxu0 0
    %8068 = vmatmul.mubr.bf16.gmra.mrb[0].mxu0 %v6944
    %v8069 = vpop.f32.mrb[0].mxu0
    %v8070 = vadd.f32 %v7781, %v8069
    %v8071 = vpop.f32.mrb[0].mxu0
    %v8072 = vpop.f32.mrb[0].mxu0
    %v8073 = vadd.f32 %v7784, %v8072
    %v8074 = vpop.f32.mrb[0].mxu0
    %8075 = vmatprep.mubr.bf16.mxu0 0
    %8076 = vmatmul.mubr.bf16.gmra.mrb[0].mxu0 %v6949
    %v8077 = vpop.f32.mrb[0].mxu0
    %v8078 = vadd.f32 %v7789, %v8077
    %v8079 = vpop.f32.mrb[0].mxu0
    %v8080 = vpop.f32.mrb[0].mxu0
    %v8081 = vadd.f32 %v7792, %v8080
    %v8082 = vpop.f32.mrb[0].mxu0
    %8083 = vmatprep.mubr.bf16.mxu0 0
    %8084 = vmatmul.mubr.bf16.gmra.mrb[0].mxu0 %v6954
    %v8085 = vpop.f32.mrb[0].mxu0
    %v8086 = vadd.f32 %v7797, %v8085
    %v8087 = vpop.f32.mrb[0].mxu0
    %v8088 = vpop.f32.mrb[0].mxu0
    %v8089 = vadd.f32 %v7800, %v8088
    %v8090 = vpop.f32.mrb[0].mxu0
    %8091 = vmatprep.mubr.bf16.mxu0 0
    %8092 = vmatmul.mubr.bf16.gmra.mrb[0].mxu0 %v6959
    %v8093 = vpop.f32.mrb[0].mxu0
    %v8094 = vadd.f32 %v7805, %v8093
    %v8095 = vpop.f32.mrb[0].mxu0
    %v8096 = vpop.f32.mrb[0].mxu0
    %v8097 = vadd.f32 %v7808, %v8096
    %v8098 = vpop.f32.mrb[0].mxu0
    %8099 = vmatprep.mubr.bf16.mxu0 0
    %8100 = vmatmul.mubr.bf16.gmra.mrb[0].mxu0 %v6964
    %v8101 = vpop.f32.mrb[0].mxu0
    %v8102 = vadd.f32 %v7813, %v8101
    %v8103 = vpop.f32.mrb[0].mxu0
    %v8104 = vpop.f32.mrb[0].mxu0
    %v8105 = vadd.f32 %v7816, %v8104
    %v8106 = vpop.f32.mrb[0].mxu0
    %8107 = vmatprep.mubr.bf16.mxu0 0
    %8108 = vmatmul.mubr.bf16.gmra.mrb[0].mxu0 %v6969
    %v8109 = vpop.f32.mrb[0].mxu0
    %v8110 = vadd.f32 %v7821, %v8109
    %v8111 = vpop.f32.mrb[0].mxu0
    %v8112 = vpop.f32.mrb[0].mxu0
    %v8113 = vadd.f32 %v7824, %v8112
    %v8114 = vpop.f32.mrb[0].mxu0
    %8115 = vmatprep.mubr.bf16.mxu0 0
    %8116 = vmatmul.mubr.bf16.gmra.mrb[0].mxu0 %v6974
    %v8117 = vpop.f32.mrb[0].mxu0
    %v8118 = vadd.f32 %v7829, %v8117
    %v8119 = vpop.f32.mrb[0].mxu0
    %v8120 = vpop.f32.mrb[0].mxu0
    %v8121 = vadd.f32 %v7832, %v8120
    %v8122 = vpop.f32.mrb[0].mxu0
    %8123 = vmatprep.mubr.bf16.mxu0 0
    %8124 = vmatmul.mubr.bf16.gmra.mrb[0].mxu0 %v6979
    %v8125 = vpop.f32.mrb[0].mxu0
    %v8126 = vadd.f32 %v7837, %v8125
    %v8127 = vpop.f32.mrb[0].mxu0
    %v8128 = vpop.f32.mrb[0].mxu0
    %v8129 = vadd.f32 %v7840, %v8128
    %v8130 = vpop.f32.mrb[0].mxu0
    %8131 = vmatprep.mubr.bf16.mxu0 0
    %8132 = vmatmul.mubr.bf16.gmra.mrb[0].mxu0 %v6984
    %v8133 = vpop.f32.mrb[0].mxu0
    %v8134 = vadd.f32 %v7845, %v8133
    %v8135 = vpop.f32.mrb[0].mxu0
    %v8136 = vpop.f32.mrb[0].mxu0
    %v8137 = vadd.f32 %v7848, %v8136
    %v8138 = vpop.f32.mrb[0].mxu0
    %8139 = vmatprep.mubr.bf16.mxu0 0
    %8140 = vmatmul.mubr.bf16.gmra.mrb[0].mxu0 %v6989
    %v8141 = vpop.f32.mrb[0].mxu0
    %v8142 = vadd.f32 %v7853, %v8141
    %v8143 = vpop.f32.mrb[0].mxu0
    %v8144 = vpop.f32.mrb[0].mxu0
    %v8145 = vadd.f32 %v7856, %v8144
    %v8146 = vpop.f32.mrb[0].mxu0
    %8147 = vmatprep.mubr.bf16.mxu0 0
    %8148 = vmatmul.mubr.bf16.gmra.mrb[0].mxu0 %v6994
    %v8149 = vpop.f32.mrb[0].mxu0
    %v8150 = vadd.f32 %v7861, %v8149
    %v8151 = vpop.f32.mrb[0].mxu0
    %v8152 = vpop.f32.mrb[0].mxu0
    %v8153 = vadd.f32 %v7864, %v8152
    %v8154 = vpop.f32.mrb[0].mxu0
    %8155 = vmatprep.mubr.bf16.mxu0 0
    %8156 = vmatmul.mubr.bf16.gmra.mrb[0].mxu0 %v6999
    %v8157 = vpop.f32.mrb[0].mxu0
    %v8158 = vadd.f32 %v7869, %v8157
    %v8159 = vpop.f32.mrb[0].mxu0
    %v8160 = vpop.f32.mrb[0].mxu0
    %v8161 = vadd.f32 %v7872, %v8160
    %v8162 = vpop.f32.mrb[0].mxu0
    %8163 = vmatprep.mubr.bf16.mxu0 0
    %8164 = vmatmul.mubr.bf16.gmra.mrb[0].mxu0 %v7004
    %v8165 = vpop.f32.mrb[0].mxu0
    %v8166 = vadd.f32 %v7877, %v8165
    %v8167 = vpop.f32.mrb[0].mxu0
    %v8168 = vpop.f32.mrb[0].mxu0
    %v8169 = vadd.f32 %v7880, %v8168
    %v8170 = vpop.f32.mrb[0].mxu0
    %8171 = vmatprep.mubr.bf16.mxu0 0
    %8172 = vmatmul.mubr.bf16.gmra.mrb[0].mxu0 %v7009
    %v8173 = vpop.f32.mrb[0].mxu0
    %v8174 = vadd.f32 %v7885, %v8173
    %v8175 = vpop.f32.mrb[0].mxu0
    %v8176 = vpop.f32.mrb[0].mxu0
    %v8177 = vadd.f32 %v7888, %v8176
    %v8178 = vpop.f32.mrb[0].mxu0
    %8179 = vmatprep.mubr.bf16.mxu0 0
    %8180 = vmatmul.mubr.bf16.gmra.mrb[0].mxu0 %v7014
    %v8181 = vpop.f32.mrb[0].mxu0
    %v8182 = vadd.f32 %v7893, %v8181
    %v8183 = vpop.f32.mrb[0].mxu0
    %v8184 = vpop.f32.mrb[0].mxu0
    %v8185 = vadd.f32 %v7896, %v8184
    %v8186 = vpop.f32.mrb[0].mxu0
    %8187 = vmatprep.mubr.bf16.mxu0 0
    %8188 = vmatmul.mubr.bf16.gmra.mrb[0].mxu0 %v7019
    %v8189 = vpop.f32.mrb[0].mxu0
    %v8190 = vadd.f32 %v7901, %v8189
    %v8191 = vpop.f32.mrb[0].mxu0
    %v8192 = vpop.f32.mrb[0].mxu0
    %v8193 = vadd.f32 %v7904, %v8192
    %v8194 = vpop.f32.mrb[0].mxu0
    %8195 = vmatprep.mubr.bf16.mxu0 0
    %8196 = vmatmul.mubr.bf16.gmra.mrb[0].mxu0 %v7024
    %v8197 = vpop.f32.mrb[0].mxu0
    %v8198 = vadd.f32 %v7909, %v8197
    %v8199 = vpop.f32.mrb[0].mxu0
    %v8200 = vpop.f32.mrb[0].mxu0
    %v8201 = vadd.f32 %v7912, %v8200
    %v8202 = vpop.f32.mrb[0].mxu0
    %8203 = vmatprep.mubr.bf16.mxu0 0
    %8204 = vmatmul.mubr.bf16.gmra.mrb[0].mxu0 %v7029
    %v8205 = vpop.f32.mrb[0].mxu0
    %v8206 = vadd.f32 %v7917, %v8205
    %v8207 = vpop.f32.mrb[0].mxu0
    %v8208 = vpop.f32.mrb[0].mxu0
    %v8209 = vadd.f32 %v7920, %v8208
    %v8210 = vpop.f32.mrb[0].mxu0
    %8211 = vmatprep.mubr.bf16.mxu0 0
    %8212 = vmatmul.mubr.bf16.gmra.mrb[0].mxu0 %v7034
    %v8213 = vpop.f32.mrb[0].mxu0
    %v8214 = vadd.f32 %v7925, %v8213
    %v8215 = vpop.f32.mrb[0].mxu0
    %v8216 = vpop.f32.mrb[0].mxu0
    %v8217 = vadd.f32 %v7928, %v8216
    %v8218 = vpop.f32.mrb[0].mxu0
    %8219 = vmatprep.mubr.bf16.mxu0 0
    %8220 = vmatmul.mubr.bf16.gmra.mrb[0].mxu0 %v7039
    %v8221 = vpop.f32.mrb[0].mxu0
    %v8222 = vadd.f32 %v7933, %v8221
    %v8223 = vpop.f32.mrb[0].mxu0
    %v8224 = vpop.f32.mrb[0].mxu0
    %v8225 = vadd.f32 %v7936, %v8224
    %v8226 = vpop.f32.mrb[0].mxu0
    %8227 = vmatprep.mubr.bf16.mxu0 0
    %8228 = vmatmul.mubr.bf16.gmra.mrb[0].mxu0 %v7044
    %v8229 = vpop.f32.mrb[0].mxu0
    %v8230 = vadd.f32 %v7941, %v8229
    %v8231 = vpop.f32.mrb[0].mxu0
    %v8232 = vpop.f32.mrb[0].mxu0
    %v8233 = vadd.f32 %v7944, %v8232
    %v8234 = vpop.f32.mrb[0].mxu0
    %8235 = vmatprep.mubr.bf16.mxu0 0
    %8236 = vmatmul.mubr.bf16.gmra.mrb[0].mxu0 %v7049
    %v8237 = vpop.f32.mrb[0].mxu0
    %v8238 = vadd.f32 %v7949, %v8237
    %v8239 = vpop.f32.mrb[0].mxu0
    %v8240 = vpop.f32.mrb[0].mxu0
    %v8241 = vadd.f32 %v7952, %v8240
    %v8242 = vpop.f32.mrb[0].mxu0
    %8243 = vdwg.mxu0
    %v8244 = vld [vmem:[%s9] sm:$0x1]
    %v8245 = vld [vmem:[%s10] sm:$0x1]
    %v8246 = vsel %vm41, %v7990, 0.0
    %v8247 = vsel %vm41, %v7993, 0.0
    %v8248 = vadd.f32 %v8246, %v8247
    %v8249 = vsel %vm41, %v7998, 0.0
    %v8250 = vadd.f32 %v8248, %v8249
    %v8251 = vsel %vm41, %v8001, 0.0
    %v8252 = vadd.f32 %v8250, %v8251
    %v8253 = vsel %vm41, %v8006, 0.0
    %v8254 = vadd.f32 %v8252, %v8253
    %v8255 = vsel %vm41, %v8009, 0.0
    %v8256 = vadd.f32 %v8254, %v8255
    %v8257 = vsel %vm41, %v8014, 0.0
    %v8258 = vadd.f32 %v8256, %v8257
    %v8259 = vsel %vm41, %v8017, 0.0
    %v8260 = vadd.f32 %v8258, %v8259
    %v8261 = vsel %vm41, %v8022, 0.0
    %v8262 = vadd.f32 %v8260, %v8261
    %v8263 = vsel %vm41, %v8025, 0.0
    %v8264 = vadd.f32 %v8262, %v8263
    %v8265 = vsel %vm41, %v8030, 0.0
    %v8266 = vadd.f32 %v8264, %v8265
    %v8267 = vsel %vm41, %v8033, 0.0
    %v8268 = vadd.f32 %v8266, %v8267
    %v8269 = vsel %vm41, %v8038, 0.0
    %v8270 = vadd.f32 %v8268, %v8269
    %v8271 = vsel %vm41, %v8041, 0.0
    %v8272 = vadd.f32 %v8270, %v8271
    %v8273 = vsel %vm41, %v8046, 0.0
    %v8274 = vadd.f32 %v8272, %v8273
    %v8275 = vsel %vm41, %v8049, 0.0
    %v8276 = vadd.f32 %v8274, %v8275
    %v8277 = vsel %vm41, %v8054, 0.0
    %v8278 = vadd.f32 %v8276, %v8277
    %v8279 = vsel %vm41, %v8057, 0.0
    %v8280 = vadd.f32 %v8278, %v8279
    %v8281 = vsel %vm41, %v8062, 0.0
    %v8282 = vadd.f32 %v8280, %v8281
    %v8283 = vsel %vm41, %v8065, 0.0
    %v8284 = vadd.f32 %v8282, %v8283
    %v8285 = vsel %vm41, %v8070, 0.0
    %v8286 = vadd.f32 %v8284, %v8285
    %v8287 = vsel %vm41, %v8073, 0.0
    %v8288 = vadd.f32 %v8286, %v8287
    %v8289 = vsel %vm41, %v8078, 0.0
    %v8290 = vadd.f32 %v8288, %v8289
    %v8291 = vsel %vm41, %v8081, 0.0
    %v8292 = vadd.f32 %v8290, %v8291
    %v8293 = vsel %vm41, %v8086, 0.0
    %v8294 = vadd.f32 %v8292, %v8293
    %v8295 = vsel %vm41, %v8089, 0.0
    %v8296 = vadd.f32 %v8294, %v8295
    %v8297 = vsel %vm41, %v8094, 0.0
    %v8298 = vadd.f32 %v8296, %v8297
    %v8299 = vsel %vm41, %v8097, 0.0
    %v8300 = vadd.f32 %v8298, %v8299
    %v8301 = vsel %vm41, %v8102, 0.0
    %v8302 = vadd.f32 %v8300, %v8301
    %v8303 = vsel %vm41, %v8105, 0.0
    %v8304 = vadd.f32 %v8302, %v8303
    %v8305 = vsel %vm41, %v8110, 0.0
    %v8306 = vadd.f32 %v8304, %v8305
    %v8307 = vsel %vm41, %v8113, 0.0
    %v8308 = vadd.f32 %v8306, %v8307
    %v8309 = vsel %vm41, %v8118, 0.0
    %v8310 = vadd.f32 %v8308, %v8309
    %v8311 = vsel %vm41, %v8121, 0.0
    %v8312 = vadd.f32 %v8310, %v8311
    %v8313 = vsel %vm41, %v8126, 0.0
    %v8314 = vadd.f32 %v8312, %v8313
    %v8315 = vsel %vm41, %v8129, 0.0
    %v8316 = vadd.f32 %v8314, %v8315
    %v8317 = vsel %vm41, %v8134, 0.0
    %v8318 = vadd.f32 %v8316, %v8317
    %v8319 = vsel %vm41, %v8137, 0.0
    %v8320 = vadd.f32 %v8318, %v8319
    %v8321 = vsel %vm41, %v8142, 0.0
    %v8322 = vadd.f32 %v8320, %v8321
    %v8323 = vsel %vm41, %v8145, 0.0
    %v8324 = vadd.f32 %v8322, %v8323
    %v8325 = vsel %vm41, %v8150, 0.0
    %v8326 = vadd.f32 %v8324, %v8325
    %v8327 = vsel %vm41, %v8153, 0.0
    %v8328 = vadd.f32 %v8326, %v8327
    %v8329 = vsel %vm41, %v8158, 0.0
    %v8330 = vadd.f32 %v8328, %v8329
    %v8331 = vsel %vm41, %v8161, 0.0
    %v8332 = vadd.f32 %v8330, %v8331
    %v8333 = vsel %vm41, %v8166, 0.0
    %v8334 = vadd.f32 %v8332, %v8333
    %v8335 = vsel %vm41, %v8169, 0.0
    %v8336 = vadd.f32 %v8334, %v8335
    %v8337 = vsel %vm41, %v8174, 0.0
    %v8338 = vadd.f32 %v8336, %v8337
    %v8339 = vsel %vm41, %v8177, 0.0
    %v8340 = vadd.f32 %v8338, %v8339
    %v8341 = vsel %vm41, %v8182, 0.0
    %v8342 = vadd.f32 %v8340, %v8341
    %v8343 = vsel %vm41, %v8185, 0.0
    %v8344 = vadd.f32 %v8342, %v8343
    %v8345 = vsel %vm41, %v8190, 0.0
    %v8346 = vadd.f32 %v8344, %v8345
    %v8347 = vsel %vm41, %v8193, 0.0
    %v8348 = vadd.f32 %v8346, %v8347
    %v8349 = vsel %vm41, %v8198, 0.0
    %v8350 = vadd.f32 %v8348, %v8349
    %v8351 = vsel %vm41, %v8201, 0.0
    %v8352 = vadd.f32 %v8350, %v8351
    %v8353 = vsel %vm41, %v8206, 0.0
    %v8354 = vadd.f32 %v8352, %v8353
    %v8355 = vsel %vm41, %v8209, 0.0
    %v8356 = vadd.f32 %v8354, %v8355
    %v8357 = vsel %vm41, %v8214, 0.0
    %v8358 = vadd.f32 %v8356, %v8357
    %v8359 = vsel %vm41, %v8217, 0.0
    %v8360 = vadd.f32 %v8358, %v8359
    %v8361 = vsel %vm41, %v8222, 0.0
    %v8362 = vadd.f32 %v8360, %v8361
    %v8363 = vsel %vm41, %v8225, 0.0
    %v8364 = vadd.f32 %v8362, %v8363
    %v8365 = vsel %vm41, %v8230, 0.0
    %v8366 = vadd.f32 %v8364, %v8365
    %v8367 = vsel %vm41, %v8233, 0.0
    %v8368 = vadd.f32 %v8366, %v8367
    %v8369 = vsel %vm41, %v8238, 0.0
    %v8370 = vadd.f32 %v8368, %v8369
    %v8371 = vsel %vm41, %v8241, 0.0
    %v8372 = vadd.f32 %v8370, %v8371
    %v8373 = vrot.slane %v8372, 4
    %v8374 = vadd.f32 %v8372, %v8373
    %v8375 = vrot.slane %v8374, 2
    %v8376 = vadd.f32 %v8374, %v8375
    %v8377 = vrot.slane %v8376, 1
    %v8378 = vadd.f32 %v8376, %v8377
    %v8379 = vmul.f32 %v8378, 0.001953125
    %v8380 = vsub.f32 %v7990, %v8379
    %v8381 = vsub.f32 %v7993, %v8379
    %v8382 = vsub.f32 %v7998, %v8379
    %v8383 = vsub.f32 %v8001, %v8379
    %v8384 = vsub.f32 %v8006, %v8379
    %v8385 = vsub.f32 %v8009, %v8379
    %v8386 = vsub.f32 %v8014, %v8379
    %v8387 = vsub.f32 %v8017, %v8379
    %v8388 = vsub.f32 %v8022, %v8379
    %v8389 = vsub.f32 %v8025, %v8379
    %v8390 = vsub.f32 %v8030, %v8379
    %v8391 = vsub.f32 %v8033, %v8379
    %v8392 = vsub.f32 %v8038, %v8379
    %v8393 = vsub.f32 %v8041, %v8379
    %v8394 = vsub.f32 %v8046, %v8379
    %v8395 = vsub.f32 %v8049, %v8379
    %v8396 = vsub.f32 %v8054, %v8379
    %v8397 = vsub.f32 %v8057, %v8379
    %v8398 = vsub.f32 %v8062, %v8379
    %v8399 = vsub.f32 %v8065, %v8379
    %v8400 = vsub.f32 %v8070, %v8379
    %v8401 = vsub.f32 %v8073, %v8379
    %v8402 = vsub.f32 %v8078, %v8379
    %v8403 = vsub.f32 %v8081, %v8379
    %v8404 = vsub.f32 %v8086, %v8379
    %v8405 = vsub.f32 %v8089, %v8379
    %v8406 = vsub.f32 %v8094, %v8379
    %v8407 = vsub.f32 %v8097, %v8379
    %v8408 = vsub.f32 %v8102, %v8379
    %v8409 = vsub.f32 %v8105, %v8379
    %v8410 = vsub.f32 %v8110, %v8379
    %v8411 = vsub.f32 %v8113, %v8379
    %v8412 = vsub.f32 %v8118, %v8379
    %v8413 = vsub.f32 %v8121, %v8379
    %v8414 = vsub.f32 %v8126, %v8379
    %v8415 = vsub.f32 %v8129, %v8379
    %v8416 = vsub.f32 %v8134, %v8379
    %v8417 = vsub.f32 %v8137, %v8379
    %v8418 = vsub.f32 %v8142, %v8379
    %v8419 = vsub.f32 %v8145, %v8379
    %v8420 = vsub.f32 %v8150, %v8379
    %v8421 = vsub.f32 %v8153, %v8379
    %v8422 = vsub.f32 %v8158, %v8379
    %v8423 = vsub.f32 %v8161, %v8379
    %v8424 = vsub.f32 %v8166, %v8379
    %v8425 = vsub.f32 %v8169, %v8379
    %v8426 = vsub.f32 %v8174, %v8379
    %v8427 = vsub.f32 %v8177, %v8379
    %v8428 = vsub.f32 %v8182, %v8379
    %v8429 = vsub.f32 %v8185, %v8379
    %v8430 = vsub.f32 %v8190, %v8379
    %v8431 = vsub.f32 %v8193, %v8379
    %v8432 = vsub.f32 %v8198, %v8379
    %v8433 = vsub.f32 %v8201, %v8379
    %v8434 = vsub.f32 %v8206, %v8379
    %v8435 = vsub.f32 %v8209, %v8379
    %v8436 = vsub.f32 %v8214, %v8379
    %v8437 = vsub.f32 %v8217, %v8379
    %v8438 = vsub.f32 %v8222, %v8379
    %v8439 = vsub.f32 %v8225, %v8379
    %v8440 = vsub.f32 %v8230, %v8379
    %v8441 = vsub.f32 %v8233, %v8379
    %v8442 = vsub.f32 %v8238, %v8379
    %v8443 = vsub.f32 %v8241, %v8379
    %v8444 = vmul.f32 %v8380, %v8380
    %v8445 = vmul.f32 %v8381, %v8381
    %v8446 = vmul.f32 %v8382, %v8382
    %v8447 = vmul.f32 %v8383, %v8383
    %v8448 = vmul.f32 %v8384, %v8384
    %v8449 = vmul.f32 %v8385, %v8385
    %v8450 = vmul.f32 %v8386, %v8386
    %v8451 = vmul.f32 %v8387, %v8387
    %v8452 = vmul.f32 %v8388, %v8388
    %v8453 = vmul.f32 %v8389, %v8389
    %v8454 = vmul.f32 %v8390, %v8390
    %v8455 = vmul.f32 %v8391, %v8391
    %v8456 = vmul.f32 %v8392, %v8392
    %v8457 = vmul.f32 %v8393, %v8393
    %v8458 = vmul.f32 %v8394, %v8394
    %v8459 = vmul.f32 %v8395, %v8395
    %v8460 = vmul.f32 %v8396, %v8396
    %v8461 = vmul.f32 %v8397, %v8397
    %v8462 = vmul.f32 %v8398, %v8398
    %v8463 = vmul.f32 %v8399, %v8399
    %v8464 = vmul.f32 %v8400, %v8400
    %v8465 = vmul.f32 %v8401, %v8401
    %v8466 = vmul.f32 %v8402, %v8402
    %v8467 = vmul.f32 %v8403, %v8403
    %v8468 = vmul.f32 %v8404, %v8404
    %v8469 = vmul.f32 %v8405, %v8405
    %v8470 = vmul.f32 %v8406, %v8406
    %v8471 = vmul.f32 %v8407, %v8407
    %v8472 = vmul.f32 %v8408, %v8408
    %v8473 = vmul.f32 %v8409, %v8409
    %v8474 = vmul.f32 %v8410, %v8410
    %v8475 = vmul.f32 %v8411, %v8411
    %v8476 = vmul.f32 %v8412, %v8412
    %v8477 = vmul.f32 %v8413, %v8413
    %v8478 = vmul.f32 %v8414, %v8414
    %v8479 = vmul.f32 %v8415, %v8415
    %v8480 = vmul.f32 %v8416, %v8416
    %v8481 = vmul.f32 %v8417, %v8417
    %v8482 = vmul.f32 %v8418, %v8418
    %v8483 = vmul.f32 %v8419, %v8419
    %v8484 = vmul.f32 %v8420, %v8420
    %v8485 = vmul.f32 %v8421, %v8421
    %v8486 = vmul.f32 %v8422, %v8422
    %v8487 = vmul.f32 %v8423, %v8423
    %v8488 = vmul.f32 %v8424, %v8424
    %v8489 = vmul.f32 %v8425, %v8425
    %v8490 = vmul.f32 %v8426, %v8426
    %v8491 = vmul.f32 %v8427, %v8427
    %v8492 = vmul.f32 %v8428, %v8428
    %v8493 = vmul.f32 %v8429, %v8429
    %v8494 = vmul.f32 %v8430, %v8430
    %v8495 = vmul.f32 %v8431, %v8431
    %v8496 = vmul.f32 %v8432, %v8432
    %v8497 = vmul.f32 %v8433, %v8433
    %v8498 = vmul.f32 %v8434, %v8434
    %v8499 = vmul.f32 %v8435, %v8435
    %v8500 = vmul.f32 %v8436, %v8436
    %v8501 = vmul.f32 %v8437, %v8437
    %v8502 = vmul.f32 %v8438, %v8438
    %v8503 = vmul.f32 %v8439, %v8439
    %v8504 = vmul.f32 %v8440, %v8440
    %v8505 = vmul.f32 %v8441, %v8441
    %v8506 = vmul.f32 %v8442, %v8442
    %v8507 = vmul.f32 %v8443, %v8443
    %v8508 = vsel %vm41, %v8444, 0.0
    %v8509 = vsel %vm41, %v8445, 0.0
    %v8510 = vadd.f32 %v8508, %v8509
    %v8511 = vsel %vm41, %v8446, 0.0
    %v8512 = vadd.f32 %v8510, %v8511
    %v8513 = vsel %vm41, %v8447, 0.0
    %v8514 = vadd.f32 %v8512, %v8513
    %v8515 = vsel %vm41, %v8448, 0.0
    %v8516 = vadd.f32 %v8514, %v8515
    %v8517 = vsel %vm41, %v8449, 0.0
    %v8518 = vadd.f32 %v8516, %v8517
    %v8519 = vsel %vm41, %v8450, 0.0
    %v8520 = vadd.f32 %v8518, %v8519
    %v8521 = vsel %vm41, %v8451, 0.0
    %v8522 = vadd.f32 %v8520, %v8521
    %v8523 = vsel %vm41, %v8452, 0.0
    %v8524 = vadd.f32 %v8522, %v8523
    %v8525 = vsel %vm41, %v8453, 0.0
    %v8526 = vadd.f32 %v8524, %v8525
    %v8527 = vsel %vm41, %v8454, 0.0
    %v8528 = vadd.f32 %v8526, %v8527
    %v8529 = vsel %vm41, %v8455, 0.0
    %v8530 = vadd.f32 %v8528, %v8529
    %v8531 = vsel %vm41, %v8456, 0.0
    %v8532 = vadd.f32 %v8530, %v8531
    %v8533 = vsel %vm41, %v8457, 0.0
    %v8534 = vadd.f32 %v8532, %v8533
    %v8535 = vsel %vm41, %v8458, 0.0
    %v8536 = vadd.f32 %v8534, %v8535
    %v8537 = vsel %vm41, %v8459, 0.0
    %v8538 = vadd.f32 %v8536, %v8537
    %v8539 = vsel %vm41, %v8460, 0.0
    %v8540 = vadd.f32 %v8538, %v8539
    %v8541 = vsel %vm41, %v8461, 0.0
    %v8542 = vadd.f32 %v8540, %v8541
    %v8543 = vsel %vm41, %v8462, 0.0
    %v8544 = vadd.f32 %v8542, %v8543
    %v8545 = vsel %vm41, %v8463, 0.0
    %v8546 = vadd.f32 %v8544, %v8545
    %v8547 = vsel %vm41, %v8464, 0.0
    %v8548 = vadd.f32 %v8546, %v8547
    %v8549 = vsel %vm41, %v8465, 0.0
    %v8550 = vadd.f32 %v8548, %v8549
    %v8551 = vsel %vm41, %v8466, 0.0
    %v8552 = vadd.f32 %v8550, %v8551
    %v8553 = vsel %vm41, %v8467, 0.0
    %v8554 = vadd.f32 %v8552, %v8553
    %v8555 = vsel %vm41, %v8468, 0.0
    %v8556 = vadd.f32 %v8554, %v8555
    %v8557 = vsel %vm41, %v8469, 0.0
    %v8558 = vadd.f32 %v8556, %v8557
    %v8559 = vsel %vm41, %v8470, 0.0
    %v8560 = vadd.f32 %v8558, %v8559
    %v8561 = vsel %vm41, %v8471, 0.0
    %v8562 = vadd.f32 %v8560, %v8561
    %v8563 = vsel %vm41, %v8472, 0.0
    %v8564 = vadd.f32 %v8562, %v8563
    %v8565 = vsel %vm41, %v8473, 0.0
    %v8566 = vadd.f32 %v8564, %v8565
    %v8567 = vsel %vm41, %v8474, 0.0
    %v8568 = vadd.f32 %v8566, %v8567
    %v8569 = vsel %vm41, %v8475, 0.0
    %v8570 = vadd.f32 %v8568, %v8569
    %v8571 = vsel %vm41, %v8476, 0.0
    %v8572 = vadd.f32 %v8570, %v8571
    %v8573 = vsel %vm41, %v8477, 0.0
    %v8574 = vadd.f32 %v8572, %v8573
    %v8575 = vsel %vm41, %v8478, 0.0
    %v8576 = vadd.f32 %v8574, %v8575
    %v8577 = vsel %vm41, %v8479, 0.0
    %v8578 = vadd.f32 %v8576, %v8577
    %v8579 = vsel %vm41, %v8480, 0.0
    %v8580 = vadd.f32 %v8578, %v8579
    %v8581 = vsel %vm41, %v8481, 0.0
    %v8582 = vadd.f32 %v8580, %v8581
    %v8583 = vsel %vm41, %v8482, 0.0
    %v8584 = vadd.f32 %v8582, %v8583
    %v8585 = vsel %vm41, %v8483, 0.0
    %v8586 = vadd.f32 %v8584, %v8585
    %v8587 = vsel %vm41, %v8484, 0.0
    %v8588 = vadd.f32 %v8586, %v8587
    %v8589 = vsel %vm41, %v8485, 0.0
    %v8590 = vadd.f32 %v8588, %v8589
    %v8591 = vsel %vm41, %v8486, 0.0
    %v8592 = vadd.f32 %v8590, %v8591
    %v8593 = vsel %vm41, %v8487, 0.0
    %v8594 = vadd.f32 %v8592, %v8593
    %v8595 = vsel %vm41, %v8488, 0.0
    %v8596 = vadd.f32 %v8594, %v8595
    %v8597 = vsel %vm41, %v8489, 0.0
    %v8598 = vadd.f32 %v8596, %v8597
    %v8599 = vsel %vm41, %v8490, 0.0
    %v8600 = vadd.f32 %v8598, %v8599
    %v8601 = vsel %vm41, %v8491, 0.0
    %v8602 = vadd.f32 %v8600, %v8601
    %v8603 = vsel %vm41, %v8492, 0.0
    %v8604 = vadd.f32 %v8602, %v8603
    %v8605 = vsel %vm41, %v8493, 0.0
    %v8606 = vadd.f32 %v8604, %v8605
    %v8607 = vsel %vm41, %v8494, 0.0
    %v8608 = vadd.f32 %v8606, %v8607
    %v8609 = vsel %vm41, %v8495, 0.0
    %v8610 = vadd.f32 %v8608, %v8609
    %v8611 = vsel %vm41, %v8496, 0.0
    %v8612 = vadd.f32 %v8610, %v8611
    %v8613 = vsel %vm41, %v8497, 0.0
    %v8614 = vadd.f32 %v8612, %v8613
    %v8615 = vsel %vm41, %v8498, 0.0
    %v8616 = vadd.f32 %v8614, %v8615
    %v8617 = vsel %vm41, %v8499, 0.0
    %v8618 = vadd.f32 %v8616, %v8617
    %v8619 = vsel %vm41, %v8500, 0.0
    %v8620 = vadd.f32 %v8618, %v8619
    %v8621 = vsel %vm41, %v8501, 0.0
    %v8622 = vadd.f32 %v8620, %v8621
    %v8623 = vsel %vm41, %v8502, 0.0
    %v8624 = vadd.f32 %v8622, %v8623
    %v8625 = vsel %vm41, %v8503, 0.0
    %v8626 = vadd.f32 %v8624, %v8625
    %v8627 = vsel %vm41, %v8504, 0.0
    %v8628 = vadd.f32 %v8626, %v8627
    %v8629 = vsel %vm41, %v8505, 0.0
    %v8630 = vadd.f32 %v8628, %v8629
    %v8631 = vsel %vm41, %v8506, 0.0
    %v8632 = vadd.f32 %v8630, %v8631
    %v8633 = vsel %vm41, %v8507, 0.0
    %v8634 = vadd.f32 %v8632, %v8633
    %v8635 = vrot.slane %v8634, 4
    %v8636 = vadd.f32 %v8634, %v8635
    %v8637 = vrot.slane %v8636, 2
    %v8638 = vadd.f32 %v8636, %v8637
    %v8639 = vrot.slane %v8638, 1
    %v8640 = vadd.f32 %v8638, %v8639
    %v8641 = vmul.f32 %v8640, 0.001953125
    %v8642 = vadd.f32 %v8641, 1e-05
    %v8643 = vrsqrt.pop %v8642
    %v8644 = vmul.f32 %v8643, %v8244
    %v8645 = vlaneseq
    %v8646 = vshrl.u32 %v8645, 7
    %v8647 = vsub.s32 0, %v8646
    %v8648 = vrot.slane %v8644, %v8647
    %v8649 = vmul.f32 %v8380, %v8648
    %v8650 = vmul.f32 %v8381, %v8648
    %v8651 = vmul.f32 %v8382, %v8648
    %v8652 = vmul.f32 %v8383, %v8648
    %v8653 = vmul.f32 %v8384, %v8648
    %v8654 = vmul.f32 %v8385, %v8648
    %v8655 = vmul.f32 %v8386, %v8648
    %v8656 = vmul.f32 %v8387, %v8648
    %v8657 = vmul.f32 %v8388, %v8648
    %v8658 = vmul.f32 %v8389, %v8648
    %v8659 = vmul.f32 %v8390, %v8648
    %v8660 = vmul.f32 %v8391, %v8648
    %v8661 = vmul.f32 %v8392, %v8648
    %v8662 = vmul.f32 %v8393, %v8648
    %v8663 = vmul.f32 %v8394, %v8648
    %v8664 = vmul.f32 %v8395, %v8648
    %v8665 = vmul.f32 %v8396, %v8648
    %v8666 = vmul.f32 %v8397, %v8648
    %v8667 = vmul.f32 %v8398, %v8648
    %v8668 = vmul.f32 %v8399, %v8648
    %v8669 = vmul.f32 %v8400, %v8648
    %v8670 = vmul.f32 %v8401, %v8648
    %v8671 = vmul.f32 %v8402, %v8648
    %v8672 = vmul.f32 %v8403, %v8648
    %v8673 = vmul.f32 %v8404, %v8648
    %v8674 = vmul.f32 %v8405, %v8648
    %v8675 = vmul.f32 %v8406, %v8648
    %v8676 = vmul.f32 %v8407, %v8648
    %v8677 = vmul.f32 %v8408, %v8648
    %v8678 = vmul.f32 %v8409, %v8648
    %v8679 = vmul.f32 %v8410, %v8648
    %v8680 = vmul.f32 %v8411, %v8648
    %v8681 = vmul.f32 %v8412, %v8648
    %v8682 = vmul.f32 %v8413, %v8648
    %v8683 = vmul.f32 %v8414, %v8648
    %v8684 = vmul.f32 %v8415, %v8648
    %v8685 = vmul.f32 %v8416, %v8648
    %v8686 = vmul.f32 %v8417, %v8648
    %v8687 = vmul.f32 %v8418, %v8648
    %v8688 = vmul.f32 %v8419, %v8648
    %v8689 = vmul.f32 %v8420, %v8648
    %v8690 = vmul.f32 %v8421, %v8648
    %v8691 = vmul.f32 %v8422, %v8648
    %v8692 = vmul.f32 %v8423, %v8648
    %v8693 = vmul.f32 %v8424, %v8648
    %v8694 = vmul.f32 %v8425, %v8648
    %v8695 = vmul.f32 %v8426, %v8648
    %v8696 = vmul.f32 %v8427, %v8648
    %v8697 = vmul.f32 %v8428, %v8648
    %v8698 = vmul.f32 %v8429, %v8648
    %v8699 = vmul.f32 %v8430, %v8648
    %v8700 = vmul.f32 %v8431, %v8648
    %v8701 = vmul.f32 %v8432, %v8648
    %v8702 = vmul.f32 %v8433, %v8648
    %v8703 = vmul.f32 %v8434, %v8648
    %v8704 = vmul.f32 %v8435, %v8648
    %v8705 = vmul.f32 %v8436, %v8648
    %v8706 = vmul.f32 %v8437, %v8648
    %v8707 = vmul.f32 %v8438, %v8648
    %v8708 = vmul.f32 %v8439, %v8648
    %v8709 = vmul.f32 %v8440, %v8648
    %v8710 = vmul.f32 %v8441, %v8648
    %v8711 = vmul.f32 %v8442, %v8648
    %v8712 = vmul.f32 %v8443, %v8648
    %v8714 = vlaneseq
    %v8715 = vshrl.u32 %v8714, 7
    %v8716 = vsub.s32 0, %v8715
    %v8717 = vrot.slane %v8245, %v8716
    %v8719 = vadd.f32 %v8649, %v8717
    %v8720 = vadd.f32 %v8650, %v8717
    %v8721 = vadd.f32 %v8651, %v8717
    %v8722 = vadd.f32 %v8652, %v8717
    %v8723 = vadd.f32 %v8653, %v8717
    %v8724 = vadd.f32 %v8654, %v8717
    %v8725 = vadd.f32 %v8655, %v8717
    %v8726 = vadd.f32 %v8656, %v8717
    %v8727 = vadd.f32 %v8657, %v8717
    %v8728 = vadd.f32 %v8658, %v8717
    %v8729 = vadd.f32 %v8659, %v8717
    %v8730 = vadd.f32 %v8660, %v8717
    %v8731 = vadd.f32 %v8661, %v8717
    %v8732 = vadd.f32 %v8662, %v8717
    %v8733 = vadd.f32 %v8663, %v8717
    %v8734 = vadd.f32 %v8664, %v8717
    %v8735 = vadd.f32 %v8665, %v8717
    %v8736 = vadd.f32 %v8666, %v8717
    %v8737 = vadd.f32 %v8667, %v8717
    %v8738 = vadd.f32 %v8668, %v8717
    %v8739 = vadd.f32 %v8669, %v8717
    %v8740 = vadd.f32 %v8670, %v8717
    %v8741 = vadd.f32 %v8671, %v8717
    %v8742 = vadd.f32 %v8672, %v8717
    %v8743 = vadd.f32 %v8673, %v8717
    %v8744 = vadd.f32 %v8674, %v8717
    %v8745 = vadd.f32 %v8675, %v8717
    %v8746 = vadd.f32 %v8676, %v8717
    %v8747 = vadd.f32 %v8677, %v8717
    %v8748 = vadd.f32 %v8678, %v8717
    %v8749 = vadd.f32 %v8679, %v8717
    %v8750 = vadd.f32 %v8680, %v8717
    %v8751 = vadd.f32 %v8681, %v8717
    %v8752 = vadd.f32 %v8682, %v8717
    %v8753 = vadd.f32 %v8683, %v8717
    %v8754 = vadd.f32 %v8684, %v8717
    %v8755 = vadd.f32 %v8685, %v8717
    %v8756 = vadd.f32 %v8686, %v8717
    %v8757 = vadd.f32 %v8687, %v8717
    %v8758 = vadd.f32 %v8688, %v8717
    %v8759 = vadd.f32 %v8689, %v8717
    %v8760 = vadd.f32 %v8690, %v8717
    %v8761 = vadd.f32 %v8691, %v8717
    %v8762 = vadd.f32 %v8692, %v8717
    %v8763 = vadd.f32 %v8693, %v8717
    %v8764 = vadd.f32 %v8694, %v8717
    %v8765 = vadd.f32 %v8695, %v8717
    %v8766 = vadd.f32 %v8696, %v8717
    %v8767 = vadd.f32 %v8697, %v8717
    %v8768 = vadd.f32 %v8698, %v8717
    %v8769 = vadd.f32 %v8699, %v8717
    %v8770 = vadd.f32 %v8700, %v8717
    %v8771 = vadd.f32 %v8701, %v8717
    %v8772 = vadd.f32 %v8702, %v8717
    %v8773 = vadd.f32 %v8703, %v8717
    %v8774 = vadd.f32 %v8704, %v8717
    %v8775 = vadd.f32 %v8705, %v8717
    %v8776 = vadd.f32 %v8706, %v8717
    %v8777 = vadd.f32 %v8707, %v8717
    %v8778 = vadd.f32 %v8708, %v8717
    %v8779 = vadd.f32 %v8709, %v8717
    %v8780 = vadd.f32 %v8710, %v8717
    %v8781 = vadd.f32 %v8711, %v8717
    %v8782 = vadd.f32 %v8712, %v8717
    %v8783 = vld [vmem:[%s2] sm:$0xff]
    %v8784 = vld [vmem:[%s2 + $0x8] sm:$0xff]
    %v8785 = vld [vmem:[%s2 + $0x10] sm:$0xff]
    %v8786 = vld [vmem:[%s2 + $0x18] sm:$0xff]
    %v8787 = vld [vmem:[%s2 + $0x20] sm:$0xff]
    %v8788 = vld [vmem:[%s2 + $0x28] sm:$0xff]
    %v8789 = vld [vmem:[%s2 + $0x30] sm:$0xff]
    %v8790 = vld [vmem:[%s2 + $0x38] sm:$0xff]
    %v8791 = vld [vmem:[%s2 + $0x40] sm:$0xff]
    %v8792 = vld [vmem:[%s2 + $0x48] sm:$0xff]
    %v8793 = vld [vmem:[%s2 + $0x50] sm:$0xff]
    %v8794 = vld [vmem:[%s2 + $0x58] sm:$0xff]
    %v8795 = vld [vmem:[%s2 + $0x60] sm:$0xff]
    %v8796 = vld [vmem:[%s2 + $0x68] sm:$0xff]
    %v8797 = vld [vmem:[%s2 + $0x70] sm:$0xff]
    %v8798 = vld [vmem:[%s2 + $0x78] sm:$0xff]
    %v8799 = vld [vmem:[%s2 + $0x80] sm:$0xff]
    %v8800 = vld [vmem:[%s2 + $0x88] sm:$0xff]
    %v8801 = vld [vmem:[%s2 + $0x90] sm:$0xff]
    %v8802 = vld [vmem:[%s2 + $0x98] sm:$0xff]
    %v8803 = vld [vmem:[%s2 + $0xa0] sm:$0xff]
    %v8804 = vld [vmem:[%s2 + $0xa8] sm:$0xff]
    %v8805 = vld [vmem:[%s2 + $0xb0] sm:$0xff]
    %v8806 = vld [vmem:[%s2 + $0xb8] sm:$0xff]
    %v8807 = vld [vmem:[%s2 + $0xc0] sm:$0xff]
    %v8808 = vld [vmem:[%s2 + $0xc8] sm:$0xff]
    %v8809 = vld [vmem:[%s2 + $0xd0] sm:$0xff]
    %v8810 = vld [vmem:[%s2 + $0xd8] sm:$0xff]
    %v8811 = vld [vmem:[%s2 + $0xe0] sm:$0xff]
    %v8812 = vld [vmem:[%s2 + $0xe8] sm:$0xff]
    %v8813 = vld [vmem:[%s2 + $0xf0] sm:$0xff]
    %v8814 = vld [vmem:[%s2 + $0xf8] sm:$0xff]
    %v8815 = vld [vmem:[%s2 + $0x100] sm:$0xff]
    %v8816 = vld [vmem:[%s2 + $0x108] sm:$0xff]
    %v8817 = vld [vmem:[%s2 + $0x110] sm:$0xff]
    %v8818 = vld [vmem:[%s2 + $0x118] sm:$0xff]
    %v8819 = vld [vmem:[%s2 + $0x120] sm:$0xff]
    %v8820 = vld [vmem:[%s2 + $0x128] sm:$0xff]
    %v8821 = vld [vmem:[%s2 + $0x130] sm:$0xff]
    %v8822 = vld [vmem:[%s2 + $0x138] sm:$0xff]
    %v8823 = vld [vmem:[%s2 + $0x140] sm:$0xff]
    %v8824 = vld [vmem:[%s2 + $0x148] sm:$0xff]
    %v8825 = vld [vmem:[%s2 + $0x150] sm:$0xff]
    %v8826 = vld [vmem:[%s2 + $0x158] sm:$0xff]
    %v8827 = vld [vmem:[%s2 + $0x160] sm:$0xff]
    %v8828 = vld [vmem:[%s2 + $0x168] sm:$0xff]
    %v8829 = vld [vmem:[%s2 + $0x170] sm:$0xff]
    %v8830 = vld [vmem:[%s2 + $0x178] sm:$0xff]
    %v8831 = vld [vmem:[%s2 + $0x180] sm:$0xff]
    %v8832 = vld [vmem:[%s2 + $0x188] sm:$0xff]
    %v8833 = vld [vmem:[%s2 + $0x190] sm:$0xff]
    %v8834 = vld [vmem:[%s2 + $0x198] sm:$0xff]
    %v8835 = vld [vmem:[%s2 + $0x1a0] sm:$0xff]
    %v8836 = vld [vmem:[%s2 + $0x1a8] sm:$0xff]
    %v8837 = vld [vmem:[%s2 + $0x1b0] sm:$0xff]
    %v8838 = vld [vmem:[%s2 + $0x1b8] sm:$0xff]
    %v8839 = vld [vmem:[%s2 + $0x1c0] sm:$0xff]
    %v8840 = vld [vmem:[%s2 + $0x1c8] sm:$0xff]
    %v8841 = vld [vmem:[%s2 + $0x1d0] sm:$0xff]
    %v8842 = vld [vmem:[%s2 + $0x1d8] sm:$0xff]
    %v8843 = vld [vmem:[%s2 + $0x1e0] sm:$0xff]
    %v8844 = vld [vmem:[%s2 + $0x1e8] sm:$0xff]
    %v8845 = vld [vmem:[%s2 + $0x1f0] sm:$0xff]
    %v8846 = vld [vmem:[%s2 + $0x1f8] sm:$0xff]
    %v8847 = vadd.f32 %v8783, %v8719
    %v8848 = vadd.f32 %v8784, %v8720
    %v8849 = vadd.f32 %v8785, %v8721
    %v8850 = vadd.f32 %v8786, %v8722
    %v8851 = vadd.f32 %v8787, %v8723
    %v8852 = vadd.f32 %v8788, %v8724
    %v8853 = vadd.f32 %v8789, %v8725
    %v8854 = vadd.f32 %v8790, %v8726
    %v8855 = vadd.f32 %v8791, %v8727
    %v8856 = vadd.f32 %v8792, %v8728
    %v8857 = vadd.f32 %v8793, %v8729
    %v8858 = vadd.f32 %v8794, %v8730
    %v8859 = vadd.f32 %v8795, %v8731
    %v8860 = vadd.f32 %v8796, %v8732
    %v8861 = vadd.f32 %v8797, %v8733
    %v8862 = vadd.f32 %v8798, %v8734
    %v8863 = vadd.f32 %v8799, %v8735
    %v8864 = vadd.f32 %v8800, %v8736
    %v8865 = vadd.f32 %v8801, %v8737
    %v8866 = vadd.f32 %v8802, %v8738
    %v8867 = vadd.f32 %v8803, %v8739
    %v8868 = vadd.f32 %v8804, %v8740
    %v8869 = vadd.f32 %v8805, %v8741
    %v8870 = vadd.f32 %v8806, %v8742
    %v8871 = vadd.f32 %v8807, %v8743
    %v8872 = vadd.f32 %v8808, %v8744
    %v8873 = vadd.f32 %v8809, %v8745
    %v8874 = vadd.f32 %v8810, %v8746
    %v8875 = vadd.f32 %v8811, %v8747
    %v8876 = vadd.f32 %v8812, %v8748
    %v8877 = vadd.f32 %v8813, %v8749
    %v8878 = vadd.f32 %v8814, %v8750
    %v8879 = vadd.f32 %v8815, %v8751
    %v8880 = vadd.f32 %v8816, %v8752
    %v8881 = vadd.f32 %v8817, %v8753
    %v8882 = vadd.f32 %v8818, %v8754
    %v8883 = vadd.f32 %v8819, %v8755
    %v8884 = vadd.f32 %v8820, %v8756
    %v8885 = vadd.f32 %v8821, %v8757
    %v8886 = vadd.f32 %v8822, %v8758
    %v8887 = vadd.f32 %v8823, %v8759
    %v8888 = vadd.f32 %v8824, %v8760
    %v8889 = vadd.f32 %v8825, %v8761
    %v8890 = vadd.f32 %v8826, %v8762
    %v8891 = vadd.f32 %v8827, %v8763
    %v8892 = vadd.f32 %v8828, %v8764
    %v8893 = vadd.f32 %v8829, %v8765
    %v8894 = vadd.f32 %v8830, %v8766
    %v8895 = vadd.f32 %v8831, %v8767
    %v8896 = vadd.f32 %v8832, %v8768
    %v8897 = vadd.f32 %v8833, %v8769
    %v8898 = vadd.f32 %v8834, %v8770
    %v8899 = vadd.f32 %v8835, %v8771
    %v8900 = vadd.f32 %v8836, %v8772
    %v8901 = vadd.f32 %v8837, %v8773
    %v8902 = vadd.f32 %v8838, %v8774
    %v8903 = vadd.f32 %v8839, %v8775
    %v8904 = vadd.f32 %v8840, %v8776
    %v8905 = vadd.f32 %v8841, %v8777
    %v8906 = vadd.f32 %v8842, %v8778
    %v8907 = vadd.f32 %v8843, %v8779
    %v8908 = vadd.f32 %v8844, %v8780
    %v8909 = vadd.f32 %v8845, %v8781
    %v8910 = vadd.f32 %v8846, %v8782
    %8911 = vst.msk [vmem:[#allocation5] sm:$0xff] %vm41, %v8847
    %8912 = vst.msk [vmem:[#allocation5 + $0x8] sm:$0xff] %vm41, %v8848
    %8913 = vst.msk [vmem:[#allocation5 + $0x10] sm:$0xff] %vm41, %v8849
    %8914 = vst.msk [vmem:[#allocation5 + $0x18] sm:$0xff] %vm41, %v8850
    %8915 = vst.msk [vmem:[#allocation5 + $0x20] sm:$0xff] %vm41, %v8851
    %8916 = vst.msk [vmem:[#allocation5 + $0x28] sm:$0xff] %vm41, %v8852
    %8917 = vst.msk [vmem:[#allocation5 + $0x30] sm:$0xff] %vm41, %v8853
    %8918 = vst.msk [vmem:[#allocation5 + $0x38] sm:$0xff] %vm41, %v8854
    %8919 = vst.msk [vmem:[#allocation5 + $0x40] sm:$0xff] %vm41, %v8855
    %8920 = vst.msk [vmem:[#allocation5 + $0x48] sm:$0xff] %vm41, %v8856
    %8921 = vst.msk [vmem:[#allocation5 + $0x50] sm:$0xff] %vm41, %v8857
    %8922 = vst.msk [vmem:[#allocation5 + $0x58] sm:$0xff] %vm41, %v8858
    %8923 = vst.msk [vmem:[#allocation5 + $0x60] sm:$0xff] %vm41, %v8859
    %8924 = vst.msk [vmem:[#allocation5 + $0x68] sm:$0xff] %vm41, %v8860
    %8925 = vst.msk [vmem:[#allocation5 + $0x70] sm:$0xff] %vm41, %v8861
    %8926 = vst.msk [vmem:[#allocation5 + $0x78] sm:$0xff] %vm41, %v8862
    %8927 = vst.msk [vmem:[#allocation5 + $0x80] sm:$0xff] %vm41, %v8863
    %8928 = vst.msk [vmem:[#allocation5 + $0x88] sm:$0xff] %vm41, %v8864
    %8929 = vst.msk [vmem:[#allocation5 + $0x90] sm:$0xff] %vm41, %v8865
    %8930 = vst.msk [vmem:[#allocation5 + $0x98] sm:$0xff] %vm41, %v8866
    %8931 = vst.msk [vmem:[#allocation5 + $0xa0] sm:$0xff] %vm41, %v8867
    %8932 = vst.msk [vmem:[#allocation5 + $0xa8] sm:$0xff] %vm41, %v8868
    %8933 = vst.msk [vmem:[#allocation5 + $0xb0] sm:$0xff] %vm41, %v8869
    %8934 = vst.msk [vmem:[#allocation5 + $0xb8] sm:$0xff] %vm41, %v8870
    %8935 = vst.msk [vmem:[#allocation5 + $0xc0] sm:$0xff] %vm41, %v8871
    %8936 = vst.msk [vmem:[#allocation5 + $0xc8] sm:$0xff] %vm41, %v8872
    %8937 = vst.msk [vmem:[#allocation5 + $0xd0] sm:$0xff] %vm41, %v8873
    %8938 = vst.msk [vmem:[#allocation5 + $0xd8] sm:$0xff] %vm41, %v8874
    %8939 = vst.msk [vmem:[#allocation5 + $0xe0] sm:$0xff] %vm41, %v8875
    %8940 = vst.msk [vmem:[#allocation5 + $0xe8] sm:$0xff] %vm41, %v8876
    %8941 = vst.msk [vmem:[#allocation5 + $0xf0] sm:$0xff] %vm41, %v8877
    %8942 = vst.msk [vmem:[#allocation5 + $0xf8] sm:$0xff] %vm41, %v8878
    %8943 = vst.msk [vmem:[#allocation5 + $0x100] sm:$0xff] %vm41, %v8879
    %8944 = vst.msk [vmem:[#allocation5 + $0x108] sm:$0xff] %vm41, %v8880
    %8945 = vst.msk [vmem:[#allocation5 + $0x110] sm:$0xff] %vm41, %v8881
    %8946 = vst.msk [vmem:[#allocation5 + $0x118] sm:$0xff] %vm41, %v8882
    %8947 = vst.msk [vmem:[#allocation5 + $0x120] sm:$0xff] %vm41, %v8883
    %8948 = vst.msk [vmem:[#allocation5 + $0x128] sm:$0xff] %vm41, %v8884
    %8949 = vst.msk [vmem:[#allocation5 + $0x130] sm:$0xff] %vm41, %v8885
    %8950 = vst.msk [vmem:[#allocation5 + $0x138] sm:$0xff] %vm41, %v8886
    %8951 = vst.msk [vmem:[#allocation5 + $0x140] sm:$0xff] %vm41, %v8887
    %8952 = vst.msk [vmem:[#allocation5 + $0x148] sm:$0xff] %vm41, %v8888
    %8953 = vst.msk [vmem:[#allocation5 + $0x150] sm:$0xff] %vm41, %v8889
    %8954 = vst.msk [vmem:[#allocation5 + $0x158] sm:$0xff] %vm41, %v8890
    %8955 = vst.msk [vmem:[#allocation5 + $0x160] sm:$0xff] %vm41, %v8891
    %8956 = vst.msk [vmem:[#allocation5 + $0x168] sm:$0xff] %vm41, %v8892
    %8957 = vst.msk [vmem:[#allocation5 + $0x170] sm:$0xff] %vm41, %v8893
    %8958 = vst.msk [vmem:[#allocation5 + $0x178] sm:$0xff] %vm41, %v8894
    %8959 = vst.msk [vmem:[#allocation5 + $0x180] sm:$0xff] %vm41, %v8895
    %8960 = vst.msk [vmem:[#allocation5 + $0x188] sm:$0xff] %vm41, %v8896
    %8961 = vst.msk [vmem:[#allocation5 + $0x190] sm:$0xff] %vm41, %v8897
    %8962 = vst.msk [vmem:[#allocation5 + $0x198] sm:$0xff] %vm41, %v8898
    %8963 = vst.msk [vmem:[#allocation5 + $0x1a0] sm:$0xff] %vm41, %v8899
    %8964 = vst.msk [vmem:[#allocation5 + $0x1a8] sm:$0xff] %vm41, %v8900
    %8965 = vst.msk [vmem:[#allocation5 + $0x1b0] sm:$0xff] %vm41, %v8901
    %8966 = vst.msk [vmem:[#allocation5 + $0x1b8] sm:$0xff] %vm41, %v8902
    %8967 = vst.msk [vmem:[#allocation5 + $0x1c0] sm:$0xff] %vm41, %v8903
    %8968 = vst.msk [vmem:[#allocation5 + $0x1c8] sm:$0xff] %vm41, %v8904
    %8969 = vst.msk [vmem:[#allocation5 + $0x1d0] sm:$0xff] %vm41, %v8905
    %8970 = vst.msk [vmem:[#allocation5 + $0x1d8] sm:$0xff] %vm41, %v8906
    %8971 = vst.msk [vmem:[#allocation5 + $0x1e0] sm:$0xff] %vm41, %v8907
    %8972 = vst.msk [vmem:[#allocation5 + $0x1e8] sm:$0xff] %vm41, %v8908
    %8973 = vst.msk [vmem:[#allocation5 + $0x1f0] sm:$0xff] %vm41, %v8909
    %8974 = vst.msk [vmem:[#allocation5 + $0x1f8] sm:$0xff] %vm41, %v8910
    // Predicated region
    $region46: #{srgan_resblock.1} parent=1 // pred_check
      _
    $region47: #{srgan_resblock.1} parent=1 // pred_check_branch
      %8976 = sbr.rel (0) target = $region49
    $region48: #{srgan_resblock.1} parent=1 // pred_region
      %s8978 = ssub.s32 8192, 8192
      %8979 = vsyncadd [#allocation6], %s8978
      %s8980 = sshll.u32 [#allocation5], 4
      %s8981 = int_to_ptr.vmem [resolvable:$true] %s8980
      %8986 = dma.vmem_to_hbm [thread:$0]  %s8981, 8192, %s11, [#allocation6], 128, 128, 8
    $region49: #{srgan_resblock.1} parent=1 // pred_fallthru
      _
    // Predicated region
    $region50: #{srgan_resblock.1} parent=1 // pred_check
      _
    $region51: #{srgan_resblock.1} parent=1 // pred_check_branch
      %8988 = sbr.rel (0) target = $region53
    $region52: #{srgan_resblock.1} parent=1 // pred_region
      %8989 = dma.done [#allocation6], 8192
    $region53: #{srgan_resblock.1} parent=1 // pred_fallthru
      _
    %8990 = vsyncpa [#allocation6], 1

</llo_original>
